<compile_context>
chip_gen: v7x
topology: tpu7x:2x2x1
jax: 0.10.0
libtpu: 0.0.40
codegen_flags: <defaults>
</compile_context>

<pallas_src>
import functools

import jax
import jax.numpy as jnp
from jax.experimental import pallas as pl
from jax.experimental.pallas import tpu as pltpu

BN_EPS = 1e-5


# ---------------------------------------------------------------------------
# Fused Pallas kernel
# ---------------------------------------------------------------------------
def _decoder_kernel(x_ref, w0_ref, s0_ref, b0_ref, w1_ref, s1_ref, b1_ref,
                    wf_ref, bf_ref, o_ref, xpad_ref, y0pad_ref, *, H, W):
    HW = H * W
    Cin = x_ref.shape[3]            # 128
    C0 = w0_ref.shape[1]            # 256  (conv0 output channels)

    # --- conv0 input: zero halo + bf16 cast, built in VMEM (no XLA pad) ------
    xpad_ref[...] = jnp.zeros_like(xpad_ref)
    xpad_ref[1:H + 1, 1:W + 1, :] = x_ref[0].astype(jnp.bfloat16)

    # --- conv0: 3x3, Cin -> C0, as ONE matmul with K = 9*Cin -----------------
    taps0 = [xpad_ref[dy:dy + H, dx:dx + W, :].reshape(HW, Cin)
             for dy in range(3) for dx in range(3)]
    patch0 = jnp.concatenate(taps0, axis=1)                      # (HW, 9*Cin)
    acc0 = jnp.dot(patch0, w0_ref[...], preferred_element_type=jnp.float32)
    y0 = jnp.maximum(acc0 * s0_ref[...] + b0_ref[...], 0.0)      # BN + ReLU

    # --- pixel-shuffle #1 is folded into w1; stage y0 on the pre-shuffle grid
    y0pad_ref[...] = jnp.zeros_like(y0pad_ref)
    y0pad_ref[1:H + 1, 1:W + 1, :] = y0.astype(jnp.bfloat16).reshape(H, W, C0)

    # --- conv1' : conv1 composed with pixel-shuffle #1, still on the HxW grid
    taps1 = [y0pad_ref[dy:dy + H, dx:dx + W, :].reshape(HW, C0)
             for dy in range(3) for dx in range(3)]
    patch1 = jnp.concatenate(taps1, axis=1)                      # (HW, 9*C0)
    acc1 = jnp.dot(patch1, w1_ref[...], preferred_element_type=jnp.float32)
    y1 = jnp.maximum(acc1 * s1_ref[...] + b1_ref[...], 0.0)      # (HW, 4*64)

    # --- 1x1 conv composed with pixel-shuffle #2: one lane-packed matmul -----
    z = jnp.dot(y1, wf_ref[...], preferred_element_type=jnp.float32)
    o_ref[0] = z + bf_ref[...]                                   # (HW, 32)


# ---------------------------------------------------------------------------
# Offline weight preparation (BN already folded; compose both pixel shuffles)
# ---------------------------------------------------------------------------
def _phase(par, d):
    """Output parity `par` and 3x3 tap offset `d` (0..2):
    2*r + par + d - 1 == 2*(r + shift) + parity."""
    t = par + d - 1
    i = t % 2
    return i, (t - i) // 2


def prepare_kernel_params(p):
    w0 = p["w0"]                                    # (3,3,Cin,C0) HWIO
    Cin, C0 = w0.shape[2], w0.shape[3]
    C1 = p["w1"].shape[3]                           # 64
    n_out = p["w2"].shape[1]                        # 2
    assert C0 == 4 * C1

    w0cat = w0.reshape(9 * Cin, C0).astype(jnp.bfloat16)
    s0 = p["s0"].reshape(1, C0).astype(jnp.float32)
    b0 = p["b0"].reshape(1, C0).astype(jnp.float32)

    # conv1 o pixel_shuffle(2): 3x3 conv on the pre-shuffle HxW grid with
    # C0 = 256 inputs and 4*C1 outputs (4 = output sub-pixel phases (a, b)).
    w1c = jnp.zeros((3, 3, C0, 4 * C1), jnp.float32)
    for a in range(2):
        for b in range(2):
            for dy in range(3):
                i, dh = _phase(a, dy)
                for dx in range(3):
                    j, dw = _phase(b, dx)
                    w1c = w1c.at[dh + 1, dw + 1, (2 * i + j)::4,
                                 (2 * a + b) * C1:(2 * a + b + 1) * C1
                                 ].set(p["w1"][dy, dx])
    w1cat = w1c.reshape(9 * C0, 4 * C1).astype(jnp.bfloat16)
    s1 = jnp.tile(p["s1"], 4).reshape(1, 4 * C1).astype(jnp.float32)
    b1 = jnp.tile(p["b1"], 4).reshape(1, 4 * C1).astype(jnp.float32)

    # 1x1 conv o pixel_shuffle(2): (4*C1, 32) matrix; column = (a, b, i, j, oc)
    wf = jnp.zeros((4 * C1, 16 * n_out), jnp.float32)
    for a in range(2):
        for b in range(2):
            for i in range(2):
                for j in range(2):
                    col = (((a * 2 + b) * 2 + i) * 2 + j) * n_out
                    row = (2 * a + b) * C1 + 2 * i + j
                    wf = wf.at[row:(2 * a + b + 1) * C1:4,
                               col:col + n_out].set(p["w2"])
    bf = jnp.tile(p["b2"], 16).reshape(1, 16 * n_out).astype(jnp.float32)

    return dict(w0=w0cat, s0=s0, b0=b0, w1=w1cat, s1=s1, b1=b1, wf=wf, bf=bf)


# ---------------------------------------------------------------------------
# Public forward pass (PyTorch semantics: NCHW in -> NCHW out)
# ---------------------------------------------------------------------------
@jax.jit
def pixel_shuffle_decoder(x_nchw, kp):
    N, Cin, H, W = x_nchw.shape
    C0 = kp["s0"].shape[1]                      # 256
    C1c = kp["s1"].shape[1]                     # 256 = 4 * 64
    NC = kp["bf"].shape[1]                      # 32

    x = jnp.transpose(x_nchw, (0, 2, 3, 1))     # NCHW -> NHWC (tiny boundary op)

    kernel = functools.partial(_decoder_kernel, H=H, W=W)
    z = pl.pallas_call(
        kernel,
        out_shape=jax.ShapeDtypeStruct((N, H * W, NC), jnp.float32),
        grid=(N,),
        in_specs=[
            pl.BlockSpec((1, H, W, Cin), lambda n: (n, 0, 0, 0)),
            pl.BlockSpec((9 * Cin, C0), lambda n: (0, 0)),
            pl.BlockSpec((1, C0), lambda n: (0, 0)),
            pl.BlockSpec((1, C0), lambda n: (0, 0)),
            pl.BlockSpec((9 * C0, C1c), lambda n: (0, 0)),
            pl.BlockSpec((1, C1c), lambda n: (0, 0)),
            pl.BlockSpec((1, C1c), lambda n: (0, 0)),
            pl.BlockSpec((C1c, NC), lambda n: (0, 0)),
            pl.BlockSpec((1, NC), lambda n: (0, 0)),
        ],
        out_specs=pl.BlockSpec((1, H * W, NC), lambda n: (n, 0, 0)),
        scratch_shapes=[
            pltpu.VMEM((H + 2, W + 2, Cin), jnp.bfloat16),
            pltpu.VMEM((H + 2, W + 2, C0), jnp.bfloat16),
        ],
        compiler_params=pltpu.CompilerParams(
            dimension_semantics=("parallel",),
            vmem_limit_bytes=32 * 1024 * 1024),
    )(x, kp["w0"], kp["s0"], kp["b0"], kp["w1"], kp["s1"], kp["b1"],
      kp["wf"], kp["bf"])

    # Tiny epilogue: unpack the (a, b, i, j, oc)-packed columns into NCHW.
    # z[n, r*W+s, a*16+b*8+i*4+j*2+oc] == out[n, oc, 4r+2a+i, 4s+2b+j]
    z = z.reshape(N, H, W, 2, 2, 2, 2, 2)
    out = z.transpose(0, 7, 1, 3, 5, 2, 4, 6).reshape(N, 2, 4 * H, 4 * W)
    return out


# ---------------------------------------------------------------------------
# Deterministic synthetic parameters (BN folded into scale/shift)
# ---------------------------------------------------------------------------
def make_params(key, input_feat_dim=128, output_channel=2):
    channel_conf = [256, 64, 16]     # num_upsample == 2

    def conv_bn(key, cin, cout):
        k = jax.random.split(key, 6)
        w = jax.random.normal(k[0], (3, 3, cin, cout), jnp.float32) * 0.05
        bias = jax.random.normal(k[1], (cout,), jnp.float32) * 0.05
        gamma = 1.0 + 0.1 * jax.random.normal(k[2], (cout,), jnp.float32)
        beta = 0.1 * jax.random.normal(k[3], (cout,), jnp.float32)
        mean = 0.1 * jax.random.normal(k[4], (cout,), jnp.float32)
        var = 0.9 + 0.1 * jnp.abs(jax.random.normal(k[5], (cout,), jnp.float32))
        scale = gamma / jnp.sqrt(var + BN_EPS)
        shift = (bias - mean) * scale + beta
        return w, scale, shift

    k0, k1, k2 = jax.random.split(key, 3)
    w0, s0, b0 = conv_bn(k0, input_feat_dim, channel_conf[0])     # 128 -> 256
    w1, s1, b1 = conv_bn(k1, channel_conf[1], channel_conf[1])    # 64 -> 64
    kw, kb = jax.random.split(k2)
    w2 = jax.random.normal(kw, (channel_conf[2], output_channel),
                           jnp.float32) * 0.1                     # 1x1: 16 -> 2
    b2 = jax.random.normal(kb, (output_channel,), jnp.float32) * 0.05
    return dict(w0=w0, s0=s0, b0=b0, w1=w1, s1=s1, b1=b1, w2=w2, b2=b2)


# ---------------------------------------------------------------------------
# Plain-JAX reference (same math & MXU precision) for cross-checking
# ---------------------------------------------------------------------------
def pixel_shuffle_nhwc(x, r=2):
    N, H, W, C = x.shape
    c = C // (r * r)
    x = x.reshape(N, H, W, c, r, r)
    x = x.transpose(0, 1, 4, 2, 5, 3)
    return x.reshape(N, H * r, W * r, c)


def reference_forward(x_nchw, p):
    x = jnp.transpose(x_nchw, (0, 2, 3, 1))

    def conv3x3(x, w):
        return jax.lax.conv_general_dilated(
            x.astype(jnp.bfloat16), w.astype(jnp.bfloat16), (1, 1), "SAME",
            dimension_numbers=("NHWC", "HWIO", "NHWC"),
            preferred_element_type=jnp.float32)

    y = jnp.maximum(conv3x3(x, p["w0"]) * p["s0"] + p["b0"], 0.0)
    y = pixel_shuffle_nhwc(y, 2)
    y = jnp.maximum(conv3x3(y, p["w1"]) * p["s1"] + p["b1"], 0.0)
    y = pixel_shuffle_nhwc(y, 2)
    y = jnp.einsum("nhwc,co->nhwo", y, p["w2"]) + p["b2"]
    return jnp.transpose(y, (0, 3, 1, 2))


# ---------------------------------------------------------------------------
if __name__ == "__main__":
    key = jax.random.PRNGKey(0)
    kx, kp_key = jax.random.split(key)

    N, C, H, W = 2, 128, 16, 16      # input_feat_dim=128 required by the module
    x = jax.random.normal(kx, (N, C, H, W), jnp.float32)

    params = make_params(kp_key)
    kparams = prepare_kernel_params(params)

    out = jax.block_until_ready(pixel_shuffle_decoder(x, kparams))
    assert out.shape == (N, 2, 4 * H, 4 * W), out.shape
    assert out.dtype == jnp.float32

    ref = jax.block_until_ready(reference_forward(x, params))
    if not jnp.allclose(out, ref, atol=2e-2, rtol=2e-2):
        err = float(jnp.max(jnp.abs(out - ref)))
        raise AssertionError(f"Pallas output != reference (max abs err {err})")

    print("KERNEL_OK")
</pallas_src>

<mosaic_0001>
module attributes {stable_mosaic.version = 11 : i64} {
  func.func @_decoder_kernel(%arg0: i32, %arg1: memref<1x16x16x128xf32, #tpu.memory_space<vmem>>, %arg2: memref<1152x256xbf16, #tpu.memory_space<vmem>>, %arg3: memref<1x256xf32, #tpu.memory_space<vmem>>, %arg4: memref<1x256xf32, #tpu.memory_space<vmem>>, %arg5: memref<2304x256xbf16, #tpu.memory_space<vmem>>, %arg6: memref<1x256xf32, #tpu.memory_space<vmem>>, %arg7: memref<1x256xf32, #tpu.memory_space<vmem>>, %arg8: memref<256x32xf32, #tpu.memory_space<vmem>>, %arg9: memref<1x32xf32, #tpu.memory_space<vmem>>, %arg10: memref<1x256x32xf32, #tpu.memory_space<vmem>>, %arg11: memref<18x18x128xbf16, #tpu.memory_space<vmem>>, %arg12: memref<18x18x256xbf16, #tpu.memory_space<vmem>>) attributes {dimension_semantics = [#tpu.dimension_semantics<parallel>], iteration_bounds = array<i64: 2>, scalar_prefetch = 0 : i64, scratch_operands = 2 : i64, tpu.core_type = #tpu.core_type<tc>, window_params = [{transform_indices = @transform_0, window_bounds = array<i64: 1, 16, 16, 128>}, {pipeline_mode = #tpu.pipeline_mode<synchronous>, transform_indices = @transform_1, window_bounds = array<i64: 1152, 256>}, {pipeline_mode = #tpu.pipeline_mode<synchronous>, transform_indices = @transform_2, window_bounds = array<i64: 1, 256>}, {pipeline_mode = #tpu.pipeline_mode<synchronous>, transform_indices = @transform_3, window_bounds = array<i64: 1, 256>}, {pipeline_mode = #tpu.pipeline_mode<synchronous>, transform_indices = @transform_4, window_bounds = array<i64: 2304, 256>}, {pipeline_mode = #tpu.pipeline_mode<synchronous>, transform_indices = @transform_5, window_bounds = array<i64: 1, 256>}, {pipeline_mode = #tpu.pipeline_mode<synchronous>, transform_indices = @transform_6, window_bounds = array<i64: 1, 256>}, {pipeline_mode = #tpu.pipeline_mode<synchronous>, transform_indices = @transform_7, window_bounds = array<i64: 256, 32>}, {pipeline_mode = #tpu.pipeline_mode<synchronous>, transform_indices = @transform_8, window_bounds = array<i64: 1, 32>}, {transform_indices = @transform_9, window_bounds = array<i64: 1, 256, 32>}]} {
    %cst = arith.constant 0.000000e+00 : bf16
    %0 = vector.broadcast %cst : bf16 to vector<18x18x128xbf16>
    %c0 = arith.constant 0 : index
    %c0_0 = arith.constant 0 : index
    %c0_1 = arith.constant 0 : index
    %1 = vector.load %arg11[%c0, %c0_0, %c0_1] : memref<18x18x128xbf16, #tpu.memory_space<vmem>>, vector<18x18x128xbf16>
    tpu.vector_store %arg11[%c0, %c0_0, %c0_1], %0 {strides = array<i32>} : memref<18x18x128xbf16, #tpu.memory_space<vmem>>, vector<18x18x128xbf16>,
    %c0_2 = arith.constant 0 : index
    %c0_3 = arith.constant 0 : index
    %c0_4 = arith.constant 0 : index
    %c0_5 = arith.constant 0 : index
    %2 = vector.load %arg1[%c0_2, %c0_3, %c0_4, %c0_5] : memref<1x16x16x128xf32, #tpu.memory_space<vmem>>, vector<1x16x16x128xf32>
    %3 = vector.shape_cast %2 : vector<1x16x16x128xf32> to vector<16x16x128xf32>
    %4 = arith.truncf %3 : vector<16x16x128xf32> to vector<16x16x128xbf16>
    %c1 = arith.constant 1 : index
    %c1_6 = arith.constant 1 : index
    %c0_7 = arith.constant 0 : index
    %5 = vector.load %arg11[%c1, %c1_6, %c0_7] : memref<18x18x128xbf16, #tpu.memory_space<vmem>>, vector<16x16x128xbf16>
    tpu.vector_store %arg11[%c1, %c1_6, %c0_7], %4 {strides = array<i32>} : memref<18x18x128xbf16, #tpu.memory_space<vmem>>, vector<16x16x128xbf16>,
    %c0_8 = arith.constant 0 : index
    %c0_9 = arith.constant 0 : index
    %c0_10 = arith.constant 0 : index
    %6 = vector.load %arg11[%c0_8, %c0_9, %c0_10] : memref<18x18x128xbf16, #tpu.memory_space<vmem>>, vector<16x16x128xbf16>
    %7 = vector.shape_cast %6 : vector<16x16x128xbf16> to vector<256x128xbf16>
    %c0_11 = arith.constant 0 : index
    %c1_12 = arith.constant 1 : index
    %c0_13 = arith.constant 0 : index
    %8 = vector.load %arg11[%c0_11, %c1_12, %c0_13] : memref<18x18x128xbf16, #tpu.memory_space<vmem>>, vector<16x16x128xbf16>
    %9 = vector.shape_cast %8 : vector<16x16x128xbf16> to vector<256x128xbf16>
    %c0_14 = arith.constant 0 : index
    %c2 = arith.constant 2 : index
    %c0_15 = arith.constant 0 : index
    %10 = vector.load %arg11[%c0_14, %c2, %c0_15] : memref<18x18x128xbf16, #tpu.memory_space<vmem>>, vector<16x16x128xbf16>
    %11 = vector.shape_cast %10 : vector<16x16x128xbf16> to vector<256x128xbf16>
    %c1_16 = arith.constant 1 : index
    %c0_17 = arith.constant 0 : index
    %c0_18 = arith.constant 0 : index
    %12 = vector.load %arg11[%c1_16, %c0_17, %c0_18] : memref<18x18x128xbf16, #tpu.memory_space<vmem>>, vector<16x16x128xbf16>
    %13 = vector.shape_cast %12 : vector<16x16x128xbf16> to vector<256x128xbf16>
    %c1_19 = arith.constant 1 : index
    %c1_20 = arith.constant 1 : index
    %c0_21 = arith.constant 0 : index
    %14 = vector.load %arg11[%c1_19, %c1_20, %c0_21] : memref<18x18x128xbf16, #tpu.memory_space<vmem>>, vector<16x16x128xbf16>
    %15 = vector.shape_cast %14 : vector<16x16x128xbf16> to vector<256x128xbf16>
    %c1_22 = arith.constant 1 : index
    %c2_23 = arith.constant 2 : index
    %c0_24 = arith.constant 0 : index
    %16 = vector.load %arg11[%c1_22, %c2_23, %c0_24] : memref<18x18x128xbf16, #tpu.memory_space<vmem>>, vector<16x16x128xbf16>
    %17 = vector.shape_cast %16 : vector<16x16x128xbf16> to vector<256x128xbf16>
    %c2_25 = arith.constant 2 : index
    %c0_26 = arith.constant 0 : index
    %c0_27 = arith.constant 0 : index
    %18 = vector.load %arg11[%c2_25, %c0_26, %c0_27] : memref<18x18x128xbf16, #tpu.memory_space<vmem>>, vector<16x16x128xbf16>
    %19 = vector.shape_cast %18 : vector<16x16x128xbf16> to vector<256x128xbf16>
    %c2_28 = arith.constant 2 : index
    %c1_29 = arith.constant 1 : index
    %c0_30 = arith.constant 0 : index
    %20 = vector.load %arg11[%c2_28, %c1_29, %c0_30] : memref<18x18x128xbf16, #tpu.memory_space<vmem>>, vector<16x16x128xbf16>
    %21 = vector.shape_cast %20 : vector<16x16x128xbf16> to vector<256x128xbf16>
    %c2_31 = arith.constant 2 : index
    %c2_32 = arith.constant 2 : index
    %c0_33 = arith.constant 0 : index
    %22 = vector.load %arg11[%c2_31, %c2_32, %c0_33] : memref<18x18x128xbf16, #tpu.memory_space<vmem>>, vector<16x16x128xbf16>
    %23 = vector.shape_cast %22 : vector<16x16x128xbf16> to vector<256x128xbf16>
    %24 = tpu.concatenate %7, %9, %11, %13, %15, %17, %19, %21, %23 in 1 : vector<256x128xbf16>, vector<256x128xbf16>, vector<256x128xbf16>, vector<256x128xbf16>, vector<256x128xbf16>, vector<256x128xbf16>, vector<256x128xbf16>, vector<256x128xbf16>, vector<256x128xbf16> -> vector<256x1152xbf16>
    %c0_34 = arith.constant 0 : index
    %c0_35 = arith.constant 0 : index
    %25 = vector.load %arg2[%c0_34, %c0_35] : memref<1152x256xbf16, #tpu.memory_space<vmem>>, vector<1152x256xbf16>
    %cst_36 = arith.constant dense<0.000000e+00> : vector<256x256xf32>
    %26 = tpu.matmul %24, %25, %cst_36 {dimension_numbers = #tpu.dot_dimension_numbers<[1], [0], [0], [1], [0, 0, 1, 1], [], []>} : vector<256x1152xbf16>, vector<1152x256xbf16>, vector<256x256xf32> -> vector<256x256xf32>
    %c0_37 = arith.constant 0 : index
    %c0_38 = arith.constant 0 : index
    %27 = vector.load %arg3[%c0_37, %c0_38] : memref<1x256xf32, #tpu.memory_space<vmem>>, vector<1x256xf32>
    %28 = vector.broadcast %27 : vector<1x256xf32> to vector<256x256xf32>
    %29 = arith.mulf %26, %28 : vector<256x256xf32>
    %c0_39 = arith.constant 0 : index
    %c0_40 = arith.constant 0 : index
    %30 = vector.load %arg4[%c0_39, %c0_40] : memref<1x256xf32, #tpu.memory_space<vmem>>, vector<1x256xf32>
    %31 = vector.broadcast %30 : vector<1x256xf32> to vector<256x256xf32>
    %32 = arith.addf %29, %31 : vector<256x256xf32>
    %cst_41 = arith.constant 0.000000e+00 : f32
    %33 = vector.broadcast %cst_41 : f32 to vector<256x256xf32>
    %34 = arith.maximumf %32, %33 : vector<256x256xf32>
    %cst_42 = arith.constant 0.000000e+00 : bf16
    %35 = vector.broadcast %cst_42 : bf16 to vector<18x18x256xbf16>
    %c0_43 = arith.constant 0 : index
    %c0_44 = arith.constant 0 : index
    %c0_45 = arith.constant 0 : index
    %36 = vector.load %arg12[%c0_43, %c0_44, %c0_45] : memref<18x18x256xbf16, #tpu.memory_space<vmem>>, vector<18x18x256xbf16>
    tpu.vector_store %arg12[%c0_43, %c0_44, %c0_45], %35 {strides = array<i32>} : memref<18x18x256xbf16, #tpu.memory_space<vmem>>, vector<18x18x256xbf16>,
    %37 = arith.truncf %34 : vector<256x256xf32> to vector<256x256xbf16>
    %38 = vector.shape_cast %37 : vector<256x256xbf16> to vector<16x16x256xbf16>
    %c1_46 = arith.constant 1 : index
    %c1_47 = arith.constant 1 : index
    %c0_48 = arith.constant 0 : index
    %39 = vector.load %arg12[%c1_46, %c1_47, %c0_48] : memref<18x18x256xbf16, #tpu.memory_space<vmem>>, vector<16x16x256xbf16>
    tpu.vector_store %arg12[%c1_46, %c1_47, %c0_48], %38 {strides = array<i32>} : memref<18x18x256xbf16, #tpu.memory_space<vmem>>, vector<16x16x256xbf16>,
    %c0_49 = arith.constant 0 : index
    %c0_50 = arith.constant 0 : index
    %c0_51 = arith.constant 0 : index
    %40 = vector.load %arg12[%c0_49, %c0_50, %c0_51] : memref<18x18x256xbf16, #tpu.memory_space<vmem>>, vector<16x16x256xbf16>
    %41 = vector.shape_cast %40 : vector<16x16x256xbf16> to vector<256x256xbf16>
    %c0_52 = arith.constant 0 : index
    %c1_53 = arith.constant 1 : index
    %c0_54 = arith.constant 0 : index
    %42 = vector.load %arg12[%c0_52, %c1_53, %c0_54] : memref<18x18x256xbf16, #tpu.memory_space<vmem>>, vector<16x16x256xbf16>
    %43 = vector.shape_cast %42 : vector<16x16x256xbf16> to vector<256x256xbf16>
    %c0_55 = arith.constant 0 : index
    %c2_56 = arith.constant 2 : index
    %c0_57 = arith.constant 0 : index
    %44 = vector.load %arg12[%c0_55, %c2_56, %c0_57] : memref<18x18x256xbf16, #tpu.memory_space<vmem>>, vector<16x16x256xbf16>
    %45 = vector.shape_cast %44 : vector<16x16x256xbf16> to vector<256x256xbf16>
    %c1_58 = arith.constant 1 : index
    %c0_59 = arith.constant 0 : index
    %c0_60 = arith.constant 0 : index
    %46 = vector.load %arg12[%c1_58, %c0_59, %c0_60] : memref<18x18x256xbf16, #tpu.memory_space<vmem>>, vector<16x16x256xbf16>
    %47 = vector.shape_cast %46 : vector<16x16x256xbf16> to vector<256x256xbf16>
    %c1_61 = arith.constant 1 : index
    %c1_62 = arith.constant 1 : index
    %c0_63 = arith.constant 0 : index
    %48 = vector.load %arg12[%c1_61, %c1_62, %c0_63] : memref<18x18x256xbf16, #tpu.memory_space<vmem>>, vector<16x16x256xbf16>
    %49 = vector.shape_cast %48 : vector<16x16x256xbf16> to vector<256x256xbf16>
    %c1_64 = arith.constant 1 : index
    %c2_65 = arith.constant 2 : index
    %c0_66 = arith.constant 0 : index
    %50 = vector.load %arg12[%c1_64, %c2_65, %c0_66] : memref<18x18x256xbf16, #tpu.memory_space<vmem>>, vector<16x16x256xbf16>
    %51 = vector.shape_cast %50 : vector<16x16x256xbf16> to vector<256x256xbf16>
    %c2_67 = arith.constant 2 : index
    %c0_68 = arith.constant 0 : index
    %c0_69 = arith.constant 0 : index
    %52 = vector.load %arg12[%c2_67, %c0_68, %c0_69] : memref<18x18x256xbf16, #tpu.memory_space<vmem>>, vector<16x16x256xbf16>
    %53 = vector.shape_cast %52 : vector<16x16x256xbf16> to vector<256x256xbf16>
    %c2_70 = arith.constant 2 : index
    %c1_71 = arith.constant 1 : index
    %c0_72 = arith.constant 0 : index
    %54 = vector.load %arg12[%c2_70, %c1_71, %c0_72] : memref<18x18x256xbf16, #tpu.memory_space<vmem>>, vector<16x16x256xbf16>
    %55 = vector.shape_cast %54 : vector<16x16x256xbf16> to vector<256x256xbf16>
    %c2_73 = arith.constant 2 : index
    %c2_74 = arith.constant 2 : index
    %c0_75 = arith.constant 0 : index
    %56 = vector.load %arg12[%c2_73, %c2_74, %c0_75] : memref<18x18x256xbf16, #tpu.memory_space<vmem>>, vector<16x16x256xbf16>
    %57 = vector.shape_cast %56 : vector<16x16x256xbf16> to vector<256x256xbf16>
    %58 = tpu.concatenate %41, %43, %45, %47, %49, %51, %53, %55, %57 in 1 : vector<256x256xbf16>, vector<256x256xbf16>, vector<256x256xbf16>, vector<256x256xbf16>, vector<256x256xbf16>, vector<256x256xbf16>, vector<256x256xbf16>, vector<256x256xbf16>, vector<256x256xbf16> -> vector<256x2304xbf16>
    %c0_76 = arith.constant 0 : index
    %c0_77 = arith.constant 0 : index
    %59 = vector.load %arg5[%c0_76, %c0_77] : memref<2304x256xbf16, #tpu.memory_space<vmem>>, vector<2304x256xbf16>
    %cst_78 = arith.constant dense<0.000000e+00> : vector<256x256xf32>
    %60 = tpu.matmul %58, %59, %cst_78 {dimension_numbers = #tpu.dot_dimension_numbers<[1], [0], [0], [1], [0, 0, 1, 1], [], []>} : vector<256x2304xbf16>, vector<2304x256xbf16>, vector<256x256xf32> -> vector<256x256xf32>
    %c0_79 = arith.constant 0 : index
    %c0_80 = arith.constant 0 : index
    %61 = vector.load %arg6[%c0_79, %c0_80] : memref<1x256xf32, #tpu.memory_space<vmem>>, vector<1x256xf32>
    %62 = vector.broadcast %61 : vector<1x256xf32> to vector<256x256xf32>
    %63 = arith.mulf %60, %62 : vector<256x256xf32>
    %c0_81 = arith.constant 0 : index
    %c0_82 = arith.constant 0 : index
    %64 = vector.load %arg7[%c0_81, %c0_82] : memref<1x256xf32, #tpu.memory_space<vmem>>, vector<1x256xf32>
    %65 = vector.broadcast %64 : vector<1x256xf32> to vector<256x256xf32>
    %66 = arith.addf %63, %65 : vector<256x256xf32>
    %cst_83 = arith.constant 0.000000e+00 : f32
    %67 = vector.broadcast %cst_83 : f32 to vector<256x256xf32>
    %68 = arith.maximumf %66, %67 : vector<256x256xf32>
    %c0_84 = arith.constant 0 : index
    %c0_85 = arith.constant 0 : index
    %69 = vector.load %arg8[%c0_84, %c0_85] : memref<256x32xf32, #tpu.memory_space<vmem>>, vector<256x32xf32>
    %cst_86 = arith.constant dense<0.000000e+00> : vector<256x32xf32>
    %70 = tpu.matmul %68, %69, %cst_86 {dimension_numbers = #tpu.dot_dimension_numbers<[1], [0], [0], [1], [0, 0, 1, 1], [], []>} : vector<256x256xf32>, vector<256x32xf32>, vector<256x32xf32> -> vector<256x32xf32>
    %c0_87 = arith.constant 0 : index
    %c0_88 = arith.constant 0 : index
    %71 = vector.load %arg9[%c0_87, %c0_88] : memref<1x32xf32, #tpu.memory_space<vmem>>, vector<1x32xf32>
    %72 = vector.broadcast %71 : vector<1x32xf32> to vector<256x32xf32>
    %73 = arith.addf %70, %72 : vector<256x32xf32>
    %c0_89 = arith.constant 0 : index
    %c0_90 = arith.constant 0 : index
    %c0_91 = arith.constant 0 : index
    %74 = vector.load %arg10[%c0_89, %c0_90, %c0_91] : memref<1x256x32xf32, #tpu.memory_space<vmem>>, vector<1x256x32xf32>
    %75 = vector.shape_cast %74 : vector<1x256x32xf32> to vector<256x32xf32>
    %76 = vector.shape_cast %73 : vector<256x32xf32> to vector<1x256x32xf32>
    tpu.vector_store %arg10[%c0_89, %c0_90, %c0_91], %76 {strides = array<i32>} : memref<1x256x32xf32, #tpu.memory_space<vmem>>, vector<1x256x32xf32>,
    return
  }
  func.func @transform_0(%arg0: i32) -> (i32, i32, i32, i32) {
    %c0_i32 = arith.constant 0 : i32
    %c0_i32_0 = arith.constant 0 : i32
    %c0_i32_1 = arith.constant 0 : i32
    %c0_i32_2 = arith.constant 0 : i32
    return %arg0, %c0_i32, %c0_i32_0, %c0_i32_1 : i32, i32, i32, i32
  }
  func.func @transform_1(%arg0: i32) -> (i32, i32) {
    %c0_i32 = arith.constant 0 : i32
    %c0_i32_0 = arith.constant 0 : i32
    %c0_i32_1 = arith.constant 0 : i32
    return %c0_i32, %c0_i32_0 : i32, i32
  }
  func.func @transform_2(%arg0: i32) -> (i32, i32) {
    %c0_i32 = arith.constant 0 : i32
    %c0_i32_0 = arith.constant 0 : i32
    %c0_i32_1 = arith.constant 0 : i32
    return %c0_i32, %c0_i32_0 : i32, i32
  }
  func.func @transform_3(%arg0: i32) -> (i32, i32) {
    %c0_i32 = arith.constant 0 : i32
    %c0_i32_0 = arith.constant 0 : i32
    %c0_i32_1 = arith.constant 0 : i32
    return %c0_i32, %c0_i32_0 : i32, i32
  }
  func.func @transform_4(%arg0: i32) -> (i32, i32) {
    %c0_i32 = arith.constant 0 : i32
    %c0_i32_0 = arith.constant 0 : i32
    %c0_i32_1 = arith.constant 0 : i32
    return %c0_i32, %c0_i32_0 : i32, i32
  }
  func.func @transform_5(%arg0: i32) -> (i32, i32) {
    %c0_i32 = arith.constant 0 : i32
    %c0_i32_0 = arith.constant 0 : i32
    %c0_i32_1 = arith.constant 0 : i32
    return %c0_i32, %c0_i32_0 : i32, i32
  }
  func.func @transform_6(%arg0: i32) -> (i32, i32) {
    %c0_i32 = arith.constant 0 : i32
    %c0_i32_0 = arith.constant 0 : i32
    %c0_i32_1 = arith.constant 0 : i32
    return %c0_i32, %c0_i32_0 : i32, i32
  }
  func.func @transform_7(%arg0: i32) -> (i32, i32) {
    %c0_i32 = arith.constant 0 : i32
    %c0_i32_0 = arith.constant 0 : i32
    %c0_i32_1 = arith.constant 0 : i32
    return %c0_i32, %c0_i32_0 : i32, i32
  }
  func.func @transform_8(%arg0: i32) -> (i32, i32) {
    %c0_i32 = arith.constant 0 : i32
    %c0_i32_0 = arith.constant 0 : i32
    %c0_i32_1 = arith.constant 0 : i32
    return %c0_i32, %c0_i32_0 : i32, i32
  }
  func.func @transform_9(%arg0: i32) -> (i32, i32, i32) {
    %c0_i32 = arith.constant 0 : i32
    %c0_i32_0 = arith.constant 0 : i32
    %c0_i32_1 = arith.constant 0 : i32
    return %arg0, %c0_i32, %c0_i32_0 : i32, i32, i32
  }
}

</mosaic_0001>

<llo_original>
// kernel: pixel_shuffle_decoder.1
$region0: #{pixel_shuffle_decoder.1}
  #allocation0 [shape = 'u32[]', space=smem, size = 0x4, offset = 0x4, fixed_abs, tag = 'smem constant byte address 0x4 - core index']
  #allocation1 [shape = 'u32[144,128]{1,0:T(1,128)}', space=vmem, size = 0x12000, scoped, tag = 'internal scratch']
  #allocation2 [shape = 'bf16[18,18,128]{2,1,0:T(8,128)(2,1)}', space=vmem, size = 0x1b000, scoped, tag = 'scratch operand']
  #allocation3 [shape = 'bf16[18,18,256]{2,1,0:T(8,128)(2,1)}', space=vmem, size = 0x36000, scoped, tag = 'scratch operand']
  %s0 = inlined_call_operand.hbm [shape: f32[2,16,16,128], index: 0, kind: input, shape index: {}]
  %s1 = inlined_call_operand.hbm [shape: bf16[1152,256], index: 1, kind: input, shape index: {}]
  %s2 = inlined_call_operand.hbm [shape: f32[1,256], index: 2, kind: input, shape index: {}]
  %s3 = inlined_call_operand.hbm [shape: f32[1,256], index: 3, kind: input, shape index: {}]
  %s4 = inlined_call_operand.hbm [shape: bf16[2304,256], index: 4, kind: input, shape index: {}]
  %s5 = inlined_call_operand.hbm [shape: f32[1,256], index: 5, kind: input, shape index: {}]
  %s6 = inlined_call_operand.hbm [shape: f32[1,256], index: 6, kind: input, shape index: {}]
  %s7 = inlined_call_operand.vmem [shape: f32[256,32], index: 7, kind: input, shape index: {}]
  %s8 = inlined_call_operand.hbm [shape: f32[1,32], index: 8, kind: input, shape index: {}]
  %s9 = inlined_call_operand.vmem [shape: f32[2,256,32], index: 9, kind: output, shape index: {}]
  %s10 = sld [smem:[#allocation0]]
  $region101: #{pixel_shuffle_decoder.1} parent=0
    _
  %s12 = ssub.s32 1, %s10
  %s13 = scalar_select 0, %s12, %s10
  $region1: #{pixel_shuffle_decoder.1} parent=0
    #allocation4 [shape = 'u8[262144]{0}', space=vmem, size = 0x40000, scoped, tag = 'input window, operand 0']
    #allocation5 [shape = 's32[2]{0}', space=sflag, size = 0x8, scoped, tag = 'scoped memory for pixel_shuffle_decoder.1']
    #allocation6 [shape = 'u8[589824]{0}', space=vmem, size = 0x90000, scoped, tag = 'input window, operand 1, single buffered']
    #allocation7 [shape = 's32[1]{0}', space=sflag, size = 0x4, scoped, tag = 'scoped memory for pixel_shuffle_decoder.1']
    #allocation8 [shape = 'u8[1024]{0}', space=vmem, size = 0x400, scoped, tag = 'input window, operand 2, single buffered']
    #allocation9 [shape = 'u8[1024]{0}', space=vmem, size = 0x400, scoped, tag = 'input window, operand 3, single buffered']
    #allocation10 [shape = 's32[1]{0}', space=sflag, size = 0x4, scoped, tag = 'scoped memory for pixel_shuffle_decoder.1']
    #allocation11 [shape = 'u8[1179648]{0}', space=vmem, size = 0x120000, scoped, tag = 'input window, operand 4, single buffered']
    #allocation12 [shape = 'u8[1024]{0}', space=vmem, size = 0x400, scoped, tag = 'input window, operand 5, single buffered']
    #allocation13 [shape = 's32[1]{0}', space=sflag, size = 0x4, scoped, tag = 'scoped memory for pixel_shuffle_decoder.1']
    #allocation14 [shape = 'u8[1024]{0}', space=vmem, size = 0x400, scoped, tag = 'input window, operand 6, single buffered']
    #allocation15 [shape = 'u8[512]{0}', space=vmem, size = 0x400, scoped, tag = 'input window, operand 8, single buffered']
    #allocation16 [shape = 's32[1]{0}', space=sflag, size = 0x4, scoped, tag = 'scoped memory for pixel_shuffle_decoder.1']
    %14 = vsyncpa [#allocation5], 0
    %s15 = scalar_lea.sflag [#allocation5], 1
    %16 = vsyncpa %s15, 0
    %17 = vsyncpa [#allocation7], 0
    %18 = vsyncpa [#allocation10], 0
    %19 = vsyncpa [#allocation13], 0
    %20 = vsyncpa [#allocation16], 0
    loop: start=0, step=1, limit=4
    $region2: #{pixel_shuffle_decoder.1} parent=1 // loop_pre_header
      _
    $region3: #{pixel_shuffle_decoder.1} parent=1 // loop_header
      %s22 = sphi 0, %s26
      %p23 = scmp.ge.s32.totalorder %s22, 4
      %s32 = sphi 0, %s34
      %s35 = sphi 0, %s32
      %s36 = sphi 0, %s35
      %s52 = sphi 0, %s36
      %s56 = sphi 0, %s56
      %s58 = sphi 0, %s56
      %s59 = sphi 0, %s58
      %s73 = sphi 0, %s59
      %s77 = sphi 0, %s77
      %s79 = sphi 0, %s77
      %s80 = sphi 0, %s79
      %s94 = sphi 0, %s80
      %s98 = sphi 0, %s98
      %s100 = sphi 0, %s98
      %s101 = sphi 0, %s100
      %s115 = sphi 0, %s101
      %s119 = sphi 0, %s119
      %s121 = sphi 0, %s119
      %s122 = sphi 0, %s121
      %s136 = sphi 0, %s122
      %s140 = sphi 0, %s140
      %s142 = sphi 0, %s140
      %s143 = sphi 0, %s142
      %s157 = sphi 0, %s143
      %s161 = sphi 0, %s161
      %s163 = sphi 0, %s161
      %s164 = sphi 0, %s163
      %s178 = sphi 0, %s164
      %s182 = sphi 0, %s182
      %s184 = sphi 0, %s182
      %s185 = sphi 0, %s184
      %s199 = sphi 0, %s185
      %s203 = sphi 0, %s203
      %s205 = sphi 0, %s203
      %s206 = sphi 0, %s205
      %s220 = sphi 0, %s206
      %s226 = sphi 0, %s228
      %s229 = sphi 0, %s226
      %s230 = sphi 0, %s229
      %s246 = sphi 0, %s230
    $region4: #{pixel_shuffle_decoder.1} parent=1 // loop_header_branch
      %25 = sbr.rel (%p23) target = $region8
    $region5: #{pixel_shuffle_decoder.1} parent=1 // loop_body
      %s27 = ssub.s32 %s22, 1
      %s28 = ssub.s32 %s22, 2
      %s29 = sadd.s32 %s22, 1
      %s30 = ssub.s32 %s22, %s29
      %p31 = scmp.eq.s32.totalorder %s30, 0
      %s33 = sadd.s32 %s32, 1
      %s34 = scalar_select %p31, %s32, %s33
      %p37 = pneg %p31
      %p38 = scmp.eq.s32.totalorder %s22, 1
      %p39 = por %p37, %p38
      %p40 = scmp.ne.s32.totalorder %s32, %s35
      %p41 = scmp.eq.s32.totalorder %s22, 0
      %p42 = por %p40, %p41
      %p43 = scmp.ne.s32.totalorder %s32, %s35
      %p44 = scmp.eq.s32.totalorder %s27, 1
      %p45 = por %p43, %p44
      %p46 = scmp.ne.s32.totalorder %s35, %s36
      %p47 = scmp.eq.s32.totalorder %s27, 0
      %p48 = por %p46, %p47
      %p49 = scmp.ne.s32.totalorder %s35, %s36
      %p50 = scmp.eq.s32.totalorder %s28, 1
      %p51 = por %p49, %p50
      %p53 = scmp.ne.s32.totalorder %s36, %s52
      %p54 = scmp.eq.s32.totalorder %s28, 0
      %p55 = por %p53, %p54
      %s57 = sadd.s32 %s56, 1
      %p60 = scmp.eq.s32.totalorder %s22, 1
      %p61 = scmp.ne.s32.totalorder %s56, %s58
      %p62 = scmp.eq.s32.totalorder %s22, 0
      %p63 = por %p61, %p62
      %p64 = scmp.ne.s32.totalorder %s56, %s58
      %p65 = scmp.eq.s32.totalorder %s27, 1
      %p66 = por %p64, %p65
      %p67 = scmp.ne.s32.totalorder %s58, %s59
      %p68 = scmp.eq.s32.totalorder %s27, 0
      %p69 = por %p67, %p68
      %p70 = scmp.ne.s32.totalorder %s58, %s59
      %p71 = scmp.eq.s32.totalorder %s28, 1
      %p72 = por %p70, %p71
      %p74 = scmp.ne.s32.totalorder %s59, %s73
      %p75 = scmp.eq.s32.totalorder %s28, 0
      %p76 = por %p74, %p75
      %s78 = sadd.s32 %s77, 1
      %p81 = scmp.eq.s32.totalorder %s22, 1
      %p82 = scmp.ne.s32.totalorder %s77, %s79
      %p83 = scmp.eq.s32.totalorder %s22, 0
      %p84 = por %p82, %p83
      %p85 = scmp.ne.s32.totalorder %s77, %s79
      %p86 = scmp.eq.s32.totalorder %s27, 1
      %p87 = por %p85, %p86
      %p88 = scmp.ne.s32.totalorder %s79, %s80
      %p89 = scmp.eq.s32.totalorder %s27, 0
      %p90 = por %p88, %p89
      %p91 = scmp.ne.s32.totalorder %s79, %s80
      %p92 = scmp.eq.s32.totalorder %s28, 1
      %p93 = por %p91, %p92
      %p95 = scmp.ne.s32.totalorder %s80, %s94
      %p96 = scmp.eq.s32.totalorder %s28, 0
      %p97 = por %p95, %p96
      %s99 = sadd.s32 %s98, 1
      %p102 = scmp.eq.s32.totalorder %s22, 1
      %p103 = scmp.ne.s32.totalorder %s98, %s100
      %p104 = scmp.eq.s32.totalorder %s22, 0
      %p105 = por %p103, %p104
      %p106 = scmp.ne.s32.totalorder %s98, %s100
      %p107 = scmp.eq.s32.totalorder %s27, 1
      %p108 = por %p106, %p107
      %p109 = scmp.ne.s32.totalorder %s100, %s101
      %p110 = scmp.eq.s32.totalorder %s27, 0
      %p111 = por %p109, %p110
      %p112 = scmp.ne.s32.totalorder %s100, %s101
      %p113 = scmp.eq.s32.totalorder %s28, 1
      %p114 = por %p112, %p113
      %p116 = scmp.ne.s32.totalorder %s101, %s115
      %p117 = scmp.eq.s32.totalorder %s28, 0
      %p118 = por %p116, %p117
      %s120 = sadd.s32 %s119, 1
      %p123 = scmp.eq.s32.totalorder %s22, 1
      %p124 = scmp.ne.s32.totalorder %s119, %s121
      %p125 = scmp.eq.s32.totalorder %s22, 0
      %p126 = por %p124, %p125
      %p127 = scmp.ne.s32.totalorder %s119, %s121
      %p128 = scmp.eq.s32.totalorder %s27, 1
      %p129 = por %p127, %p128
      %p130 = scmp.ne.s32.totalorder %s121, %s122
      %p131 = scmp.eq.s32.totalorder %s27, 0
      %p132 = por %p130, %p131
      %p133 = scmp.ne.s32.totalorder %s121, %s122
      %p134 = scmp.eq.s32.totalorder %s28, 1
      %p135 = por %p133, %p134
      %p137 = scmp.ne.s32.totalorder %s122, %s136
      %p138 = scmp.eq.s32.totalorder %s28, 0
      %p139 = por %p137, %p138
      %s141 = sadd.s32 %s140, 1
      %p144 = scmp.eq.s32.totalorder %s22, 1
      %p145 = scmp.ne.s32.totalorder %s140, %s142
      %p146 = scmp.eq.s32.totalorder %s22, 0
      %p147 = por %p145, %p146
      %p148 = scmp.ne.s32.totalorder %s140, %s142
      %p149 = scmp.eq.s32.totalorder %s27, 1
      %p150 = por %p148, %p149
      %p151 = scmp.ne.s32.totalorder %s142, %s143
      %p152 = scmp.eq.s32.totalorder %s27, 0
      %p153 = por %p151, %p152
      %p154 = scmp.ne.s32.totalorder %s142, %s143
      %p155 = scmp.eq.s32.totalorder %s28, 1
      %p156 = por %p154, %p155
      %p158 = scmp.ne.s32.totalorder %s143, %s157
      %p159 = scmp.eq.s32.totalorder %s28, 0
      %p160 = por %p158, %p159
      %s162 = sadd.s32 %s161, 1
      %p165 = scmp.eq.s32.totalorder %s22, 1
      %p166 = scmp.ne.s32.totalorder %s161, %s163
      %p167 = scmp.eq.s32.totalorder %s22, 0
      %p168 = por %p166, %p167
      %p169 = scmp.ne.s32.totalorder %s161, %s163
      %p170 = scmp.eq.s32.totalorder %s27, 1
      %p171 = por %p169, %p170
      %p172 = scmp.ne.s32.totalorder %s163, %s164
      %p173 = scmp.eq.s32.totalorder %s27, 0
      %p174 = por %p172, %p173
      %p175 = scmp.ne.s32.totalorder %s163, %s164
      %p176 = scmp.eq.s32.totalorder %s28, 1
      %p177 = por %p175, %p176
      %p179 = scmp.ne.s32.totalorder %s164, %s178
      %p180 = scmp.eq.s32.totalorder %s28, 0
      %p181 = por %p179, %p180
      %s183 = sadd.s32 %s182, 1
      %p186 = scmp.eq.s32.totalorder %s22, 1
      %p187 = scmp.ne.s32.totalorder %s182, %s184
      %p188 = scmp.eq.s32.totalorder %s22, 0
      %p189 = por %p187, %p188
      %p190 = scmp.ne.s32.totalorder %s182, %s184
      %p191 = scmp.eq.s32.totalorder %s27, 1
      %p192 = por %p190, %p191
      %p193 = scmp.ne.s32.totalorder %s184, %s185
      %p194 = scmp.eq.s32.totalorder %s27, 0
      %p195 = por %p193, %p194
      %p196 = scmp.ne.s32.totalorder %s184, %s185
      %p197 = scmp.eq.s32.totalorder %s28, 1
      %p198 = por %p196, %p197
      %p200 = scmp.ne.s32.totalorder %s185, %s199
      %p201 = scmp.eq.s32.totalorder %s28, 0
      %p202 = por %p200, %p201
      %s204 = sadd.s32 %s203, 1
      %p207 = scmp.eq.s32.totalorder %s22, 1
      %p208 = scmp.ne.s32.totalorder %s203, %s205
      %p209 = scmp.eq.s32.totalorder %s22, 0
      %p210 = por %p208, %p209
      %p211 = scmp.ne.s32.totalorder %s203, %s205
      %p212 = scmp.eq.s32.totalorder %s27, 1
      %p213 = por %p211, %p212
      %p214 = scmp.ne.s32.totalorder %s205, %s206
      %p215 = scmp.eq.s32.totalorder %s27, 0
      %p216 = por %p214, %p215
      %p217 = scmp.ne.s32.totalorder %s205, %s206
      %p218 = scmp.eq.s32.totalorder %s28, 1
      %p219 = por %p217, %p218
      %p221 = scmp.ne.s32.totalorder %s206, %s220
      %p222 = scmp.eq.s32.totalorder %s28, 0
      %p223 = por %p221, %p222
      %s224 = ssub.s32 %s22, %s29
      %p225 = scmp.eq.s32.totalorder %s224, 0
      %s227 = sadd.s32 %s226, 1
      %s228 = scalar_select %p225, %s226, %s227
      %p231 = pneg %p225
      %p232 = scmp.eq.s32.totalorder %s22, 1
      %p233 = por %p231, %p232
      %p234 = scmp.ne.s32.totalorder %s226, %s229
      %p235 = scmp.eq.s32.totalorder %s22, 0
      %p236 = por %p234, %p235
      %p237 = scmp.ne.s32.totalorder %s226, %s229
      %p238 = scmp.eq.s32.totalorder %s27, 1
      %p239 = por %p237, %p238
      %p240 = scmp.ne.s32.totalorder %s229, %s230
      %p241 = scmp.eq.s32.totalorder %s27, 0
      %p242 = por %p240, %p241
      %p243 = scmp.ne.s32.totalorder %s229, %s230
      %p244 = scmp.eq.s32.totalorder %s28, 1
      %p245 = por %p243, %p244
      %p247 = scmp.ne.s32.totalorder %s230, %s246
      %p248 = scmp.eq.s32.totalorder %s28, 0
      %p249 = por %p247, %p248
      %p250 = scmp.le.s32.totalorder 1, %s22
      %p251 = scmp.lt.s32.totalorder %s22, 3
      %p252 = pnand %p250, %p251
      %p253 = pneg %p252
      // Predicated region
      $region9: #{pixel_shuffle_decoder.1} parent=5 // pred_check
        _
      $region10: #{pixel_shuffle_decoder.1} parent=5 // pred_check_branch
        %255 = sbr.rel (%p252) target = $region12
      $region11: #{pixel_shuffle_decoder.1} parent=5 // pred_region
        %s256 = ssub.s32 %s22, 1
        // Predicated region
        $region13: #{pixel_shuffle_decoder.1} parent=11 // pred_check
          %p257 = pneg %p69
        $region14: #{pixel_shuffle_decoder.1} parent=11 // pred_check_branch
          %259 = sbr.rel (%p257) target = $region16
        $region15: #{pixel_shuffle_decoder.1} parent=11 // pred_region
          %s261 = ssub.s32 18432, 18432
          %262 = vsyncadd [#allocation7], %s261
          %s263 = sshll.u32 [#allocation6], 4
          %s264 = int_to_ptr.vmem [resolvable:$true] %s263
          %269 = dma.hbm_to_vmem [thread:$0]  %s1, 18432, %s264, [#allocation7], 128, 128, 8
        $region16: #{pixel_shuffle_decoder.1} parent=11 // pred_fallthru
          _
        // Predicated region
        $region17: #{pixel_shuffle_decoder.1} parent=11 // pred_check
          %p270 = pneg %p90
        $region18: #{pixel_shuffle_decoder.1} parent=11 // pred_check_branch
          %272 = sbr.rel (%p270) target = $region20
        $region19: #{pixel_shuffle_decoder.1} parent=11 // pred_region
          %s274 = ssub.s32 32, 32
          %275 = vsyncadd [#allocation7], %s274
          %s277 = sshll.u32 [#allocation8], 4
          %s278 = int_to_ptr.vmem [resolvable:$true] %s277
          %280 = dma.hbm_to_vmem [thread:$0]  %s2, 32, %s278, [#allocation7]
        $region20: #{pixel_shuffle_decoder.1} parent=11 // pred_fallthru
          _
        // Predicated region
        $region21: #{pixel_shuffle_decoder.1} parent=11 // pred_check
          %p281 = pneg %p111
        $region22: #{pixel_shuffle_decoder.1} parent=11 // pred_check_branch
          %283 = sbr.rel (%p281) target = $region24
        $region23: #{pixel_shuffle_decoder.1} parent=11 // pred_region
          %s285 = ssub.s32 32, 32
          %286 = vsyncadd [#allocation10], %s285
          %s288 = sshll.u32 [#allocation9], 4
          %s289 = int_to_ptr.vmem [resolvable:$true] %s288
          %291 = dma.hbm_to_vmem [thread:$0]  %s3, 32, %s289, [#allocation10]
        $region24: #{pixel_shuffle_decoder.1} parent=11 // pred_fallthru
          _
        // Predicated region
        $region25: #{pixel_shuffle_decoder.1} parent=11 // pred_check
          %p292 = pneg %p132
        $region26: #{pixel_shuffle_decoder.1} parent=11 // pred_check_branch
          %294 = sbr.rel (%p292) target = $region28
        $region27: #{pixel_shuffle_decoder.1} parent=11 // pred_region
          %s296 = ssub.s32 36864, 36864
          %297 = vsyncadd [#allocation10], %s296
          %s298 = sshll.u32 [#allocation11], 4
          %s299 = int_to_ptr.vmem [resolvable:$true] %s298
          %304 = dma.hbm_to_vmem [thread:$0]  %s4, 36864, %s299, [#allocation10], 128, 128, 8
        $region28: #{pixel_shuffle_decoder.1} parent=11 // pred_fallthru
          _
        // Predicated region
        $region29: #{pixel_shuffle_decoder.1} parent=11 // pred_check
          %p305 = pneg %p153
        $region30: #{pixel_shuffle_decoder.1} parent=11 // pred_check_branch
          %307 = sbr.rel (%p305) target = $region32
        $region31: #{pixel_shuffle_decoder.1} parent=11 // pred_region
          %s309 = ssub.s32 32, 32
          %310 = vsyncadd [#allocation13], %s309
          %s312 = sshll.u32 [#allocation12], 4
          %s313 = int_to_ptr.vmem [resolvable:$true] %s312
          %315 = dma.hbm_to_vmem [thread:$0]  %s5, 32, %s313, [#allocation13]
        $region32: #{pixel_shuffle_decoder.1} parent=11 // pred_fallthru
          _
        // Predicated region
        $region33: #{pixel_shuffle_decoder.1} parent=11 // pred_check
          %p316 = pneg %p174
        $region34: #{pixel_shuffle_decoder.1} parent=11 // pred_check_branch
          %318 = sbr.rel (%p316) target = $region36
        $region35: #{pixel_shuffle_decoder.1} parent=11 // pred_region
          %s320 = ssub.s32 32, 32
          %321 = vsyncadd [#allocation13], %s320
          %s323 = sshll.u32 [#allocation14], 4
          %s324 = int_to_ptr.vmem [resolvable:$true] %s323
          %326 = dma.hbm_to_vmem [thread:$0]  %s6, 32, %s324, [#allocation13]
        $region36: #{pixel_shuffle_decoder.1} parent=11 // pred_fallthru
          _
        // Predicated region
        $region37: #{pixel_shuffle_decoder.1} parent=11 // pred_check
          %p327 = pneg %p195
        $region38: #{pixel_shuffle_decoder.1} parent=11 // pred_check_branch
          %329 = sbr.rel (%p327) target = $region40
        $region39: #{pixel_shuffle_decoder.1} parent=11 // pred_region
          _
        $region40: #{pixel_shuffle_decoder.1} parent=11 // pred_fallthru
          _
        // Predicated region
        $region41: #{pixel_shuffle_decoder.1} parent=11 // pred_check
          %p330 = pneg %p216
        $region42: #{pixel_shuffle_decoder.1} parent=11 // pred_check_branch
          %332 = sbr.rel (%p330) target = $region44
        $region43: #{pixel_shuffle_decoder.1} parent=11 // pred_region
          %s334 = ssub.s32 16, 16
          %335 = vsyncadd [#allocation16], %s334
          %s337 = sshll.u32 [#allocation15], 4
          %s338 = int_to_ptr.vmem [resolvable:$true] %s337
          %340 = dma.hbm_to_vmem [thread:$0]  %s8, 16, %s338, [#allocation16]
        $region44: #{pixel_shuffle_decoder.1} parent=11 // pred_fallthru
          _
      $region12: #{pixel_shuffle_decoder.1} parent=5 // pred_fallthru
        _
      %p341 = scmp.lt.s32.totalorder %s22, 2
      // Predicated region
      $region45: #{pixel_shuffle_decoder.1} parent=5 // pred_check
        %p342 = pneg %p341
      $region46: #{pixel_shuffle_decoder.1} parent=5 // pred_check_branch
        %344 = sbr.rel (%p342) target = $region48
      $region47: #{pixel_shuffle_decoder.1} parent=5 // pred_region
        // Predicated region
        $region49: #{pixel_shuffle_decoder.1} parent=47 // pred_check
          %p345 = pneg %p42
        $region50: #{pixel_shuffle_decoder.1} parent=47 // pred_check_branch
          %347 = sbr.rel (%p345) target = $region52
        $region51: #{pixel_shuffle_decoder.1} parent=47 // pred_region
          %s348 = sand.u32 %s32, 1
          %s349 = scalar_lea.sflag [#allocation5], %s348
          %s350 = sand.u32 %s32, 1
          %s351 = smul.addr %s350, 256
          %s352 = scalar_lea.vmem [#allocation4], %s351
          %s354 = ssub.s32 4096, 4096
          %355 = vsyncadd %s349, %s354
          %s356 = smul.addr %s22, 32
          %s357 = smul.addr %s356, 128
          %s358 = scalar_lea.hbm %s0, %s357
          %s359 = sshll.u32 %s352, 4
          %s360 = int_to_ptr.vmem [resolvable:$true] %s359
          %365 = dma.hbm_to_vmem [thread:$0]  %s358, 4096, %s360, %s349, 128, 128, 8
        $region52: #{pixel_shuffle_decoder.1} parent=47 // pred_fallthru
          _
      $region48: #{pixel_shuffle_decoder.1} parent=5 // pred_fallthru
        _
      %p366 = scmp.le.s32.totalorder 1, %s22
      %p367 = scmp.lt.s32.totalorder %s22, 3
      %p368 = pnand %p366, %p367
      %p369 = pneg %p368
      // Predicated region
      $region53: #{pixel_shuffle_decoder.1} parent=5 // pred_check
        _
      $region54: #{pixel_shuffle_decoder.1} parent=5 // pred_check_branch
        %371 = sbr.rel (%p368) target = $region56
      $region55: #{pixel_shuffle_decoder.1} parent=5 // pred_region
        %s372 = ssub.s32 %s22, 1
        %s373 = sand.u32 %s35, 1
        %s374 = scalar_lea.sflag [#allocation5], %s373
        %s375 = sand.u32 %s35, 1
        %s376 = smul.addr %s375, 256
        %s377 = scalar_lea.vmem [#allocation4], %s376
        // Predicated region
        $region57: #{pixel_shuffle_decoder.1} parent=55 // pred_check
          %p378 = pneg %p48
        $region58: #{pixel_shuffle_decoder.1} parent=55 // pred_check_branch
          %380 = sbr.rel (%p378) target = $region60
        $region59: #{pixel_shuffle_decoder.1} parent=55 // pred_region
          %381 = dma.done %s374, 4096
        $region60: #{pixel_shuffle_decoder.1} parent=55 // pred_fallthru
          _
        // Predicated region
        $region61: #{pixel_shuffle_decoder.1} parent=55 // pred_check
          %p382 = pneg %p69
        $region62: #{pixel_shuffle_decoder.1} parent=55 // pred_check_branch
          %384 = sbr.rel (%p382) target = $region64
        $region63: #{pixel_shuffle_decoder.1} parent=55 // pred_region
          %385 = dma.done [#allocation7], 18432
        $region64: #{pixel_shuffle_decoder.1} parent=55 // pred_fallthru
          _
        // Predicated region
        $region65: #{pixel_shuffle_decoder.1} parent=55 // pred_check
          %p386 = pneg %p90
        $region66: #{pixel_shuffle_decoder.1} parent=55 // pred_check_branch
          %388 = sbr.rel (%p386) target = $region68
        $region67: #{pixel_shuffle_decoder.1} parent=55 // pred_region
          %389 = dma.done [#allocation7], 32
        $region68: #{pixel_shuffle_decoder.1} parent=55 // pred_fallthru
          _
        // Predicated region
        $region69: #{pixel_shuffle_decoder.1} parent=55 // pred_check
          %p390 = pneg %p111
        $region70: #{pixel_shuffle_decoder.1} parent=55 // pred_check_branch
          %392 = sbr.rel (%p390) target = $region72
        $region71: #{pixel_shuffle_decoder.1} parent=55 // pred_region
          %393 = dma.done [#allocation10], 32
        $region72: #{pixel_shuffle_decoder.1} parent=55 // pred_fallthru
          _
        // Predicated region
        $region73: #{pixel_shuffle_decoder.1} parent=55 // pred_check
          %p394 = pneg %p132
        $region74: #{pixel_shuffle_decoder.1} parent=55 // pred_check_branch
          %396 = sbr.rel (%p394) target = $region76
        $region75: #{pixel_shuffle_decoder.1} parent=55 // pred_region
          %397 = dma.done [#allocation10], 36864
        $region76: #{pixel_shuffle_decoder.1} parent=55 // pred_fallthru
          _
        // Predicated region
        $region77: #{pixel_shuffle_decoder.1} parent=55 // pred_check
          %p398 = pneg %p153
        $region78: #{pixel_shuffle_decoder.1} parent=55 // pred_check_branch
          %400 = sbr.rel (%p398) target = $region80
        $region79: #{pixel_shuffle_decoder.1} parent=55 // pred_region
          %401 = dma.done [#allocation13], 32
        $region80: #{pixel_shuffle_decoder.1} parent=55 // pred_fallthru
          _
        // Predicated region
        $region81: #{pixel_shuffle_decoder.1} parent=55 // pred_check
          %p402 = pneg %p174
        $region82: #{pixel_shuffle_decoder.1} parent=55 // pred_check_branch
          %404 = sbr.rel (%p402) target = $region84
        $region83: #{pixel_shuffle_decoder.1} parent=55 // pred_region
          %405 = dma.done [#allocation13], 32
        $region84: #{pixel_shuffle_decoder.1} parent=55 // pred_fallthru
          _
        // Predicated region
        $region85: #{pixel_shuffle_decoder.1} parent=55 // pred_check
          %p406 = pneg %p216
        $region86: #{pixel_shuffle_decoder.1} parent=55 // pred_check_branch
          %408 = sbr.rel (%p406) target = $region88
        $region87: #{pixel_shuffle_decoder.1} parent=55 // pred_region
          %409 = dma.done [#allocation16], 16
        $region88: #{pixel_shuffle_decoder.1} parent=55 // pred_fallthru
          _
        %s410 = sand.u32 %s35, 1
        %s411 = scalar_lea.sflag [#allocation5], %s410
        %s412 = sand.u32 %s35, 1
        %s413 = smul.addr %s412, 256
        %s414 = scalar_lea.vmem [#allocation4], %s413
        %p415 = pneg %p48
        %p416 = pneg %p45
        %p417 = pneg %p69
        %p418 = pneg %p66
        %p419 = pneg %p90
        %p420 = pneg %p87
        %p421 = pneg %p111
        %p422 = pneg %p108
        %p423 = pneg %p132
        %p424 = pneg %p129
        %p425 = pneg %p153
        %p426 = pneg %p150
        %p427 = pneg %p174
        %p428 = pneg %p171
        %p429 = pneg %p195
        %p430 = pneg %p192
        %p431 = pneg %p216
        %p432 = pneg %p213
        %p433 = pneg %p242
        %p434 = pneg %p239
        %p435 = scmp.lt.s32.totalorder %s27, 1
        %s436 = scalar_select %p435, %s27, 1
        %s437 = smul.addr %s436, 32
        %s438 = smul.addr %s437, 8
        %s439 = scalar_lea.vmem %s9, %s438
        %p440 = scmp.lt.s32.totalorder %s27, 1
        %s441 = scalar_select %p440, %s27, 1
        %s442 = smul.addr %s441, 32
        %s443 = smul.addr %s442, 8
        %s444 = scalar_lea.vmem %s9, %s443
        %446 = vst [vmem:[#allocation2] sm:$0xf] 0
        %447 = vst [vmem:[#allocation2 + $0x4] sm:$0xf] 0
        %448 = vst [vmem:[#allocation2 + $0x8] sm:$0x1] 0
        %449 = vst [vmem:[#allocation2 + $0xc] sm:$0xf] 0
        %450 = vst [vmem:[#allocation2 + $0x10] sm:$0xf] 0
        %451 = vst [vmem:[#allocation2 + $0x14] sm:$0x1] 0
        %452 = vst [vmem:[#allocation2 + $0x18] sm:$0xf] 0
        %453 = vst [vmem:[#allocation2 + $0x1c] sm:$0xf] 0
        %454 = vst [vmem:[#allocation2 + $0x20] sm:$0x1] 0
        %455 = vst [vmem:[#allocation2 + $0x24] sm:$0xf] 0
        %456 = vst [vmem:[#allocation2 + $0x28] sm:$0xf] 0
        %457 = vst [vmem:[#allocation2 + $0x2c] sm:$0x1] 0
        %458 = vst [vmem:[#allocation2 + $0x30] sm:$0xf] 0
        %459 = vst [vmem:[#allocation2 + $0x34] sm:$0xf] 0
        %460 = vst [vmem:[#allocation2 + $0x38] sm:$0x1] 0
        %461 = vst [vmem:[#allocation2 + $0x3c] sm:$0xf] 0
        %462 = vst [vmem:[#allocation2 + $0x40] sm:$0xf] 0
        %463 = vst [vmem:[#allocation2 + $0x44] sm:$0x1] 0
        %464 = vst [vmem:[#allocation2 + $0x48] sm:$0xf] 0
        %465 = vst [vmem:[#allocation2 + $0x4c] sm:$0xf] 0
        %466 = vst [vmem:[#allocation2 + $0x50] sm:$0x1] 0
        %467 = vst [vmem:[#allocation2 + $0x54] sm:$0xf] 0
        %468 = vst [vmem:[#allocation2 + $0x58] sm:$0xf] 0
        %469 = vst [vmem:[#allocation2 + $0x5c] sm:$0x1] 0
        %470 = vst [vmem:[#allocation2 + $0x60] sm:$0xf] 0
        %471 = vst [vmem:[#allocation2 + $0x64] sm:$0xf] 0
        %472 = vst [vmem:[#allocation2 + $0x68] sm:$0x1] 0
        %473 = vst [vmem:[#allocation2 + $0x6c] sm:$0xf] 0
        %474 = vst [vmem:[#allocation2 + $0x70] sm:$0xf] 0
        %475 = vst [vmem:[#allocation2 + $0x74] sm:$0x1] 0
        %476 = vst [vmem:[#allocation2 + $0x78] sm:$0xf] 0
        %477 = vst [vmem:[#allocation2 + $0x7c] sm:$0xf] 0
        %478 = vst [vmem:[#allocation2 + $0x80] sm:$0x1] 0
        %479 = vst [vmem:[#allocation2 + $0x84] sm:$0xf] 0
        %480 = vst [vmem:[#allocation2 + $0x88] sm:$0xf] 0
        %481 = vst [vmem:[#allocation2 + $0x8c] sm:$0x1] 0
        %482 = vst [vmem:[#allocation2 + $0x90] sm:$0xf] 0
        %483 = vst [vmem:[#allocation2 + $0x94] sm:$0xf] 0
        %484 = vst [vmem:[#allocation2 + $0x98] sm:$0x1] 0
        %485 = vst [vmem:[#allocation2 + $0x9c] sm:$0xf] 0
        %486 = vst [vmem:[#allocation2 + $0xa0] sm:$0xf] 0
        %487 = vst [vmem:[#allocation2 + $0xa4] sm:$0x1] 0
        %488 = vst [vmem:[#allocation2 + $0xa8] sm:$0xf] 0
        %489 = vst [vmem:[#allocation2 + $0xac] sm:$0xf] 0
        %490 = vst [vmem:[#allocation2 + $0xb0] sm:$0x1] 0
        %491 = vst [vmem:[#allocation2 + $0xb4] sm:$0xf] 0
        %492 = vst [vmem:[#allocation2 + $0xb8] sm:$0xf] 0
        %493 = vst [vmem:[#allocation2 + $0xbc] sm:$0x1] 0
        %494 = vst [vmem:[#allocation2 + $0xc0] sm:$0xf] 0
        %495 = vst [vmem:[#allocation2 + $0xc4] sm:$0xf] 0
        %496 = vst [vmem:[#allocation2 + $0xc8] sm:$0x1] 0
        %497 = vst [vmem:[#allocation2 + $0xcc] sm:$0xf] 0
        %498 = vst [vmem:[#allocation2 + $0xd0] sm:$0xf] 0
        %499 = vst [vmem:[#allocation2 + $0xd4] sm:$0x1] 0
        %v500 = vld [vmem:[%s377] sm:$0xff]
        %v501 = vld [vmem:[%s377 + $0x8] sm:$0xff]
        %v502 = vld [vmem:[%s377 + $0x10] sm:$0xff]
        %v503 = vld [vmem:[%s377 + $0x18] sm:$0xff]
        %v504 = vld [vmem:[%s377 + $0x20] sm:$0xff]
        %v505 = vld [vmem:[%s377 + $0x28] sm:$0xff]
        %v506 = vld [vmem:[%s377 + $0x30] sm:$0xff]
        %v507 = vld [vmem:[%s377 + $0x38] sm:$0xff]
        %v508 = vld [vmem:[%s377 + $0x40] sm:$0xff]
        %v509 = vld [vmem:[%s377 + $0x48] sm:$0xff]
        %v510 = vld [vmem:[%s377 + $0x50] sm:$0xff]
        %v511 = vld [vmem:[%s377 + $0x58] sm:$0xff]
        %v512 = vld [vmem:[%s377 + $0x60] sm:$0xff]
        %v513 = vld [vmem:[%s377 + $0x68] sm:$0xff]
        %v514 = vld [vmem:[%s377 + $0x70] sm:$0xff]
        %v515 = vld [vmem:[%s377 + $0x78] sm:$0xff]
        %v516 = vld [vmem:[%s377 + $0x80] sm:$0xff]
        %v517 = vld [vmem:[%s377 + $0x88] sm:$0xff]
        %v518 = vld [vmem:[%s377 + $0x90] sm:$0xff]
        %v519 = vld [vmem:[%s377 + $0x98] sm:$0xff]
        %v520 = vld [vmem:[%s377 + $0xa0] sm:$0xff]
        %v521 = vld [vmem:[%s377 + $0xa8] sm:$0xff]
        %v522 = vld [vmem:[%s377 + $0xb0] sm:$0xff]
        %v523 = vld [vmem:[%s377 + $0xb8] sm:$0xff]
        %v524 = vld [vmem:[%s377 + $0xc0] sm:$0xff]
        %v525 = vld [vmem:[%s377 + $0xc8] sm:$0xff]
        %v526 = vld [vmem:[%s377 + $0xd0] sm:$0xff]
        %v527 = vld [vmem:[%s377 + $0xd8] sm:$0xff]
        %v528 = vld [vmem:[%s377 + $0xe0] sm:$0xff]
        %v529 = vld [vmem:[%s377 + $0xe8] sm:$0xff]
        %v530 = vld [vmem:[%s377 + $0xf0] sm:$0xff]
        %v531 = vld [vmem:[%s377 + $0xf8] sm:$0xff]
        %v532 = vpack.c.bf16 %v501, %v500
        %v533 = vpack.c.bf16 %v503, %v502
        %v534 = vpack.c.bf16 %v505, %v504
        %v535 = vpack.c.bf16 %v507, %v506
        %v536 = vpack.c.bf16 %v509, %v508
        %v537 = vpack.c.bf16 %v511, %v510
        %v538 = vpack.c.bf16 %v513, %v512
        %v539 = vpack.c.bf16 %v515, %v514
        %v540 = vpack.c.bf16 %v517, %v516
        %v541 = vpack.c.bf16 %v519, %v518
        %v542 = vpack.c.bf16 %v521, %v520
        %v543 = vpack.c.bf16 %v523, %v522
        %v544 = vpack.c.bf16 %v525, %v524
        %v545 = vpack.c.bf16 %v527, %v526
        %v546 = vpack.c.bf16 %v529, %v528
        %v547 = vpack.c.bf16 %v531, %v530
        %v564 = vunpack.c.l.b16 %v532
        %v565 = vunpack.c.h.b16 %v532
        %v566 = vunpack.c.l.b16 %v533
        %v567 = vunpack.c.h.b16 %v533
        %v568 = vunpack.c.l.b16 %v534
        %v569 = vunpack.c.h.b16 %v534
        %v570 = vunpack.c.l.b16 %v535
        %v571 = vunpack.c.h.b16 %v535
        %v572 = vunpack.c.l.b16 %v536
        %v573 = vunpack.c.h.b16 %v536
        %v574 = vunpack.c.l.b16 %v537
        %v575 = vunpack.c.h.b16 %v537
        %v576 = vunpack.c.l.b16 %v538
        %v577 = vunpack.c.h.b16 %v538
        %v578 = vunpack.c.l.b16 %v539
        %v579 = vunpack.c.h.b16 %v539
        %v580 = vunpack.c.l.b16 %v540
        %v581 = vunpack.c.h.b16 %v540
        %v582 = vunpack.c.l.b16 %v541
        %v583 = vunpack.c.h.b16 %v541
        %v584 = vunpack.c.l.b16 %v542
        %v585 = vunpack.c.h.b16 %v542
        %v586 = vunpack.c.l.b16 %v543
        %v587 = vunpack.c.h.b16 %v543
        %v588 = vunpack.c.l.b16 %v544
        %v589 = vunpack.c.h.b16 %v544
        %v590 = vunpack.c.l.b16 %v545
        %v591 = vunpack.c.h.b16 %v545
        %v592 = vunpack.c.l.b16 %v546
        %v593 = vunpack.c.h.b16 %v546
        %v594 = vunpack.c.l.b16 %v547
        %v595 = vunpack.c.h.b16 %v547
        %v596 = vpack.c.b16 %v564, %v564
        %v597 = vpack.c.b16 %v565, %v565
        %v598 = vpack.c.b16 %v566, %v566
        %v599 = vpack.c.b16 %v567, %v567
        %v600 = vpack.c.b16 %v568, %v568
        %v601 = vpack.c.b16 %v569, %v569
        %v602 = vpack.c.b16 %v570, %v570
        %v603 = vpack.c.b16 %v571, %v571
        %v604 = vpack.c.b16 %v572, %v572
        %v605 = vpack.c.b16 %v573, %v573
        %v606 = vpack.c.b16 %v574, %v574
        %v607 = vpack.c.b16 %v575, %v575
        %v608 = vpack.c.b16 %v576, %v576
        %v609 = vpack.c.b16 %v577, %v577
        %v610 = vpack.c.b16 %v578, %v578
        %v611 = vpack.c.b16 %v579, %v579
        %v612 = vpack.c.b16 %v580, %v580
        %v613 = vpack.c.b16 %v581, %v581
        %v614 = vpack.c.b16 %v582, %v582
        %v615 = vpack.c.b16 %v583, %v583
        %v616 = vpack.c.b16 %v584, %v584
        %v617 = vpack.c.b16 %v585, %v585
        %v618 = vpack.c.b16 %v586, %v586
        %v619 = vpack.c.b16 %v587, %v587
        %v620 = vpack.c.b16 %v588, %v588
        %v621 = vpack.c.b16 %v589, %v589
        %v622 = vpack.c.b16 %v590, %v590
        %v623 = vpack.c.b16 %v591, %v591
        %v624 = vpack.c.b16 %v592, %v592
        %v625 = vpack.c.b16 %v593, %v593
        %v626 = vpack.c.b16 %v594, %v594
        %v627 = vpack.c.b16 %v595, %v595
        %vm628 = vsmask.f32 256
        %vm629 = vsmask.f32 4368
        %vm630 = vmor %vm628, %vm629
        %v632 = vshrl.u32 %v596, 16
        %v634 = vrot.slane %v632, 7
        %v635 = vshll.u32 %v596, 16
        %v637 = vor.u32 %v634, %v635
        %v638 = vrot.slane %v634, 4
        %v640 = vshrl.u32 %v597, 16
        %v642 = vrot.slane %v640, 7
        %v643 = vshll.u32 %v597, 16
        %v645 = vor.u32 %v642, %v643
        %v646 = vsel %vm630, %v638, %v645
        %v647 = vrot.slane %v642, 4
        %v649 = vshrl.u32 %v598, 16
        %v651 = vrot.slane %v649, 7
        %v652 = vshll.u32 %v598, 16
        %v654 = vor.u32 %v651, %v652
        %v655 = vrot.slane %v651, 4
        %v657 = vshrl.u32 %v599, 16
        %v659 = vrot.slane %v657, 7
        %v660 = vshll.u32 %v599, 16
        %v662 = vor.u32 %v659, %v660
        %v663 = vsel %vm630, %v655, %v662
        %v664 = vrot.slane %v659, 4
        %v666 = vshrl.u32 %v600, 16
        %v668 = vrot.slane %v666, 7
        %v669 = vshll.u32 %v600, 16
        %v671 = vor.u32 %v668, %v669
        %v672 = vrot.slane %v668, 4
        %v674 = vshrl.u32 %v601, 16
        %v676 = vrot.slane %v674, 7
        %v677 = vshll.u32 %v601, 16
        %v679 = vor.u32 %v676, %v677
        %v680 = vsel %vm630, %v672, %v679
        %v681 = vrot.slane %v676, 4
        %v683 = vshrl.u32 %v602, 16
        %v685 = vrot.slane %v683, 7
        %v686 = vshll.u32 %v602, 16
        %v688 = vor.u32 %v685, %v686
        %v689 = vrot.slane %v685, 4
        %v691 = vshrl.u32 %v603, 16
        %v693 = vrot.slane %v691, 7
        %v694 = vshll.u32 %v603, 16
        %v696 = vor.u32 %v693, %v694
        %v697 = vsel %vm630, %v689, %v696
        %v698 = vrot.slane %v693, 4
        %v700 = vshrl.u32 %v604, 16
        %v702 = vrot.slane %v700, 7
        %v703 = vshll.u32 %v604, 16
        %v705 = vor.u32 %v702, %v703
        %v706 = vrot.slane %v702, 4
        %v708 = vshrl.u32 %v605, 16
        %v710 = vrot.slane %v708, 7
        %v711 = vshll.u32 %v605, 16
        %v713 = vor.u32 %v710, %v711
        %v714 = vsel %vm630, %v706, %v713
        %v715 = vrot.slane %v710, 4
        %v717 = vshrl.u32 %v606, 16
        %v719 = vrot.slane %v717, 7
        %v720 = vshll.u32 %v606, 16
        %v722 = vor.u32 %v719, %v720
        %v723 = vrot.slane %v719, 4
        %v725 = vshrl.u32 %v607, 16
        %v727 = vrot.slane %v725, 7
        %v728 = vshll.u32 %v607, 16
        %v730 = vor.u32 %v727, %v728
        %v731 = vsel %vm630, %v723, %v730
        %v732 = vrot.slane %v727, 4
        %v734 = vshrl.u32 %v608, 16
        %v736 = vrot.slane %v734, 7
        %v737 = vshll.u32 %v608, 16
        %v739 = vor.u32 %v736, %v737
        %v740 = vrot.slane %v736, 4
        %v742 = vshrl.u32 %v609, 16
        %v744 = vrot.slane %v742, 7
        %v745 = vshll.u32 %v609, 16
        %v747 = vor.u32 %v744, %v745
        %v748 = vsel %vm630, %v740, %v747
        %v749 = vrot.slane %v744, 4
        %v751 = vshrl.u32 %v610, 16
        %v753 = vrot.slane %v751, 7
        %v754 = vshll.u32 %v610, 16
        %v756 = vor.u32 %v753, %v754
        %v757 = vrot.slane %v753, 4
        %v759 = vshrl.u32 %v611, 16
        %v761 = vrot.slane %v759, 7
        %v762 = vshll.u32 %v611, 16
        %v764 = vor.u32 %v761, %v762
        %v765 = vsel %vm630, %v757, %v764
        %v766 = vrot.slane %v761, 4
        %v768 = vshrl.u32 %v612, 16
        %v770 = vrot.slane %v768, 7
        %v771 = vshll.u32 %v612, 16
        %v773 = vor.u32 %v770, %v771
        %v774 = vrot.slane %v770, 4
        %v776 = vshrl.u32 %v613, 16
        %v778 = vrot.slane %v776, 7
        %v779 = vshll.u32 %v613, 16
        %v781 = vor.u32 %v778, %v779
        %v782 = vsel %vm630, %v774, %v781
        %v783 = vrot.slane %v778, 4
        %v785 = vshrl.u32 %v614, 16
        %v787 = vrot.slane %v785, 7
        %v788 = vshll.u32 %v614, 16
        %v790 = vor.u32 %v787, %v788
        %v791 = vrot.slane %v787, 4
        %v793 = vshrl.u32 %v615, 16
        %v795 = vrot.slane %v793, 7
        %v796 = vshll.u32 %v615, 16
        %v798 = vor.u32 %v795, %v796
        %v799 = vsel %vm630, %v791, %v798
        %v800 = vrot.slane %v795, 4
        %v802 = vshrl.u32 %v616, 16
        %v804 = vrot.slane %v802, 7
        %v805 = vshll.u32 %v616, 16
        %v807 = vor.u32 %v804, %v805
        %v808 = vrot.slane %v804, 4
        %v810 = vshrl.u32 %v617, 16
        %v812 = vrot.slane %v810, 7
        %v813 = vshll.u32 %v617, 16
        %v815 = vor.u32 %v812, %v813
        %v816 = vsel %vm630, %v808, %v815
        %v817 = vrot.slane %v812, 4
        %v819 = vshrl.u32 %v618, 16
        %v821 = vrot.slane %v819, 7
        %v822 = vshll.u32 %v618, 16
        %v824 = vor.u32 %v821, %v822
        %v825 = vrot.slane %v821, 4
        %v827 = vshrl.u32 %v619, 16
        %v829 = vrot.slane %v827, 7
        %v830 = vshll.u32 %v619, 16
        %v832 = vor.u32 %v829, %v830
        %v833 = vsel %vm630, %v825, %v832
        %v834 = vrot.slane %v829, 4
        %v836 = vshrl.u32 %v620, 16
        %v838 = vrot.slane %v836, 7
        %v839 = vshll.u32 %v620, 16
        %v841 = vor.u32 %v838, %v839
        %v842 = vrot.slane %v838, 4
        %v844 = vshrl.u32 %v621, 16
        %v846 = vrot.slane %v844, 7
        %v847 = vshll.u32 %v621, 16
        %v849 = vor.u32 %v846, %v847
        %v850 = vsel %vm630, %v842, %v849
        %v851 = vrot.slane %v846, 4
        %v853 = vshrl.u32 %v622, 16
        %v855 = vrot.slane %v853, 7
        %v856 = vshll.u32 %v622, 16
        %v858 = vor.u32 %v855, %v856
        %v859 = vrot.slane %v855, 4
        %v861 = vshrl.u32 %v623, 16
        %v863 = vrot.slane %v861, 7
        %v864 = vshll.u32 %v623, 16
        %v866 = vor.u32 %v863, %v864
        %v867 = vsel %vm630, %v859, %v866
        %v868 = vrot.slane %v863, 4
        %v870 = vshrl.u32 %v624, 16
        %v872 = vrot.slane %v870, 7
        %v873 = vshll.u32 %v624, 16
        %v875 = vor.u32 %v872, %v873
        %v876 = vrot.slane %v872, 4
        %v878 = vshrl.u32 %v625, 16
        %v880 = vrot.slane %v878, 7
        %v881 = vshll.u32 %v625, 16
        %v883 = vor.u32 %v880, %v881
        %v884 = vsel %vm630, %v876, %v883
        %v885 = vrot.slane %v880, 4
        %v887 = vshrl.u32 %v626, 16
        %v889 = vrot.slane %v887, 7
        %v890 = vshll.u32 %v626, 16
        %v892 = vor.u32 %v889, %v890
        %v893 = vrot.slane %v889, 4
        %v895 = vshrl.u32 %v627, 16
        %v897 = vrot.slane %v895, 7
        %v898 = vshll.u32 %v627, 16
        %v900 = vor.u32 %v897, %v898
        %v901 = vsel %vm630, %v893, %v900
        %v902 = vrot.slane %v897, 4
        %s951 = scalar_lea.vmem [#allocation2], 12
        %vm952 = vcmask 1043456
        %vm953 = vsmask.f32 7938
        %vm954 = vmand %vm952, %vm953
        %v955 = vld [vmem:[%s951] sm:$0xf]
        %v956 = vsel %vm954, %v637, %v955
        %957 = vst [vmem:[%s951] sm:$0xf] %v956
        %958 = vst [vmem:[%s951 + $0x4] sm:$0xf] %v646
        %vm959 = vcmask 1040384
        %vm960 = vmand %vm959, %vm628
        %v961 = vld [vmem:[%s951 + $0x8] sm:$0x1]
        %v962 = vsel %vm960, %v647, %v961
        %963 = vst [vmem:[%s951 + $0x8] sm:$0x1] %v962
        %v964 = vld [vmem:[%s951 + $0xc] sm:$0xf]
        %v965 = vsel %vm954, %v654, %v964
        %966 = vst [vmem:[%s951 + $0xc] sm:$0xf] %v965
        %967 = vst [vmem:[%s951 + $0x10] sm:$0xf] %v663
        %v968 = vld [vmem:[%s951 + $0x14] sm:$0x1]
        %v969 = vsel %vm960, %v664, %v968
        %970 = vst [vmem:[%s951 + $0x14] sm:$0x1] %v969
        %v971 = vld [vmem:[%s951 + $0x18] sm:$0xf]
        %v972 = vsel %vm954, %v671, %v971
        %973 = vst [vmem:[%s951 + $0x18] sm:$0xf] %v972
        %974 = vst [vmem:[%s951 + $0x1c] sm:$0xf] %v680
        %v975 = vld [vmem:[%s951 + $0x20] sm:$0x1]
        %v976 = vsel %vm960, %v681, %v975
        %977 = vst [vmem:[%s951 + $0x20] sm:$0x1] %v976
        %v978 = vld [vmem:[%s951 + $0x24] sm:$0xf]
        %v979 = vsel %vm954, %v688, %v978
        %980 = vst [vmem:[%s951 + $0x24] sm:$0xf] %v979
        %981 = vst [vmem:[%s951 + $0x28] sm:$0xf] %v697
        %v982 = vld [vmem:[%s951 + $0x2c] sm:$0x1]
        %v983 = vsel %vm960, %v698, %v982
        %984 = vst [vmem:[%s951 + $0x2c] sm:$0x1] %v983
        %v985 = vld [vmem:[%s951 + $0x30] sm:$0xf]
        %v986 = vsel %vm954, %v705, %v985
        %987 = vst [vmem:[%s951 + $0x30] sm:$0xf] %v986
        %988 = vst [vmem:[%s951 + $0x34] sm:$0xf] %v714
        %v989 = vld [vmem:[%s951 + $0x38] sm:$0x1]
        %v990 = vsel %vm960, %v715, %v989
        %991 = vst [vmem:[%s951 + $0x38] sm:$0x1] %v990
        %v992 = vld [vmem:[%s951 + $0x3c] sm:$0xf]
        %v993 = vsel %vm954, %v722, %v992
        %994 = vst [vmem:[%s951 + $0x3c] sm:$0xf] %v993
        %995 = vst [vmem:[%s951 + $0x40] sm:$0xf] %v731
        %v996 = vld [vmem:[%s951 + $0x44] sm:$0x1]
        %v997 = vsel %vm960, %v732, %v996
        %998 = vst [vmem:[%s951 + $0x44] sm:$0x1] %v997
        %v999 = vld [vmem:[%s951 + $0x48] sm:$0xf]
        %v1000 = vsel %vm954, %v739, %v999
        %1001 = vst [vmem:[%s951 + $0x48] sm:$0xf] %v1000
        %1002 = vst [vmem:[%s951 + $0x4c] sm:$0xf] %v748
        %v1003 = vld [vmem:[%s951 + $0x50] sm:$0x1]
        %v1004 = vsel %vm960, %v749, %v1003
        %1005 = vst [vmem:[%s951 + $0x50] sm:$0x1] %v1004
        %v1006 = vld [vmem:[%s951 + $0x54] sm:$0xf]
        %v1007 = vsel %vm954, %v756, %v1006
        %1008 = vst [vmem:[%s951 + $0x54] sm:$0xf] %v1007
        %1009 = vst [vmem:[%s951 + $0x58] sm:$0xf] %v765
        %v1010 = vld [vmem:[%s951 + $0x5c] sm:$0x1]
        %v1011 = vsel %vm960, %v766, %v1010
        %1012 = vst [vmem:[%s951 + $0x5c] sm:$0x1] %v1011
        %v1013 = vld [vmem:[%s951 + $0x60] sm:$0xf]
        %v1014 = vsel %vm954, %v773, %v1013
        %1015 = vst [vmem:[%s951 + $0x60] sm:$0xf] %v1014
        %1016 = vst [vmem:[%s951 + $0x64] sm:$0xf] %v782
        %v1017 = vld [vmem:[%s951 + $0x68] sm:$0x1]
        %v1018 = vsel %vm960, %v783, %v1017
        %1019 = vst [vmem:[%s951 + $0x68] sm:$0x1] %v1018
        %v1020 = vld [vmem:[%s951 + $0x6c] sm:$0xf]
        %v1021 = vsel %vm954, %v790, %v1020
        %1022 = vst [vmem:[%s951 + $0x6c] sm:$0xf] %v1021
        %1023 = vst [vmem:[%s951 + $0x70] sm:$0xf] %v799
        %v1024 = vld [vmem:[%s951 + $0x74] sm:$0x1]
        %v1025 = vsel %vm960, %v800, %v1024
        %1026 = vst [vmem:[%s951 + $0x74] sm:$0x1] %v1025
        %v1027 = vld [vmem:[%s951 + $0x78] sm:$0xf]
        %v1028 = vsel %vm954, %v807, %v1027
        %1029 = vst [vmem:[%s951 + $0x78] sm:$0xf] %v1028
        %1030 = vst [vmem:[%s951 + $0x7c] sm:$0xf] %v816
        %v1031 = vld [vmem:[%s951 + $0x80] sm:$0x1]
        %v1032 = vsel %vm960, %v817, %v1031
        %1033 = vst [vmem:[%s951 + $0x80] sm:$0x1] %v1032
        %v1034 = vld [vmem:[%s951 + $0x84] sm:$0xf]
        %v1035 = vsel %vm954, %v824, %v1034
        %1036 = vst [vmem:[%s951 + $0x84] sm:$0xf] %v1035
        %1037 = vst [vmem:[%s951 + $0x88] sm:$0xf] %v833
        %v1038 = vld [vmem:[%s951 + $0x8c] sm:$0x1]
        %v1039 = vsel %vm960, %v834, %v1038
        %1040 = vst [vmem:[%s951 + $0x8c] sm:$0x1] %v1039
        %v1041 = vld [vmem:[%s951 + $0x90] sm:$0xf]
        %v1042 = vsel %vm954, %v841, %v1041
        %1043 = vst [vmem:[%s951 + $0x90] sm:$0xf] %v1042
        %1044 = vst [vmem:[%s951 + $0x94] sm:$0xf] %v850
        %v1045 = vld [vmem:[%s951 + $0x98] sm:$0x1]
        %v1046 = vsel %vm960, %v851, %v1045
        %1047 = vst [vmem:[%s951 + $0x98] sm:$0x1] %v1046
        %v1048 = vld [vmem:[%s951 + $0x9c] sm:$0xf]
        %v1049 = vsel %vm954, %v858, %v1048
        %1050 = vst [vmem:[%s951 + $0x9c] sm:$0xf] %v1049
        %1051 = vst [vmem:[%s951 + $0xa0] sm:$0xf] %v867
        %v1052 = vld [vmem:[%s951 + $0xa4] sm:$0x1]
        %v1053 = vsel %vm960, %v868, %v1052
        %1054 = vst [vmem:[%s951 + $0xa4] sm:$0x1] %v1053
        %v1055 = vld [vmem:[%s951 + $0xa8] sm:$0xf]
        %v1056 = vsel %vm954, %v875, %v1055
        %1057 = vst [vmem:[%s951 + $0xa8] sm:$0xf] %v1056
        %1058 = vst [vmem:[%s951 + $0xac] sm:$0xf] %v884
        %v1059 = vld [vmem:[%s951 + $0xb0] sm:$0x1]
        %v1060 = vsel %vm960, %v885, %v1059
        %1061 = vst [vmem:[%s951 + $0xb0] sm:$0x1] %v1060
        %v1062 = vld [vmem:[%s951 + $0xb4] sm:$0xf]
        %v1063 = vsel %vm954, %v892, %v1062
        %1064 = vst [vmem:[%s951 + $0xb4] sm:$0xf] %v1063
        %1065 = vst [vmem:[%s951 + $0xb8] sm:$0xf] %v901
        %v1066 = vld [vmem:[%s951 + $0xbc] sm:$0x1]
        %v1067 = vsel %vm960, %v902, %v1066
        %1068 = vst [vmem:[%s951 + $0xbc] sm:$0x1] %v1067
        %v1069 = vld [vmem:[#allocation2] sm:$0xf]
        %v1070 = vld [vmem:[#allocation2 + $0x4] sm:$0xf]
        %v1071 = vld [vmem:[#allocation2 + $0xc] sm:$0xf]
        %v1072 = vld [vmem:[#allocation2 + $0x10] sm:$0xf]
        %v1073 = vld [vmem:[#allocation2 + $0x18] sm:$0xf]
        %v1074 = vld [vmem:[#allocation2 + $0x1c] sm:$0xf]
        %v1075 = vld [vmem:[#allocation2 + $0x24] sm:$0xf]
        %v1076 = vld [vmem:[#allocation2 + $0x28] sm:$0xf]
        %v1077 = vld [vmem:[#allocation2 + $0x30] sm:$0xf]
        %v1078 = vld [vmem:[#allocation2 + $0x34] sm:$0xf]
        %v1079 = vld [vmem:[#allocation2 + $0x3c] sm:$0xf]
        %v1080 = vld [vmem:[#allocation2 + $0x40] sm:$0xf]
        %v1081 = vld [vmem:[#allocation2 + $0x48] sm:$0xf]
        %v1082 = vld [vmem:[#allocation2 + $0x4c] sm:$0xf]
        %v1083 = vld [vmem:[#allocation2 + $0x54] sm:$0xf]
        %v1084 = vld [vmem:[#allocation2 + $0x58] sm:$0xf]
        %v1085 = vld [vmem:[#allocation2 + $0x60] sm:$0xf]
        %v1086 = vld [vmem:[#allocation2 + $0x64] sm:$0xf]
        %v1087 = vld [vmem:[#allocation2 + $0x6c] sm:$0xf]
        %v1088 = vld [vmem:[#allocation2 + $0x70] sm:$0xf]
        %v1089 = vld [vmem:[#allocation2 + $0x78] sm:$0xf]
        %v1090 = vld [vmem:[#allocation2 + $0x7c] sm:$0xf]
        %v1091 = vld [vmem:[#allocation2 + $0x84] sm:$0xf]
        %v1092 = vld [vmem:[#allocation2 + $0x88] sm:$0xf]
        %v1093 = vld [vmem:[#allocation2 + $0x90] sm:$0xf]
        %v1094 = vld [vmem:[#allocation2 + $0x94] sm:$0xf]
        %v1095 = vld [vmem:[#allocation2 + $0x9c] sm:$0xf]
        %v1096 = vld [vmem:[#allocation2 + $0xa0] sm:$0xf]
        %v1097 = vld [vmem:[#allocation2 + $0xa8] sm:$0xf]
        %v1098 = vld [vmem:[#allocation2 + $0xac] sm:$0xf]
        %v1099 = vld [vmem:[#allocation2 + $0xb4] sm:$0xf]
        %v1100 = vld [vmem:[#allocation2 + $0xb8] sm:$0xf]
        %v1101 = vld [vmem:[#allocation2 + $0x8] sm:$0x1]
        %v1102 = vld [vmem:[#allocation2 + $0x14] sm:$0x1]
        %v1103 = vld [vmem:[#allocation2 + $0x20] sm:$0x1]
        %v1104 = vld [vmem:[#allocation2 + $0x2c] sm:$0x1]
        %v1105 = vld [vmem:[#allocation2 + $0x38] sm:$0x1]
        %v1106 = vld [vmem:[#allocation2 + $0x44] sm:$0x1]
        %v1107 = vld [vmem:[#allocation2 + $0x50] sm:$0x1]
        %v1108 = vld [vmem:[#allocation2 + $0x5c] sm:$0x1]
        %v1109 = vld [vmem:[#allocation2 + $0x68] sm:$0x1]
        %v1110 = vld [vmem:[#allocation2 + $0x74] sm:$0x1]
        %v1111 = vld [vmem:[#allocation2 + $0x80] sm:$0x1]
        %v1112 = vld [vmem:[#allocation2 + $0x8c] sm:$0x1]
        %v1113 = vld [vmem:[#allocation2 + $0x98] sm:$0x1]
        %v1114 = vld [vmem:[#allocation2 + $0xa4] sm:$0x1]
        %v1115 = vld [vmem:[#allocation2 + $0xb0] sm:$0x1]
        %v1116 = vld [vmem:[#allocation2 + $0xbc] sm:$0x1]
        %vm1117 = vsmask.f32 3328
        %vm1118 = vsmask.f32 7440
        %vm1119 = vmor %vm1117, %vm1118
        %v1121 = vshrl.u32 %v1069, 16
        %v1123 = vrot.slane %v1121, 4
        %v1124 = vshll.u32 %v1069, 16
        %v1126 = vrot.slane %v1124, 5
        %v1127 = vor.u32 %v1123, %v1126
        %v1128 = vrot.slane %v1127, 4
        %v1130 = vshll.u32 %v1070, 16
        %v1132 = vrot.slane %v1130, 5
        %v1133 = vsel %vm1119, %v1128, %v1132
        %v1134 = vshrl.u32 %v1070, 16
        %v1136 = vrot.slane %v1134, 4
        %v1137 = vor.u32 %v1136, %v1132
        %v1138 = vrot.slane %v1137, 4
        %v1140 = vshll.u32 %v1101, 16
        %v1142 = vrot.slane %v1140, 5
        %v1143 = vsel %vm1119, %v1138, %v1142
        %v1145 = vshrl.u32 %v1071, 16
        %v1147 = vrot.slane %v1145, 4
        %v1148 = vshll.u32 %v1071, 16
        %v1150 = vrot.slane %v1148, 5
        %v1151 = vor.u32 %v1147, %v1150
        %v1152 = vrot.slane %v1151, 4
        %v1154 = vshll.u32 %v1072, 16
        %v1156 = vrot.slane %v1154, 5
        %v1157 = vsel %vm1119, %v1152, %v1156
        %v1158 = vshrl.u32 %v1072, 16
        %v1160 = vrot.slane %v1158, 4
        %v1161 = vor.u32 %v1160, %v1156
        %v1162 = vrot.slane %v1161, 4
        %v1164 = vshll.u32 %v1102, 16
        %v1166 = vrot.slane %v1164, 5
        %v1167 = vsel %vm1119, %v1162, %v1166
        %v1169 = vshrl.u32 %v1073, 16
        %v1171 = vrot.slane %v1169, 4
        %v1172 = vshll.u32 %v1073, 16
        %v1174 = vrot.slane %v1172, 5
        %v1175 = vor.u32 %v1171, %v1174
        %v1176 = vrot.slane %v1175, 4
        %v1178 = vshll.u32 %v1074, 16
        %v1180 = vrot.slane %v1178, 5
        %v1181 = vsel %vm1119, %v1176, %v1180
        %v1182 = vshrl.u32 %v1074, 16
        %v1184 = vrot.slane %v1182, 4
        %v1185 = vor.u32 %v1184, %v1180
        %v1186 = vrot.slane %v1185, 4
        %v1188 = vshll.u32 %v1103, 16
        %v1190 = vrot.slane %v1188, 5
        %v1191 = vsel %vm1119, %v1186, %v1190
        %v1193 = vshrl.u32 %v1075, 16
        %v1195 = vrot.slane %v1193, 4
        %v1196 = vshll.u32 %v1075, 16
        %v1198 = vrot.slane %v1196, 5
        %v1199 = vor.u32 %v1195, %v1198
        %v1200 = vrot.slane %v1199, 4
        %v1202 = vshll.u32 %v1076, 16
        %v1204 = vrot.slane %v1202, 5
        %v1205 = vsel %vm1119, %v1200, %v1204
        %v1206 = vshrl.u32 %v1076, 16
        %v1208 = vrot.slane %v1206, 4
        %v1209 = vor.u32 %v1208, %v1204
        %v1210 = vrot.slane %v1209, 4
        %v1212 = vshll.u32 %v1104, 16
        %v1214 = vrot.slane %v1212, 5
        %v1215 = vsel %vm1119, %v1210, %v1214
        %v1217 = vshrl.u32 %v1077, 16
        %v1219 = vrot.slane %v1217, 4
        %v1220 = vshll.u32 %v1077, 16
        %v1222 = vrot.slane %v1220, 5
        %v1223 = vor.u32 %v1219, %v1222
        %v1224 = vrot.slane %v1223, 4
        %v1226 = vshll.u32 %v1078, 16
        %v1228 = vrot.slane %v1226, 5
        %v1229 = vsel %vm1119, %v1224, %v1228
        %v1230 = vshrl.u32 %v1078, 16
        %v1232 = vrot.slane %v1230, 4
        %v1233 = vor.u32 %v1232, %v1228
        %v1234 = vrot.slane %v1233, 4
        %v1236 = vshll.u32 %v1105, 16
        %v1238 = vrot.slane %v1236, 5
        %v1239 = vsel %vm1119, %v1234, %v1238
        %v1241 = vshrl.u32 %v1079, 16
        %v1243 = vrot.slane %v1241, 4
        %v1244 = vshll.u32 %v1079, 16
        %v1246 = vrot.slane %v1244, 5
        %v1247 = vor.u32 %v1243, %v1246
        %v1248 = vrot.slane %v1247, 4
        %v1250 = vshll.u32 %v1080, 16
        %v1252 = vrot.slane %v1250, 5
        %v1253 = vsel %vm1119, %v1248, %v1252
        %v1254 = vshrl.u32 %v1080, 16
        %v1256 = vrot.slane %v1254, 4
        %v1257 = vor.u32 %v1256, %v1252
        %v1258 = vrot.slane %v1257, 4
        %v1260 = vshll.u32 %v1106, 16
        %v1262 = vrot.slane %v1260, 5
        %v1263 = vsel %vm1119, %v1258, %v1262
        %v1265 = vshrl.u32 %v1081, 16
        %v1267 = vrot.slane %v1265, 4
        %v1268 = vshll.u32 %v1081, 16
        %v1270 = vrot.slane %v1268, 5
        %v1271 = vor.u32 %v1267, %v1270
        %v1272 = vrot.slane %v1271, 4
        %v1274 = vshll.u32 %v1082, 16
        %v1276 = vrot.slane %v1274, 5
        %v1277 = vsel %vm1119, %v1272, %v1276
        %v1278 = vshrl.u32 %v1082, 16
        %v1280 = vrot.slane %v1278, 4
        %v1281 = vor.u32 %v1280, %v1276
        %v1282 = vrot.slane %v1281, 4
        %v1284 = vshll.u32 %v1107, 16
        %v1286 = vrot.slane %v1284, 5
        %v1287 = vsel %vm1119, %v1282, %v1286
        %v1289 = vshrl.u32 %v1083, 16
        %v1291 = vrot.slane %v1289, 4
        %v1292 = vshll.u32 %v1083, 16
        %v1294 = vrot.slane %v1292, 5
        %v1295 = vor.u32 %v1291, %v1294
        %v1296 = vrot.slane %v1295, 4
        %v1298 = vshll.u32 %v1084, 16
        %v1300 = vrot.slane %v1298, 5
        %v1301 = vsel %vm1119, %v1296, %v1300
        %v1302 = vshrl.u32 %v1084, 16
        %v1304 = vrot.slane %v1302, 4
        %v1305 = vor.u32 %v1304, %v1300
        %v1306 = vrot.slane %v1305, 4
        %v1308 = vshll.u32 %v1108, 16
        %v1310 = vrot.slane %v1308, 5
        %v1311 = vsel %vm1119, %v1306, %v1310
        %v1313 = vshrl.u32 %v1085, 16
        %v1315 = vrot.slane %v1313, 4
        %v1316 = vshll.u32 %v1085, 16
        %v1318 = vrot.slane %v1316, 5
        %v1319 = vor.u32 %v1315, %v1318
        %v1320 = vrot.slane %v1319, 4
        %v1322 = vshll.u32 %v1086, 16
        %v1324 = vrot.slane %v1322, 5
        %v1325 = vsel %vm1119, %v1320, %v1324
        %v1326 = vshrl.u32 %v1086, 16
        %v1328 = vrot.slane %v1326, 4
        %v1329 = vor.u32 %v1328, %v1324
        %v1330 = vrot.slane %v1329, 4
        %v1332 = vshll.u32 %v1109, 16
        %v1334 = vrot.slane %v1332, 5
        %v1335 = vsel %vm1119, %v1330, %v1334
        %v1337 = vshrl.u32 %v1087, 16
        %v1339 = vrot.slane %v1337, 4
        %v1340 = vshll.u32 %v1087, 16
        %v1342 = vrot.slane %v1340, 5
        %v1343 = vor.u32 %v1339, %v1342
        %v1344 = vrot.slane %v1343, 4
        %v1346 = vshll.u32 %v1088, 16
        %v1348 = vrot.slane %v1346, 5
        %v1349 = vsel %vm1119, %v1344, %v1348
        %v1350 = vshrl.u32 %v1088, 16
        %v1352 = vrot.slane %v1350, 4
        %v1353 = vor.u32 %v1352, %v1348
        %v1354 = vrot.slane %v1353, 4
        %v1356 = vshll.u32 %v1110, 16
        %v1358 = vrot.slane %v1356, 5
        %v1359 = vsel %vm1119, %v1354, %v1358
        %v1361 = vshrl.u32 %v1089, 16
        %v1363 = vrot.slane %v1361, 4
        %v1364 = vshll.u32 %v1089, 16
        %v1366 = vrot.slane %v1364, 5
        %v1367 = vor.u32 %v1363, %v1366
        %v1368 = vrot.slane %v1367, 4
        %v1370 = vshll.u32 %v1090, 16
        %v1372 = vrot.slane %v1370, 5
        %v1373 = vsel %vm1119, %v1368, %v1372
        %v1374 = vshrl.u32 %v1090, 16
        %v1376 = vrot.slane %v1374, 4
        %v1377 = vor.u32 %v1376, %v1372
        %v1378 = vrot.slane %v1377, 4
        %v1380 = vshll.u32 %v1111, 16
        %v1382 = vrot.slane %v1380, 5
        %v1383 = vsel %vm1119, %v1378, %v1382
        %v1385 = vshrl.u32 %v1091, 16
        %v1387 = vrot.slane %v1385, 4
        %v1388 = vshll.u32 %v1091, 16
        %v1390 = vrot.slane %v1388, 5
        %v1391 = vor.u32 %v1387, %v1390
        %v1392 = vrot.slane %v1391, 4
        %v1394 = vshll.u32 %v1092, 16
        %v1396 = vrot.slane %v1394, 5
        %v1397 = vsel %vm1119, %v1392, %v1396
        %v1398 = vshrl.u32 %v1092, 16
        %v1400 = vrot.slane %v1398, 4
        %v1401 = vor.u32 %v1400, %v1396
        %v1402 = vrot.slane %v1401, 4
        %v1404 = vshll.u32 %v1112, 16
        %v1406 = vrot.slane %v1404, 5
        %v1407 = vsel %vm1119, %v1402, %v1406
        %v1409 = vshrl.u32 %v1093, 16
        %v1411 = vrot.slane %v1409, 4
        %v1412 = vshll.u32 %v1093, 16
        %v1414 = vrot.slane %v1412, 5
        %v1415 = vor.u32 %v1411, %v1414
        %v1416 = vrot.slane %v1415, 4
        %v1418 = vshll.u32 %v1094, 16
        %v1420 = vrot.slane %v1418, 5
        %v1421 = vsel %vm1119, %v1416, %v1420
        %v1422 = vshrl.u32 %v1094, 16
        %v1424 = vrot.slane %v1422, 4
        %v1425 = vor.u32 %v1424, %v1420
        %v1426 = vrot.slane %v1425, 4
        %v1428 = vshll.u32 %v1113, 16
        %v1430 = vrot.slane %v1428, 5
        %v1431 = vsel %vm1119, %v1426, %v1430
        %v1433 = vshrl.u32 %v1095, 16
        %v1435 = vrot.slane %v1433, 4
        %v1436 = vshll.u32 %v1095, 16
        %v1438 = vrot.slane %v1436, 5
        %v1439 = vor.u32 %v1435, %v1438
        %v1440 = vrot.slane %v1439, 4
        %v1442 = vshll.u32 %v1096, 16
        %v1444 = vrot.slane %v1442, 5
        %v1445 = vsel %vm1119, %v1440, %v1444
        %v1446 = vshrl.u32 %v1096, 16
        %v1448 = vrot.slane %v1446, 4
        %v1449 = vor.u32 %v1448, %v1444
        %v1450 = vrot.slane %v1449, 4
        %v1452 = vshll.u32 %v1114, 16
        %v1454 = vrot.slane %v1452, 5
        %v1455 = vsel %vm1119, %v1450, %v1454
        %v1457 = vshrl.u32 %v1097, 16
        %v1459 = vrot.slane %v1457, 4
        %v1460 = vshll.u32 %v1097, 16
        %v1462 = vrot.slane %v1460, 5
        %v1463 = vor.u32 %v1459, %v1462
        %v1464 = vrot.slane %v1463, 4
        %v1466 = vshll.u32 %v1098, 16
        %v1468 = vrot.slane %v1466, 5
        %v1469 = vsel %vm1119, %v1464, %v1468
        %v1470 = vshrl.u32 %v1098, 16
        %v1472 = vrot.slane %v1470, 4
        %v1473 = vor.u32 %v1472, %v1468
        %v1474 = vrot.slane %v1473, 4
        %v1476 = vshll.u32 %v1115, 16
        %v1478 = vrot.slane %v1476, 5
        %v1479 = vsel %vm1119, %v1474, %v1478
        %v1481 = vshrl.u32 %v1099, 16
        %v1483 = vrot.slane %v1481, 4
        %v1484 = vshll.u32 %v1099, 16
        %v1486 = vrot.slane %v1484, 5
        %v1487 = vor.u32 %v1483, %v1486
        %v1488 = vrot.slane %v1487, 4
        %v1490 = vshll.u32 %v1100, 16
        %v1492 = vrot.slane %v1490, 5
        %v1493 = vsel %vm1119, %v1488, %v1492
        %v1494 = vshrl.u32 %v1100, 16
        %v1496 = vrot.slane %v1494, 4
        %v1497 = vor.u32 %v1496, %v1492
        %v1498 = vrot.slane %v1497, 4
        %v1500 = vshll.u32 %v1116, 16
        %v1502 = vrot.slane %v1500, 5
        %v1503 = vsel %vm1119, %v1498, %v1502
        %v1504 = vld [vmem:[#allocation2] sm:$0xe]
        %v1505 = vld [vmem:[#allocation2 + $0xc] sm:$0xe]
        %v1506 = vld [vmem:[#allocation2 + $0x18] sm:$0xe]
        %v1507 = vld [vmem:[#allocation2 + $0x24] sm:$0xe]
        %v1508 = vld [vmem:[#allocation2 + $0x30] sm:$0xe]
        %v1509 = vld [vmem:[#allocation2 + $0x3c] sm:$0xe]
        %v1510 = vld [vmem:[#allocation2 + $0x48] sm:$0xe]
        %v1511 = vld [vmem:[#allocation2 + $0x54] sm:$0xe]
        %v1512 = vld [vmem:[#allocation2 + $0x60] sm:$0xe]
        %v1513 = vld [vmem:[#allocation2 + $0x6c] sm:$0xe]
        %v1514 = vld [vmem:[#allocation2 + $0x78] sm:$0xe]
        %v1515 = vld [vmem:[#allocation2 + $0x84] sm:$0xe]
        %v1516 = vld [vmem:[#allocation2 + $0x90] sm:$0xe]
        %v1517 = vld [vmem:[#allocation2 + $0x9c] sm:$0xe]
        %v1518 = vld [vmem:[#allocation2 + $0xa8] sm:$0xe]
        %v1519 = vld [vmem:[#allocation2 + $0xb4] sm:$0xe]
        %vm1568 = vcmask 1042432
        %vm1569 = vcmask 1046532
        %vm1570 = vmor %vm1568, %vm1569
        %v1571 = vrot.slane %v1504, 5
        %v1572 = vrot.slane %v1571, 4
        %v1573 = vrot.slane %v1070, 5
        %v1574 = vsel %vm1570, %v1572, %v1573
        %v1575 = vrot.slane %v1573, 4
        %v1576 = vrot.slane %v1101, 5
        %v1577 = vsel %vm1570, %v1575, %v1576
        %v1578 = vrot.slane %v1505, 5
        %v1579 = vrot.slane %v1578, 4
        %v1580 = vrot.slane %v1072, 5
        %v1581 = vsel %vm1570, %v1579, %v1580
        %v1582 = vrot.slane %v1580, 4
        %v1583 = vrot.slane %v1102, 5
        %v1584 = vsel %vm1570, %v1582, %v1583
        %v1585 = vrot.slane %v1506, 5
        %v1586 = vrot.slane %v1585, 4
        %v1587 = vrot.slane %v1074, 5
        %v1588 = vsel %vm1570, %v1586, %v1587
        %v1589 = vrot.slane %v1587, 4
        %v1590 = vrot.slane %v1103, 5
        %v1591 = vsel %vm1570, %v1589, %v1590
        %v1592 = vrot.slane %v1507, 5
        %v1593 = vrot.slane %v1592, 4
        %v1594 = vrot.slane %v1076, 5
        %v1595 = vsel %vm1570, %v1593, %v1594
        %v1596 = vrot.slane %v1594, 4
        %v1597 = vrot.slane %v1104, 5
        %v1598 = vsel %vm1570, %v1596, %v1597
        %v1599 = vrot.slane %v1508, 5
        %v1600 = vrot.slane %v1599, 4
        %v1601 = vrot.slane %v1078, 5
        %v1602 = vsel %vm1570, %v1600, %v1601
        %v1603 = vrot.slane %v1601, 4
        %v1604 = vrot.slane %v1105, 5
        %v1605 = vsel %vm1570, %v1603, %v1604
        %v1606 = vrot.slane %v1509, 5
        %v1607 = vrot.slane %v1606, 4
        %v1608 = vrot.slane %v1080, 5
        %v1609 = vsel %vm1570, %v1607, %v1608
        %v1610 = vrot.slane %v1608, 4
        %v1611 = vrot.slane %v1106, 5
        %v1612 = vsel %vm1570, %v1610, %v1611
        %v1613 = vrot.slane %v1510, 5
        %v1614 = vrot.slane %v1613, 4
        %v1615 = vrot.slane %v1082, 5
        %v1616 = vsel %vm1570, %v1614, %v1615
        %v1617 = vrot.slane %v1615, 4
        %v1618 = vrot.slane %v1107, 5
        %v1619 = vsel %vm1570, %v1617, %v1618
        %v1620 = vrot.slane %v1511, 5
        %v1621 = vrot.slane %v1620, 4
        %v1622 = vrot.slane %v1084, 5
        %v1623 = vsel %vm1570, %v1621, %v1622
        %v1624 = vrot.slane %v1622, 4
        %v1625 = vrot.slane %v1108, 5
        %v1626 = vsel %vm1570, %v1624, %v1625
        %v1627 = vrot.slane %v1512, 5
        %v1628 = vrot.slane %v1627, 4
        %v1629 = vrot.slane %v1086, 5
        %v1630 = vsel %vm1570, %v1628, %v1629
        %v1631 = vrot.slane %v1629, 4
        %v1632 = vrot.slane %v1109, 5
        %v1633 = vsel %vm1570, %v1631, %v1632
        %v1634 = vrot.slane %v1513, 5
        %v1635 = vrot.slane %v1634, 4
        %v1636 = vrot.slane %v1088, 5
        %v1637 = vsel %vm1570, %v1635, %v1636
        %v1638 = vrot.slane %v1636, 4
        %v1639 = vrot.slane %v1110, 5
        %v1640 = vsel %vm1570, %v1638, %v1639
        %v1641 = vrot.slane %v1514, 5
        %v1642 = vrot.slane %v1641, 4
        %v1643 = vrot.slane %v1090, 5
        %v1644 = vsel %vm1570, %v1642, %v1643
        %v1645 = vrot.slane %v1643, 4
        %v1646 = vrot.slane %v1111, 5
        %v1647 = vsel %vm1570, %v1645, %v1646
        %v1648 = vrot.slane %v1515, 5
        %v1649 = vrot.slane %v1648, 4
        %v1650 = vrot.slane %v1092, 5
        %v1651 = vsel %vm1570, %v1649, %v1650
        %v1652 = vrot.slane %v1650, 4
        %v1653 = vrot.slane %v1112, 5
        %v1654 = vsel %vm1570, %v1652, %v1653
        %v1655 = vrot.slane %v1516, 5
        %v1656 = vrot.slane %v1655, 4
        %v1657 = vrot.slane %v1094, 5
        %v1658 = vsel %vm1570, %v1656, %v1657
        %v1659 = vrot.slane %v1657, 4
        %v1660 = vrot.slane %v1113, 5
        %v1661 = vsel %vm1570, %v1659, %v1660
        %v1662 = vrot.slane %v1517, 5
        %v1663 = vrot.slane %v1662, 4
        %v1664 = vrot.slane %v1096, 5
        %v1665 = vsel %vm1570, %v1663, %v1664
        %v1666 = vrot.slane %v1664, 4
        %v1667 = vrot.slane %v1114, 5
        %v1668 = vsel %vm1570, %v1666, %v1667
        %v1669 = vrot.slane %v1518, 5
        %v1670 = vrot.slane %v1669, 4
        %v1671 = vrot.slane %v1098, 5
        %v1672 = vsel %vm1570, %v1670, %v1671
        %v1673 = vrot.slane %v1671, 4
        %v1674 = vrot.slane %v1115, 5
        %v1675 = vsel %vm1570, %v1673, %v1674
        %v1676 = vrot.slane %v1519, 5
        %v1677 = vrot.slane %v1676, 4
        %v1678 = vrot.slane %v1100, 5
        %v1679 = vsel %vm1570, %v1677, %v1678
        %v1680 = vrot.slane %v1678, 4
        %v1681 = vrot.slane %v1116, 5
        %v1682 = vsel %vm1570, %v1680, %v1681
        %v1683 = vld [vmem:[%s951] sm:$0xf]
        %v1684 = vld [vmem:[%s951 + $0x4] sm:$0xf]
        %v1685 = vld [vmem:[%s951 + $0xc] sm:$0xf]
        %v1686 = vld [vmem:[%s951 + $0x10] sm:$0xf]
        %v1687 = vld [vmem:[%s951 + $0x18] sm:$0xf]
        %v1688 = vld [vmem:[%s951 + $0x1c] sm:$0xf]
        %v1689 = vld [vmem:[%s951 + $0x24] sm:$0xf]
        %v1690 = vld [vmem:[%s951 + $0x28] sm:$0xf]
        %v1691 = vld [vmem:[%s951 + $0x30] sm:$0xf]
        %v1692 = vld [vmem:[%s951 + $0x34] sm:$0xf]
        %v1693 = vld [vmem:[%s951 + $0x3c] sm:$0xf]
        %v1694 = vld [vmem:[%s951 + $0x40] sm:$0xf]
        %v1695 = vld [vmem:[%s951 + $0x48] sm:$0xf]
        %v1696 = vld [vmem:[%s951 + $0x4c] sm:$0xf]
        %v1697 = vld [vmem:[%s951 + $0x54] sm:$0xf]
        %v1698 = vld [vmem:[%s951 + $0x58] sm:$0xf]
        %v1699 = vld [vmem:[%s951 + $0x60] sm:$0xf]
        %v1700 = vld [vmem:[%s951 + $0x64] sm:$0xf]
        %v1701 = vld [vmem:[%s951 + $0x6c] sm:$0xf]
        %v1702 = vld [vmem:[%s951 + $0x70] sm:$0xf]
        %v1703 = vld [vmem:[%s951 + $0x78] sm:$0xf]
        %v1704 = vld [vmem:[%s951 + $0x7c] sm:$0xf]
        %v1705 = vld [vmem:[%s951 + $0x84] sm:$0xf]
        %v1706 = vld [vmem:[%s951 + $0x88] sm:$0xf]
        %v1707 = vld [vmem:[%s951 + $0x90] sm:$0xf]
        %v1708 = vld [vmem:[%s951 + $0x94] sm:$0xf]
        %v1709 = vld [vmem:[%s951 + $0x9c] sm:$0xf]
        %v1710 = vld [vmem:[%s951 + $0xa0] sm:$0xf]
        %v1711 = vld [vmem:[%s951 + $0xa8] sm:$0xf]
        %v1712 = vld [vmem:[%s951 + $0xac] sm:$0xf]
        %v1713 = vld [vmem:[%s951 + $0xb4] sm:$0xf]
        %v1714 = vld [vmem:[%s951 + $0xb8] sm:$0xf]
        %v1715 = vld [vmem:[%s951 + $0x8] sm:$0x1]
        %v1716 = vld [vmem:[%s951 + $0x14] sm:$0x1]
        %v1717 = vld [vmem:[%s951 + $0x20] sm:$0x1]
        %v1718 = vld [vmem:[%s951 + $0x2c] sm:$0x1]
        %v1719 = vld [vmem:[%s951 + $0x38] sm:$0x1]
        %v1720 = vld [vmem:[%s951 + $0x44] sm:$0x1]
        %v1721 = vld [vmem:[%s951 + $0x50] sm:$0x1]
        %v1722 = vld [vmem:[%s951 + $0x5c] sm:$0x1]
        %v1723 = vld [vmem:[%s951 + $0x68] sm:$0x1]
        %v1724 = vld [vmem:[%s951 + $0x74] sm:$0x1]
        %v1725 = vld [vmem:[%s951 + $0x80] sm:$0x1]
        %v1726 = vld [vmem:[%s951 + $0x8c] sm:$0x1]
        %v1727 = vld [vmem:[%s951 + $0x98] sm:$0x1]
        %v1728 = vld [vmem:[%s951 + $0xa4] sm:$0x1]
        %v1729 = vld [vmem:[%s951 + $0xb0] sm:$0x1]
        %v1730 = vld [vmem:[%s951 + $0xbc] sm:$0x1]
        %v1732 = vshrl.u32 %v1683, 16
        %v1734 = vrot.slane %v1732, 4
        %v1735 = vshll.u32 %v1683, 16
        %v1737 = vrot.slane %v1735, 5
        %v1738 = vor.u32 %v1734, %v1737
        %v1739 = vrot.slane %v1738, 4
        %v1741 = vshll.u32 %v1684, 16
        %v1743 = vrot.slane %v1741, 5
        %v1744 = vsel %vm1119, %v1739, %v1743
        %v1745 = vshrl.u32 %v1684, 16
        %v1747 = vrot.slane %v1745, 4
        %v1748 = vor.u32 %v1747, %v1743
        %v1749 = vrot.slane %v1748, 4
        %v1751 = vshll.u32 %v1715, 16
        %v1753 = vrot.slane %v1751, 5
        %v1754 = vsel %vm1119, %v1749, %v1753
        %v1756 = vshrl.u32 %v1685, 16
        %v1758 = vrot.slane %v1756, 4
        %v1759 = vshll.u32 %v1685, 16
        %v1761 = vrot.slane %v1759, 5
        %v1762 = vor.u32 %v1758, %v1761
        %v1763 = vrot.slane %v1762, 4
        %v1765 = vshll.u32 %v1686, 16
        %v1767 = vrot.slane %v1765, 5
        %v1768 = vsel %vm1119, %v1763, %v1767
        %v1769 = vshrl.u32 %v1686, 16
        %v1771 = vrot.slane %v1769, 4
        %v1772 = vor.u32 %v1771, %v1767
        %v1773 = vrot.slane %v1772, 4
        %v1775 = vshll.u32 %v1716, 16
        %v1777 = vrot.slane %v1775, 5
        %v1778 = vsel %vm1119, %v1773, %v1777
        %v1780 = vshrl.u32 %v1687, 16
        %v1782 = vrot.slane %v1780, 4
        %v1783 = vshll.u32 %v1687, 16
        %v1785 = vrot.slane %v1783, 5
        %v1786 = vor.u32 %v1782, %v1785
        %v1787 = vrot.slane %v1786, 4
        %v1789 = vshll.u32 %v1688, 16
        %v1791 = vrot.slane %v1789, 5
        %v1792 = vsel %vm1119, %v1787, %v1791
        %v1793 = vshrl.u32 %v1688, 16
        %v1795 = vrot.slane %v1793, 4
        %v1796 = vor.u32 %v1795, %v1791
        %v1797 = vrot.slane %v1796, 4
        %v1799 = vshll.u32 %v1717, 16
        %v1801 = vrot.slane %v1799, 5
        %v1802 = vsel %vm1119, %v1797, %v1801
        %v1804 = vshrl.u32 %v1689, 16
        %v1806 = vrot.slane %v1804, 4
        %v1807 = vshll.u32 %v1689, 16
        %v1809 = vrot.slane %v1807, 5
        %v1810 = vor.u32 %v1806, %v1809
        %v1811 = vrot.slane %v1810, 4
        %v1813 = vshll.u32 %v1690, 16
        %v1815 = vrot.slane %v1813, 5
        %v1816 = vsel %vm1119, %v1811, %v1815
        %v1817 = vshrl.u32 %v1690, 16
        %v1819 = vrot.slane %v1817, 4
        %v1820 = vor.u32 %v1819, %v1815
        %v1821 = vrot.slane %v1820, 4
        %v1823 = vshll.u32 %v1718, 16
        %v1825 = vrot.slane %v1823, 5
        %v1826 = vsel %vm1119, %v1821, %v1825
        %v1828 = vshrl.u32 %v1691, 16
        %v1830 = vrot.slane %v1828, 4
        %v1831 = vshll.u32 %v1691, 16
        %v1833 = vrot.slane %v1831, 5
        %v1834 = vor.u32 %v1830, %v1833
        %v1835 = vrot.slane %v1834, 4
        %v1837 = vshll.u32 %v1692, 16
        %v1839 = vrot.slane %v1837, 5
        %v1840 = vsel %vm1119, %v1835, %v1839
        %v1841 = vshrl.u32 %v1692, 16
        %v1843 = vrot.slane %v1841, 4
        %v1844 = vor.u32 %v1843, %v1839
        %v1845 = vrot.slane %v1844, 4
        %v1847 = vshll.u32 %v1719, 16
        %v1849 = vrot.slane %v1847, 5
        %v1850 = vsel %vm1119, %v1845, %v1849
        %v1852 = vshrl.u32 %v1693, 16
        %v1854 = vrot.slane %v1852, 4
        %v1855 = vshll.u32 %v1693, 16
        %v1857 = vrot.slane %v1855, 5
        %v1858 = vor.u32 %v1854, %v1857
        %v1859 = vrot.slane %v1858, 4
        %v1861 = vshll.u32 %v1694, 16
        %v1863 = vrot.slane %v1861, 5
        %v1864 = vsel %vm1119, %v1859, %v1863
        %v1865 = vshrl.u32 %v1694, 16
        %v1867 = vrot.slane %v1865, 4
        %v1868 = vor.u32 %v1867, %v1863
        %v1869 = vrot.slane %v1868, 4
        %v1871 = vshll.u32 %v1720, 16
        %v1873 = vrot.slane %v1871, 5
        %v1874 = vsel %vm1119, %v1869, %v1873
        %v1876 = vshrl.u32 %v1695, 16
        %v1878 = vrot.slane %v1876, 4
        %v1879 = vshll.u32 %v1695, 16
        %v1881 = vrot.slane %v1879, 5
        %v1882 = vor.u32 %v1878, %v1881
        %v1883 = vrot.slane %v1882, 4
        %v1885 = vshll.u32 %v1696, 16
        %v1887 = vrot.slane %v1885, 5
        %v1888 = vsel %vm1119, %v1883, %v1887
        %v1889 = vshrl.u32 %v1696, 16
        %v1891 = vrot.slane %v1889, 4
        %v1892 = vor.u32 %v1891, %v1887
        %v1893 = vrot.slane %v1892, 4
        %v1895 = vshll.u32 %v1721, 16
        %v1897 = vrot.slane %v1895, 5
        %v1898 = vsel %vm1119, %v1893, %v1897
        %v1900 = vshrl.u32 %v1697, 16
        %v1902 = vrot.slane %v1900, 4
        %v1903 = vshll.u32 %v1697, 16
        %v1905 = vrot.slane %v1903, 5
        %v1906 = vor.u32 %v1902, %v1905
        %v1907 = vrot.slane %v1906, 4
        %v1909 = vshll.u32 %v1698, 16
        %v1911 = vrot.slane %v1909, 5
        %v1912 = vsel %vm1119, %v1907, %v1911
        %v1913 = vshrl.u32 %v1698, 16
        %v1915 = vrot.slane %v1913, 4
        %v1916 = vor.u32 %v1915, %v1911
        %v1917 = vrot.slane %v1916, 4
        %v1919 = vshll.u32 %v1722, 16
        %v1921 = vrot.slane %v1919, 5
        %v1922 = vsel %vm1119, %v1917, %v1921
        %v1924 = vshrl.u32 %v1699, 16
        %v1926 = vrot.slane %v1924, 4
        %v1927 = vshll.u32 %v1699, 16
        %v1929 = vrot.slane %v1927, 5
        %v1930 = vor.u32 %v1926, %v1929
        %v1931 = vrot.slane %v1930, 4
        %v1933 = vshll.u32 %v1700, 16
        %v1935 = vrot.slane %v1933, 5
        %v1936 = vsel %vm1119, %v1931, %v1935
        %v1937 = vshrl.u32 %v1700, 16
        %v1939 = vrot.slane %v1937, 4
        %v1940 = vor.u32 %v1939, %v1935
        %v1941 = vrot.slane %v1940, 4
        %v1943 = vshll.u32 %v1723, 16
        %v1945 = vrot.slane %v1943, 5
        %v1946 = vsel %vm1119, %v1941, %v1945
        %v1948 = vshrl.u32 %v1701, 16
        %v1950 = vrot.slane %v1948, 4
        %v1951 = vshll.u32 %v1701, 16
        %v1953 = vrot.slane %v1951, 5
        %v1954 = vor.u32 %v1950, %v1953
        %v1955 = vrot.slane %v1954, 4
        %v1957 = vshll.u32 %v1702, 16
        %v1959 = vrot.slane %v1957, 5
        %v1960 = vsel %vm1119, %v1955, %v1959
        %v1961 = vshrl.u32 %v1702, 16
        %v1963 = vrot.slane %v1961, 4
        %v1964 = vor.u32 %v1963, %v1959
        %v1965 = vrot.slane %v1964, 4
        %v1967 = vshll.u32 %v1724, 16
        %v1969 = vrot.slane %v1967, 5
        %v1970 = vsel %vm1119, %v1965, %v1969
        %v1972 = vshrl.u32 %v1703, 16
        %v1974 = vrot.slane %v1972, 4
        %v1975 = vshll.u32 %v1703, 16
        %v1977 = vrot.slane %v1975, 5
        %v1978 = vor.u32 %v1974, %v1977
        %v1979 = vrot.slane %v1978, 4
        %v1981 = vshll.u32 %v1704, 16
        %v1983 = vrot.slane %v1981, 5
        %v1984 = vsel %vm1119, %v1979, %v1983
        %v1985 = vshrl.u32 %v1704, 16
        %v1987 = vrot.slane %v1985, 4
        %v1988 = vor.u32 %v1987, %v1983
        %v1989 = vrot.slane %v1988, 4
        %v1991 = vshll.u32 %v1725, 16
        %v1993 = vrot.slane %v1991, 5
        %v1994 = vsel %vm1119, %v1989, %v1993
        %v1996 = vshrl.u32 %v1705, 16
        %v1998 = vrot.slane %v1996, 4
        %v1999 = vshll.u32 %v1705, 16
        %v2001 = vrot.slane %v1999, 5
        %v2002 = vor.u32 %v1998, %v2001
        %v2003 = vrot.slane %v2002, 4
        %v2005 = vshll.u32 %v1706, 16
        %v2007 = vrot.slane %v2005, 5
        %v2008 = vsel %vm1119, %v2003, %v2007
        %v2009 = vshrl.u32 %v1706, 16
        %v2011 = vrot.slane %v2009, 4
        %v2012 = vor.u32 %v2011, %v2007
        %v2013 = vrot.slane %v2012, 4
        %v2015 = vshll.u32 %v1726, 16
        %v2017 = vrot.slane %v2015, 5
        %v2018 = vsel %vm1119, %v2013, %v2017
        %v2020 = vshrl.u32 %v1707, 16
        %v2022 = vrot.slane %v2020, 4
        %v2023 = vshll.u32 %v1707, 16
        %v2025 = vrot.slane %v2023, 5
        %v2026 = vor.u32 %v2022, %v2025
        %v2027 = vrot.slane %v2026, 4
        %v2029 = vshll.u32 %v1708, 16
        %v2031 = vrot.slane %v2029, 5
        %v2032 = vsel %vm1119, %v2027, %v2031
        %v2033 = vshrl.u32 %v1708, 16
        %v2035 = vrot.slane %v2033, 4
        %v2036 = vor.u32 %v2035, %v2031
        %v2037 = vrot.slane %v2036, 4
        %v2039 = vshll.u32 %v1727, 16
        %v2041 = vrot.slane %v2039, 5
        %v2042 = vsel %vm1119, %v2037, %v2041
        %v2044 = vshrl.u32 %v1709, 16
        %v2046 = vrot.slane %v2044, 4
        %v2047 = vshll.u32 %v1709, 16
        %v2049 = vrot.slane %v2047, 5
        %v2050 = vor.u32 %v2046, %v2049
        %v2051 = vrot.slane %v2050, 4
        %v2053 = vshll.u32 %v1710, 16
        %v2055 = vrot.slane %v2053, 5
        %v2056 = vsel %vm1119, %v2051, %v2055
        %v2057 = vshrl.u32 %v1710, 16
        %v2059 = vrot.slane %v2057, 4
        %v2060 = vor.u32 %v2059, %v2055
        %v2061 = vrot.slane %v2060, 4
        %v2063 = vshll.u32 %v1728, 16
        %v2065 = vrot.slane %v2063, 5
        %v2066 = vsel %vm1119, %v2061, %v2065
        %v2068 = vshrl.u32 %v1711, 16
        %v2070 = vrot.slane %v2068, 4
        %v2071 = vshll.u32 %v1711, 16
        %v2073 = vrot.slane %v2071, 5
        %v2074 = vor.u32 %v2070, %v2073
        %v2075 = vrot.slane %v2074, 4
        %v2077 = vshll.u32 %v1712, 16
        %v2079 = vrot.slane %v2077, 5
        %v2080 = vsel %vm1119, %v2075, %v2079
        %v2081 = vshrl.u32 %v1712, 16
        %v2083 = vrot.slane %v2081, 4
        %v2084 = vor.u32 %v2083, %v2079
        %v2085 = vrot.slane %v2084, 4
        %v2087 = vshll.u32 %v1729, 16
        %v2089 = vrot.slane %v2087, 5
        %v2090 = vsel %vm1119, %v2085, %v2089
        %v2092 = vshrl.u32 %v1713, 16
        %v2094 = vrot.slane %v2092, 4
        %v2095 = vshll.u32 %v1713, 16
        %v2097 = vrot.slane %v2095, 5
        %v2098 = vor.u32 %v2094, %v2097
        %v2099 = vrot.slane %v2098, 4
        %v2101 = vshll.u32 %v1714, 16
        %v2103 = vrot.slane %v2101, 5
        %v2104 = vsel %vm1119, %v2099, %v2103
        %v2105 = vshrl.u32 %v1714, 16
        %v2107 = vrot.slane %v2105, 4
        %v2108 = vor.u32 %v2107, %v2103
        %v2109 = vrot.slane %v2108, 4
        %v2111 = vshll.u32 %v1730, 16
        %v2113 = vrot.slane %v2111, 5
        %v2114 = vsel %vm1119, %v2109, %v2113
        %v2115 = vld [vmem:[%s951] sm:$0xe]
        %v2116 = vld [vmem:[%s951 + $0xc] sm:$0xe]
        %v2117 = vld [vmem:[%s951 + $0x18] sm:$0xe]
        %v2118 = vld [vmem:[%s951 + $0x24] sm:$0xe]
        %v2119 = vld [vmem:[%s951 + $0x30] sm:$0xe]
        %v2120 = vld [vmem:[%s951 + $0x3c] sm:$0xe]
        %v2121 = vld [vmem:[%s951 + $0x48] sm:$0xe]
        %v2122 = vld [vmem:[%s951 + $0x54] sm:$0xe]
        %v2123 = vld [vmem:[%s951 + $0x60] sm:$0xe]
        %v2124 = vld [vmem:[%s951 + $0x6c] sm:$0xe]
        %v2125 = vld [vmem:[%s951 + $0x78] sm:$0xe]
        %v2126 = vld [vmem:[%s951 + $0x84] sm:$0xe]
        %v2127 = vld [vmem:[%s951 + $0x90] sm:$0xe]
        %v2128 = vld [vmem:[%s951 + $0x9c] sm:$0xe]
        %v2129 = vld [vmem:[%s951 + $0xa8] sm:$0xe]
        %v2130 = vld [vmem:[%s951 + $0xb4] sm:$0xe]
        %v2179 = vrot.slane %v2115, 5
        %v2180 = vrot.slane %v2179, 4
        %v2181 = vrot.slane %v1684, 5
        %v2182 = vsel %vm1570, %v2180, %v2181
        %v2183 = vrot.slane %v2181, 4
        %v2184 = vrot.slane %v1715, 5
        %v2185 = vsel %vm1570, %v2183, %v2184
        %v2186 = vrot.slane %v2116, 5
        %v2187 = vrot.slane %v2186, 4
        %v2188 = vrot.slane %v1686, 5
        %v2189 = vsel %vm1570, %v2187, %v2188
        %v2190 = vrot.slane %v2188, 4
        %v2191 = vrot.slane %v1716, 5
        %v2192 = vsel %vm1570, %v2190, %v2191
        %v2193 = vrot.slane %v2117, 5
        %v2194 = vrot.slane %v2193, 4
        %v2195 = vrot.slane %v1688, 5
        %v2196 = vsel %vm1570, %v2194, %v2195
        %v2197 = vrot.slane %v2195, 4
        %v2198 = vrot.slane %v1717, 5
        %v2199 = vsel %vm1570, %v2197, %v2198
        %v2200 = vrot.slane %v2118, 5
        %v2201 = vrot.slane %v2200, 4
        %v2202 = vrot.slane %v1690, 5
        %v2203 = vsel %vm1570, %v2201, %v2202
        %v2204 = vrot.slane %v2202, 4
        %v2205 = vrot.slane %v1718, 5
        %v2206 = vsel %vm1570, %v2204, %v2205
        %v2207 = vrot.slane %v2119, 5
        %v2208 = vrot.slane %v2207, 4
        %v2209 = vrot.slane %v1692, 5
        %v2210 = vsel %vm1570, %v2208, %v2209
        %v2211 = vrot.slane %v2209, 4
        %v2212 = vrot.slane %v1719, 5
        %v2213 = vsel %vm1570, %v2211, %v2212
        %v2214 = vrot.slane %v2120, 5
        %v2215 = vrot.slane %v2214, 4
        %v2216 = vrot.slane %v1694, 5
        %v2217 = vsel %vm1570, %v2215, %v2216
        %v2218 = vrot.slane %v2216, 4
        %v2219 = vrot.slane %v1720, 5
        %v2220 = vsel %vm1570, %v2218, %v2219
        %v2221 = vrot.slane %v2121, 5
        %v2222 = vrot.slane %v2221, 4
        %v2223 = vrot.slane %v1696, 5
        %v2224 = vsel %vm1570, %v2222, %v2223
        %v2225 = vrot.slane %v2223, 4
        %v2226 = vrot.slane %v1721, 5
        %v2227 = vsel %vm1570, %v2225, %v2226
        %v2228 = vrot.slane %v2122, 5
        %v2229 = vrot.slane %v2228, 4
        %v2230 = vrot.slane %v1698, 5
        %v2231 = vsel %vm1570, %v2229, %v2230
        %v2232 = vrot.slane %v2230, 4
        %v2233 = vrot.slane %v1722, 5
        %v2234 = vsel %vm1570, %v2232, %v2233
        %v2235 = vrot.slane %v2123, 5
        %v2236 = vrot.slane %v2235, 4
        %v2237 = vrot.slane %v1700, 5
        %v2238 = vsel %vm1570, %v2236, %v2237
        %v2239 = vrot.slane %v2237, 4
        %v2240 = vrot.slane %v1723, 5
        %v2241 = vsel %vm1570, %v2239, %v2240
        %v2242 = vrot.slane %v2124, 5
        %v2243 = vrot.slane %v2242, 4
        %v2244 = vrot.slane %v1702, 5
        %v2245 = vsel %vm1570, %v2243, %v2244
        %v2246 = vrot.slane %v2244, 4
        %v2247 = vrot.slane %v1724, 5
        %v2248 = vsel %vm1570, %v2246, %v2247
        %v2249 = vrot.slane %v2125, 5
        %v2250 = vrot.slane %v2249, 4
        %v2251 = vrot.slane %v1704, 5
        %v2252 = vsel %vm1570, %v2250, %v2251
        %v2253 = vrot.slane %v2251, 4
        %v2254 = vrot.slane %v1725, 5
        %v2255 = vsel %vm1570, %v2253, %v2254
        %v2256 = vrot.slane %v2126, 5
        %v2257 = vrot.slane %v2256, 4
        %v2258 = vrot.slane %v1706, 5
        %v2259 = vsel %vm1570, %v2257, %v2258
        %v2260 = vrot.slane %v2258, 4
        %v2261 = vrot.slane %v1726, 5
        %v2262 = vsel %vm1570, %v2260, %v2261
        %v2263 = vrot.slane %v2127, 5
        %v2264 = vrot.slane %v2263, 4
        %v2265 = vrot.slane %v1708, 5
        %v2266 = vsel %vm1570, %v2264, %v2265
        %v2267 = vrot.slane %v2265, 4
        %v2268 = vrot.slane %v1727, 5
        %v2269 = vsel %vm1570, %v2267, %v2268
        %v2270 = vrot.slane %v2128, 5
        %v2271 = vrot.slane %v2270, 4
        %v2272 = vrot.slane %v1710, 5
        %v2273 = vsel %vm1570, %v2271, %v2272
        %v2274 = vrot.slane %v2272, 4
        %v2275 = vrot.slane %v1728, 5
        %v2276 = vsel %vm1570, %v2274, %v2275
        %v2277 = vrot.slane %v2129, 5
        %v2278 = vrot.slane %v2277, 4
        %v2279 = vrot.slane %v1712, 5
        %v2280 = vsel %vm1570, %v2278, %v2279
        %v2281 = vrot.slane %v2279, 4
        %v2282 = vrot.slane %v1729, 5
        %v2283 = vsel %vm1570, %v2281, %v2282
        %v2284 = vrot.slane %v2130, 5
        %v2285 = vrot.slane %v2284, 4
        %v2286 = vrot.slane %v1714, 5
        %v2287 = vsel %vm1570, %v2285, %v2286
        %v2288 = vrot.slane %v2286, 4
        %v2289 = vrot.slane %v1730, 5
        %v2290 = vsel %vm1570, %v2288, %v2289
        %s2291 = scalar_lea.vmem [#allocation2], 24
        %v2292 = vld [vmem:[%s2291] sm:$0xf]
        %v2293 = vld [vmem:[%s2291 + $0x4] sm:$0xf]
        %v2294 = vld [vmem:[%s2291 + $0xc] sm:$0xf]
        %v2295 = vld [vmem:[%s2291 + $0x10] sm:$0xf]
        %v2296 = vld [vmem:[%s2291 + $0x18] sm:$0xf]
        %v2297 = vld [vmem:[%s2291 + $0x1c] sm:$0xf]
        %v2298 = vld [vmem:[%s2291 + $0x24] sm:$0xf]
        %v2299 = vld [vmem:[%s2291 + $0x28] sm:$0xf]
        %v2300 = vld [vmem:[%s2291 + $0x30] sm:$0xf]
        %v2301 = vld [vmem:[%s2291 + $0x34] sm:$0xf]
        %v2302 = vld [vmem:[%s2291 + $0x3c] sm:$0xf]
        %v2303 = vld [vmem:[%s2291 + $0x40] sm:$0xf]
        %v2304 = vld [vmem:[%s2291 + $0x48] sm:$0xf]
        %v2305 = vld [vmem:[%s2291 + $0x4c] sm:$0xf]
        %v2306 = vld [vmem:[%s2291 + $0x54] sm:$0xf]
        %v2307 = vld [vmem:[%s2291 + $0x58] sm:$0xf]
        %v2308 = vld [vmem:[%s2291 + $0x60] sm:$0xf]
        %v2309 = vld [vmem:[%s2291 + $0x64] sm:$0xf]
        %v2310 = vld [vmem:[%s2291 + $0x6c] sm:$0xf]
        %v2311 = vld [vmem:[%s2291 + $0x70] sm:$0xf]
        %v2312 = vld [vmem:[%s2291 + $0x78] sm:$0xf]
        %v2313 = vld [vmem:[%s2291 + $0x7c] sm:$0xf]
        %v2314 = vld [vmem:[%s2291 + $0x84] sm:$0xf]
        %v2315 = vld [vmem:[%s2291 + $0x88] sm:$0xf]
        %v2316 = vld [vmem:[%s2291 + $0x90] sm:$0xf]
        %v2317 = vld [vmem:[%s2291 + $0x94] sm:$0xf]
        %v2318 = vld [vmem:[%s2291 + $0x9c] sm:$0xf]
        %v2319 = vld [vmem:[%s2291 + $0xa0] sm:$0xf]
        %v2320 = vld [vmem:[%s2291 + $0xa8] sm:$0xf]
        %v2321 = vld [vmem:[%s2291 + $0xac] sm:$0xf]
        %v2322 = vld [vmem:[%s2291 + $0xb4] sm:$0xf]
        %v2323 = vld [vmem:[%s2291 + $0xb8] sm:$0xf]
        %v2324 = vld [vmem:[%s2291 + $0x8] sm:$0x1]
        %v2325 = vld [vmem:[%s2291 + $0x14] sm:$0x1]
        %v2326 = vld [vmem:[%s2291 + $0x20] sm:$0x1]
        %v2327 = vld [vmem:[%s2291 + $0x2c] sm:$0x1]
        %v2328 = vld [vmem:[%s2291 + $0x38] sm:$0x1]
        %v2329 = vld [vmem:[%s2291 + $0x44] sm:$0x1]
        %v2330 = vld [vmem:[%s2291 + $0x50] sm:$0x1]
        %v2331 = vld [vmem:[%s2291 + $0x5c] sm:$0x1]
        %v2332 = vld [vmem:[%s2291 + $0x68] sm:$0x1]
        %v2333 = vld [vmem:[%s2291 + $0x74] sm:$0x1]
        %v2334 = vld [vmem:[%s2291 + $0x80] sm:$0x1]
        %v2335 = vld [vmem:[%s2291 + $0x8c] sm:$0x1]
        %v2336 = vld [vmem:[%s2291 + $0x98] sm:$0x1]
        %v2337 = vld [vmem:[%s2291 + $0xa4] sm:$0x1]
        %v2338 = vld [vmem:[%s2291 + $0xb0] sm:$0x1]
        %v2339 = vld [vmem:[%s2291 + $0xbc] sm:$0x1]
        %v2341 = vshrl.u32 %v2292, 16
        %v2343 = vrot.slane %v2341, 4
        %v2344 = vshll.u32 %v2292, 16
        %v2346 = vrot.slane %v2344, 5
        %v2347 = vor.u32 %v2343, %v2346
        %v2348 = vrot.slane %v2347, 4
        %v2350 = vshll.u32 %v2293, 16
        %v2352 = vrot.slane %v2350, 5
        %v2353 = vsel %vm1119, %v2348, %v2352
        %v2354 = vshrl.u32 %v2293, 16
        %v2356 = vrot.slane %v2354, 4
        %v2357 = vor.u32 %v2356, %v2352
        %v2358 = vrot.slane %v2357, 4
        %v2360 = vshll.u32 %v2324, 16
        %v2362 = vrot.slane %v2360, 5
        %v2363 = vsel %vm1119, %v2358, %v2362
        %v2365 = vshrl.u32 %v2294, 16
        %v2367 = vrot.slane %v2365, 4
        %v2368 = vshll.u32 %v2294, 16
        %v2370 = vrot.slane %v2368, 5
        %v2371 = vor.u32 %v2367, %v2370
        %v2372 = vrot.slane %v2371, 4
        %v2374 = vshll.u32 %v2295, 16
        %v2376 = vrot.slane %v2374, 5
        %v2377 = vsel %vm1119, %v2372, %v2376
        %v2378 = vshrl.u32 %v2295, 16
        %v2380 = vrot.slane %v2378, 4
        %v2381 = vor.u32 %v2380, %v2376
        %v2382 = vrot.slane %v2381, 4
        %v2384 = vshll.u32 %v2325, 16
        %v2386 = vrot.slane %v2384, 5
        %v2387 = vsel %vm1119, %v2382, %v2386
        %v2389 = vshrl.u32 %v2296, 16
        %v2391 = vrot.slane %v2389, 4
        %v2392 = vshll.u32 %v2296, 16
        %v2394 = vrot.slane %v2392, 5
        %v2395 = vor.u32 %v2391, %v2394
        %v2396 = vrot.slane %v2395, 4
        %v2398 = vshll.u32 %v2297, 16
        %v2400 = vrot.slane %v2398, 5
        %v2401 = vsel %vm1119, %v2396, %v2400
        %v2402 = vshrl.u32 %v2297, 16
        %v2404 = vrot.slane %v2402, 4
        %v2405 = vor.u32 %v2404, %v2400
        %v2406 = vrot.slane %v2405, 4
        %v2408 = vshll.u32 %v2326, 16
        %v2410 = vrot.slane %v2408, 5
        %v2411 = vsel %vm1119, %v2406, %v2410
        %v2413 = vshrl.u32 %v2298, 16
        %v2415 = vrot.slane %v2413, 4
        %v2416 = vshll.u32 %v2298, 16
        %v2418 = vrot.slane %v2416, 5
        %v2419 = vor.u32 %v2415, %v2418
        %v2420 = vrot.slane %v2419, 4
        %v2422 = vshll.u32 %v2299, 16
        %v2424 = vrot.slane %v2422, 5
        %v2425 = vsel %vm1119, %v2420, %v2424
        %v2426 = vshrl.u32 %v2299, 16
        %v2428 = vrot.slane %v2426, 4
        %v2429 = vor.u32 %v2428, %v2424
        %v2430 = vrot.slane %v2429, 4
        %v2432 = vshll.u32 %v2327, 16
        %v2434 = vrot.slane %v2432, 5
        %v2435 = vsel %vm1119, %v2430, %v2434
        %v2437 = vshrl.u32 %v2300, 16
        %v2439 = vrot.slane %v2437, 4
        %v2440 = vshll.u32 %v2300, 16
        %v2442 = vrot.slane %v2440, 5
        %v2443 = vor.u32 %v2439, %v2442
        %v2444 = vrot.slane %v2443, 4
        %v2446 = vshll.u32 %v2301, 16
        %v2448 = vrot.slane %v2446, 5
        %v2449 = vsel %vm1119, %v2444, %v2448
        %v2450 = vshrl.u32 %v2301, 16
        %v2452 = vrot.slane %v2450, 4
        %v2453 = vor.u32 %v2452, %v2448
        %v2454 = vrot.slane %v2453, 4
        %v2456 = vshll.u32 %v2328, 16
        %v2458 = vrot.slane %v2456, 5
        %v2459 = vsel %vm1119, %v2454, %v2458
        %v2461 = vshrl.u32 %v2302, 16
        %v2463 = vrot.slane %v2461, 4
        %v2464 = vshll.u32 %v2302, 16
        %v2466 = vrot.slane %v2464, 5
        %v2467 = vor.u32 %v2463, %v2466
        %v2468 = vrot.slane %v2467, 4
        %v2470 = vshll.u32 %v2303, 16
        %v2472 = vrot.slane %v2470, 5
        %v2473 = vsel %vm1119, %v2468, %v2472
        %v2474 = vshrl.u32 %v2303, 16
        %v2476 = vrot.slane %v2474, 4
        %v2477 = vor.u32 %v2476, %v2472
        %v2478 = vrot.slane %v2477, 4
        %v2480 = vshll.u32 %v2329, 16
        %v2482 = vrot.slane %v2480, 5
        %v2483 = vsel %vm1119, %v2478, %v2482
        %v2485 = vshrl.u32 %v2304, 16
        %v2487 = vrot.slane %v2485, 4
        %v2488 = vshll.u32 %v2304, 16
        %v2490 = vrot.slane %v2488, 5
        %v2491 = vor.u32 %v2487, %v2490
        %v2492 = vrot.slane %v2491, 4
        %v2494 = vshll.u32 %v2305, 16
        %v2496 = vrot.slane %v2494, 5
        %v2497 = vsel %vm1119, %v2492, %v2496
        %v2498 = vshrl.u32 %v2305, 16
        %v2500 = vrot.slane %v2498, 4
        %v2501 = vor.u32 %v2500, %v2496
        %v2502 = vrot.slane %v2501, 4
        %v2504 = vshll.u32 %v2330, 16
        %v2506 = vrot.slane %v2504, 5
        %v2507 = vsel %vm1119, %v2502, %v2506
        %v2509 = vshrl.u32 %v2306, 16
        %v2511 = vrot.slane %v2509, 4
        %v2512 = vshll.u32 %v2306, 16
        %v2514 = vrot.slane %v2512, 5
        %v2515 = vor.u32 %v2511, %v2514
        %v2516 = vrot.slane %v2515, 4
        %v2518 = vshll.u32 %v2307, 16
        %v2520 = vrot.slane %v2518, 5
        %v2521 = vsel %vm1119, %v2516, %v2520
        %v2522 = vshrl.u32 %v2307, 16
        %v2524 = vrot.slane %v2522, 4
        %v2525 = vor.u32 %v2524, %v2520
        %v2526 = vrot.slane %v2525, 4
        %v2528 = vshll.u32 %v2331, 16
        %v2530 = vrot.slane %v2528, 5
        %v2531 = vsel %vm1119, %v2526, %v2530
        %v2533 = vshrl.u32 %v2308, 16
        %v2535 = vrot.slane %v2533, 4
        %v2536 = vshll.u32 %v2308, 16
        %v2538 = vrot.slane %v2536, 5
        %v2539 = vor.u32 %v2535, %v2538
        %v2540 = vrot.slane %v2539, 4
        %v2542 = vshll.u32 %v2309, 16
        %v2544 = vrot.slane %v2542, 5
        %v2545 = vsel %vm1119, %v2540, %v2544
        %v2546 = vshrl.u32 %v2309, 16
        %v2548 = vrot.slane %v2546, 4
        %v2549 = vor.u32 %v2548, %v2544
        %v2550 = vrot.slane %v2549, 4
        %v2552 = vshll.u32 %v2332, 16
        %v2554 = vrot.slane %v2552, 5
        %v2555 = vsel %vm1119, %v2550, %v2554
        %v2557 = vshrl.u32 %v2310, 16
        %v2559 = vrot.slane %v2557, 4
        %v2560 = vshll.u32 %v2310, 16
        %v2562 = vrot.slane %v2560, 5
        %v2563 = vor.u32 %v2559, %v2562
        %v2564 = vrot.slane %v2563, 4
        %v2566 = vshll.u32 %v2311, 16
        %v2568 = vrot.slane %v2566, 5
        %v2569 = vsel %vm1119, %v2564, %v2568
        %v2570 = vshrl.u32 %v2311, 16
        %v2572 = vrot.slane %v2570, 4
        %v2573 = vor.u32 %v2572, %v2568
        %v2574 = vrot.slane %v2573, 4
        %v2576 = vshll.u32 %v2333, 16
        %v2578 = vrot.slane %v2576, 5
        %v2579 = vsel %vm1119, %v2574, %v2578
        %v2581 = vshrl.u32 %v2312, 16
        %v2583 = vrot.slane %v2581, 4
        %v2584 = vshll.u32 %v2312, 16
        %v2586 = vrot.slane %v2584, 5
        %v2587 = vor.u32 %v2583, %v2586
        %v2588 = vrot.slane %v2587, 4
        %v2590 = vshll.u32 %v2313, 16
        %v2592 = vrot.slane %v2590, 5
        %v2593 = vsel %vm1119, %v2588, %v2592
        %v2594 = vshrl.u32 %v2313, 16
        %v2596 = vrot.slane %v2594, 4
        %v2597 = vor.u32 %v2596, %v2592
        %v2598 = vrot.slane %v2597, 4
        %v2600 = vshll.u32 %v2334, 16
        %v2602 = vrot.slane %v2600, 5
        %v2603 = vsel %vm1119, %v2598, %v2602
        %v2605 = vshrl.u32 %v2314, 16
        %v2607 = vrot.slane %v2605, 4
        %v2608 = vshll.u32 %v2314, 16
        %v2610 = vrot.slane %v2608, 5
        %v2611 = vor.u32 %v2607, %v2610
        %v2612 = vrot.slane %v2611, 4
        %v2614 = vshll.u32 %v2315, 16
        %v2616 = vrot.slane %v2614, 5
        %v2617 = vsel %vm1119, %v2612, %v2616
        %v2618 = vshrl.u32 %v2315, 16
        %v2620 = vrot.slane %v2618, 4
        %v2621 = vor.u32 %v2620, %v2616
        %v2622 = vrot.slane %v2621, 4
        %v2624 = vshll.u32 %v2335, 16
        %v2626 = vrot.slane %v2624, 5
        %v2627 = vsel %vm1119, %v2622, %v2626
        %v2629 = vshrl.u32 %v2316, 16
        %v2631 = vrot.slane %v2629, 4
        %v2632 = vshll.u32 %v2316, 16
        %v2634 = vrot.slane %v2632, 5
        %v2635 = vor.u32 %v2631, %v2634
        %v2636 = vrot.slane %v2635, 4
        %v2638 = vshll.u32 %v2317, 16
        %v2640 = vrot.slane %v2638, 5
        %v2641 = vsel %vm1119, %v2636, %v2640
        %v2642 = vshrl.u32 %v2317, 16
        %v2644 = vrot.slane %v2642, 4
        %v2645 = vor.u32 %v2644, %v2640
        %v2646 = vrot.slane %v2645, 4
        %v2648 = vshll.u32 %v2336, 16
        %v2650 = vrot.slane %v2648, 5
        %v2651 = vsel %vm1119, %v2646, %v2650
        %v2653 = vshrl.u32 %v2318, 16
        %v2655 = vrot.slane %v2653, 4
        %v2656 = vshll.u32 %v2318, 16
        %v2658 = vrot.slane %v2656, 5
        %v2659 = vor.u32 %v2655, %v2658
        %v2660 = vrot.slane %v2659, 4
        %v2662 = vshll.u32 %v2319, 16
        %v2664 = vrot.slane %v2662, 5
        %v2665 = vsel %vm1119, %v2660, %v2664
        %v2666 = vshrl.u32 %v2319, 16
        %v2668 = vrot.slane %v2666, 4
        %v2669 = vor.u32 %v2668, %v2664
        %v2670 = vrot.slane %v2669, 4
        %v2672 = vshll.u32 %v2337, 16
        %v2674 = vrot.slane %v2672, 5
        %v2675 = vsel %vm1119, %v2670, %v2674
        %v2677 = vshrl.u32 %v2320, 16
        %v2679 = vrot.slane %v2677, 4
        %v2680 = vshll.u32 %v2320, 16
        %v2682 = vrot.slane %v2680, 5
        %v2683 = vor.u32 %v2679, %v2682
        %v2684 = vrot.slane %v2683, 4
        %v2686 = vshll.u32 %v2321, 16
        %v2688 = vrot.slane %v2686, 5
        %v2689 = vsel %vm1119, %v2684, %v2688
        %v2690 = vshrl.u32 %v2321, 16
        %v2692 = vrot.slane %v2690, 4
        %v2693 = vor.u32 %v2692, %v2688
        %v2694 = vrot.slane %v2693, 4
        %v2696 = vshll.u32 %v2338, 16
        %v2698 = vrot.slane %v2696, 5
        %v2699 = vsel %vm1119, %v2694, %v2698
        %v2701 = vshrl.u32 %v2322, 16
        %v2703 = vrot.slane %v2701, 4
        %v2704 = vshll.u32 %v2322, 16
        %v2706 = vrot.slane %v2704, 5
        %v2707 = vor.u32 %v2703, %v2706
        %v2708 = vrot.slane %v2707, 4
        %v2710 = vshll.u32 %v2323, 16
        %v2712 = vrot.slane %v2710, 5
        %v2713 = vsel %vm1119, %v2708, %v2712
        %v2714 = vshrl.u32 %v2323, 16
        %v2716 = vrot.slane %v2714, 4
        %v2717 = vor.u32 %v2716, %v2712
        %v2718 = vrot.slane %v2717, 4
        %v2720 = vshll.u32 %v2339, 16
        %v2722 = vrot.slane %v2720, 5
        %v2723 = vsel %vm1119, %v2718, %v2722
        %v2724 = vld [vmem:[%s2291] sm:$0xe]
        %v2725 = vld [vmem:[%s2291 + $0xc] sm:$0xe]
        %v2726 = vld [vmem:[%s2291 + $0x18] sm:$0xe]
        %v2727 = vld [vmem:[%s2291 + $0x24] sm:$0xe]
        %v2728 = vld [vmem:[%s2291 + $0x30] sm:$0xe]
        %v2729 = vld [vmem:[%s2291 + $0x3c] sm:$0xe]
        %v2730 = vld [vmem:[%s2291 + $0x48] sm:$0xe]
        %v2731 = vld [vmem:[%s2291 + $0x54] sm:$0xe]
        %v2732 = vld [vmem:[%s2291 + $0x60] sm:$0xe]
        %v2733 = vld [vmem:[%s2291 + $0x6c] sm:$0xe]
        %v2734 = vld [vmem:[%s2291 + $0x78] sm:$0xe]
        %v2735 = vld [vmem:[%s2291 + $0x84] sm:$0xe]
        %v2736 = vld [vmem:[%s2291 + $0x90] sm:$0xe]
        %v2737 = vld [vmem:[%s2291 + $0x9c] sm:$0xe]
        %v2738 = vld [vmem:[%s2291 + $0xa8] sm:$0xe]
        %v2739 = vld [vmem:[%s2291 + $0xb4] sm:$0xe]
        %v2788 = vrot.slane %v2724, 5
        %v2789 = vrot.slane %v2788, 4
        %v2790 = vrot.slane %v2293, 5
        %v2791 = vsel %vm1570, %v2789, %v2790
        %v2792 = vrot.slane %v2790, 4
        %v2793 = vrot.slane %v2324, 5
        %v2794 = vsel %vm1570, %v2792, %v2793
        %v2795 = vrot.slane %v2725, 5
        %v2796 = vrot.slane %v2795, 4
        %v2797 = vrot.slane %v2295, 5
        %v2798 = vsel %vm1570, %v2796, %v2797
        %v2799 = vrot.slane %v2797, 4
        %v2800 = vrot.slane %v2325, 5
        %v2801 = vsel %vm1570, %v2799, %v2800
        %v2802 = vrot.slane %v2726, 5
        %v2803 = vrot.slane %v2802, 4
        %v2804 = vrot.slane %v2297, 5
        %v2805 = vsel %vm1570, %v2803, %v2804
        %v2806 = vrot.slane %v2804, 4
        %v2807 = vrot.slane %v2326, 5
        %v2808 = vsel %vm1570, %v2806, %v2807
        %v2809 = vrot.slane %v2727, 5
        %v2810 = vrot.slane %v2809, 4
        %v2811 = vrot.slane %v2299, 5
        %v2812 = vsel %vm1570, %v2810, %v2811
        %v2813 = vrot.slane %v2811, 4
        %v2814 = vrot.slane %v2327, 5
        %v2815 = vsel %vm1570, %v2813, %v2814
        %v2816 = vrot.slane %v2728, 5
        %v2817 = vrot.slane %v2816, 4
        %v2818 = vrot.slane %v2301, 5
        %v2819 = vsel %vm1570, %v2817, %v2818
        %v2820 = vrot.slane %v2818, 4
        %v2821 = vrot.slane %v2328, 5
        %v2822 = vsel %vm1570, %v2820, %v2821
        %v2823 = vrot.slane %v2729, 5
        %v2824 = vrot.slane %v2823, 4
        %v2825 = vrot.slane %v2303, 5
        %v2826 = vsel %vm1570, %v2824, %v2825
        %v2827 = vrot.slane %v2825, 4
        %v2828 = vrot.slane %v2329, 5
        %v2829 = vsel %vm1570, %v2827, %v2828
        %v2830 = vrot.slane %v2730, 5
        %v2831 = vrot.slane %v2830, 4
        %v2832 = vrot.slane %v2305, 5
        %v2833 = vsel %vm1570, %v2831, %v2832
        %v2834 = vrot.slane %v2832, 4
        %v2835 = vrot.slane %v2330, 5
        %v2836 = vsel %vm1570, %v2834, %v2835
        %v2837 = vrot.slane %v2731, 5
        %v2838 = vrot.slane %v2837, 4
        %v2839 = vrot.slane %v2307, 5
        %v2840 = vsel %vm1570, %v2838, %v2839
        %v2841 = vrot.slane %v2839, 4
        %v2842 = vrot.slane %v2331, 5
        %v2843 = vsel %vm1570, %v2841, %v2842
        %v2844 = vrot.slane %v2732, 5
        %v2845 = vrot.slane %v2844, 4
        %v2846 = vrot.slane %v2309, 5
        %v2847 = vsel %vm1570, %v2845, %v2846
        %v2848 = vrot.slane %v2846, 4
        %v2849 = vrot.slane %v2332, 5
        %v2850 = vsel %vm1570, %v2848, %v2849
        %v2851 = vrot.slane %v2733, 5
        %v2852 = vrot.slane %v2851, 4
        %v2853 = vrot.slane %v2311, 5
        %v2854 = vsel %vm1570, %v2852, %v2853
        %v2855 = vrot.slane %v2853, 4
        %v2856 = vrot.slane %v2333, 5
        %v2857 = vsel %vm1570, %v2855, %v2856
        %v2858 = vrot.slane %v2734, 5
        %v2859 = vrot.slane %v2858, 4
        %v2860 = vrot.slane %v2313, 5
        %v2861 = vsel %vm1570, %v2859, %v2860
        %v2862 = vrot.slane %v2860, 4
        %v2863 = vrot.slane %v2334, 5
        %v2864 = vsel %vm1570, %v2862, %v2863
        %v2865 = vrot.slane %v2735, 5
        %v2866 = vrot.slane %v2865, 4
        %v2867 = vrot.slane %v2315, 5
        %v2868 = vsel %vm1570, %v2866, %v2867
        %v2869 = vrot.slane %v2867, 4
        %v2870 = vrot.slane %v2335, 5
        %v2871 = vsel %vm1570, %v2869, %v2870
        %v2872 = vrot.slane %v2736, 5
        %v2873 = vrot.slane %v2872, 4
        %v2874 = vrot.slane %v2317, 5
        %v2875 = vsel %vm1570, %v2873, %v2874
        %v2876 = vrot.slane %v2874, 4
        %v2877 = vrot.slane %v2336, 5
        %v2878 = vsel %vm1570, %v2876, %v2877
        %v2879 = vrot.slane %v2737, 5
        %v2880 = vrot.slane %v2879, 4
        %v2881 = vrot.slane %v2319, 5
        %v2882 = vsel %vm1570, %v2880, %v2881
        %v2883 = vrot.slane %v2881, 4
        %v2884 = vrot.slane %v2337, 5
        %v2885 = vsel %vm1570, %v2883, %v2884
        %v2886 = vrot.slane %v2738, 5
        %v2887 = vrot.slane %v2886, 4
        %v2888 = vrot.slane %v2321, 5
        %v2889 = vsel %vm1570, %v2887, %v2888
        %v2890 = vrot.slane %v2888, 4
        %v2891 = vrot.slane %v2338, 5
        %v2892 = vsel %vm1570, %v2890, %v2891
        %v2893 = vrot.slane %v2739, 5
        %v2894 = vrot.slane %v2893, 4
        %v2895 = vrot.slane %v2323, 5
        %v2896 = vsel %vm1570, %v2894, %v2895
        %v2897 = vrot.slane %v2895, 4
        %v2898 = vrot.slane %v2339, 5
        %v2899 = vsel %vm1570, %v2897, %v2898
        %v2916 = vunpack.c.l.b16 %v1069
        %v2917 = vunpack.c.l.b16 %v1070
        %v2918 = vunpack.c.l.b16 %v1071
        %v2919 = vunpack.c.l.b16 %v1072
        %v2920 = vunpack.c.l.b16 %v1073
        %v2921 = vunpack.c.l.b16 %v1074
        %v2922 = vunpack.c.l.b16 %v1075
        %v2923 = vunpack.c.l.b16 %v1076
        %v2924 = vunpack.c.l.b16 %v1077
        %v2925 = vunpack.c.l.b16 %v1078
        %v2926 = vunpack.c.l.b16 %v1079
        %v2927 = vunpack.c.l.b16 %v1080
        %v2928 = vunpack.c.l.b16 %v1081
        %v2929 = vunpack.c.l.b16 %v1082
        %v2930 = vunpack.c.l.b16 %v1083
        %v2931 = vunpack.c.l.b16 %v1084
        %v2932 = vunpack.c.l.b16 %v1085
        %v2933 = vunpack.c.l.b16 %v1086
        %v2934 = vunpack.c.l.b16 %v1087
        %v2935 = vunpack.c.l.b16 %v1088
        %v2936 = vunpack.c.l.b16 %v1089
        %v2937 = vunpack.c.l.b16 %v1090
        %v2938 = vunpack.c.l.b16 %v1091
        %v2939 = vunpack.c.l.b16 %v1092
        %v2940 = vunpack.c.l.b16 %v1093
        %v2941 = vunpack.c.l.b16 %v1094
        %v2942 = vunpack.c.l.b16 %v1095
        %v2943 = vunpack.c.l.b16 %v1096
        %v2944 = vunpack.c.l.b16 %v1097
        %v2945 = vunpack.c.l.b16 %v1098
        %v2946 = vunpack.c.l.b16 %v1099
        %v2947 = vunpack.c.l.b16 %v1100
        %v2948 = vpack.c.b16 %v2917, %v2916
        %v2949 = vpack.c.b16 %v2919, %v2918
        %v2950 = vpack.c.b16 %v2921, %v2920
        %v2951 = vpack.c.b16 %v2923, %v2922
        %v2952 = vpack.c.b16 %v2925, %v2924
        %v2953 = vpack.c.b16 %v2927, %v2926
        %v2954 = vpack.c.b16 %v2929, %v2928
        %v2955 = vpack.c.b16 %v2931, %v2930
        %v2956 = vpack.c.b16 %v2933, %v2932
        %v2957 = vpack.c.b16 %v2935, %v2934
        %v2958 = vpack.c.b16 %v2937, %v2936
        %v2959 = vpack.c.b16 %v2939, %v2938
        %v2960 = vpack.c.b16 %v2941, %v2940
        %v2961 = vpack.c.b16 %v2943, %v2942
        %v2962 = vpack.c.b16 %v2945, %v2944
        %v2963 = vpack.c.b16 %v2947, %v2946
        %v2980 = vunpack.c.l.b16 %v1133
        %v2981 = vunpack.c.l.b16 %v1143
        %v2982 = vunpack.c.l.b16 %v1157
        %v2983 = vunpack.c.l.b16 %v1167
        %v2984 = vunpack.c.l.b16 %v1181
        %v2985 = vunpack.c.l.b16 %v1191
        %v2986 = vunpack.c.l.b16 %v1205
        %v2987 = vunpack.c.l.b16 %v1215
        %v2988 = vunpack.c.l.b16 %v1229
        %v2989 = vunpack.c.l.b16 %v1239
        %v2990 = vunpack.c.l.b16 %v1253
        %v2991 = vunpack.c.l.b16 %v1263
        %v2992 = vunpack.c.l.b16 %v1277
        %v2993 = vunpack.c.l.b16 %v1287
        %v2994 = vunpack.c.l.b16 %v1301
        %v2995 = vunpack.c.l.b16 %v1311
        %v2996 = vunpack.c.l.b16 %v1325
        %v2997 = vunpack.c.l.b16 %v1335
        %v2998 = vunpack.c.l.b16 %v1349
        %v2999 = vunpack.c.l.b16 %v1359
        %v3000 = vunpack.c.l.b16 %v1373
        %v3001 = vunpack.c.l.b16 %v1383
        %v3002 = vunpack.c.l.b16 %v1397
        %v3003 = vunpack.c.l.b16 %v1407
        %v3004 = vunpack.c.l.b16 %v1421
        %v3005 = vunpack.c.l.b16 %v1431
        %v3006 = vunpack.c.l.b16 %v1445
        %v3007 = vunpack.c.l.b16 %v1455
        %v3008 = vunpack.c.l.b16 %v1469
        %v3009 = vunpack.c.l.b16 %v1479
        %v3010 = vunpack.c.l.b16 %v1493
        %v3011 = vunpack.c.l.b16 %v1503
        %v3012 = vpack.c.b16 %v2981, %v2980
        %v3013 = vpack.c.b16 %v2983, %v2982
        %v3014 = vpack.c.b16 %v2985, %v2984
        %v3015 = vpack.c.b16 %v2987, %v2986
        %v3016 = vpack.c.b16 %v2989, %v2988
        %v3017 = vpack.c.b16 %v2991, %v2990
        %v3018 = vpack.c.b16 %v2993, %v2992
        %v3019 = vpack.c.b16 %v2995, %v2994
        %v3020 = vpack.c.b16 %v2997, %v2996
        %v3021 = vpack.c.b16 %v2999, %v2998
        %v3022 = vpack.c.b16 %v3001, %v3000
        %v3023 = vpack.c.b16 %v3003, %v3002
        %v3024 = vpack.c.b16 %v3005, %v3004
        %v3025 = vpack.c.b16 %v3007, %v3006
        %v3026 = vpack.c.b16 %v3009, %v3008
        %v3027 = vpack.c.b16 %v3011, %v3010
        %v3044 = vunpack.c.l.b16 %v1574
        %v3045 = vunpack.c.l.b16 %v1577
        %v3046 = vunpack.c.l.b16 %v1581
        %v3047 = vunpack.c.l.b16 %v1584
        %v3048 = vunpack.c.l.b16 %v1588
        %v3049 = vunpack.c.l.b16 %v1591
        %v3050 = vunpack.c.l.b16 %v1595
        %v3051 = vunpack.c.l.b16 %v1598
        %v3052 = vunpack.c.l.b16 %v1602
        %v3053 = vunpack.c.l.b16 %v1605
        %v3054 = vunpack.c.l.b16 %v1609
        %v3055 = vunpack.c.l.b16 %v1612
        %v3056 = vunpack.c.l.b16 %v1616
        %v3057 = vunpack.c.l.b16 %v1619
        %v3058 = vunpack.c.l.b16 %v1623
        %v3059 = vunpack.c.l.b16 %v1626
        %v3060 = vunpack.c.l.b16 %v1630
        %v3061 = vunpack.c.l.b16 %v1633
        %v3062 = vunpack.c.l.b16 %v1637
        %v3063 = vunpack.c.l.b16 %v1640
        %v3064 = vunpack.c.l.b16 %v1644
        %v3065 = vunpack.c.l.b16 %v1647
        %v3066 = vunpack.c.l.b16 %v1651
        %v3067 = vunpack.c.l.b16 %v1654
        %v3068 = vunpack.c.l.b16 %v1658
        %v3069 = vunpack.c.l.b16 %v1661
        %v3070 = vunpack.c.l.b16 %v1665
        %v3071 = vunpack.c.l.b16 %v1668
        %v3072 = vunpack.c.l.b16 %v1672
        %v3073 = vunpack.c.l.b16 %v1675
        %v3074 = vunpack.c.l.b16 %v1679
        %v3075 = vunpack.c.l.b16 %v1682
        %v3076 = vpack.c.b16 %v3045, %v3044
        %v3077 = vpack.c.b16 %v3047, %v3046
        %v3078 = vpack.c.b16 %v3049, %v3048
        %v3079 = vpack.c.b16 %v3051, %v3050
        %v3080 = vpack.c.b16 %v3053, %v3052
        %v3081 = vpack.c.b16 %v3055, %v3054
        %v3082 = vpack.c.b16 %v3057, %v3056
        %v3083 = vpack.c.b16 %v3059, %v3058
        %v3084 = vpack.c.b16 %v3061, %v3060
        %v3085 = vpack.c.b16 %v3063, %v3062
        %v3086 = vpack.c.b16 %v3065, %v3064
        %v3087 = vpack.c.b16 %v3067, %v3066
        %v3088 = vpack.c.b16 %v3069, %v3068
        %v3089 = vpack.c.b16 %v3071, %v3070
        %v3090 = vpack.c.b16 %v3073, %v3072
        %v3091 = vpack.c.b16 %v3075, %v3074
        %v3124 = vunpack.c.l.b16 %v1683
        %v3125 = vunpack.c.l.b16 %v1684
        %v3126 = vunpack.c.l.b16 %v1685
        %v3127 = vunpack.c.l.b16 %v1686
        %v3128 = vunpack.c.l.b16 %v1687
        %v3129 = vunpack.c.l.b16 %v1688
        %v3130 = vunpack.c.l.b16 %v1689
        %v3131 = vunpack.c.l.b16 %v1690
        %v3132 = vunpack.c.l.b16 %v1691
        %v3133 = vunpack.c.l.b16 %v1692
        %v3134 = vunpack.c.l.b16 %v1693
        %v3135 = vunpack.c.l.b16 %v1694
        %v3136 = vunpack.c.l.b16 %v1695
        %v3137 = vunpack.c.l.b16 %v1696
        %v3138 = vunpack.c.l.b16 %v1697
        %v3139 = vunpack.c.l.b16 %v1698
        %v3140 = vunpack.c.l.b16 %v1699
        %v3141 = vunpack.c.l.b16 %v1700
        %v3142 = vunpack.c.l.b16 %v1701
        %v3143 = vunpack.c.l.b16 %v1702
        %v3144 = vunpack.c.l.b16 %v1703
        %v3145 = vunpack.c.l.b16 %v1704
        %v3146 = vunpack.c.l.b16 %v1705
        %v3147 = vunpack.c.l.b16 %v1706
        %v3148 = vunpack.c.l.b16 %v1707
        %v3149 = vunpack.c.l.b16 %v1708
        %v3150 = vunpack.c.l.b16 %v1709
        %v3151 = vunpack.c.l.b16 %v1710
        %v3152 = vunpack.c.l.b16 %v1711
        %v3153 = vunpack.c.l.b16 %v1712
        %v3154 = vunpack.c.l.b16 %v1713
        %v3155 = vunpack.c.l.b16 %v1714
        %v3156 = vpack.c.b16 %v3125, %v3124
        %v3157 = vpack.c.b16 %v3127, %v3126
        %v3158 = vpack.c.b16 %v3129, %v3128
        %v3159 = vpack.c.b16 %v3131, %v3130
        %v3160 = vpack.c.b16 %v3133, %v3132
        %v3161 = vpack.c.b16 %v3135, %v3134
        %v3162 = vpack.c.b16 %v3137, %v3136
        %v3163 = vpack.c.b16 %v3139, %v3138
        %v3164 = vpack.c.b16 %v3141, %v3140
        %v3165 = vpack.c.b16 %v3143, %v3142
        %v3166 = vpack.c.b16 %v3145, %v3144
        %v3167 = vpack.c.b16 %v3147, %v3146
        %v3168 = vpack.c.b16 %v3149, %v3148
        %v3169 = vpack.c.b16 %v3151, %v3150
        %v3170 = vpack.c.b16 %v3153, %v3152
        %v3171 = vpack.c.b16 %v3155, %v3154
        %v3188 = vunpack.c.l.b16 %v1744
        %v3189 = vunpack.c.l.b16 %v1754
        %v3190 = vunpack.c.l.b16 %v1768
        %v3191 = vunpack.c.l.b16 %v1778
        %v3192 = vunpack.c.l.b16 %v1792
        %v3193 = vunpack.c.l.b16 %v1802
        %v3194 = vunpack.c.l.b16 %v1816
        %v3195 = vunpack.c.l.b16 %v1826
        %v3196 = vunpack.c.l.b16 %v1840
        %v3197 = vunpack.c.l.b16 %v1850
        %v3198 = vunpack.c.l.b16 %v1864
        %v3199 = vunpack.c.l.b16 %v1874
        %v3200 = vunpack.c.l.b16 %v1888
        %v3201 = vunpack.c.l.b16 %v1898
        %v3202 = vunpack.c.l.b16 %v1912
        %v3203 = vunpack.c.l.b16 %v1922
        %v3204 = vunpack.c.l.b16 %v1936
        %v3205 = vunpack.c.l.b16 %v1946
        %v3206 = vunpack.c.l.b16 %v1960
        %v3207 = vunpack.c.l.b16 %v1970
        %v3208 = vunpack.c.l.b16 %v1984
        %v3209 = vunpack.c.l.b16 %v1994
        %v3210 = vunpack.c.l.b16 %v2008
        %v3211 = vunpack.c.l.b16 %v2018
        %v3212 = vunpack.c.l.b16 %v2032
        %v3213 = vunpack.c.l.b16 %v2042
        %v3214 = vunpack.c.l.b16 %v2056
        %v3215 = vunpack.c.l.b16 %v2066
        %v3216 = vunpack.c.l.b16 %v2080
        %v3217 = vunpack.c.l.b16 %v2090
        %v3218 = vunpack.c.l.b16 %v2104
        %v3219 = vunpack.c.l.b16 %v2114
        %v3220 = vpack.c.b16 %v3189, %v3188
        %v3221 = vpack.c.b16 %v3191, %v3190
        %v3222 = vpack.c.b16 %v3193, %v3192
        %v3223 = vpack.c.b16 %v3195, %v3194
        %v3224 = vpack.c.b16 %v3197, %v3196
        %v3225 = vpack.c.b16 %v3199, %v3198
        %v3226 = vpack.c.b16 %v3201, %v3200
        %v3227 = vpack.c.b16 %v3203, %v3202
        %v3228 = vpack.c.b16 %v3205, %v3204
        %v3229 = vpack.c.b16 %v3207, %v3206
        %v3230 = vpack.c.b16 %v3209, %v3208
        %v3231 = vpack.c.b16 %v3211, %v3210
        %v3232 = vpack.c.b16 %v3213, %v3212
        %v3233 = vpack.c.b16 %v3215, %v3214
        %v3234 = vpack.c.b16 %v3217, %v3216
        %v3235 = vpack.c.b16 %v3219, %v3218
        %v3252 = vunpack.c.l.b16 %v2182
        %v3253 = vunpack.c.l.b16 %v2185
        %v3254 = vunpack.c.l.b16 %v2189
        %v3255 = vunpack.c.l.b16 %v2192
        %v3256 = vunpack.c.l.b16 %v2196
        %v3257 = vunpack.c.l.b16 %v2199
        %v3258 = vunpack.c.l.b16 %v2203
        %v3259 = vunpack.c.l.b16 %v2206
        %v3260 = vunpack.c.l.b16 %v2210
        %v3261 = vunpack.c.l.b16 %v2213
        %v3262 = vunpack.c.l.b16 %v2217
        %v3263 = vunpack.c.l.b16 %v2220
        %v3264 = vunpack.c.l.b16 %v2224
        %v3265 = vunpack.c.l.b16 %v2227
        %v3266 = vunpack.c.l.b16 %v2231
        %v3267 = vunpack.c.l.b16 %v2234
        %v3268 = vunpack.c.l.b16 %v2238
        %v3269 = vunpack.c.l.b16 %v2241
        %v3270 = vunpack.c.l.b16 %v2245
        %v3271 = vunpack.c.l.b16 %v2248
        %v3272 = vunpack.c.l.b16 %v2252
        %v3273 = vunpack.c.l.b16 %v2255
        %v3274 = vunpack.c.l.b16 %v2259
        %v3275 = vunpack.c.l.b16 %v2262
        %v3276 = vunpack.c.l.b16 %v2266
        %v3277 = vunpack.c.l.b16 %v2269
        %v3278 = vunpack.c.l.b16 %v2273
        %v3279 = vunpack.c.l.b16 %v2276
        %v3280 = vunpack.c.l.b16 %v2280
        %v3281 = vunpack.c.l.b16 %v2283
        %v3282 = vunpack.c.l.b16 %v2287
        %v3283 = vunpack.c.l.b16 %v2290
        %v3284 = vpack.c.b16 %v3253, %v3252
        %v3285 = vpack.c.b16 %v3255, %v3254
        %v3286 = vpack.c.b16 %v3257, %v3256
        %v3287 = vpack.c.b16 %v3259, %v3258
        %v3288 = vpack.c.b16 %v3261, %v3260
        %v3289 = vpack.c.b16 %v3263, %v3262
        %v3290 = vpack.c.b16 %v3265, %v3264
        %v3291 = vpack.c.b16 %v3267, %v3266
        %v3292 = vpack.c.b16 %v3269, %v3268
        %v3293 = vpack.c.b16 %v3271, %v3270
        %v3294 = vpack.c.b16 %v3273, %v3272
        %v3295 = vpack.c.b16 %v3275, %v3274
        %v3296 = vpack.c.b16 %v3277, %v3276
        %v3297 = vpack.c.b16 %v3279, %v3278
        %v3298 = vpack.c.b16 %v3281, %v3280
        %v3299 = vpack.c.b16 %v3283, %v3282
        %v3332 = vunpack.c.l.b16 %v2292
        %v3333 = vunpack.c.l.b16 %v2293
        %v3334 = vunpack.c.l.b16 %v2294
        %v3335 = vunpack.c.l.b16 %v2295
        %v3336 = vunpack.c.l.b16 %v2296
        %v3337 = vunpack.c.l.b16 %v2297
        %v3338 = vunpack.c.l.b16 %v2298
        %v3339 = vunpack.c.l.b16 %v2299
        %v3340 = vunpack.c.l.b16 %v2300
        %v3341 = vunpack.c.l.b16 %v2301
        %v3342 = vunpack.c.l.b16 %v2302
        %v3343 = vunpack.c.l.b16 %v2303
        %v3344 = vunpack.c.l.b16 %v2304
        %v3345 = vunpack.c.l.b16 %v2305
        %v3346 = vunpack.c.l.b16 %v2306
        %v3347 = vunpack.c.l.b16 %v2307
        %v3348 = vunpack.c.l.b16 %v2308
        %v3349 = vunpack.c.l.b16 %v2309
        %v3350 = vunpack.c.l.b16 %v2310
        %v3351 = vunpack.c.l.b16 %v2311
        %v3352 = vunpack.c.l.b16 %v2312
        %v3353 = vunpack.c.l.b16 %v2313
        %v3354 = vunpack.c.l.b16 %v2314
        %v3355 = vunpack.c.l.b16 %v2315
        %v3356 = vunpack.c.l.b16 %v2316
        %v3357 = vunpack.c.l.b16 %v2317
        %v3358 = vunpack.c.l.b16 %v2318
        %v3359 = vunpack.c.l.b16 %v2319
        %v3360 = vunpack.c.l.b16 %v2320
        %v3361 = vunpack.c.l.b16 %v2321
        %v3362 = vunpack.c.l.b16 %v2322
        %v3363 = vunpack.c.l.b16 %v2323
        %v3364 = vpack.c.b16 %v3333, %v3332
        %v3365 = vpack.c.b16 %v3335, %v3334
        %v3366 = vpack.c.b16 %v3337, %v3336
        %v3367 = vpack.c.b16 %v3339, %v3338
        %v3368 = vpack.c.b16 %v3341, %v3340
        %v3369 = vpack.c.b16 %v3343, %v3342
        %v3370 = vpack.c.b16 %v3345, %v3344
        %v3371 = vpack.c.b16 %v3347, %v3346
        %v3372 = vpack.c.b16 %v3349, %v3348
        %v3373 = vpack.c.b16 %v3351, %v3350
        %v3374 = vpack.c.b16 %v3353, %v3352
        %v3375 = vpack.c.b16 %v3355, %v3354
        %v3376 = vpack.c.b16 %v3357, %v3356
        %v3377 = vpack.c.b16 %v3359, %v3358
        %v3378 = vpack.c.b16 %v3361, %v3360
        %v3379 = vpack.c.b16 %v3363, %v3362
        %v3396 = vunpack.c.l.b16 %v2353
        %v3397 = vunpack.c.l.b16 %v2363
        %v3398 = vunpack.c.l.b16 %v2377
        %v3399 = vunpack.c.l.b16 %v2387
        %v3400 = vunpack.c.l.b16 %v2401
        %v3401 = vunpack.c.l.b16 %v2411
        %v3402 = vunpack.c.l.b16 %v2425
        %v3403 = vunpack.c.l.b16 %v2435
        %v3404 = vunpack.c.l.b16 %v2449
        %v3405 = vunpack.c.l.b16 %v2459
        %v3406 = vunpack.c.l.b16 %v2473
        %v3407 = vunpack.c.l.b16 %v2483
        %v3408 = vunpack.c.l.b16 %v2497
        %v3409 = vunpack.c.l.b16 %v2507
        %v3410 = vunpack.c.l.b16 %v2521
        %v3411 = vunpack.c.l.b16 %v2531
        %v3412 = vunpack.c.l.b16 %v2545
        %v3413 = vunpack.c.l.b16 %v2555
        %v3414 = vunpack.c.l.b16 %v2569
        %v3415 = vunpack.c.l.b16 %v2579
        %v3416 = vunpack.c.l.b16 %v2593
        %v3417 = vunpack.c.l.b16 %v2603
        %v3418 = vunpack.c.l.b16 %v2617
        %v3419 = vunpack.c.l.b16 %v2627
        %v3420 = vunpack.c.l.b16 %v2641
        %v3421 = vunpack.c.l.b16 %v2651
        %v3422 = vunpack.c.l.b16 %v2665
        %v3423 = vunpack.c.l.b16 %v2675
        %v3424 = vunpack.c.l.b16 %v2689
        %v3425 = vunpack.c.l.b16 %v2699
        %v3426 = vunpack.c.l.b16 %v2713
        %v3427 = vunpack.c.l.b16 %v2723
        %v3428 = vpack.c.b16 %v3397, %v3396
        %v3429 = vpack.c.b16 %v3399, %v3398
        %v3430 = vpack.c.b16 %v3401, %v3400
        %v3431 = vpack.c.b16 %v3403, %v3402
        %v3432 = vpack.c.b16 %v3405, %v3404
        %v3433 = vpack.c.b16 %v3407, %v3406
        %v3434 = vpack.c.b16 %v3409, %v3408
        %v3435 = vpack.c.b16 %v3411, %v3410
        %v3436 = vpack.c.b16 %v3413, %v3412
        %v3437 = vpack.c.b16 %v3415, %v3414
        %v3438 = vpack.c.b16 %v3417, %v3416
        %v3439 = vpack.c.b16 %v3419, %v3418
        %v3440 = vpack.c.b16 %v3421, %v3420
        %v3441 = vpack.c.b16 %v3423, %v3422
        %v3442 = vpack.c.b16 %v3425, %v3424
        %v3443 = vpack.c.b16 %v3427, %v3426
        %v3460 = vunpack.c.l.b16 %v2791
        %v3461 = vunpack.c.l.b16 %v2794
        %v3462 = vunpack.c.l.b16 %v2798
        %v3463 = vunpack.c.l.b16 %v2801
        %v3464 = vunpack.c.l.b16 %v2805
        %v3465 = vunpack.c.l.b16 %v2808
        %v3466 = vunpack.c.l.b16 %v2812
        %v3467 = vunpack.c.l.b16 %v2815
        %v3468 = vunpack.c.l.b16 %v2819
        %v3469 = vunpack.c.l.b16 %v2822
        %v3470 = vunpack.c.l.b16 %v2826
        %v3471 = vunpack.c.l.b16 %v2829
        %v3472 = vunpack.c.l.b16 %v2833
        %v3473 = vunpack.c.l.b16 %v2836
        %v3474 = vunpack.c.l.b16 %v2840
        %v3475 = vunpack.c.l.b16 %v2843
        %v3476 = vunpack.c.l.b16 %v2847
        %v3477 = vunpack.c.l.b16 %v2850
        %v3478 = vunpack.c.l.b16 %v2854
        %v3479 = vunpack.c.l.b16 %v2857
        %v3480 = vunpack.c.l.b16 %v2861
        %v3481 = vunpack.c.l.b16 %v2864
        %v3482 = vunpack.c.l.b16 %v2868
        %v3483 = vunpack.c.l.b16 %v2871
        %v3484 = vunpack.c.l.b16 %v2875
        %v3485 = vunpack.c.l.b16 %v2878
        %v3486 = vunpack.c.l.b16 %v2882
        %v3487 = vunpack.c.l.b16 %v2885
        %v3488 = vunpack.c.l.b16 %v2889
        %v3489 = vunpack.c.l.b16 %v2892
        %v3490 = vunpack.c.l.b16 %v2896
        %v3491 = vunpack.c.l.b16 %v2899
        %v3492 = vpack.c.b16 %v3461, %v3460
        %v3493 = vpack.c.b16 %v3463, %v3462
        %v3494 = vpack.c.b16 %v3465, %v3464
        %v3495 = vpack.c.b16 %v3467, %v3466
        %v3496 = vpack.c.b16 %v3469, %v3468
        %v3497 = vpack.c.b16 %v3471, %v3470
        %v3498 = vpack.c.b16 %v3473, %v3472
        %v3499 = vpack.c.b16 %v3475, %v3474
        %v3500 = vpack.c.b16 %v3477, %v3476
        %v3501 = vpack.c.b16 %v3479, %v3478
        %v3502 = vpack.c.b16 %v3481, %v3480
        %v3503 = vpack.c.b16 %v3483, %v3482
        %v3504 = vpack.c.b16 %v3485, %v3484
        %v3505 = vpack.c.b16 %v3487, %v3486
        %v3506 = vpack.c.b16 %v3489, %v3488
        %v3507 = vpack.c.b16 %v3491, %v3490
        %v3524 = vld [vmem:[#allocation6] sm:$0xff]
        %v3525 = vld [vmem:[#allocation6 + $0x8] sm:$0xff]
        %v3526 = vld [vmem:[#allocation6 + $0x10] sm:$0xff]
        %v3527 = vld [vmem:[#allocation6 + $0x18] sm:$0xff]
        %v3528 = vld [vmem:[#allocation6 + $0x20] sm:$0xff]
        %v3529 = vld [vmem:[#allocation6 + $0x28] sm:$0xff]
        %v3530 = vld [vmem:[#allocation6 + $0x30] sm:$0xff]
        %v3531 = vld [vmem:[#allocation6 + $0x38] sm:$0xff]
        %v3532 = vld [vmem:[#allocation6 + $0x40] sm:$0xff]
        %v3533 = vld [vmem:[#allocation6 + $0x48] sm:$0xff]
        %v3534 = vld [vmem:[#allocation6 + $0x50] sm:$0xff]
        %v3535 = vld [vmem:[#allocation6 + $0x58] sm:$0xff]
        %v3536 = vld [vmem:[#allocation6 + $0x60] sm:$0xff]
        %v3537 = vld [vmem:[#allocation6 + $0x68] sm:$0xff]
        %v3538 = vld [vmem:[#allocation6 + $0x70] sm:$0xff]
        %v3539 = vld [vmem:[#allocation6 + $0x78] sm:$0xff]
        %v3540 = vld [vmem:[#allocation6 + $0x80] sm:$0xff]
        %v3541 = vld [vmem:[#allocation6 + $0x88] sm:$0xff]
        %v3542 = vld [vmem:[#allocation6 + $0x90] sm:$0xff]
        %v3543 = vld [vmem:[#allocation6 + $0x98] sm:$0xff]
        %v3544 = vld [vmem:[#allocation6 + $0xa0] sm:$0xff]
        %v3545 = vld [vmem:[#allocation6 + $0xa8] sm:$0xff]
        %v3546 = vld [vmem:[#allocation6 + $0xb0] sm:$0xff]
        %v3547 = vld [vmem:[#allocation6 + $0xb8] sm:$0xff]
        %v3548 = vld [vmem:[#allocation6 + $0xc0] sm:$0xff]
        %v3549 = vld [vmem:[#allocation6 + $0xc8] sm:$0xff]
        %v3550 = vld [vmem:[#allocation6 + $0xd0] sm:$0xff]
        %v3551 = vld [vmem:[#allocation6 + $0xd8] sm:$0xff]
        %v3552 = vld [vmem:[#allocation6 + $0xe0] sm:$0xff]
        %v3553 = vld [vmem:[#allocation6 + $0xe8] sm:$0xff]
        %v3554 = vld [vmem:[#allocation6 + $0xf0] sm:$0xff]
        %v3555 = vld [vmem:[#allocation6 + $0xf8] sm:$0xff]
        %v3556 = vld [vmem:[#allocation6 + $0x100] sm:$0xff]
        %v3557 = vld [vmem:[#allocation6 + $0x108] sm:$0xff]
        %v3558 = vld [vmem:[#allocation6 + $0x110] sm:$0xff]
        %v3559 = vld [vmem:[#allocation6 + $0x118] sm:$0xff]
        %v3560 = vld [vmem:[#allocation6 + $0x120] sm:$0xff]
        %v3561 = vld [vmem:[#allocation6 + $0x128] sm:$0xff]
        %v3562 = vld [vmem:[#allocation6 + $0x130] sm:$0xff]
        %v3563 = vld [vmem:[#allocation6 + $0x138] sm:$0xff]
        %v3564 = vld [vmem:[#allocation6 + $0x140] sm:$0xff]
        %v3565 = vld [vmem:[#allocation6 + $0x148] sm:$0xff]
        %v3566 = vld [vmem:[#allocation6 + $0x150] sm:$0xff]
        %v3567 = vld [vmem:[#allocation6 + $0x158] sm:$0xff]
        %v3568 = vld [vmem:[#allocation6 + $0x160] sm:$0xff]
        %v3569 = vld [vmem:[#allocation6 + $0x168] sm:$0xff]
        %v3570 = vld [vmem:[#allocation6 + $0x170] sm:$0xff]
        %v3571 = vld [vmem:[#allocation6 + $0x178] sm:$0xff]
        %v3572 = vld [vmem:[#allocation6 + $0x180] sm:$0xff]
        %v3573 = vld [vmem:[#allocation6 + $0x188] sm:$0xff]
        %v3574 = vld [vmem:[#allocation6 + $0x190] sm:$0xff]
        %v3575 = vld [vmem:[#allocation6 + $0x198] sm:$0xff]
        %v3576 = vld [vmem:[#allocation6 + $0x1a0] sm:$0xff]
        %v3577 = vld [vmem:[#allocation6 + $0x1a8] sm:$0xff]
        %v3578 = vld [vmem:[#allocation6 + $0x1b0] sm:$0xff]
        %v3579 = vld [vmem:[#allocation6 + $0x1b8] sm:$0xff]
        %v3580 = vld [vmem:[#allocation6 + $0x1c0] sm:$0xff]
        %v3581 = vld [vmem:[#allocation6 + $0x1c8] sm:$0xff]
        %v3582 = vld [vmem:[#allocation6 + $0x1d0] sm:$0xff]
        %v3583 = vld [vmem:[#allocation6 + $0x1d8] sm:$0xff]
        %v3584 = vld [vmem:[#allocation6 + $0x1e0] sm:$0xff]
        %v3585 = vld [vmem:[#allocation6 + $0x1e8] sm:$0xff]
        %v3586 = vld [vmem:[#allocation6 + $0x1f0] sm:$0xff]
        %v3587 = vld [vmem:[#allocation6 + $0x1f8] sm:$0xff]
        %v3588 = vld [vmem:[#allocation6 + $0x200] sm:$0xff]
        %v3589 = vld [vmem:[#allocation6 + $0x208] sm:$0xff]
        %v3590 = vld [vmem:[#allocation6 + $0x210] sm:$0xff]
        %v3591 = vld [vmem:[#allocation6 + $0x218] sm:$0xff]
        %v3592 = vld [vmem:[#allocation6 + $0x220] sm:$0xff]
        %v3593 = vld [vmem:[#allocation6 + $0x228] sm:$0xff]
        %v3594 = vld [vmem:[#allocation6 + $0x230] sm:$0xff]
        %v3595 = vld [vmem:[#allocation6 + $0x238] sm:$0xff]
        %v3596 = vld [vmem:[#allocation6 + $0x240] sm:$0xff]
        %v3597 = vld [vmem:[#allocation6 + $0x248] sm:$0xff]
        %v3598 = vld [vmem:[#allocation6 + $0x250] sm:$0xff]
        %v3599 = vld [vmem:[#allocation6 + $0x258] sm:$0xff]
        %v3600 = vld [vmem:[#allocation6 + $0x260] sm:$0xff]
        %v3601 = vld [vmem:[#allocation6 + $0x268] sm:$0xff]
        %v3602 = vld [vmem:[#allocation6 + $0x270] sm:$0xff]
        %v3603 = vld [vmem:[#allocation6 + $0x278] sm:$0xff]
        %v3604 = vld [vmem:[#allocation6 + $0x280] sm:$0xff]
        %v3605 = vld [vmem:[#allocation6 + $0x288] sm:$0xff]
        %v3606 = vld [vmem:[#allocation6 + $0x290] sm:$0xff]
        %v3607 = vld [vmem:[#allocation6 + $0x298] sm:$0xff]
        %v3608 = vld [vmem:[#allocation6 + $0x2a0] sm:$0xff]
        %v3609 = vld [vmem:[#allocation6 + $0x2a8] sm:$0xff]
        %v3610 = vld [vmem:[#allocation6 + $0x2b0] sm:$0xff]
        %v3611 = vld [vmem:[#allocation6 + $0x2b8] sm:$0xff]
        %v3612 = vld [vmem:[#allocation6 + $0x2c0] sm:$0xff]
        %v3613 = vld [vmem:[#allocation6 + $0x2c8] sm:$0xff]
        %v3614 = vld [vmem:[#allocation6 + $0x2d0] sm:$0xff]
        %v3615 = vld [vmem:[#allocation6 + $0x2d8] sm:$0xff]
        %v3616 = vld [vmem:[#allocation6 + $0x2e0] sm:$0xff]
        %v3617 = vld [vmem:[#allocation6 + $0x2e8] sm:$0xff]
        %v3618 = vld [vmem:[#allocation6 + $0x2f0] sm:$0xff]
        %v3619 = vld [vmem:[#allocation6 + $0x2f8] sm:$0xff]
        %v3620 = vld [vmem:[#allocation6 + $0x300] sm:$0xff]
        %v3621 = vld [vmem:[#allocation6 + $0x308] sm:$0xff]
        %v3622 = vld [vmem:[#allocation6 + $0x310] sm:$0xff]
        %v3623 = vld [vmem:[#allocation6 + $0x318] sm:$0xff]
        %v3624 = vld [vmem:[#allocation6 + $0x320] sm:$0xff]
        %v3625 = vld [vmem:[#allocation6 + $0x328] sm:$0xff]
        %v3626 = vld [vmem:[#allocation6 + $0x330] sm:$0xff]
        %v3627 = vld [vmem:[#allocation6 + $0x338] sm:$0xff]
        %v3628 = vld [vmem:[#allocation6 + $0x340] sm:$0xff]
        %v3629 = vld [vmem:[#allocation6 + $0x348] sm:$0xff]
        %v3630 = vld [vmem:[#allocation6 + $0x350] sm:$0xff]
        %v3631 = vld [vmem:[#allocation6 + $0x358] sm:$0xff]
        %v3632 = vld [vmem:[#allocation6 + $0x360] sm:$0xff]
        %v3633 = vld [vmem:[#allocation6 + $0x368] sm:$0xff]
        %v3634 = vld [vmem:[#allocation6 + $0x370] sm:$0xff]
        %v3635 = vld [vmem:[#allocation6 + $0x378] sm:$0xff]
        %v3636 = vld [vmem:[#allocation6 + $0x380] sm:$0xff]
        %v3637 = vld [vmem:[#allocation6 + $0x388] sm:$0xff]
        %v3638 = vld [vmem:[#allocation6 + $0x390] sm:$0xff]
        %v3639 = vld [vmem:[#allocation6 + $0x398] sm:$0xff]
        %v3640 = vld [vmem:[#allocation6 + $0x3a0] sm:$0xff]
        %v3641 = vld [vmem:[#allocation6 + $0x3a8] sm:$0xff]
        %v3642 = vld [vmem:[#allocation6 + $0x3b0] sm:$0xff]
        %v3643 = vld [vmem:[#allocation6 + $0x3b8] sm:$0xff]
        %v3644 = vld [vmem:[#allocation6 + $0x3c0] sm:$0xff]
        %v3645 = vld [vmem:[#allocation6 + $0x3c8] sm:$0xff]
        %v3646 = vld [vmem:[#allocation6 + $0x3d0] sm:$0xff]
        %v3647 = vld [vmem:[#allocation6 + $0x3d8] sm:$0xff]
        %v3648 = vld [vmem:[#allocation6 + $0x3e0] sm:$0xff]
        %v3649 = vld [vmem:[#allocation6 + $0x3e8] sm:$0xff]
        %v3650 = vld [vmem:[#allocation6 + $0x3f0] sm:$0xff]
        %v3651 = vld [vmem:[#allocation6 + $0x3f8] sm:$0xff]
        %v3652 = vld [vmem:[#allocation6 + $0x400] sm:$0xff]
        %v3653 = vld [vmem:[#allocation6 + $0x408] sm:$0xff]
        %v3654 = vld [vmem:[#allocation6 + $0x410] sm:$0xff]
        %v3655 = vld [vmem:[#allocation6 + $0x418] sm:$0xff]
        %v3656 = vld [vmem:[#allocation6 + $0x420] sm:$0xff]
        %v3657 = vld [vmem:[#allocation6 + $0x428] sm:$0xff]
        %v3658 = vld [vmem:[#allocation6 + $0x430] sm:$0xff]
        %v3659 = vld [vmem:[#allocation6 + $0x438] sm:$0xff]
        %v3660 = vld [vmem:[#allocation6 + $0x440] sm:$0xff]
        %v3661 = vld [vmem:[#allocation6 + $0x448] sm:$0xff]
        %v3662 = vld [vmem:[#allocation6 + $0x450] sm:$0xff]
        %v3663 = vld [vmem:[#allocation6 + $0x458] sm:$0xff]
        %v3664 = vld [vmem:[#allocation6 + $0x460] sm:$0xff]
        %v3665 = vld [vmem:[#allocation6 + $0x468] sm:$0xff]
        %v3666 = vld [vmem:[#allocation6 + $0x470] sm:$0xff]
        %v3667 = vld [vmem:[#allocation6 + $0x478] sm:$0xff]
        %v3812 = vunpack.c.l.b16 %v3524
        %v3813 = vunpack.c.h.b16 %v3524
        %v3814 = vunpack.c.l.b16 %v3525
        %v3815 = vunpack.c.h.b16 %v3525
        %v3816 = vunpack.c.l.b16 %v3526
        %v3817 = vunpack.c.h.b16 %v3526
        %v3818 = vunpack.c.l.b16 %v3527
        %v3819 = vunpack.c.h.b16 %v3527
        %v3820 = vunpack.c.l.b16 %v3528
        %v3821 = vunpack.c.h.b16 %v3528
        %v3822 = vunpack.c.l.b16 %v3529
        %v3823 = vunpack.c.h.b16 %v3529
        %v3824 = vunpack.c.l.b16 %v3530
        %v3825 = vunpack.c.h.b16 %v3530
        %v3826 = vunpack.c.l.b16 %v3531
        %v3827 = vunpack.c.h.b16 %v3531
        %v3828 = vunpack.c.l.b16 %v3532
        %v3829 = vunpack.c.h.b16 %v3532
        %v3830 = vunpack.c.l.b16 %v3533
        %v3831 = vunpack.c.h.b16 %v3533
        %v3832 = vunpack.c.l.b16 %v3534
        %v3833 = vunpack.c.h.b16 %v3534
        %v3834 = vunpack.c.l.b16 %v3535
        %v3835 = vunpack.c.h.b16 %v3535
        %v3836 = vunpack.c.l.b16 %v3536
        %v3837 = vunpack.c.h.b16 %v3536
        %v3838 = vunpack.c.l.b16 %v3537
        %v3839 = vunpack.c.h.b16 %v3537
        %v3840 = vunpack.c.l.b16 %v3538
        %v3841 = vunpack.c.h.b16 %v3538
        %v3842 = vunpack.c.l.b16 %v3539
        %v3843 = vunpack.c.h.b16 %v3539
        %v3844 = vunpack.c.l.b16 %v3540
        %v3845 = vunpack.c.h.b16 %v3540
        %v3846 = vunpack.c.l.b16 %v3541
        %v3847 = vunpack.c.h.b16 %v3541
        %v3848 = vunpack.c.l.b16 %v3542
        %v3849 = vunpack.c.h.b16 %v3542
        %v3850 = vunpack.c.l.b16 %v3543
        %v3851 = vunpack.c.h.b16 %v3543
        %v3852 = vunpack.c.l.b16 %v3544
        %v3853 = vunpack.c.h.b16 %v3544
        %v3854 = vunpack.c.l.b16 %v3545
        %v3855 = vunpack.c.h.b16 %v3545
        %v3856 = vunpack.c.l.b16 %v3546
        %v3857 = vunpack.c.h.b16 %v3546
        %v3858 = vunpack.c.l.b16 %v3547
        %v3859 = vunpack.c.h.b16 %v3547
        %v3860 = vunpack.c.l.b16 %v3548
        %v3861 = vunpack.c.h.b16 %v3548
        %v3862 = vunpack.c.l.b16 %v3549
        %v3863 = vunpack.c.h.b16 %v3549
        %v3864 = vunpack.c.l.b16 %v3550
        %v3865 = vunpack.c.h.b16 %v3550
        %v3866 = vunpack.c.l.b16 %v3551
        %v3867 = vunpack.c.h.b16 %v3551
        %v3868 = vunpack.c.l.b16 %v3552
        %v3869 = vunpack.c.h.b16 %v3552
        %v3870 = vunpack.c.l.b16 %v3553
        %v3871 = vunpack.c.h.b16 %v3553
        %v3872 = vunpack.c.l.b16 %v3554
        %v3873 = vunpack.c.h.b16 %v3554
        %v3874 = vunpack.c.l.b16 %v3555
        %v3875 = vunpack.c.h.b16 %v3555
        %v3876 = vunpack.c.l.b16 %v3556
        %v3877 = vunpack.c.h.b16 %v3556
        %v3878 = vunpack.c.l.b16 %v3557
        %v3879 = vunpack.c.h.b16 %v3557
        %v3880 = vunpack.c.l.b16 %v3558
        %v3881 = vunpack.c.h.b16 %v3558
        %v3882 = vunpack.c.l.b16 %v3559
        %v3883 = vunpack.c.h.b16 %v3559
        %v3884 = vunpack.c.l.b16 %v3560
        %v3885 = vunpack.c.h.b16 %v3560
        %v3886 = vunpack.c.l.b16 %v3561
        %v3887 = vunpack.c.h.b16 %v3561
        %v3888 = vunpack.c.l.b16 %v3562
        %v3889 = vunpack.c.h.b16 %v3562
        %v3890 = vunpack.c.l.b16 %v3563
        %v3891 = vunpack.c.h.b16 %v3563
        %v3892 = vunpack.c.l.b16 %v3564
        %v3893 = vunpack.c.h.b16 %v3564
        %v3894 = vunpack.c.l.b16 %v3565
        %v3895 = vunpack.c.h.b16 %v3565
        %v3896 = vunpack.c.l.b16 %v3566
        %v3897 = vunpack.c.h.b16 %v3566
        %v3898 = vunpack.c.l.b16 %v3567
        %v3899 = vunpack.c.h.b16 %v3567
        %v3900 = vunpack.c.l.b16 %v3568
        %v3901 = vunpack.c.h.b16 %v3568
        %v3902 = vunpack.c.l.b16 %v3569
        %v3903 = vunpack.c.h.b16 %v3569
        %v3904 = vunpack.c.l.b16 %v3570
        %v3905 = vunpack.c.h.b16 %v3570
        %v3906 = vunpack.c.l.b16 %v3571
        %v3907 = vunpack.c.h.b16 %v3571
        %v3908 = vunpack.c.l.b16 %v3572
        %v3909 = vunpack.c.h.b16 %v3572
        %v3910 = vunpack.c.l.b16 %v3573
        %v3911 = vunpack.c.h.b16 %v3573
        %v3912 = vunpack.c.l.b16 %v3574
        %v3913 = vunpack.c.h.b16 %v3574
        %v3914 = vunpack.c.l.b16 %v3575
        %v3915 = vunpack.c.h.b16 %v3575
        %v3916 = vunpack.c.l.b16 %v3576
        %v3917 = vunpack.c.h.b16 %v3576
        %v3918 = vunpack.c.l.b16 %v3577
        %v3919 = vunpack.c.h.b16 %v3577
        %v3920 = vunpack.c.l.b16 %v3578
        %v3921 = vunpack.c.h.b16 %v3578
        %v3922 = vunpack.c.l.b16 %v3579
        %v3923 = vunpack.c.h.b16 %v3579
        %v3924 = vunpack.c.l.b16 %v3580
        %v3925 = vunpack.c.h.b16 %v3580
        %v3926 = vunpack.c.l.b16 %v3581
        %v3927 = vunpack.c.h.b16 %v3581
        %v3928 = vunpack.c.l.b16 %v3582
        %v3929 = vunpack.c.h.b16 %v3582
        %v3930 = vunpack.c.l.b16 %v3583
        %v3931 = vunpack.c.h.b16 %v3583
        %v3932 = vunpack.c.l.b16 %v3584
        %v3933 = vunpack.c.h.b16 %v3584
        %v3934 = vunpack.c.l.b16 %v3585
        %v3935 = vunpack.c.h.b16 %v3585
        %v3936 = vunpack.c.l.b16 %v3586
        %v3937 = vunpack.c.h.b16 %v3586
        %v3938 = vunpack.c.l.b16 %v3587
        %v3939 = vunpack.c.h.b16 %v3587
        %v3940 = vunpack.c.l.b16 %v3588
        %v3941 = vunpack.c.h.b16 %v3588
        %v3942 = vunpack.c.l.b16 %v3589
        %v3943 = vunpack.c.h.b16 %v3589
        %v3944 = vunpack.c.l.b16 %v3590
        %v3945 = vunpack.c.h.b16 %v3590
        %v3946 = vunpack.c.l.b16 %v3591
        %v3947 = vunpack.c.h.b16 %v3591
        %v3948 = vunpack.c.l.b16 %v3592
        %v3949 = vunpack.c.h.b16 %v3592
        %v3950 = vunpack.c.l.b16 %v3593
        %v3951 = vunpack.c.h.b16 %v3593
        %v3952 = vunpack.c.l.b16 %v3594
        %v3953 = vunpack.c.h.b16 %v3594
        %v3954 = vunpack.c.l.b16 %v3595
        %v3955 = vunpack.c.h.b16 %v3595
        %v3956 = vunpack.c.l.b16 %v3596
        %v3957 = vunpack.c.h.b16 %v3596
        %v3958 = vunpack.c.l.b16 %v3597
        %v3959 = vunpack.c.h.b16 %v3597
        %v3960 = vunpack.c.l.b16 %v3598
        %v3961 = vunpack.c.h.b16 %v3598
        %v3962 = vunpack.c.l.b16 %v3599
        %v3963 = vunpack.c.h.b16 %v3599
        %v3964 = vunpack.c.l.b16 %v3600
        %v3965 = vunpack.c.h.b16 %v3600
        %v3966 = vunpack.c.l.b16 %v3601
        %v3967 = vunpack.c.h.b16 %v3601
        %v3968 = vunpack.c.l.b16 %v3602
        %v3969 = vunpack.c.h.b16 %v3602
        %v3970 = vunpack.c.l.b16 %v3603
        %v3971 = vunpack.c.h.b16 %v3603
        %v3972 = vunpack.c.l.b16 %v3604
        %v3973 = vunpack.c.h.b16 %v3604
        %v3974 = vunpack.c.l.b16 %v3605
        %v3975 = vunpack.c.h.b16 %v3605
        %v3976 = vunpack.c.l.b16 %v3606
        %v3977 = vunpack.c.h.b16 %v3606
        %v3978 = vunpack.c.l.b16 %v3607
        %v3979 = vunpack.c.h.b16 %v3607
        %v3980 = vunpack.c.l.b16 %v3608
        %v3981 = vunpack.c.h.b16 %v3608
        %v3982 = vunpack.c.l.b16 %v3609
        %v3983 = vunpack.c.h.b16 %v3609
        %v3984 = vunpack.c.l.b16 %v3610
        %v3985 = vunpack.c.h.b16 %v3610
        %v3986 = vunpack.c.l.b16 %v3611
        %v3987 = vunpack.c.h.b16 %v3611
        %v3988 = vunpack.c.l.b16 %v3612
        %v3989 = vunpack.c.h.b16 %v3612
        %v3990 = vunpack.c.l.b16 %v3613
        %v3991 = vunpack.c.h.b16 %v3613
        %v3992 = vunpack.c.l.b16 %v3614
        %v3993 = vunpack.c.h.b16 %v3614
        %v3994 = vunpack.c.l.b16 %v3615
        %v3995 = vunpack.c.h.b16 %v3615
        %v3996 = vunpack.c.l.b16 %v3616
        %v3997 = vunpack.c.h.b16 %v3616
        %v3998 = vunpack.c.l.b16 %v3617
        %v3999 = vunpack.c.h.b16 %v3617
        %v4000 = vunpack.c.l.b16 %v3618
        %v4001 = vunpack.c.h.b16 %v3618
        %v4002 = vunpack.c.l.b16 %v3619
        %v4003 = vunpack.c.h.b16 %v3619
        %v4004 = vunpack.c.l.b16 %v3620
        %v4005 = vunpack.c.h.b16 %v3620
        %v4006 = vunpack.c.l.b16 %v3621
        %v4007 = vunpack.c.h.b16 %v3621
        %v4008 = vunpack.c.l.b16 %v3622
        %v4009 = vunpack.c.h.b16 %v3622
        %v4010 = vunpack.c.l.b16 %v3623
        %v4011 = vunpack.c.h.b16 %v3623
        %v4012 = vunpack.c.l.b16 %v3624
        %v4013 = vunpack.c.h.b16 %v3624
        %v4014 = vunpack.c.l.b16 %v3625
        %v4015 = vunpack.c.h.b16 %v3625
        %v4016 = vunpack.c.l.b16 %v3626
        %v4017 = vunpack.c.h.b16 %v3626
        %v4018 = vunpack.c.l.b16 %v3627
        %v4019 = vunpack.c.h.b16 %v3627
        %v4020 = vunpack.c.l.b16 %v3628
        %v4021 = vunpack.c.h.b16 %v3628
        %v4022 = vunpack.c.l.b16 %v3629
        %v4023 = vunpack.c.h.b16 %v3629
        %v4024 = vunpack.c.l.b16 %v3630
        %v4025 = vunpack.c.h.b16 %v3630
        %v4026 = vunpack.c.l.b16 %v3631
        %v4027 = vunpack.c.h.b16 %v3631
        %v4028 = vunpack.c.l.b16 %v3632
        %v4029 = vunpack.c.h.b16 %v3632
        %v4030 = vunpack.c.l.b16 %v3633
        %v4031 = vunpack.c.h.b16 %v3633
        %v4032 = vunpack.c.l.b16 %v3634
        %v4033 = vunpack.c.h.b16 %v3634
        %v4034 = vunpack.c.l.b16 %v3635
        %v4035 = vunpack.c.h.b16 %v3635
        %v4036 = vunpack.c.l.b16 %v3636
        %v4037 = vunpack.c.h.b16 %v3636
        %v4038 = vunpack.c.l.b16 %v3637
        %v4039 = vunpack.c.h.b16 %v3637
        %v4040 = vunpack.c.l.b16 %v3638
        %v4041 = vunpack.c.h.b16 %v3638
        %v4042 = vunpack.c.l.b16 %v3639
        %v4043 = vunpack.c.h.b16 %v3639
        %v4044 = vunpack.c.l.b16 %v3640
        %v4045 = vunpack.c.h.b16 %v3640
        %v4046 = vunpack.c.l.b16 %v3641
        %v4047 = vunpack.c.h.b16 %v3641
        %v4048 = vunpack.c.l.b16 %v3642
        %v4049 = vunpack.c.h.b16 %v3642
        %v4050 = vunpack.c.l.b16 %v3643
        %v4051 = vunpack.c.h.b16 %v3643
        %v4052 = vunpack.c.l.b16 %v3644
        %v4053 = vunpack.c.h.b16 %v3644
        %v4054 = vunpack.c.l.b16 %v3645
        %v4055 = vunpack.c.h.b16 %v3645
        %v4056 = vunpack.c.l.b16 %v3646
        %v4057 = vunpack.c.h.b16 %v3646
        %v4058 = vunpack.c.l.b16 %v3647
        %v4059 = vunpack.c.h.b16 %v3647
        %v4060 = vunpack.c.l.b16 %v3648
        %v4061 = vunpack.c.h.b16 %v3648
        %v4062 = vunpack.c.l.b16 %v3649
        %v4063 = vunpack.c.h.b16 %v3649
        %v4064 = vunpack.c.l.b16 %v3650
        %v4065 = vunpack.c.h.b16 %v3650
        %v4066 = vunpack.c.l.b16 %v3651
        %v4067 = vunpack.c.h.b16 %v3651
        %v4068 = vunpack.c.l.b16 %v3652
        %v4069 = vunpack.c.h.b16 %v3652
        %v4070 = vunpack.c.l.b16 %v3653
        %v4071 = vunpack.c.h.b16 %v3653
        %v4072 = vunpack.c.l.b16 %v3654
        %v4073 = vunpack.c.h.b16 %v3654
        %v4074 = vunpack.c.l.b16 %v3655
        %v4075 = vunpack.c.h.b16 %v3655
        %v4076 = vunpack.c.l.b16 %v3656
        %v4077 = vunpack.c.h.b16 %v3656
        %v4078 = vunpack.c.l.b16 %v3657
        %v4079 = vunpack.c.h.b16 %v3657
        %v4080 = vunpack.c.l.b16 %v3658
        %v4081 = vunpack.c.h.b16 %v3658
        %v4082 = vunpack.c.l.b16 %v3659
        %v4083 = vunpack.c.h.b16 %v3659
        %v4084 = vunpack.c.l.b16 %v3660
        %v4085 = vunpack.c.h.b16 %v3660
        %v4086 = vunpack.c.l.b16 %v3661
        %v4087 = vunpack.c.h.b16 %v3661
        %v4088 = vunpack.c.l.b16 %v3662
        %v4089 = vunpack.c.h.b16 %v3662
        %v4090 = vunpack.c.l.b16 %v3663
        %v4091 = vunpack.c.h.b16 %v3663
        %v4092 = vunpack.c.l.b16 %v3664
        %v4093 = vunpack.c.h.b16 %v3664
        %v4094 = vunpack.c.l.b16 %v3665
        %v4095 = vunpack.c.h.b16 %v3665
        %v4096 = vunpack.c.l.b16 %v3666
        %v4097 = vunpack.c.h.b16 %v3666
        %v4098 = vunpack.c.l.b16 %v3667
        %v4099 = vunpack.c.h.b16 %v3667
        %v4100 = vpack.c.b16 %v3814, %v3812
        %v4101 = vpack.c.b16 %v3815, %v3813
        %v4102 = vpack.c.b16 %v3818, %v3816
        %v4103 = vpack.c.b16 %v3819, %v3817
        %v4104 = vpack.c.b16 %v3822, %v3820
        %v4105 = vpack.c.b16 %v3823, %v3821
        %v4106 = vpack.c.b16 %v3826, %v3824
        %v4107 = vpack.c.b16 %v3827, %v3825
        %v4108 = vpack.c.b16 %v3830, %v3828
        %v4109 = vpack.c.b16 %v3831, %v3829
        %v4110 = vpack.c.b16 %v3834, %v3832
        %v4111 = vpack.c.b16 %v3835, %v3833
        %v4112 = vpack.c.b16 %v3838, %v3836
        %v4113 = vpack.c.b16 %v3839, %v3837
        %v4114 = vpack.c.b16 %v3842, %v3840
        %v4115 = vpack.c.b16 %v3843, %v3841
        %v4116 = vpack.c.b16 %v3846, %v3844
        %v4117 = vpack.c.b16 %v3847, %v3845
        %v4118 = vpack.c.b16 %v3850, %v3848
        %v4119 = vpack.c.b16 %v3851, %v3849
        %v4120 = vpack.c.b16 %v3854, %v3852
        %v4121 = vpack.c.b16 %v3855, %v3853
        %v4122 = vpack.c.b16 %v3858, %v3856
        %v4123 = vpack.c.b16 %v3859, %v3857
        %v4124 = vpack.c.b16 %v3862, %v3860
        %v4125 = vpack.c.b16 %v3863, %v3861
        %v4126 = vpack.c.b16 %v3866, %v3864
        %v4127 = vpack.c.b16 %v3867, %v3865
        %v4128 = vpack.c.b16 %v3870, %v3868
        %v4129 = vpack.c.b16 %v3871, %v3869
        %v4130 = vpack.c.b16 %v3874, %v3872
        %v4131 = vpack.c.b16 %v3875, %v3873
        %v4132 = vpack.c.b16 %v3878, %v3876
        %v4133 = vpack.c.b16 %v3879, %v3877
        %v4134 = vpack.c.b16 %v3882, %v3880
        %v4135 = vpack.c.b16 %v3883, %v3881
        %v4136 = vpack.c.b16 %v3886, %v3884
        %v4137 = vpack.c.b16 %v3887, %v3885
        %v4138 = vpack.c.b16 %v3890, %v3888
        %v4139 = vpack.c.b16 %v3891, %v3889
        %v4140 = vpack.c.b16 %v3894, %v3892
        %v4141 = vpack.c.b16 %v3895, %v3893
        %v4142 = vpack.c.b16 %v3898, %v3896
        %v4143 = vpack.c.b16 %v3899, %v3897
        %v4144 = vpack.c.b16 %v3902, %v3900
        %v4145 = vpack.c.b16 %v3903, %v3901
        %v4146 = vpack.c.b16 %v3906, %v3904
        %v4147 = vpack.c.b16 %v3907, %v3905
        %v4148 = vpack.c.b16 %v3910, %v3908
        %v4149 = vpack.c.b16 %v3911, %v3909
        %v4150 = vpack.c.b16 %v3914, %v3912
        %v4151 = vpack.c.b16 %v3915, %v3913
        %v4152 = vpack.c.b16 %v3918, %v3916
        %v4153 = vpack.c.b16 %v3919, %v3917
        %v4154 = vpack.c.b16 %v3922, %v3920
        %v4155 = vpack.c.b16 %v3923, %v3921
        %v4156 = vpack.c.b16 %v3926, %v3924
        %v4157 = vpack.c.b16 %v3927, %v3925
        %v4158 = vpack.c.b16 %v3930, %v3928
        %v4159 = vpack.c.b16 %v3931, %v3929
        %v4160 = vpack.c.b16 %v3934, %v3932
        %v4161 = vpack.c.b16 %v3935, %v3933
        %v4162 = vpack.c.b16 %v3938, %v3936
        %v4163 = vpack.c.b16 %v3939, %v3937
        %v4164 = vpack.c.b16 %v3942, %v3940
        %v4165 = vpack.c.b16 %v3943, %v3941
        %v4166 = vpack.c.b16 %v3946, %v3944
        %v4167 = vpack.c.b16 %v3947, %v3945
        %v4168 = vpack.c.b16 %v3950, %v3948
        %v4169 = vpack.c.b16 %v3951, %v3949
        %v4170 = vpack.c.b16 %v3954, %v3952
        %v4171 = vpack.c.b16 %v3955, %v3953
        %v4172 = vpack.c.b16 %v3958, %v3956
        %v4173 = vpack.c.b16 %v3959, %v3957
        %v4174 = vpack.c.b16 %v3962, %v3960
        %v4175 = vpack.c.b16 %v3963, %v3961
        %v4176 = vpack.c.b16 %v3966, %v3964
        %v4177 = vpack.c.b16 %v3967, %v3965
        %v4178 = vpack.c.b16 %v3970, %v3968
        %v4179 = vpack.c.b16 %v3971, %v3969
        %v4180 = vpack.c.b16 %v3974, %v3972
        %v4181 = vpack.c.b16 %v3975, %v3973
        %v4182 = vpack.c.b16 %v3978, %v3976
        %v4183 = vpack.c.b16 %v3979, %v3977
        %v4184 = vpack.c.b16 %v3982, %v3980
        %v4185 = vpack.c.b16 %v3983, %v3981
        %v4186 = vpack.c.b16 %v3986, %v3984
        %v4187 = vpack.c.b16 %v3987, %v3985
        %v4188 = vpack.c.b16 %v3990, %v3988
        %v4189 = vpack.c.b16 %v3991, %v3989
        %v4190 = vpack.c.b16 %v3994, %v3992
        %v4191 = vpack.c.b16 %v3995, %v3993
        %v4192 = vpack.c.b16 %v3998, %v3996
        %v4193 = vpack.c.b16 %v3999, %v3997
        %v4194 = vpack.c.b16 %v4002, %v4000
        %v4195 = vpack.c.b16 %v4003, %v4001
        %v4196 = vpack.c.b16 %v4006, %v4004
        %v4197 = vpack.c.b16 %v4007, %v4005
        %v4198 = vpack.c.b16 %v4010, %v4008
        %v4199 = vpack.c.b16 %v4011, %v4009
        %v4200 = vpack.c.b16 %v4014, %v4012
        %v4201 = vpack.c.b16 %v4015, %v4013
        %v4202 = vpack.c.b16 %v4018, %v4016
        %v4203 = vpack.c.b16 %v4019, %v4017
        %v4204 = vpack.c.b16 %v4022, %v4020
        %v4205 = vpack.c.b16 %v4023, %v4021
        %v4206 = vpack.c.b16 %v4026, %v4024
        %v4207 = vpack.c.b16 %v4027, %v4025
        %v4208 = vpack.c.b16 %v4030, %v4028
        %v4209 = vpack.c.b16 %v4031, %v4029
        %v4210 = vpack.c.b16 %v4034, %v4032
        %v4211 = vpack.c.b16 %v4035, %v4033
        %v4212 = vpack.c.b16 %v4038, %v4036
        %v4213 = vpack.c.b16 %v4039, %v4037
        %v4214 = vpack.c.b16 %v4042, %v4040
        %v4215 = vpack.c.b16 %v4043, %v4041
        %v4216 = vpack.c.b16 %v4046, %v4044
        %v4217 = vpack.c.b16 %v4047, %v4045
        %v4218 = vpack.c.b16 %v4050, %v4048
        %v4219 = vpack.c.b16 %v4051, %v4049
        %v4220 = vpack.c.b16 %v4054, %v4052
        %v4221 = vpack.c.b16 %v4055, %v4053
        %v4222 = vpack.c.b16 %v4058, %v4056
        %v4223 = vpack.c.b16 %v4059, %v4057
        %v4224 = vpack.c.b16 %v4062, %v4060
        %v4225 = vpack.c.b16 %v4063, %v4061
        %v4226 = vpack.c.b16 %v4066, %v4064
        %v4227 = vpack.c.b16 %v4067, %v4065
        %v4228 = vpack.c.b16 %v4070, %v4068
        %v4229 = vpack.c.b16 %v4071, %v4069
        %v4230 = vpack.c.b16 %v4074, %v4072
        %v4231 = vpack.c.b16 %v4075, %v4073
        %v4232 = vpack.c.b16 %v4078, %v4076
        %v4233 = vpack.c.b16 %v4079, %v4077
        %v4234 = vpack.c.b16 %v4082, %v4080
        %v4235 = vpack.c.b16 %v4083, %v4081
        %v4236 = vpack.c.b16 %v4086, %v4084
        %v4237 = vpack.c.b16 %v4087, %v4085
        %v4238 = vpack.c.b16 %v4090, %v4088
        %v4239 = vpack.c.b16 %v4091, %v4089
        %v4240 = vpack.c.b16 %v4094, %v4092
        %v4241 = vpack.c.b16 %v4095, %v4093
        %v4242 = vpack.c.b16 %v4098, %v4096
        %v4243 = vpack.c.b16 %v4099, %v4097
        %4388 = vmatprep.subr.bf16.mxu0 %v4101
        %4389 = vmatpush1.bf16.msra.mxu0 %v4100
        %4390 = vmatprep.subr.bf16.mxu0 %v4103
        %4391 = vmatpush1.bf16.msra.mxu0 %v4102
        %4392 = vmatprep.subr.bf16.mxu0 %v4105
        %4393 = vmatpush1.bf16.msra.mxu0 %v4104
        %4394 = vmatprep.subr.bf16.mxu0 %v4107
        %4395 = vmatpush1.bf16.msra.mxu0 %v4106
        %4396 = vmatprep.subr.bf16.mxu0 %v4109
        %4397 = vmatpush1.bf16.msra.mxu0 %v4108
        %4398 = vmatprep.subr.bf16.mxu0 %v4111
        %4399 = vmatpush1.bf16.msra.mxu0 %v4110
        %4400 = vmatprep.subr.bf16.mxu0 %v4113
        %4401 = vmatpush1.bf16.msra.mxu0 %v4112
        %4402 = vmatprep.subr.bf16.mxu0 %v4115
        %4403 = vmatpush1.bf16.msra.mxu0 %v4114
        %4404 = vmatprep.subr.bf16.mxu0 %v4117
        %4405 = vmatpush1.bf16.msra.mxu0 %v4116
        %4406 = vmatprep.subr.bf16.mxu0 %v4119
        %4407 = vmatpush1.bf16.msra.mxu0 %v4118
        %4408 = vmatprep.subr.bf16.mxu0 %v4121
        %4409 = vmatpush1.bf16.msra.mxu0 %v4120
        %4410 = vmatprep.subr.bf16.mxu0 %v4123
        %4411 = vmatpush1.bf16.msra.mxu0 %v4122
        %4412 = vmatprep.subr.bf16.mxu0 %v4125
        %4413 = vmatpush1.bf16.msra.mxu0 %v4124
        %4414 = vmatprep.subr.bf16.mxu0 %v4127
        %4415 = vmatpush1.bf16.msra.mxu0 %v4126
        %4416 = vmatprep.subr.bf16.mxu0 %v4129
        %4417 = vmatpush1.bf16.msra.mxu0 %v4128
        %4418 = vmatprep.subr.bf16.mxu0 %v4131
        %4419 = vmatpush1.bf16.msra.mxu0 %v4130
        %4420 = vmatprep.mubr.bf16.mxu0 %v3012
        %4421 = vmatmul.mubr.bf16.gmra.mrb[0].mxu0 %v2948
        %v4422 = vpop.f32.mrb[0].mxu0
        %v4423 = vadd.f32 0.0, %v4422
        %v4424 = vpop.f32.mrb[0].mxu0
        %v4425 = vadd.f32 0.0, %v4424
        %v4426 = vpop.f32.mrb[0].mxu0
        %v4427 = vadd.f32 0.0, %v4426
        %v4428 = vpop.f32.mrb[0].mxu0
        %v4429 = vadd.f32 0.0, %v4428
        %4430 = vmatprep.mubr.bf16.mxu0 %v3013
        %4431 = vmatmul.mubr.bf16.gmra.mrb[0].mxu0 %v2949
        %v4432 = vpop.f32.mrb[0].mxu0
        %v4433 = vadd.f32 0.0, %v4432
        %v4434 = vpop.f32.mrb[0].mxu0
        %v4435 = vadd.f32 0.0, %v4434
        %v4436 = vpop.f32.mrb[0].mxu0
        %v4437 = vadd.f32 0.0, %v4436
        %v4438 = vpop.f32.mrb[0].mxu0
        %v4439 = vadd.f32 0.0, %v4438
        %4440 = vmatprep.mubr.bf16.mxu0 %v3014
        %4441 = vmatmul.mubr.bf16.gmra.mrb[0].mxu0 %v2950
        %v4442 = vpop.f32.mrb[0].mxu0
        %v4443 = vadd.f32 0.0, %v4442
        %v4444 = vpop.f32.mrb[0].mxu0
        %v4445 = vadd.f32 0.0, %v4444
        %v4446 = vpop.f32.mrb[0].mxu0
        %v4447 = vadd.f32 0.0, %v4446
        %v4448 = vpop.f32.mrb[0].mxu0
        %v4449 = vadd.f32 0.0, %v4448
        %4450 = vmatprep.mubr.bf16.mxu0 %v3015
        %4451 = vmatmul.mubr.bf16.gmra.mrb[0].mxu0 %v2951
        %v4452 = vpop.f32.mrb[0].mxu0
        %v4453 = vadd.f32 0.0, %v4452
        %v4454 = vpop.f32.mrb[0].mxu0
        %v4455 = vadd.f32 0.0, %v4454
        %v4456 = vpop.f32.mrb[0].mxu0
        %v4457 = vadd.f32 0.0, %v4456
        %v4458 = vpop.f32.mrb[0].mxu0
        %v4459 = vadd.f32 0.0, %v4458
        %4460 = vmatprep.mubr.bf16.mxu0 %v3016
        %4461 = vmatmul.mubr.bf16.gmra.mrb[0].mxu0 %v2952
        %v4462 = vpop.f32.mrb[0].mxu0
        %v4463 = vadd.f32 0.0, %v4462
        %v4464 = vpop.f32.mrb[0].mxu0
        %v4465 = vadd.f32 0.0, %v4464
        %v4466 = vpop.f32.mrb[0].mxu0
        %v4467 = vadd.f32 0.0, %v4466
        %v4468 = vpop.f32.mrb[0].mxu0
        %v4469 = vadd.f32 0.0, %v4468
        %4470 = vmatprep.mubr.bf16.mxu0 %v3017
        %4471 = vmatmul.mubr.bf16.gmra.mrb[0].mxu0 %v2953
        %v4472 = vpop.f32.mrb[0].mxu0
        %v4473 = vadd.f32 0.0, %v4472
        %v4474 = vpop.f32.mrb[0].mxu0
        %v4475 = vadd.f32 0.0, %v4474
        %v4476 = vpop.f32.mrb[0].mxu0
        %v4477 = vadd.f32 0.0, %v4476
        %v4478 = vpop.f32.mrb[0].mxu0
        %v4479 = vadd.f32 0.0, %v4478
        %4480 = vmatprep.mubr.bf16.mxu0 %v3018
        %4481 = vmatmul.mubr.bf16.gmra.mrb[0].mxu0 %v2954
        %v4482 = vpop.f32.mrb[0].mxu0
        %v4483 = vadd.f32 0.0, %v4482
        %v4484 = vpop.f32.mrb[0].mxu0
        %v4485 = vadd.f32 0.0, %v4484
        %v4486 = vpop.f32.mrb[0].mxu0
        %v4487 = vadd.f32 0.0, %v4486
        %v4488 = vpop.f32.mrb[0].mxu0
        %v4489 = vadd.f32 0.0, %v4488
        %4490 = vmatprep.mubr.bf16.mxu0 %v3019
        %4491 = vmatmul.mubr.bf16.gmra.mrb[0].mxu0 %v2955
        %v4492 = vpop.f32.mrb[0].mxu0
        %v4493 = vadd.f32 0.0, %v4492
        %v4494 = vpop.f32.mrb[0].mxu0
        %v4495 = vadd.f32 0.0, %v4494
        %v4496 = vpop.f32.mrb[0].mxu0
        %v4497 = vadd.f32 0.0, %v4496
        %v4498 = vpop.f32.mrb[0].mxu0
        %v4499 = vadd.f32 0.0, %v4498
        %4500 = vmatprep.mubr.bf16.mxu0 %v3020
        %4501 = vmatmul.mubr.bf16.gmra.mrb[0].mxu0 %v2956
        %v4502 = vpop.f32.mrb[0].mxu0
        %v4503 = vadd.f32 0.0, %v4502
        %v4504 = vpop.f32.mrb[0].mxu0
        %v4505 = vadd.f32 0.0, %v4504
        %v4506 = vpop.f32.mrb[0].mxu0
        %v4507 = vadd.f32 0.0, %v4506
        %v4508 = vpop.f32.mrb[0].mxu0
        %v4509 = vadd.f32 0.0, %v4508
        %4510 = vmatprep.mubr.bf16.mxu0 %v3021
        %4511 = vmatmul.mubr.bf16.gmra.mrb[0].mxu0 %v2957
        %v4512 = vpop.f32.mrb[0].mxu0
        %v4513 = vadd.f32 0.0, %v4512
        %v4514 = vpop.f32.mrb[0].mxu0
        %v4515 = vadd.f32 0.0, %v4514
        %v4516 = vpop.f32.mrb[0].mxu0
        %v4517 = vadd.f32 0.0, %v4516
        %v4518 = vpop.f32.mrb[0].mxu0
        %v4519 = vadd.f32 0.0, %v4518
        %4520 = vmatprep.mubr.bf16.mxu0 %v3022
        %4521 = vmatmul.mubr.bf16.gmra.mrb[0].mxu0 %v2958
        %v4522 = vpop.f32.mrb[0].mxu0
        %v4523 = vadd.f32 0.0, %v4522
        %v4524 = vpop.f32.mrb[0].mxu0
        %v4525 = vadd.f32 0.0, %v4524
        %v4526 = vpop.f32.mrb[0].mxu0
        %v4527 = vadd.f32 0.0, %v4526
        %v4528 = vpop.f32.mrb[0].mxu0
        %v4529 = vadd.f32 0.0, %v4528
        %4530 = vmatprep.mubr.bf16.mxu0 %v3023
        %4531 = vmatmul.mubr.bf16.gmra.mrb[0].mxu0 %v2959
        %v4532 = vpop.f32.mrb[0].mxu0
        %v4533 = vadd.f32 0.0, %v4532
        %v4534 = vpop.f32.mrb[0].mxu0
        %v4535 = vadd.f32 0.0, %v4534
        %v4536 = vpop.f32.mrb[0].mxu0
        %v4537 = vadd.f32 0.0, %v4536
        %v4538 = vpop.f32.mrb[0].mxu0
        %v4539 = vadd.f32 0.0, %v4538
        %4540 = vmatprep.mubr.bf16.mxu0 %v3024
        %4541 = vmatmul.mubr.bf16.gmra.mrb[0].mxu0 %v2960
        %v4542 = vpop.f32.mrb[0].mxu0
        %v4543 = vadd.f32 0.0, %v4542
        %v4544 = vpop.f32.mrb[0].mxu0
        %v4545 = vadd.f32 0.0, %v4544
        %v4546 = vpop.f32.mrb[0].mxu0
        %v4547 = vadd.f32 0.0, %v4546
        %v4548 = vpop.f32.mrb[0].mxu0
        %v4549 = vadd.f32 0.0, %v4548
        %4550 = vmatprep.mubr.bf16.mxu0 %v3025
        %4551 = vmatmul.mubr.bf16.gmra.mrb[0].mxu0 %v2961
        %v4552 = vpop.f32.mrb[0].mxu0
        %v4553 = vadd.f32 0.0, %v4552
        %v4554 = vpop.f32.mrb[0].mxu0
        %v4555 = vadd.f32 0.0, %v4554
        %v4556 = vpop.f32.mrb[0].mxu0
        %v4557 = vadd.f32 0.0, %v4556
        %v4558 = vpop.f32.mrb[0].mxu0
        %v4559 = vadd.f32 0.0, %v4558
        %4560 = vmatprep.mubr.bf16.mxu0 %v3026
        %4561 = vmatmul.mubr.bf16.gmra.mrb[0].mxu0 %v2962
        %v4562 = vpop.f32.mrb[0].mxu0
        %v4563 = vadd.f32 0.0, %v4562
        %v4564 = vpop.f32.mrb[0].mxu0
        %v4565 = vadd.f32 0.0, %v4564
        %v4566 = vpop.f32.mrb[0].mxu0
        %v4567 = vadd.f32 0.0, %v4566
        %v4568 = vpop.f32.mrb[0].mxu0
        %v4569 = vadd.f32 0.0, %v4568
        %4570 = vmatprep.mubr.bf16.mxu0 %v3027
        %4571 = vmatmul.mubr.bf16.gmra.mrb[0].mxu0 %v2963
        %v4572 = vpop.f32.mrb[0].mxu0
        %v4573 = vadd.f32 0.0, %v4572
        %v4574 = vpop.f32.mrb[0].mxu0
        %v4575 = vadd.f32 0.0, %v4574
        %v4576 = vpop.f32.mrb[0].mxu0
        %v4577 = vadd.f32 0.0, %v4576
        %v4578 = vpop.f32.mrb[0].mxu0
        %v4579 = vadd.f32 0.0, %v4578
        %4580 = vdwg.mxu0
        %4581 = vmatprep.subr.bf16.mxu0 %v4133
        %4582 = vmatpush1.bf16.msra.mxu0 %v4132
        %4583 = vmatprep.subr.bf16.mxu0 %v4135
        %4584 = vmatpush1.bf16.msra.mxu0 %v4134
        %4585 = vmatprep.subr.bf16.mxu0 %v4137
        %4586 = vmatpush1.bf16.msra.mxu0 %v4136
        %4587 = vmatprep.subr.bf16.mxu0 %v4139
        %4588 = vmatpush1.bf16.msra.mxu0 %v4138
        %4589 = vmatprep.subr.bf16.mxu0 %v4141
        %4590 = vmatpush1.bf16.msra.mxu0 %v4140
        %4591 = vmatprep.subr.bf16.mxu0 %v4143
        %4592 = vmatpush1.bf16.msra.mxu0 %v4142
        %4593 = vmatprep.subr.bf16.mxu0 %v4145
        %4594 = vmatpush1.bf16.msra.mxu0 %v4144
        %4595 = vmatprep.subr.bf16.mxu0 %v4147
        %4596 = vmatpush1.bf16.msra.mxu0 %v4146
        %4597 = vmatprep.subr.bf16.mxu0 %v4149
        %4598 = vmatpush1.bf16.msra.mxu0 %v4148
        %4599 = vmatprep.subr.bf16.mxu0 %v4151
        %4600 = vmatpush1.bf16.msra.mxu0 %v4150
        %4601 = vmatprep.subr.bf16.mxu0 %v4153
        %4602 = vmatpush1.bf16.msra.mxu0 %v4152
        %4603 = vmatprep.subr.bf16.mxu0 %v4155
        %4604 = vmatpush1.bf16.msra.mxu0 %v4154
        %4605 = vmatprep.subr.bf16.mxu0 %v4157
        %4606 = vmatpush1.bf16.msra.mxu0 %v4156
        %4607 = vmatprep.subr.bf16.mxu0 %v4159
        %4608 = vmatpush1.bf16.msra.mxu0 %v4158
        %4609 = vmatprep.subr.bf16.mxu0 %v4161
        %4610 = vmatpush1.bf16.msra.mxu0 %v4160
        %4611 = vmatprep.subr.bf16.mxu0 %v4163
        %4612 = vmatpush1.bf16.msra.mxu0 %v4162
        %4613 = vmatprep.mubr.bf16.mxu0 %v3156
        %4614 = vmatmul.mubr.bf16.gmra.mrb[0].mxu0 %v3076
        %v4615 = vpop.f32.mrb[0].mxu0
        %v4616 = vadd.f32 %v4423, %v4615
        %v4617 = vpop.f32.mrb[0].mxu0
        %v4618 = vadd.f32 %v4425, %v4617
        %v4619 = vpop.f32.mrb[0].mxu0
        %v4620 = vadd.f32 %v4427, %v4619
        %v4621 = vpop.f32.mrb[0].mxu0
        %v4622 = vadd.f32 %v4429, %v4621
        %4623 = vmatprep.mubr.bf16.mxu0 %v3157
        %4624 = vmatmul.mubr.bf16.gmra.mrb[0].mxu0 %v3077
        %v4625 = vpop.f32.mrb[0].mxu0
        %v4626 = vadd.f32 %v4433, %v4625
        %v4627 = vpop.f32.mrb[0].mxu0
        %v4628 = vadd.f32 %v4435, %v4627
        %v4629 = vpop.f32.mrb[0].mxu0
        %v4630 = vadd.f32 %v4437, %v4629
        %v4631 = vpop.f32.mrb[0].mxu0
        %v4632 = vadd.f32 %v4439, %v4631
        %4633 = vmatprep.mubr.bf16.mxu0 %v3158
        %4634 = vmatmul.mubr.bf16.gmra.mrb[0].mxu0 %v3078
        %v4635 = vpop.f32.mrb[0].mxu0
        %v4636 = vadd.f32 %v4443, %v4635
        %v4637 = vpop.f32.mrb[0].mxu0
        %v4638 = vadd.f32 %v4445, %v4637
        %v4639 = vpop.f32.mrb[0].mxu0
        %v4640 = vadd.f32 %v4447, %v4639
        %v4641 = vpop.f32.mrb[0].mxu0
        %v4642 = vadd.f32 %v4449, %v4641
        %4643 = vmatprep.mubr.bf16.mxu0 %v3159
        %4644 = vmatmul.mubr.bf16.gmra.mrb[0].mxu0 %v3079
        %v4645 = vpop.f32.mrb[0].mxu0
        %v4646 = vadd.f32 %v4453, %v4645
        %v4647 = vpop.f32.mrb[0].mxu0
        %v4648 = vadd.f32 %v4455, %v4647
        %v4649 = vpop.f32.mrb[0].mxu0
        %v4650 = vadd.f32 %v4457, %v4649
        %v4651 = vpop.f32.mrb[0].mxu0
        %v4652 = vadd.f32 %v4459, %v4651
        %4653 = vmatprep.mubr.bf16.mxu0 %v3160
        %4654 = vmatmul.mubr.bf16.gmra.mrb[0].mxu0 %v3080
        %v4655 = vpop.f32.mrb[0].mxu0
        %v4656 = vadd.f32 %v4463, %v4655
        %v4657 = vpop.f32.mrb[0].mxu0
        %v4658 = vadd.f32 %v4465, %v4657
        %v4659 = vpop.f32.mrb[0].mxu0
        %v4660 = vadd.f32 %v4467, %v4659
        %v4661 = vpop.f32.mrb[0].mxu0
        %v4662 = vadd.f32 %v4469, %v4661
        %4663 = vmatprep.mubr.bf16.mxu0 %v3161
        %4664 = vmatmul.mubr.bf16.gmra.mrb[0].mxu0 %v3081
        %v4665 = vpop.f32.mrb[0].mxu0
        %v4666 = vadd.f32 %v4473, %v4665
        %v4667 = vpop.f32.mrb[0].mxu0
        %v4668 = vadd.f32 %v4475, %v4667
        %v4669 = vpop.f32.mrb[0].mxu0
        %v4670 = vadd.f32 %v4477, %v4669
        %v4671 = vpop.f32.mrb[0].mxu0
        %v4672 = vadd.f32 %v4479, %v4671
        %4673 = vmatprep.mubr.bf16.mxu0 %v3162
        %4674 = vmatmul.mubr.bf16.gmra.mrb[0].mxu0 %v3082
        %v4675 = vpop.f32.mrb[0].mxu0
        %v4676 = vadd.f32 %v4483, %v4675
        %v4677 = vpop.f32.mrb[0].mxu0
        %v4678 = vadd.f32 %v4485, %v4677
        %v4679 = vpop.f32.mrb[0].mxu0
        %v4680 = vadd.f32 %v4487, %v4679
        %v4681 = vpop.f32.mrb[0].mxu0
        %v4682 = vadd.f32 %v4489, %v4681
        %4683 = vmatprep.mubr.bf16.mxu0 %v3163
        %4684 = vmatmul.mubr.bf16.gmra.mrb[0].mxu0 %v3083
        %v4685 = vpop.f32.mrb[0].mxu0
        %v4686 = vadd.f32 %v4493, %v4685
        %v4687 = vpop.f32.mrb[0].mxu0
        %v4688 = vadd.f32 %v4495, %v4687
        %v4689 = vpop.f32.mrb[0].mxu0
        %v4690 = vadd.f32 %v4497, %v4689
        %v4691 = vpop.f32.mrb[0].mxu0
        %v4692 = vadd.f32 %v4499, %v4691
        %4693 = vmatprep.mubr.bf16.mxu0 %v3164
        %4694 = vmatmul.mubr.bf16.gmra.mrb[0].mxu0 %v3084
        %v4695 = vpop.f32.mrb[0].mxu0
        %v4696 = vadd.f32 %v4503, %v4695
        %v4697 = vpop.f32.mrb[0].mxu0
        %v4698 = vadd.f32 %v4505, %v4697
        %v4699 = vpop.f32.mrb[0].mxu0
        %v4700 = vadd.f32 %v4507, %v4699
        %v4701 = vpop.f32.mrb[0].mxu0
        %v4702 = vadd.f32 %v4509, %v4701
        %4703 = vmatprep.mubr.bf16.mxu0 %v3165
        %4704 = vmatmul.mubr.bf16.gmra.mrb[0].mxu0 %v3085
        %v4705 = vpop.f32.mrb[0].mxu0
        %v4706 = vadd.f32 %v4513, %v4705
        %v4707 = vpop.f32.mrb[0].mxu0
        %v4708 = vadd.f32 %v4515, %v4707
        %v4709 = vpop.f32.mrb[0].mxu0
        %v4710 = vadd.f32 %v4517, %v4709
        %v4711 = vpop.f32.mrb[0].mxu0
        %v4712 = vadd.f32 %v4519, %v4711
        %4713 = vmatprep.mubr.bf16.mxu0 %v3166
        %4714 = vmatmul.mubr.bf16.gmra.mrb[0].mxu0 %v3086
        %v4715 = vpop.f32.mrb[0].mxu0
        %v4716 = vadd.f32 %v4523, %v4715
        %v4717 = vpop.f32.mrb[0].mxu0
        %v4718 = vadd.f32 %v4525, %v4717
        %v4719 = vpop.f32.mrb[0].mxu0
        %v4720 = vadd.f32 %v4527, %v4719
        %v4721 = vpop.f32.mrb[0].mxu0
        %v4722 = vadd.f32 %v4529, %v4721
        %4723 = vmatprep.mubr.bf16.mxu0 %v3167
        %4724 = vmatmul.mubr.bf16.gmra.mrb[0].mxu0 %v3087
        %v4725 = vpop.f32.mrb[0].mxu0
        %v4726 = vadd.f32 %v4533, %v4725
        %v4727 = vpop.f32.mrb[0].mxu0
        %v4728 = vadd.f32 %v4535, %v4727
        %v4729 = vpop.f32.mrb[0].mxu0
        %v4730 = vadd.f32 %v4537, %v4729
        %v4731 = vpop.f32.mrb[0].mxu0
        %v4732 = vadd.f32 %v4539, %v4731
        %4733 = vmatprep.mubr.bf16.mxu0 %v3168
        %4734 = vmatmul.mubr.bf16.gmra.mrb[0].mxu0 %v3088
        %v4735 = vpop.f32.mrb[0].mxu0
        %v4736 = vadd.f32 %v4543, %v4735
        %v4737 = vpop.f32.mrb[0].mxu0
        %v4738 = vadd.f32 %v4545, %v4737
        %v4739 = vpop.f32.mrb[0].mxu0
        %v4740 = vadd.f32 %v4547, %v4739
        %v4741 = vpop.f32.mrb[0].mxu0
        %v4742 = vadd.f32 %v4549, %v4741
        %4743 = vmatprep.mubr.bf16.mxu0 %v3169
        %4744 = vmatmul.mubr.bf16.gmra.mrb[0].mxu0 %v3089
        %v4745 = vpop.f32.mrb[0].mxu0
        %v4746 = vadd.f32 %v4553, %v4745
        %v4747 = vpop.f32.mrb[0].mxu0
        %v4748 = vadd.f32 %v4555, %v4747
        %v4749 = vpop.f32.mrb[0].mxu0
        %v4750 = vadd.f32 %v4557, %v4749
        %v4751 = vpop.f32.mrb[0].mxu0
        %v4752 = vadd.f32 %v4559, %v4751
        %4753 = vmatprep.mubr.bf16.mxu0 %v3170
        %4754 = vmatmul.mubr.bf16.gmra.mrb[0].mxu0 %v3090
        %v4755 = vpop.f32.mrb[0].mxu0
        %v4756 = vadd.f32 %v4563, %v4755
        %v4757 = vpop.f32.mrb[0].mxu0
        %v4758 = vadd.f32 %v4565, %v4757
        %v4759 = vpop.f32.mrb[0].mxu0
        %v4760 = vadd.f32 %v4567, %v4759
        %v4761 = vpop.f32.mrb[0].mxu0
        %v4762 = vadd.f32 %v4569, %v4761
        %4763 = vmatprep.mubr.bf16.mxu0 %v3171
        %4764 = vmatmul.mubr.bf16.gmra.mrb[0].mxu0 %v3091
        %v4765 = vpop.f32.mrb[0].mxu0
        %v4766 = vadd.f32 %v4573, %v4765
        %v4767 = vpop.f32.mrb[0].mxu0
        %v4768 = vadd.f32 %v4575, %v4767
        %v4769 = vpop.f32.mrb[0].mxu0
        %v4770 = vadd.f32 %v4577, %v4769
        %v4771 = vpop.f32.mrb[0].mxu0
        %v4772 = vadd.f32 %v4579, %v4771
        %4773 = vdwg.mxu0
        %4774 = vmatprep.subr.bf16.mxu0 %v4165
        %4775 = vmatpush1.bf16.msra.mxu0 %v4164
        %4776 = vmatprep.subr.bf16.mxu0 %v4167
        %4777 = vmatpush1.bf16.msra.mxu0 %v4166
        %4778 = vmatprep.subr.bf16.mxu0 %v4169
        %4779 = vmatpush1.bf16.msra.mxu0 %v4168
        %4780 = vmatprep.subr.bf16.mxu0 %v4171
        %4781 = vmatpush1.bf16.msra.mxu0 %v4170
        %4782 = vmatprep.subr.bf16.mxu0 %v4173
        %4783 = vmatpush1.bf16.msra.mxu0 %v4172
        %4784 = vmatprep.subr.bf16.mxu0 %v4175
        %4785 = vmatpush1.bf16.msra.mxu0 %v4174
        %4786 = vmatprep.subr.bf16.mxu0 %v4177
        %4787 = vmatpush1.bf16.msra.mxu0 %v4176
        %4788 = vmatprep.subr.bf16.mxu0 %v4179
        %4789 = vmatpush1.bf16.msra.mxu0 %v4178
        %4790 = vmatprep.subr.bf16.mxu0 %v4181
        %4791 = vmatpush1.bf16.msra.mxu0 %v4180
        %4792 = vmatprep.subr.bf16.mxu0 %v4183
        %4793 = vmatpush1.bf16.msra.mxu0 %v4182
        %4794 = vmatprep.subr.bf16.mxu0 %v4185
        %4795 = vmatpush1.bf16.msra.mxu0 %v4184
        %4796 = vmatprep.subr.bf16.mxu0 %v4187
        %4797 = vmatpush1.bf16.msra.mxu0 %v4186
        %4798 = vmatprep.subr.bf16.mxu0 %v4189
        %4799 = vmatpush1.bf16.msra.mxu0 %v4188
        %4800 = vmatprep.subr.bf16.mxu0 %v4191
        %4801 = vmatpush1.bf16.msra.mxu0 %v4190
        %4802 = vmatprep.subr.bf16.mxu0 %v4193
        %4803 = vmatpush1.bf16.msra.mxu0 %v4192
        %4804 = vmatprep.subr.bf16.mxu0 %v4195
        %4805 = vmatpush1.bf16.msra.mxu0 %v4194
        %4806 = vmatprep.mubr.bf16.mxu0 %v3284
        %4807 = vmatmul.mubr.bf16.gmra.mrb[0].mxu0 %v3220
        %v4808 = vpop.f32.mrb[0].mxu0
        %v4809 = vadd.f32 %v4616, %v4808
        %v4810 = vpop.f32.mrb[0].mxu0
        %v4811 = vadd.f32 %v4618, %v4810
        %v4812 = vpop.f32.mrb[0].mxu0
        %v4813 = vadd.f32 %v4620, %v4812
        %v4814 = vpop.f32.mrb[0].mxu0
        %v4815 = vadd.f32 %v4622, %v4814
        %4816 = vmatprep.mubr.bf16.mxu0 %v3285
        %4817 = vmatmul.mubr.bf16.gmra.mrb[0].mxu0 %v3221
        %v4818 = vpop.f32.mrb[0].mxu0
        %v4819 = vadd.f32 %v4626, %v4818
        %v4820 = vpop.f32.mrb[0].mxu0
        %v4821 = vadd.f32 %v4628, %v4820
        %v4822 = vpop.f32.mrb[0].mxu0
        %v4823 = vadd.f32 %v4630, %v4822
        %v4824 = vpop.f32.mrb[0].mxu0
        %v4825 = vadd.f32 %v4632, %v4824
        %4826 = vmatprep.mubr.bf16.mxu0 %v3286
        %4827 = vmatmul.mubr.bf16.gmra.mrb[0].mxu0 %v3222
        %v4828 = vpop.f32.mrb[0].mxu0
        %v4829 = vadd.f32 %v4636, %v4828
        %v4830 = vpop.f32.mrb[0].mxu0
        %v4831 = vadd.f32 %v4638, %v4830
        %v4832 = vpop.f32.mrb[0].mxu0
        %v4833 = vadd.f32 %v4640, %v4832
        %v4834 = vpop.f32.mrb[0].mxu0
        %v4835 = vadd.f32 %v4642, %v4834
        %4836 = vmatprep.mubr.bf16.mxu0 %v3287
        %4837 = vmatmul.mubr.bf16.gmra.mrb[0].mxu0 %v3223
        %v4838 = vpop.f32.mrb[0].mxu0
        %v4839 = vadd.f32 %v4646, %v4838
        %v4840 = vpop.f32.mrb[0].mxu0
        %v4841 = vadd.f32 %v4648, %v4840
        %v4842 = vpop.f32.mrb[0].mxu0
        %v4843 = vadd.f32 %v4650, %v4842
        %v4844 = vpop.f32.mrb[0].mxu0
        %v4845 = vadd.f32 %v4652, %v4844
        %4846 = vmatprep.mubr.bf16.mxu0 %v3288
        %4847 = vmatmul.mubr.bf16.gmra.mrb[0].mxu0 %v3224
        %v4848 = vpop.f32.mrb[0].mxu0
        %v4849 = vadd.f32 %v4656, %v4848
        %v4850 = vpop.f32.mrb[0].mxu0
        %v4851 = vadd.f32 %v4658, %v4850
        %v4852 = vpop.f32.mrb[0].mxu0
        %v4853 = vadd.f32 %v4660, %v4852
        %v4854 = vpop.f32.mrb[0].mxu0
        %v4855 = vadd.f32 %v4662, %v4854
        %4856 = vmatprep.mubr.bf16.mxu0 %v3289
        %4857 = vmatmul.mubr.bf16.gmra.mrb[0].mxu0 %v3225
        %v4858 = vpop.f32.mrb[0].mxu0
        %v4859 = vadd.f32 %v4666, %v4858
        %v4860 = vpop.f32.mrb[0].mxu0
        %v4861 = vadd.f32 %v4668, %v4860
        %v4862 = vpop.f32.mrb[0].mxu0
        %v4863 = vadd.f32 %v4670, %v4862
        %v4864 = vpop.f32.mrb[0].mxu0
        %v4865 = vadd.f32 %v4672, %v4864
        %4866 = vmatprep.mubr.bf16.mxu0 %v3290
        %4867 = vmatmul.mubr.bf16.gmra.mrb[0].mxu0 %v3226
        %v4868 = vpop.f32.mrb[0].mxu0
        %v4869 = vadd.f32 %v4676, %v4868
        %v4870 = vpop.f32.mrb[0].mxu0
        %v4871 = vadd.f32 %v4678, %v4870
        %v4872 = vpop.f32.mrb[0].mxu0
        %v4873 = vadd.f32 %v4680, %v4872
        %v4874 = vpop.f32.mrb[0].mxu0
        %v4875 = vadd.f32 %v4682, %v4874
        %4876 = vmatprep.mubr.bf16.mxu0 %v3291
        %4877 = vmatmul.mubr.bf16.gmra.mrb[0].mxu0 %v3227
        %v4878 = vpop.f32.mrb[0].mxu0
        %v4879 = vadd.f32 %v4686, %v4878
        %v4880 = vpop.f32.mrb[0].mxu0
        %v4881 = vadd.f32 %v4688, %v4880
        %v4882 = vpop.f32.mrb[0].mxu0
        %v4883 = vadd.f32 %v4690, %v4882
        %v4884 = vpop.f32.mrb[0].mxu0
        %v4885 = vadd.f32 %v4692, %v4884
        %4886 = vmatprep.mubr.bf16.mxu0 %v3292
        %4887 = vmatmul.mubr.bf16.gmra.mrb[0].mxu0 %v3228
        %v4888 = vpop.f32.mrb[0].mxu0
        %v4889 = vadd.f32 %v4696, %v4888
        %v4890 = vpop.f32.mrb[0].mxu0
        %v4891 = vadd.f32 %v4698, %v4890
        %v4892 = vpop.f32.mrb[0].mxu0
        %v4893 = vadd.f32 %v4700, %v4892
        %v4894 = vpop.f32.mrb[0].mxu0
        %v4895 = vadd.f32 %v4702, %v4894
        %4896 = vmatprep.mubr.bf16.mxu0 %v3293
        %4897 = vmatmul.mubr.bf16.gmra.mrb[0].mxu0 %v3229
        %v4898 = vpop.f32.mrb[0].mxu0
        %v4899 = vadd.f32 %v4706, %v4898
        %v4900 = vpop.f32.mrb[0].mxu0
        %v4901 = vadd.f32 %v4708, %v4900
        %v4902 = vpop.f32.mrb[0].mxu0
        %v4903 = vadd.f32 %v4710, %v4902
        %v4904 = vpop.f32.mrb[0].mxu0
        %v4905 = vadd.f32 %v4712, %v4904
        %4906 = vmatprep.mubr.bf16.mxu0 %v3294
        %4907 = vmatmul.mubr.bf16.gmra.mrb[0].mxu0 %v3230
        %v4908 = vpop.f32.mrb[0].mxu0
        %v4909 = vadd.f32 %v4716, %v4908
        %v4910 = vpop.f32.mrb[0].mxu0
        %v4911 = vadd.f32 %v4718, %v4910
        %v4912 = vpop.f32.mrb[0].mxu0
        %v4913 = vadd.f32 %v4720, %v4912
        %v4914 = vpop.f32.mrb[0].mxu0
        %v4915 = vadd.f32 %v4722, %v4914
        %4916 = vmatprep.mubr.bf16.mxu0 %v3295
        %4917 = vmatmul.mubr.bf16.gmra.mrb[0].mxu0 %v3231
        %v4918 = vpop.f32.mrb[0].mxu0
        %v4919 = vadd.f32 %v4726, %v4918
        %v4920 = vpop.f32.mrb[0].mxu0
        %v4921 = vadd.f32 %v4728, %v4920
        %v4922 = vpop.f32.mrb[0].mxu0
        %v4923 = vadd.f32 %v4730, %v4922
        %v4924 = vpop.f32.mrb[0].mxu0
        %v4925 = vadd.f32 %v4732, %v4924
        %4926 = vmatprep.mubr.bf16.mxu0 %v3296
        %4927 = vmatmul.mubr.bf16.gmra.mrb[0].mxu0 %v3232
        %v4928 = vpop.f32.mrb[0].mxu0
        %v4929 = vadd.f32 %v4736, %v4928
        %v4930 = vpop.f32.mrb[0].mxu0
        %v4931 = vadd.f32 %v4738, %v4930
        %v4932 = vpop.f32.mrb[0].mxu0
        %v4933 = vadd.f32 %v4740, %v4932
        %v4934 = vpop.f32.mrb[0].mxu0
        %v4935 = vadd.f32 %v4742, %v4934
        %4936 = vmatprep.mubr.bf16.mxu0 %v3297
        %4937 = vmatmul.mubr.bf16.gmra.mrb[0].mxu0 %v3233
        %v4938 = vpop.f32.mrb[0].mxu0
        %v4939 = vadd.f32 %v4746, %v4938
        %v4940 = vpop.f32.mrb[0].mxu0
        %v4941 = vadd.f32 %v4748, %v4940
        %v4942 = vpop.f32.mrb[0].mxu0
        %v4943 = vadd.f32 %v4750, %v4942
        %v4944 = vpop.f32.mrb[0].mxu0
        %v4945 = vadd.f32 %v4752, %v4944
        %4946 = vmatprep.mubr.bf16.mxu0 %v3298
        %4947 = vmatmul.mubr.bf16.gmra.mrb[0].mxu0 %v3234
        %v4948 = vpop.f32.mrb[0].mxu0
        %v4949 = vadd.f32 %v4756, %v4948
        %v4950 = vpop.f32.mrb[0].mxu0
        %v4951 = vadd.f32 %v4758, %v4950
        %v4952 = vpop.f32.mrb[0].mxu0
        %v4953 = vadd.f32 %v4760, %v4952
        %v4954 = vpop.f32.mrb[0].mxu0
        %v4955 = vadd.f32 %v4762, %v4954
        %4956 = vmatprep.mubr.bf16.mxu0 %v3299
        %4957 = vmatmul.mubr.bf16.gmra.mrb[0].mxu0 %v3235
        %v4958 = vpop.f32.mrb[0].mxu0
        %v4959 = vadd.f32 %v4766, %v4958
        %v4960 = vpop.f32.mrb[0].mxu0
        %v4961 = vadd.f32 %v4768, %v4960
        %v4962 = vpop.f32.mrb[0].mxu0
        %v4963 = vadd.f32 %v4770, %v4962
        %v4964 = vpop.f32.mrb[0].mxu0
        %v4965 = vadd.f32 %v4772, %v4964
        %4966 = vdwg.mxu0
        %4967 = vmatprep.subr.bf16.mxu0 %v4197
        %4968 = vmatpush1.bf16.msra.mxu0 %v4196
        %4969 = vmatprep.subr.bf16.mxu0 %v4199
        %4970 = vmatpush1.bf16.msra.mxu0 %v4198
        %4971 = vmatprep.subr.bf16.mxu0 %v4201
        %4972 = vmatpush1.bf16.msra.mxu0 %v4200
        %4973 = vmatprep.subr.bf16.mxu0 %v4203
        %4974 = vmatpush1.bf16.msra.mxu0 %v4202
        %4975 = vmatprep.subr.bf16.mxu0 %v4205
        %4976 = vmatpush1.bf16.msra.mxu0 %v4204
        %4977 = vmatprep.subr.bf16.mxu0 %v4207
        %4978 = vmatpush1.bf16.msra.mxu0 %v4206
        %4979 = vmatprep.subr.bf16.mxu0 %v4209
        %4980 = vmatpush1.bf16.msra.mxu0 %v4208
        %4981 = vmatprep.subr.bf16.mxu0 %v4211
        %4982 = vmatpush1.bf16.msra.mxu0 %v4210
        %4983 = vmatprep.subr.bf16.mxu0 %v4213
        %4984 = vmatpush1.bf16.msra.mxu0 %v4212
        %4985 = vmatprep.subr.bf16.mxu0 %v4215
        %4986 = vmatpush1.bf16.msra.mxu0 %v4214
        %4987 = vmatprep.subr.bf16.mxu0 %v4217
        %4988 = vmatpush1.bf16.msra.mxu0 %v4216
        %4989 = vmatprep.subr.bf16.mxu0 %v4219
        %4990 = vmatpush1.bf16.msra.mxu0 %v4218
        %4991 = vmatprep.subr.bf16.mxu0 %v4221
        %4992 = vmatpush1.bf16.msra.mxu0 %v4220
        %4993 = vmatprep.subr.bf16.mxu0 %v4223
        %4994 = vmatpush1.bf16.msra.mxu0 %v4222
        %4995 = vmatprep.subr.bf16.mxu0 %v4225
        %4996 = vmatpush1.bf16.msra.mxu0 %v4224
        %4997 = vmatprep.subr.bf16.mxu0 %v4227
        %4998 = vmatpush1.bf16.msra.mxu0 %v4226
        %4999 = vmatprep.mubr.bf16.mxu0 %v3428
        %5000 = vmatmul.mubr.bf16.gmra.mrb[0].mxu0 %v3364
        %v5001 = vpop.f32.mrb[0].mxu0
        %v5002 = vadd.f32 %v4809, %v5001
        %v5003 = vpop.f32.mrb[0].mxu0
        %v5004 = vadd.f32 %v4811, %v5003
        %v5005 = vpop.f32.mrb[0].mxu0
        %v5006 = vadd.f32 %v4813, %v5005
        %v5007 = vpop.f32.mrb[0].mxu0
        %v5008 = vadd.f32 %v4815, %v5007
        %5009 = vmatprep.mubr.bf16.mxu0 %v3429
        %5010 = vmatmul.mubr.bf16.gmra.mrb[0].mxu0 %v3365
        %v5011 = vpop.f32.mrb[0].mxu0
        %v5012 = vadd.f32 %v4819, %v5011
        %v5013 = vpop.f32.mrb[0].mxu0
        %v5014 = vadd.f32 %v4821, %v5013
        %v5015 = vpop.f32.mrb[0].mxu0
        %v5016 = vadd.f32 %v4823, %v5015
        %v5017 = vpop.f32.mrb[0].mxu0
        %v5018 = vadd.f32 %v4825, %v5017
        %5019 = vmatprep.mubr.bf16.mxu0 %v3430
        %5020 = vmatmul.mubr.bf16.gmra.mrb[0].mxu0 %v3366
        %v5021 = vpop.f32.mrb[0].mxu0
        %v5022 = vadd.f32 %v4829, %v5021
        %v5023 = vpop.f32.mrb[0].mxu0
        %v5024 = vadd.f32 %v4831, %v5023
        %v5025 = vpop.f32.mrb[0].mxu0
        %v5026 = vadd.f32 %v4833, %v5025
        %v5027 = vpop.f32.mrb[0].mxu0
        %v5028 = vadd.f32 %v4835, %v5027
        %5029 = vmatprep.mubr.bf16.mxu0 %v3431
        %5030 = vmatmul.mubr.bf16.gmra.mrb[0].mxu0 %v3367
        %v5031 = vpop.f32.mrb[0].mxu0
        %v5032 = vadd.f32 %v4839, %v5031
        %v5033 = vpop.f32.mrb[0].mxu0
        %v5034 = vadd.f32 %v4841, %v5033
        %v5035 = vpop.f32.mrb[0].mxu0
        %v5036 = vadd.f32 %v4843, %v5035
        %v5037 = vpop.f32.mrb[0].mxu0
        %v5038 = vadd.f32 %v4845, %v5037
        %5039 = vmatprep.mubr.bf16.mxu0 %v3432
        %5040 = vmatmul.mubr.bf16.gmra.mrb[0].mxu0 %v3368
        %v5041 = vpop.f32.mrb[0].mxu0
        %v5042 = vadd.f32 %v4849, %v5041
        %v5043 = vpop.f32.mrb[0].mxu0
        %v5044 = vadd.f32 %v4851, %v5043
        %v5045 = vpop.f32.mrb[0].mxu0
        %v5046 = vadd.f32 %v4853, %v5045
        %v5047 = vpop.f32.mrb[0].mxu0
        %v5048 = vadd.f32 %v4855, %v5047
        %5049 = vmatprep.mubr.bf16.mxu0 %v3433
        %5050 = vmatmul.mubr.bf16.gmra.mrb[0].mxu0 %v3369
        %v5051 = vpop.f32.mrb[0].mxu0
        %v5052 = vadd.f32 %v4859, %v5051
        %v5053 = vpop.f32.mrb[0].mxu0
        %v5054 = vadd.f32 %v4861, %v5053
        %v5055 = vpop.f32.mrb[0].mxu0
        %v5056 = vadd.f32 %v4863, %v5055
        %v5057 = vpop.f32.mrb[0].mxu0
        %v5058 = vadd.f32 %v4865, %v5057
        %5059 = vmatprep.mubr.bf16.mxu0 %v3434
        %5060 = vmatmul.mubr.bf16.gmra.mrb[0].mxu0 %v3370
        %v5061 = vpop.f32.mrb[0].mxu0
        %v5062 = vadd.f32 %v4869, %v5061
        %v5063 = vpop.f32.mrb[0].mxu0
        %v5064 = vadd.f32 %v4871, %v5063
        %v5065 = vpop.f32.mrb[0].mxu0
        %v5066 = vadd.f32 %v4873, %v5065
        %v5067 = vpop.f32.mrb[0].mxu0
        %v5068 = vadd.f32 %v4875, %v5067
        %5069 = vmatprep.mubr.bf16.mxu0 %v3435
        %5070 = vmatmul.mubr.bf16.gmra.mrb[0].mxu0 %v3371
        %v5071 = vpop.f32.mrb[0].mxu0
        %v5072 = vadd.f32 %v4879, %v5071
        %v5073 = vpop.f32.mrb[0].mxu0
        %v5074 = vadd.f32 %v4881, %v5073
        %v5075 = vpop.f32.mrb[0].mxu0
        %v5076 = vadd.f32 %v4883, %v5075
        %v5077 = vpop.f32.mrb[0].mxu0
        %v5078 = vadd.f32 %v4885, %v5077
        %5079 = vmatprep.mubr.bf16.mxu0 %v3436
        %5080 = vmatmul.mubr.bf16.gmra.mrb[0].mxu0 %v3372
        %v5081 = vpop.f32.mrb[0].mxu0
        %v5082 = vadd.f32 %v4889, %v5081
        %v5083 = vpop.f32.mrb[0].mxu0
        %v5084 = vadd.f32 %v4891, %v5083
        %v5085 = vpop.f32.mrb[0].mxu0
        %v5086 = vadd.f32 %v4893, %v5085
        %v5087 = vpop.f32.mrb[0].mxu0
        %v5088 = vadd.f32 %v4895, %v5087
        %5089 = vmatprep.mubr.bf16.mxu0 %v3437
        %5090 = vmatmul.mubr.bf16.gmra.mrb[0].mxu0 %v3373
        %v5091 = vpop.f32.mrb[0].mxu0
        %v5092 = vadd.f32 %v4899, %v5091
        %v5093 = vpop.f32.mrb[0].mxu0
        %v5094 = vadd.f32 %v4901, %v5093
        %v5095 = vpop.f32.mrb[0].mxu0
        %v5096 = vadd.f32 %v4903, %v5095
        %v5097 = vpop.f32.mrb[0].mxu0
        %v5098 = vadd.f32 %v4905, %v5097
        %5099 = vmatprep.mubr.bf16.mxu0 %v3438
        %5100 = vmatmul.mubr.bf16.gmra.mrb[0].mxu0 %v3374
        %v5101 = vpop.f32.mrb[0].mxu0
        %v5102 = vadd.f32 %v4909, %v5101
        %v5103 = vpop.f32.mrb[0].mxu0
        %v5104 = vadd.f32 %v4911, %v5103
        %v5105 = vpop.f32.mrb[0].mxu0
        %v5106 = vadd.f32 %v4913, %v5105
        %v5107 = vpop.f32.mrb[0].mxu0
        %v5108 = vadd.f32 %v4915, %v5107
        %5109 = vmatprep.mubr.bf16.mxu0 %v3439
        %5110 = vmatmul.mubr.bf16.gmra.mrb[0].mxu0 %v3375
        %v5111 = vpop.f32.mrb[0].mxu0
        %v5112 = vadd.f32 %v4919, %v5111
        %v5113 = vpop.f32.mrb[0].mxu0
        %v5114 = vadd.f32 %v4921, %v5113
        %v5115 = vpop.f32.mrb[0].mxu0
        %v5116 = vadd.f32 %v4923, %v5115
        %v5117 = vpop.f32.mrb[0].mxu0
        %v5118 = vadd.f32 %v4925, %v5117
        %5119 = vmatprep.mubr.bf16.mxu0 %v3440
        %5120 = vmatmul.mubr.bf16.gmra.mrb[0].mxu0 %v3376
        %v5121 = vpop.f32.mrb[0].mxu0
        %v5122 = vadd.f32 %v4929, %v5121
        %v5123 = vpop.f32.mrb[0].mxu0
        %v5124 = vadd.f32 %v4931, %v5123
        %v5125 = vpop.f32.mrb[0].mxu0
        %v5126 = vadd.f32 %v4933, %v5125
        %v5127 = vpop.f32.mrb[0].mxu0
        %v5128 = vadd.f32 %v4935, %v5127
        %5129 = vmatprep.mubr.bf16.mxu0 %v3441
        %5130 = vmatmul.mubr.bf16.gmra.mrb[0].mxu0 %v3377
        %v5131 = vpop.f32.mrb[0].mxu0
        %v5132 = vadd.f32 %v4939, %v5131
        %v5133 = vpop.f32.mrb[0].mxu0
        %v5134 = vadd.f32 %v4941, %v5133
        %v5135 = vpop.f32.mrb[0].mxu0
        %v5136 = vadd.f32 %v4943, %v5135
        %v5137 = vpop.f32.mrb[0].mxu0
        %v5138 = vadd.f32 %v4945, %v5137
        %5139 = vmatprep.mubr.bf16.mxu0 %v3442
        %5140 = vmatmul.mubr.bf16.gmra.mrb[0].mxu0 %v3378
        %v5141 = vpop.f32.mrb[0].mxu0
        %v5142 = vadd.f32 %v4949, %v5141
        %v5143 = vpop.f32.mrb[0].mxu0
        %v5144 = vadd.f32 %v4951, %v5143
        %v5145 = vpop.f32.mrb[0].mxu0
        %v5146 = vadd.f32 %v4953, %v5145
        %v5147 = vpop.f32.mrb[0].mxu0
        %v5148 = vadd.f32 %v4955, %v5147
        %5149 = vmatprep.mubr.bf16.mxu0 %v3443
        %5150 = vmatmul.mubr.bf16.gmra.mrb[0].mxu0 %v3379
        %v5151 = vpop.f32.mrb[0].mxu0
        %v5152 = vadd.f32 %v4959, %v5151
        %v5153 = vpop.f32.mrb[0].mxu0
        %v5154 = vadd.f32 %v4961, %v5153
        %v5155 = vpop.f32.mrb[0].mxu0
        %v5156 = vadd.f32 %v4963, %v5155
        %v5157 = vpop.f32.mrb[0].mxu0
        %v5158 = vadd.f32 %v4965, %v5157
        %5159 = vdwg.mxu0
        %5160 = vmatprep.subr.bf16.mxu0 %v4229
        %5161 = vmatpush1.bf16.msra.mxu0 %v4228
        %5162 = vmatprep.subr.bf16.mxu0 %v4231
        %5163 = vmatpush1.bf16.msra.mxu0 %v4230
        %5164 = vmatprep.subr.bf16.mxu0 %v4233
        %5165 = vmatpush1.bf16.msra.mxu0 %v4232
        %5166 = vmatprep.subr.bf16.mxu0 %v4235
        %5167 = vmatpush1.bf16.msra.mxu0 %v4234
        %5168 = vmatprep.subr.bf16.mxu0 %v4237
        %5169 = vmatpush1.bf16.msra.mxu0 %v4236
        %5170 = vmatprep.subr.bf16.mxu0 %v4239
        %5171 = vmatpush1.bf16.msra.mxu0 %v4238
        %5172 = vmatprep.subr.bf16.mxu0 %v4241
        %5173 = vmatpush1.bf16.msra.mxu0 %v4240
        %5174 = vmatprep.subr.bf16.mxu0 %v4243
        %5175 = vmatpush1.bf16.msra.mxu0 %v4242
        %5176 = vmatprep.subr.bf16.mxu0 0
        %5177 = vmatpush1.bf16.msra.mxu0 0
        %5178 = vmatprep.subr.bf16.mxu0 0
        %5179 = vmatpush1.bf16.msra.mxu0 0
        %5180 = vmatprep.subr.bf16.mxu0 0
        %5181 = vmatpush1.bf16.msra.mxu0 0
        %5182 = vmatprep.subr.bf16.mxu0 0
        %5183 = vmatpush1.bf16.msra.mxu0 0
        %5184 = vmatprep.subr.bf16.mxu0 0
        %5185 = vmatpush1.bf16.msra.mxu0 0
        %5186 = vmatprep.subr.bf16.mxu0 0
        %5187 = vmatpush1.bf16.msra.mxu0 0
        %5188 = vmatprep.subr.bf16.mxu0 0
        %5189 = vmatpush1.bf16.msra.mxu0 0
        %5190 = vmatprep.subr.bf16.mxu0 0
        %5191 = vmatpush1.bf16.msra.mxu0 0
        %5192 = vmatprep.mubr.bf16.mxu0 0
        %5193 = vmatmul.mubr.bf16.gmra.mrb[0].mxu0 %v3492
        %v5194 = vpop.f32.mrb[0].mxu0
        %v5195 = vadd.f32 %v5002, %v5194
        %v5196 = vpop.f32.mrb[0].mxu0
        %v5197 = vadd.f32 %v5004, %v5196
        %v5198 = vpop.f32.mrb[0].mxu0
        %v5199 = vadd.f32 %v5006, %v5198
        %v5200 = vpop.f32.mrb[0].mxu0
        %v5201 = vadd.f32 %v5008, %v5200
        %5202 = vmatprep.mubr.bf16.mxu0 0
        %5203 = vmatmul.mubr.bf16.gmra.mrb[0].mxu0 %v3493
        %v5204 = vpop.f32.mrb[0].mxu0
        %v5205 = vadd.f32 %v5012, %v5204
        %v5206 = vpop.f32.mrb[0].mxu0
        %v5207 = vadd.f32 %v5014, %v5206
        %v5208 = vpop.f32.mrb[0].mxu0
        %v5209 = vadd.f32 %v5016, %v5208
        %v5210 = vpop.f32.mrb[0].mxu0
        %v5211 = vadd.f32 %v5018, %v5210
        %5212 = vmatprep.mubr.bf16.mxu0 0
        %5213 = vmatmul.mubr.bf16.gmra.mrb[0].mxu0 %v3494
        %v5214 = vpop.f32.mrb[0].mxu0
        %v5215 = vadd.f32 %v5022, %v5214
        %v5216 = vpop.f32.mrb[0].mxu0
        %v5217 = vadd.f32 %v5024, %v5216
        %v5218 = vpop.f32.mrb[0].mxu0
        %v5219 = vadd.f32 %v5026, %v5218
        %v5220 = vpop.f32.mrb[0].mxu0
        %v5221 = vadd.f32 %v5028, %v5220
        %5222 = vmatprep.mubr.bf16.mxu0 0
        %5223 = vmatmul.mubr.bf16.gmra.mrb[0].mxu0 %v3495
        %v5224 = vpop.f32.mrb[0].mxu0
        %v5225 = vadd.f32 %v5032, %v5224
        %v5226 = vpop.f32.mrb[0].mxu0
        %v5227 = vadd.f32 %v5034, %v5226
        %v5228 = vpop.f32.mrb[0].mxu0
        %v5229 = vadd.f32 %v5036, %v5228
        %v5230 = vpop.f32.mrb[0].mxu0
        %v5231 = vadd.f32 %v5038, %v5230
        %5232 = vmatprep.mubr.bf16.mxu0 0
        %5233 = vmatmul.mubr.bf16.gmra.mrb[0].mxu0 %v3496
        %v5234 = vpop.f32.mrb[0].mxu0
        %v5235 = vadd.f32 %v5042, %v5234
        %v5236 = vpop.f32.mrb[0].mxu0
        %v5237 = vadd.f32 %v5044, %v5236
        %v5238 = vpop.f32.mrb[0].mxu0
        %v5239 = vadd.f32 %v5046, %v5238
        %v5240 = vpop.f32.mrb[0].mxu0
        %v5241 = vadd.f32 %v5048, %v5240
        %5242 = vmatprep.mubr.bf16.mxu0 0
        %5243 = vmatmul.mubr.bf16.gmra.mrb[0].mxu0 %v3497
        %v5244 = vpop.f32.mrb[0].mxu0
        %v5245 = vadd.f32 %v5052, %v5244
        %v5246 = vpop.f32.mrb[0].mxu0
        %v5247 = vadd.f32 %v5054, %v5246
        %v5248 = vpop.f32.mrb[0].mxu0
        %v5249 = vadd.f32 %v5056, %v5248
        %v5250 = vpop.f32.mrb[0].mxu0
        %v5251 = vadd.f32 %v5058, %v5250
        %5252 = vmatprep.mubr.bf16.mxu0 0
        %5253 = vmatmul.mubr.bf16.gmra.mrb[0].mxu0 %v3498
        %v5254 = vpop.f32.mrb[0].mxu0
        %v5255 = vadd.f32 %v5062, %v5254
        %v5256 = vpop.f32.mrb[0].mxu0
        %v5257 = vadd.f32 %v5064, %v5256
        %v5258 = vpop.f32.mrb[0].mxu0
        %v5259 = vadd.f32 %v5066, %v5258
        %v5260 = vpop.f32.mrb[0].mxu0
        %v5261 = vadd.f32 %v5068, %v5260
        %5262 = vmatprep.mubr.bf16.mxu0 0
        %5263 = vmatmul.mubr.bf16.gmra.mrb[0].mxu0 %v3499
        %v5264 = vpop.f32.mrb[0].mxu0
        %v5265 = vadd.f32 %v5072, %v5264
        %v5266 = vpop.f32.mrb[0].mxu0
        %v5267 = vadd.f32 %v5074, %v5266
        %v5268 = vpop.f32.mrb[0].mxu0
        %v5269 = vadd.f32 %v5076, %v5268
        %v5270 = vpop.f32.mrb[0].mxu0
        %v5271 = vadd.f32 %v5078, %v5270
        %5272 = vmatprep.mubr.bf16.mxu0 0
        %5273 = vmatmul.mubr.bf16.gmra.mrb[0].mxu0 %v3500
        %v5274 = vpop.f32.mrb[0].mxu0
        %v5275 = vadd.f32 %v5082, %v5274
        %v5276 = vpop.f32.mrb[0].mxu0
        %v5277 = vadd.f32 %v5084, %v5276
        %v5278 = vpop.f32.mrb[0].mxu0
        %v5279 = vadd.f32 %v5086, %v5278
        %v5280 = vpop.f32.mrb[0].mxu0
        %v5281 = vadd.f32 %v5088, %v5280
        %5282 = vmatprep.mubr.bf16.mxu0 0
        %5283 = vmatmul.mubr.bf16.gmra.mrb[0].mxu0 %v3501
        %v5284 = vpop.f32.mrb[0].mxu0
        %v5285 = vadd.f32 %v5092, %v5284
        %v5286 = vpop.f32.mrb[0].mxu0
        %v5287 = vadd.f32 %v5094, %v5286
        %v5288 = vpop.f32.mrb[0].mxu0
        %v5289 = vadd.f32 %v5096, %v5288
        %v5290 = vpop.f32.mrb[0].mxu0
        %v5291 = vadd.f32 %v5098, %v5290
        %5292 = vmatprep.mubr.bf16.mxu0 0
        %5293 = vmatmul.mubr.bf16.gmra.mrb[0].mxu0 %v3502
        %v5294 = vpop.f32.mrb[0].mxu0
        %v5295 = vadd.f32 %v5102, %v5294
        %v5296 = vpop.f32.mrb[0].mxu0
        %v5297 = vadd.f32 %v5104, %v5296
        %v5298 = vpop.f32.mrb[0].mxu0
        %v5299 = vadd.f32 %v5106, %v5298
        %v5300 = vpop.f32.mrb[0].mxu0
        %v5301 = vadd.f32 %v5108, %v5300
        %5302 = vmatprep.mubr.bf16.mxu0 0
        %5303 = vmatmul.mubr.bf16.gmra.mrb[0].mxu0 %v3503
        %v5304 = vpop.f32.mrb[0].mxu0
        %v5305 = vadd.f32 %v5112, %v5304
        %v5306 = vpop.f32.mrb[0].mxu0
        %v5307 = vadd.f32 %v5114, %v5306
        %v5308 = vpop.f32.mrb[0].mxu0
        %v5309 = vadd.f32 %v5116, %v5308
        %v5310 = vpop.f32.mrb[0].mxu0
        %v5311 = vadd.f32 %v5118, %v5310
        %5312 = vmatprep.mubr.bf16.mxu0 0
        %5313 = vmatmul.mubr.bf16.gmra.mrb[0].mxu0 %v3504
        %v5314 = vpop.f32.mrb[0].mxu0
        %v5315 = vadd.f32 %v5122, %v5314
        %v5316 = vpop.f32.mrb[0].mxu0
        %v5317 = vadd.f32 %v5124, %v5316
        %v5318 = vpop.f32.mrb[0].mxu0
        %v5319 = vadd.f32 %v5126, %v5318
        %v5320 = vpop.f32.mrb[0].mxu0
        %v5321 = vadd.f32 %v5128, %v5320
        %5322 = vmatprep.mubr.bf16.mxu0 0
        %5323 = vmatmul.mubr.bf16.gmra.mrb[0].mxu0 %v3505
        %v5324 = vpop.f32.mrb[0].mxu0
        %v5325 = vadd.f32 %v5132, %v5324
        %v5326 = vpop.f32.mrb[0].mxu0
        %v5327 = vadd.f32 %v5134, %v5326
        %v5328 = vpop.f32.mrb[0].mxu0
        %v5329 = vadd.f32 %v5136, %v5328
        %v5330 = vpop.f32.mrb[0].mxu0
        %v5331 = vadd.f32 %v5138, %v5330
        %5332 = vmatprep.mubr.bf16.mxu0 0
        %5333 = vmatmul.mubr.bf16.gmra.mrb[0].mxu0 %v3506
        %v5334 = vpop.f32.mrb[0].mxu0
        %v5335 = vadd.f32 %v5142, %v5334
        %v5336 = vpop.f32.mrb[0].mxu0
        %v5337 = vadd.f32 %v5144, %v5336
        %v5338 = vpop.f32.mrb[0].mxu0
        %v5339 = vadd.f32 %v5146, %v5338
        %v5340 = vpop.f32.mrb[0].mxu0
        %v5341 = vadd.f32 %v5148, %v5340
        %5342 = vmatprep.mubr.bf16.mxu0 0
        %5343 = vmatmul.mubr.bf16.gmra.mrb[0].mxu0 %v3507
        %v5344 = vpop.f32.mrb[0].mxu0
        %v5345 = vadd.f32 %v5152, %v5344
        %v5346 = vpop.f32.mrb[0].mxu0
        %v5347 = vadd.f32 %v5154, %v5346
        %v5348 = vpop.f32.mrb[0].mxu0
        %v5349 = vadd.f32 %v5156, %v5348
        %v5350 = vpop.f32.mrb[0].mxu0
        %v5351 = vadd.f32 %v5158, %v5350
        %5352 = vdwg.mxu0
        %v5353 = vld [vmem:[#allocation8] sm:$0x3]
        %v5355 = vlaneseq
        %v5356 = vshrl.u32 %v5355, 7
        %v5357 = vsub.s32 0, %v5356
        %v5358 = vrot.slane %v5353, %v5357
        %v5359 = vlaneseq
        %v5360 = vshrl.u32 %v5359, 7
        %v5361 = vsub.s32 1, %v5360
        %v5362 = vrot.slane %v5353, %v5361
        %v5365 = vmul.f32 %v5195, %v5358
        %v5366 = vmul.f32 %v5197, %v5362
        %v5367 = vmul.f32 %v5199, %v5358
        %v5368 = vmul.f32 %v5201, %v5362
        %v5369 = vmul.f32 %v5205, %v5358
        %v5370 = vmul.f32 %v5207, %v5362
        %v5371 = vmul.f32 %v5209, %v5358
        %v5372 = vmul.f32 %v5211, %v5362
        %v5373 = vmul.f32 %v5215, %v5358
        %v5374 = vmul.f32 %v5217, %v5362
        %v5375 = vmul.f32 %v5219, %v5358
        %v5376 = vmul.f32 %v5221, %v5362
        %v5377 = vmul.f32 %v5225, %v5358
        %v5378 = vmul.f32 %v5227, %v5362
        %v5379 = vmul.f32 %v5229, %v5358
        %v5380 = vmul.f32 %v5231, %v5362
        %v5381 = vmul.f32 %v5235, %v5358
        %v5382 = vmul.f32 %v5237, %v5362
        %v5383 = vmul.f32 %v5239, %v5358
        %v5384 = vmul.f32 %v5241, %v5362
        %v5385 = vmul.f32 %v5245, %v5358
        %v5386 = vmul.f32 %v5247, %v5362
        %v5387 = vmul.f32 %v5249, %v5358
        %v5388 = vmul.f32 %v5251, %v5362
        %v5389 = vmul.f32 %v5255, %v5358
        %v5390 = vmul.f32 %v5257, %v5362
        %v5391 = vmul.f32 %v5259, %v5358
        %v5392 = vmul.f32 %v5261, %v5362
        %v5393 = vmul.f32 %v5265, %v5358
        %v5394 = vmul.f32 %v5267, %v5362
        %v5395 = vmul.f32 %v5269, %v5358
        %v5396 = vmul.f32 %v5271, %v5362
        %v5397 = vmul.f32 %v5275, %v5358
        %v5398 = vmul.f32 %v5277, %v5362
        %v5399 = vmul.f32 %v5279, %v5358
        %v5400 = vmul.f32 %v5281, %v5362
        %v5401 = vmul.f32 %v5285, %v5358
        %v5402 = vmul.f32 %v5287, %v5362
        %v5403 = vmul.f32 %v5289, %v5358
        %v5404 = vmul.f32 %v5291, %v5362
        %v5405 = vmul.f32 %v5295, %v5358
        %v5406 = vmul.f32 %v5297, %v5362
        %v5407 = vmul.f32 %v5299, %v5358
        %v5408 = vmul.f32 %v5301, %v5362
        %v5409 = vmul.f32 %v5305, %v5358
        %v5410 = vmul.f32 %v5307, %v5362
        %v5411 = vmul.f32 %v5309, %v5358
        %v5412 = vmul.f32 %v5311, %v5362
        %v5413 = vmul.f32 %v5315, %v5358
        %v5414 = vmul.f32 %v5317, %v5362
        %v5415 = vmul.f32 %v5319, %v5358
        %v5416 = vmul.f32 %v5321, %v5362
        %v5417 = vmul.f32 %v5325, %v5358
        %v5418 = vmul.f32 %v5327, %v5362
        %v5419 = vmul.f32 %v5329, %v5358
        %v5420 = vmul.f32 %v5331, %v5362
        %v5421 = vmul.f32 %v5335, %v5358
        %v5422 = vmul.f32 %v5337, %v5362
        %v5423 = vmul.f32 %v5339, %v5358
        %v5424 = vmul.f32 %v5341, %v5362
        %v5425 = vmul.f32 %v5345, %v5358
        %v5426 = vmul.f32 %v5347, %v5362
        %v5427 = vmul.f32 %v5349, %v5358
        %v5428 = vmul.f32 %v5351, %v5362
        %v5429 = vld [vmem:[#allocation9] sm:$0x3]
        %v5431 = vlaneseq
        %v5432 = vshrl.u32 %v5431, 7
        %v5433 = vsub.s32 0, %v5432
        %v5434 = vrot.slane %v5429, %v5433
        %v5435 = vlaneseq
        %v5436 = vshrl.u32 %v5435, 7
        %v5437 = vsub.s32 1, %v5436
        %v5438 = vrot.slane %v5429, %v5437
        %v5441 = vadd.f32 %v5365, %v5434
        %v5442 = vadd.f32 %v5366, %v5438
        %v5443 = vadd.f32 %v5367, %v5434
        %v5444 = vadd.f32 %v5368, %v5438
        %v5445 = vadd.f32 %v5369, %v5434
        %v5446 = vadd.f32 %v5370, %v5438
        %v5447 = vadd.f32 %v5371, %v5434
        %v5448 = vadd.f32 %v5372, %v5438
        %v5449 = vadd.f32 %v5373, %v5434
        %v5450 = vadd.f32 %v5374, %v5438
        %v5451 = vadd.f32 %v5375, %v5434
        %v5452 = vadd.f32 %v5376, %v5438
        %v5453 = vadd.f32 %v5377, %v5434
        %v5454 = vadd.f32 %v5378, %v5438
        %v5455 = vadd.f32 %v5379, %v5434
        %v5456 = vadd.f32 %v5380, %v5438
        %v5457 = vadd.f32 %v5381, %v5434
        %v5458 = vadd.f32 %v5382, %v5438
        %v5459 = vadd.f32 %v5383, %v5434
        %v5460 = vadd.f32 %v5384, %v5438
        %v5461 = vadd.f32 %v5385, %v5434
        %v5462 = vadd.f32 %v5386, %v5438
        %v5463 = vadd.f32 %v5387, %v5434
        %v5464 = vadd.f32 %v5388, %v5438
        %v5465 = vadd.f32 %v5389, %v5434
        %v5466 = vadd.f32 %v5390, %v5438
        %v5467 = vadd.f32 %v5391, %v5434
        %v5468 = vadd.f32 %v5392, %v5438
        %v5469 = vadd.f32 %v5393, %v5434
        %v5470 = vadd.f32 %v5394, %v5438
        %v5471 = vadd.f32 %v5395, %v5434
        %v5472 = vadd.f32 %v5396, %v5438
        %v5473 = vadd.f32 %v5397, %v5434
        %v5474 = vadd.f32 %v5398, %v5438
        %v5475 = vadd.f32 %v5399, %v5434
        %v5476 = vadd.f32 %v5400, %v5438
        %v5477 = vadd.f32 %v5401, %v5434
        %v5478 = vadd.f32 %v5402, %v5438
        %v5479 = vadd.f32 %v5403, %v5434
        %v5480 = vadd.f32 %v5404, %v5438
        %v5481 = vadd.f32 %v5405, %v5434
        %v5482 = vadd.f32 %v5406, %v5438
        %v5483 = vadd.f32 %v5407, %v5434
        %v5484 = vadd.f32 %v5408, %v5438
        %v5485 = vadd.f32 %v5409, %v5434
        %v5486 = vadd.f32 %v5410, %v5438
        %v5487 = vadd.f32 %v5411, %v5434
        %v5488 = vadd.f32 %v5412, %v5438
        %v5489 = vadd.f32 %v5413, %v5434
        %v5490 = vadd.f32 %v5414, %v5438
        %v5491 = vadd.f32 %v5415, %v5434
        %v5492 = vadd.f32 %v5416, %v5438
        %v5493 = vadd.f32 %v5417, %v5434
        %v5494 = vadd.f32 %v5418, %v5438
        %v5495 = vadd.f32 %v5419, %v5434
        %v5496 = vadd.f32 %v5420, %v5438
        %v5497 = vadd.f32 %v5421, %v5434
        %v5498 = vadd.f32 %v5422, %v5438
        %v5499 = vadd.f32 %v5423, %v5434
        %v5500 = vadd.f32 %v5424, %v5438
        %v5501 = vadd.f32 %v5425, %v5434
        %v5502 = vadd.f32 %v5426, %v5438
        %v5503 = vadd.f32 %v5427, %v5434
        %v5504 = vadd.f32 %v5428, %v5438
        %v5505 = vmax.f32 %v5441, 0.0
        %v5506 = vmax.f32 %v5442, 0.0
        %v5507 = vmax.f32 %v5443, 0.0
        %v5508 = vmax.f32 %v5444, 0.0
        %v5509 = vmax.f32 %v5445, 0.0
        %v5510 = vmax.f32 %v5446, 0.0
        %v5511 = vmax.f32 %v5447, 0.0
        %v5512 = vmax.f32 %v5448, 0.0
        %v5513 = vmax.f32 %v5449, 0.0
        %v5514 = vmax.f32 %v5450, 0.0
        %v5515 = vmax.f32 %v5451, 0.0
        %v5516 = vmax.f32 %v5452, 0.0
        %v5517 = vmax.f32 %v5453, 0.0
        %v5518 = vmax.f32 %v5454, 0.0
        %v5519 = vmax.f32 %v5455, 0.0
        %v5520 = vmax.f32 %v5456, 0.0
        %v5521 = vmax.f32 %v5457, 0.0
        %v5522 = vmax.f32 %v5458, 0.0
        %v5523 = vmax.f32 %v5459, 0.0
        %v5524 = vmax.f32 %v5460, 0.0
        %v5525 = vmax.f32 %v5461, 0.0
        %v5526 = vmax.f32 %v5462, 0.0
        %v5527 = vmax.f32 %v5463, 0.0
        %v5528 = vmax.f32 %v5464, 0.0
        %v5529 = vmax.f32 %v5465, 0.0
        %v5530 = vmax.f32 %v5466, 0.0
        %v5531 = vmax.f32 %v5467, 0.0
        %v5532 = vmax.f32 %v5468, 0.0
        %v5533 = vmax.f32 %v5469, 0.0
        %v5534 = vmax.f32 %v5470, 0.0
        %v5535 = vmax.f32 %v5471, 0.0
        %v5536 = vmax.f32 %v5472, 0.0
        %v5537 = vmax.f32 %v5473, 0.0
        %v5538 = vmax.f32 %v5474, 0.0
        %v5539 = vmax.f32 %v5475, 0.0
        %v5540 = vmax.f32 %v5476, 0.0
        %v5541 = vmax.f32 %v5477, 0.0
        %v5542 = vmax.f32 %v5478, 0.0
        %v5543 = vmax.f32 %v5479, 0.0
        %v5544 = vmax.f32 %v5480, 0.0
        %v5545 = vmax.f32 %v5481, 0.0
        %v5546 = vmax.f32 %v5482, 0.0
        %v5547 = vmax.f32 %v5483, 0.0
        %v5548 = vmax.f32 %v5484, 0.0
        %v5549 = vmax.f32 %v5485, 0.0
        %v5550 = vmax.f32 %v5486, 0.0
        %v5551 = vmax.f32 %v5487, 0.0
        %v5552 = vmax.f32 %v5488, 0.0
        %v5553 = vmax.f32 %v5489, 0.0
        %v5554 = vmax.f32 %v5490, 0.0
        %v5555 = vmax.f32 %v5491, 0.0
        %v5556 = vmax.f32 %v5492, 0.0
        %v5557 = vmax.f32 %v5493, 0.0
        %v5558 = vmax.f32 %v5494, 0.0
        %v5559 = vmax.f32 %v5495, 0.0
        %v5560 = vmax.f32 %v5496, 0.0
        %v5561 = vmax.f32 %v5497, 0.0
        %v5562 = vmax.f32 %v5498, 0.0
        %v5563 = vmax.f32 %v5499, 0.0
        %v5564 = vmax.f32 %v5500, 0.0
        %v5565 = vmax.f32 %v5501, 0.0
        %v5566 = vmax.f32 %v5502, 0.0
        %v5567 = vmax.f32 %v5503, 0.0
        %v5568 = vmax.f32 %v5504, 0.0
        %5569 = vst [vmem:[#allocation3] sm:$0xff] 0
        %5570 = vst [vmem:[#allocation3 + $0x8] sm:$0xff] 0
        %5571 = vst [vmem:[#allocation3 + $0x10] sm:$0x11] 0
        %5572 = vst [vmem:[#allocation3 + $0x18] sm:$0xff] 0
        %5573 = vst [vmem:[#allocation3 + $0x20] sm:$0xff] 0
        %5574 = vst [vmem:[#allocation3 + $0x28] sm:$0x11] 0
        %5575 = vst [vmem:[#allocation3 + $0x30] sm:$0xff] 0
        %5576 = vst [vmem:[#allocation3 + $0x38] sm:$0xff] 0
        %5577 = vst [vmem:[#allocation3 + $0x40] sm:$0x11] 0
        %5578 = vst [vmem:[#allocation3 + $0x48] sm:$0xff] 0
        %5579 = vst [vmem:[#allocation3 + $0x50] sm:$0xff] 0
        %5580 = vst [vmem:[#allocation3 + $0x58] sm:$0x11] 0
        %5581 = vst [vmem:[#allocation3 + $0x60] sm:$0xff] 0
        %5582 = vst [vmem:[#allocation3 + $0x68] sm:$0xff] 0
        %5583 = vst [vmem:[#allocation3 + $0x70] sm:$0x11] 0
        %5584 = vst [vmem:[#allocation3 + $0x78] sm:$0xff] 0
        %5585 = vst [vmem:[#allocation3 + $0x80] sm:$0xff] 0
        %5586 = vst [vmem:[#allocation3 + $0x88] sm:$0x11] 0
        %5587 = vst [vmem:[#allocation3 + $0x90] sm:$0xff] 0
        %5588 = vst [vmem:[#allocation3 + $0x98] sm:$0xff] 0
        %5589 = vst [vmem:[#allocation3 + $0xa0] sm:$0x11] 0
        %5590 = vst [vmem:[#allocation3 + $0xa8] sm:$0xff] 0
        %5591 = vst [vmem:[#allocation3 + $0xb0] sm:$0xff] 0
        %5592 = vst [vmem:[#allocation3 + $0xb8] sm:$0x11] 0
        %5593 = vst [vmem:[#allocation3 + $0xc0] sm:$0xff] 0
        %5594 = vst [vmem:[#allocation3 + $0xc8] sm:$0xff] 0
        %5595 = vst [vmem:[#allocation3 + $0xd0] sm:$0x11] 0
        %5596 = vst [vmem:[#allocation3 + $0xd8] sm:$0xff] 0
        %5597 = vst [vmem:[#allocation3 + $0xe0] sm:$0xff] 0
        %5598 = vst [vmem:[#allocation3 + $0xe8] sm:$0x11] 0
        %5599 = vst [vmem:[#allocation3 + $0xf0] sm:$0xff] 0
        %5600 = vst [vmem:[#allocation3 + $0xf8] sm:$0xff] 0
        %5601 = vst [vmem:[#allocation3 + $0x100] sm:$0x11] 0
        %5602 = vst [vmem:[#allocation3 + $0x108] sm:$0xff] 0
        %5603 = vst [vmem:[#allocation3 + $0x110] sm:$0xff] 0
        %5604 = vst [vmem:[#allocation3 + $0x118] sm:$0x11] 0
        %5605 = vst [vmem:[#allocation3 + $0x120] sm:$0xff] 0
        %5606 = vst [vmem:[#allocation3 + $0x128] sm:$0xff] 0
        %5607 = vst [vmem:[#allocation3 + $0x130] sm:$0x11] 0
        %5608 = vst [vmem:[#allocation3 + $0x138] sm:$0xff] 0
        %5609 = vst [vmem:[#allocation3 + $0x140] sm:$0xff] 0
        %5610 = vst [vmem:[#allocation3 + $0x148] sm:$0x11] 0
        %5611 = vst [vmem:[#allocation3 + $0x150] sm:$0xff] 0
        %5612 = vst [vmem:[#allocation3 + $0x158] sm:$0xff] 0
        %5613 = vst [vmem:[#allocation3 + $0x160] sm:$0x11] 0
        %5614 = vst [vmem:[#allocation3 + $0x168] sm:$0xff] 0
        %5615 = vst [vmem:[#allocation3 + $0x170] sm:$0xff] 0
        %5616 = vst [vmem:[#allocation3 + $0x178] sm:$0x11] 0
        %5617 = vst [vmem:[#allocation3 + $0x180] sm:$0xff] 0
        %5618 = vst [vmem:[#allocation3 + $0x188] sm:$0xff] 0
        %5619 = vst [vmem:[#allocation3 + $0x190] sm:$0x11] 0
        %5620 = vst [vmem:[#allocation3 + $0x198] sm:$0xff] 0
        %5621 = vst [vmem:[#allocation3 + $0x1a0] sm:$0xff] 0
        %5622 = vst [vmem:[#allocation3 + $0x1a8] sm:$0x11] 0
        %v5623 = vpack.c.bf16 %v5507, %v5505
        %v5624 = vpack.c.bf16 %v5508, %v5506
        %v5625 = vpack.c.bf16 %v5511, %v5509
        %v5626 = vpack.c.bf16 %v5512, %v5510
        %v5627 = vpack.c.bf16 %v5515, %v5513
        %v5628 = vpack.c.bf16 %v5516, %v5514
        %v5629 = vpack.c.bf16 %v5519, %v5517
        %v5630 = vpack.c.bf16 %v5520, %v5518
        %v5631 = vpack.c.bf16 %v5523, %v5521
        %v5632 = vpack.c.bf16 %v5524, %v5522
        %v5633 = vpack.c.bf16 %v5527, %v5525
        %v5634 = vpack.c.bf16 %v5528, %v5526
        %v5635 = vpack.c.bf16 %v5531, %v5529
        %v5636 = vpack.c.bf16 %v5532, %v5530
        %v5637 = vpack.c.bf16 %v5535, %v5533
        %v5638 = vpack.c.bf16 %v5536, %v5534
        %v5639 = vpack.c.bf16 %v5539, %v5537
        %v5640 = vpack.c.bf16 %v5540, %v5538
        %v5641 = vpack.c.bf16 %v5543, %v5541
        %v5642 = vpack.c.bf16 %v5544, %v5542
        %v5643 = vpack.c.bf16 %v5547, %v5545
        %v5644 = vpack.c.bf16 %v5548, %v5546
        %v5645 = vpack.c.bf16 %v5551, %v5549
        %v5646 = vpack.c.bf16 %v5552, %v5550
        %v5647 = vpack.c.bf16 %v5555, %v5553
        %v5648 = vpack.c.bf16 %v5556, %v5554
        %v5649 = vpack.c.bf16 %v5559, %v5557
        %v5650 = vpack.c.bf16 %v5560, %v5558
        %v5651 = vpack.c.bf16 %v5563, %v5561
        %v5652 = vpack.c.bf16 %v5564, %v5562
        %v5653 = vpack.c.bf16 %v5567, %v5565
        %v5654 = vpack.c.bf16 %v5568, %v5566
        %v5687 = vunpack.c.l.b16 %v5623
        %v5688 = vunpack.c.l.b16 %v5624
        %v5689 = vunpack.c.h.b16 %v5623
        %v5690 = vunpack.c.h.b16 %v5624
        %v5691 = vunpack.c.l.b16 %v5625
        %v5692 = vunpack.c.l.b16 %v5626
        %v5693 = vunpack.c.h.b16 %v5625
        %v5694 = vunpack.c.h.b16 %v5626
        %v5695 = vunpack.c.l.b16 %v5627
        %v5696 = vunpack.c.l.b16 %v5628
        %v5697 = vunpack.c.h.b16 %v5627
        %v5698 = vunpack.c.h.b16 %v5628
        %v5699 = vunpack.c.l.b16 %v5629
        %v5700 = vunpack.c.l.b16 %v5630
        %v5701 = vunpack.c.h.b16 %v5629
        %v5702 = vunpack.c.h.b16 %v5630
        %v5703 = vunpack.c.l.b16 %v5631
        %v5704 = vunpack.c.l.b16 %v5632
        %v5705 = vunpack.c.h.b16 %v5631
        %v5706 = vunpack.c.h.b16 %v5632
        %v5707 = vunpack.c.l.b16 %v5633
        %v5708 = vunpack.c.l.b16 %v5634
        %v5709 = vunpack.c.h.b16 %v5633
        %v5710 = vunpack.c.h.b16 %v5634
        %v5711 = vunpack.c.l.b16 %v5635
        %v5712 = vunpack.c.l.b16 %v5636
        %v5713 = vunpack.c.h.b16 %v5635
        %v5714 = vunpack.c.h.b16 %v5636
        %v5715 = vunpack.c.l.b16 %v5637
        %v5716 = vunpack.c.l.b16 %v5638
        %v5717 = vunpack.c.h.b16 %v5637
        %v5718 = vunpack.c.h.b16 %v5638
        %v5719 = vunpack.c.l.b16 %v5639
        %v5720 = vunpack.c.l.b16 %v5640
        %v5721 = vunpack.c.h.b16 %v5639
        %v5722 = vunpack.c.h.b16 %v5640
        %v5723 = vunpack.c.l.b16 %v5641
        %v5724 = vunpack.c.l.b16 %v5642
        %v5725 = vunpack.c.h.b16 %v5641
        %v5726 = vunpack.c.h.b16 %v5642
        %v5727 = vunpack.c.l.b16 %v5643
        %v5728 = vunpack.c.l.b16 %v5644
        %v5729 = vunpack.c.h.b16 %v5643
        %v5730 = vunpack.c.h.b16 %v5644
        %v5731 = vunpack.c.l.b16 %v5645
        %v5732 = vunpack.c.l.b16 %v5646
        %v5733 = vunpack.c.h.b16 %v5645
        %v5734 = vunpack.c.h.b16 %v5646
        %v5735 = vunpack.c.l.b16 %v5647
        %v5736 = vunpack.c.l.b16 %v5648
        %v5737 = vunpack.c.h.b16 %v5647
        %v5738 = vunpack.c.h.b16 %v5648
        %v5739 = vunpack.c.l.b16 %v5649
        %v5740 = vunpack.c.l.b16 %v5650
        %v5741 = vunpack.c.h.b16 %v5649
        %v5742 = vunpack.c.h.b16 %v5650
        %v5743 = vunpack.c.l.b16 %v5651
        %v5744 = vunpack.c.l.b16 %v5652
        %v5745 = vunpack.c.h.b16 %v5651
        %v5746 = vunpack.c.h.b16 %v5652
        %v5747 = vunpack.c.l.b16 %v5653
        %v5748 = vunpack.c.l.b16 %v5654
        %v5749 = vunpack.c.h.b16 %v5653
        %v5750 = vunpack.c.h.b16 %v5654
        %v5751 = vpack.c.b16 %v5688, %v5687
        %v5752 = vpack.c.b16 %v5690, %v5689
        %v5753 = vpack.c.b16 %v5692, %v5691
        %v5754 = vpack.c.b16 %v5694, %v5693
        %v5755 = vpack.c.b16 %v5696, %v5695
        %v5756 = vpack.c.b16 %v5698, %v5697
        %v5757 = vpack.c.b16 %v5700, %v5699
        %v5758 = vpack.c.b16 %v5702, %v5701
        %v5759 = vpack.c.b16 %v5704, %v5703
        %v5760 = vpack.c.b16 %v5706, %v5705
        %v5761 = vpack.c.b16 %v5708, %v5707
        %v5762 = vpack.c.b16 %v5710, %v5709
        %v5763 = vpack.c.b16 %v5712, %v5711
        %v5764 = vpack.c.b16 %v5714, %v5713
        %v5765 = vpack.c.b16 %v5716, %v5715
        %v5766 = vpack.c.b16 %v5718, %v5717
        %v5767 = vpack.c.b16 %v5720, %v5719
        %v5768 = vpack.c.b16 %v5722, %v5721
        %v5769 = vpack.c.b16 %v5724, %v5723
        %v5770 = vpack.c.b16 %v5726, %v5725
        %v5771 = vpack.c.b16 %v5728, %v5727
        %v5772 = vpack.c.b16 %v5730, %v5729
        %v5773 = vpack.c.b16 %v5732, %v5731
        %v5774 = vpack.c.b16 %v5734, %v5733
        %v5775 = vpack.c.b16 %v5736, %v5735
        %v5776 = vpack.c.b16 %v5738, %v5737
        %v5777 = vpack.c.b16 %v5740, %v5739
        %v5778 = vpack.c.b16 %v5742, %v5741
        %v5779 = vpack.c.b16 %v5744, %v5743
        %v5780 = vpack.c.b16 %v5746, %v5745
        %v5781 = vpack.c.b16 %v5748, %v5747
        %v5782 = vpack.c.b16 %v5750, %v5749
        %v5784 = vshrl.u32 %v5751, 16
        %v5786 = vrot.slane %v5784, 7
        %v5787 = vshll.u32 %v5751, 16
        %v5789 = vor.u32 %v5786, %v5787
        %v5790 = vrot.slane %v5786, 4
        %v5792 = vshrl.u32 %v5752, 16
        %v5794 = vrot.slane %v5792, 7
        %v5795 = vshll.u32 %v5752, 16
        %v5797 = vor.u32 %v5794, %v5795
        %v5798 = vsel %vm630, %v5790, %v5797
        %v5799 = vrot.slane %v5794, 4
        %v5801 = vshrl.u32 %v5753, 16
        %v5803 = vrot.slane %v5801, 7
        %v5804 = vshll.u32 %v5753, 16
        %v5806 = vor.u32 %v5803, %v5804
        %v5807 = vrot.slane %v5803, 4
        %v5809 = vshrl.u32 %v5754, 16
        %v5811 = vrot.slane %v5809, 7
        %v5812 = vshll.u32 %v5754, 16
        %v5814 = vor.u32 %v5811, %v5812
        %v5815 = vsel %vm630, %v5807, %v5814
        %v5816 = vrot.slane %v5811, 4
        %v5818 = vshrl.u32 %v5755, 16
        %v5820 = vrot.slane %v5818, 7
        %v5821 = vshll.u32 %v5755, 16
        %v5823 = vor.u32 %v5820, %v5821
        %v5824 = vrot.slane %v5820, 4
        %v5826 = vshrl.u32 %v5756, 16
        %v5828 = vrot.slane %v5826, 7
        %v5829 = vshll.u32 %v5756, 16
        %v5831 = vor.u32 %v5828, %v5829
        %v5832 = vsel %vm630, %v5824, %v5831
        %v5833 = vrot.slane %v5828, 4
        %v5835 = vshrl.u32 %v5757, 16
        %v5837 = vrot.slane %v5835, 7
        %v5838 = vshll.u32 %v5757, 16
        %v5840 = vor.u32 %v5837, %v5838
        %v5841 = vrot.slane %v5837, 4
        %v5843 = vshrl.u32 %v5758, 16
        %v5845 = vrot.slane %v5843, 7
        %v5846 = vshll.u32 %v5758, 16
        %v5848 = vor.u32 %v5845, %v5846
        %v5849 = vsel %vm630, %v5841, %v5848
        %v5850 = vrot.slane %v5845, 4
        %v5852 = vshrl.u32 %v5759, 16
        %v5854 = vrot.slane %v5852, 7
        %v5855 = vshll.u32 %v5759, 16
        %v5857 = vor.u32 %v5854, %v5855
        %v5858 = vrot.slane %v5854, 4
        %v5860 = vshrl.u32 %v5760, 16
        %v5862 = vrot.slane %v5860, 7
        %v5863 = vshll.u32 %v5760, 16
        %v5865 = vor.u32 %v5862, %v5863
        %v5866 = vsel %vm630, %v5858, %v5865
        %v5867 = vrot.slane %v5862, 4
        %v5869 = vshrl.u32 %v5761, 16
        %v5871 = vrot.slane %v5869, 7
        %v5872 = vshll.u32 %v5761, 16
        %v5874 = vor.u32 %v5871, %v5872
        %v5875 = vrot.slane %v5871, 4
        %v5877 = vshrl.u32 %v5762, 16
        %v5879 = vrot.slane %v5877, 7
        %v5880 = vshll.u32 %v5762, 16
        %v5882 = vor.u32 %v5879, %v5880
        %v5883 = vsel %vm630, %v5875, %v5882
        %v5884 = vrot.slane %v5879, 4
        %v5886 = vshrl.u32 %v5763, 16
        %v5888 = vrot.slane %v5886, 7
        %v5889 = vshll.u32 %v5763, 16
        %v5891 = vor.u32 %v5888, %v5889
        %v5892 = vrot.slane %v5888, 4
        %v5894 = vshrl.u32 %v5764, 16
        %v5896 = vrot.slane %v5894, 7
        %v5897 = vshll.u32 %v5764, 16
        %v5899 = vor.u32 %v5896, %v5897
        %v5900 = vsel %vm630, %v5892, %v5899
        %v5901 = vrot.slane %v5896, 4
        %v5903 = vshrl.u32 %v5765, 16
        %v5905 = vrot.slane %v5903, 7
        %v5906 = vshll.u32 %v5765, 16
        %v5908 = vor.u32 %v5905, %v5906
        %v5909 = vrot.slane %v5905, 4
        %v5911 = vshrl.u32 %v5766, 16
        %v5913 = vrot.slane %v5911, 7
        %v5914 = vshll.u32 %v5766, 16
        %v5916 = vor.u32 %v5913, %v5914
        %v5917 = vsel %vm630, %v5909, %v5916
        %v5918 = vrot.slane %v5913, 4
        %v5920 = vshrl.u32 %v5767, 16
        %v5922 = vrot.slane %v5920, 7
        %v5923 = vshll.u32 %v5767, 16
        %v5925 = vor.u32 %v5922, %v5923
        %v5926 = vrot.slane %v5922, 4
        %v5928 = vshrl.u32 %v5768, 16
        %v5930 = vrot.slane %v5928, 7
        %v5931 = vshll.u32 %v5768, 16
        %v5933 = vor.u32 %v5930, %v5931
        %v5934 = vsel %vm630, %v5926, %v5933
        %v5935 = vrot.slane %v5930, 4
        %v5937 = vshrl.u32 %v5769, 16
        %v5939 = vrot.slane %v5937, 7
        %v5940 = vshll.u32 %v5769, 16
        %v5942 = vor.u32 %v5939, %v5940
        %v5943 = vrot.slane %v5939, 4
        %v5945 = vshrl.u32 %v5770, 16
        %v5947 = vrot.slane %v5945, 7
        %v5948 = vshll.u32 %v5770, 16
        %v5950 = vor.u32 %v5947, %v5948
        %v5951 = vsel %vm630, %v5943, %v5950
        %v5952 = vrot.slane %v5947, 4
        %v5954 = vshrl.u32 %v5771, 16
        %v5956 = vrot.slane %v5954, 7
        %v5957 = vshll.u32 %v5771, 16
        %v5959 = vor.u32 %v5956, %v5957
        %v5960 = vrot.slane %v5956, 4
        %v5962 = vshrl.u32 %v5772, 16
        %v5964 = vrot.slane %v5962, 7
        %v5965 = vshll.u32 %v5772, 16
        %v5967 = vor.u32 %v5964, %v5965
        %v5968 = vsel %vm630, %v5960, %v5967
        %v5969 = vrot.slane %v5964, 4
        %v5971 = vshrl.u32 %v5773, 16
        %v5973 = vrot.slane %v5971, 7
        %v5974 = vshll.u32 %v5773, 16
        %v5976 = vor.u32 %v5973, %v5974
        %v5977 = vrot.slane %v5973, 4
        %v5979 = vshrl.u32 %v5774, 16
        %v5981 = vrot.slane %v5979, 7
        %v5982 = vshll.u32 %v5774, 16
        %v5984 = vor.u32 %v5981, %v5982
        %v5985 = vsel %vm630, %v5977, %v5984
        %v5986 = vrot.slane %v5981, 4
        %v5988 = vshrl.u32 %v5775, 16
        %v5990 = vrot.slane %v5988, 7
        %v5991 = vshll.u32 %v5775, 16
        %v5993 = vor.u32 %v5990, %v5991
        %v5994 = vrot.slane %v5990, 4
        %v5996 = vshrl.u32 %v5776, 16
        %v5998 = vrot.slane %v5996, 7
        %v5999 = vshll.u32 %v5776, 16
        %v6001 = vor.u32 %v5998, %v5999
        %v6002 = vsel %vm630, %v5994, %v6001
        %v6003 = vrot.slane %v5998, 4
        %v6005 = vshrl.u32 %v5777, 16
        %v6007 = vrot.slane %v6005, 7
        %v6008 = vshll.u32 %v5777, 16
        %v6010 = vor.u32 %v6007, %v6008
        %v6011 = vrot.slane %v6007, 4
        %v6013 = vshrl.u32 %v5778, 16
        %v6015 = vrot.slane %v6013, 7
        %v6016 = vshll.u32 %v5778, 16
        %v6018 = vor.u32 %v6015, %v6016
        %v6019 = vsel %vm630, %v6011, %v6018
        %v6020 = vrot.slane %v6015, 4
        %v6022 = vshrl.u32 %v5779, 16
        %v6024 = vrot.slane %v6022, 7
        %v6025 = vshll.u32 %v5779, 16
        %v6027 = vor.u32 %v6024, %v6025
        %v6028 = vrot.slane %v6024, 4
        %v6030 = vshrl.u32 %v5780, 16
        %v6032 = vrot.slane %v6030, 7
        %v6033 = vshll.u32 %v5780, 16
        %v6035 = vor.u32 %v6032, %v6033
        %v6036 = vsel %vm630, %v6028, %v6035
        %v6037 = vrot.slane %v6032, 4
        %v6039 = vshrl.u32 %v5781, 16
        %v6041 = vrot.slane %v6039, 7
        %v6042 = vshll.u32 %v5781, 16
        %v6044 = vor.u32 %v6041, %v6042
        %v6045 = vrot.slane %v6041, 4
        %v6047 = vshrl.u32 %v5782, 16
        %v6049 = vrot.slane %v6047, 7
        %v6050 = vshll.u32 %v5782, 16
        %v6052 = vor.u32 %v6049, %v6050
        %v6053 = vsel %vm630, %v6045, %v6052
        %v6054 = vrot.slane %v6049, 4
        %s6103 = scalar_lea.vmem [#allocation3], 24
        %vm6104 = vcmask 1047556
        %vm6105 = vsmask.f32 7954
        %vm6106 = vmand %vm6104, %vm6105
        %vm6107 = vmor %vm6106, %vm954
        %v6108 = vld [vmem:[%s6103] sm:$0xff]
        %v6109 = vsel %vm6107, %v5789, %v6108
        %6110 = vst [vmem:[%s6103] sm:$0xff] %v6109
        %6111 = vst [vmem:[%s6103 + $0x8] sm:$0xff] %v5798
        %vm6112 = vcmask 1044484
        %vm6113 = vsmask.f32 4352
        %vm6114 = vmand %vm6112, %vm6113
        %vm6115 = vmor %vm6114, %vm960
        %v6116 = vld [vmem:[%s6103 + $0x10] sm:$0x11]
        %v6117 = vsel %vm6115, %v5799, %v6116
        %6118 = vst [vmem:[%s6103 + $0x10] sm:$0x11] %v6117
        %v6119 = vld [vmem:[%s6103 + $0x18] sm:$0xff]
        %v6120 = vsel %vm6107, %v5806, %v6119
        %6121 = vst [vmem:[%s6103 + $0x18] sm:$0xff] %v6120
        %6122 = vst [vmem:[%s6103 + $0x20] sm:$0xff] %v5815
        %v6123 = vld [vmem:[%s6103 + $0x28] sm:$0x11]
        %v6124 = vsel %vm6115, %v5816, %v6123
        %6125 = vst [vmem:[%s6103 + $0x28] sm:$0x11] %v6124
        %v6126 = vld [vmem:[%s6103 + $0x30] sm:$0xff]
        %v6127 = vsel %vm6107, %v5823, %v6126
        %6128 = vst [vmem:[%s6103 + $0x30] sm:$0xff] %v6127
        %6129 = vst [vmem:[%s6103 + $0x38] sm:$0xff] %v5832
        %v6130 = vld [vmem:[%s6103 + $0x40] sm:$0x11]
        %v6131 = vsel %vm6115, %v5833, %v6130
        %6132 = vst [vmem:[%s6103 + $0x40] sm:$0x11] %v6131
        %v6133 = vld [vmem:[%s6103 + $0x48] sm:$0xff]
        %v6134 = vsel %vm6107, %v5840, %v6133
        %6135 = vst [vmem:[%s6103 + $0x48] sm:$0xff] %v6134
        %6136 = vst [vmem:[%s6103 + $0x50] sm:$0xff] %v5849
        %v6137 = vld [vmem:[%s6103 + $0x58] sm:$0x11]
        %v6138 = vsel %vm6115, %v5850, %v6137
        %6139 = vst [vmem:[%s6103 + $0x58] sm:$0x11] %v6138
        %v6140 = vld [vmem:[%s6103 + $0x60] sm:$0xff]
        %v6141 = vsel %vm6107, %v5857, %v6140
        %6142 = vst [vmem:[%s6103 + $0x60] sm:$0xff] %v6141
        %6143 = vst [vmem:[%s6103 + $0x68] sm:$0xff] %v5866
        %v6144 = vld [vmem:[%s6103 + $0x70] sm:$0x11]
        %v6145 = vsel %vm6115, %v5867, %v6144
        %6146 = vst [vmem:[%s6103 + $0x70] sm:$0x11] %v6145
        %v6147 = vld [vmem:[%s6103 + $0x78] sm:$0xff]
        %v6148 = vsel %vm6107, %v5874, %v6147
        %6149 = vst [vmem:[%s6103 + $0x78] sm:$0xff] %v6148
        %6150 = vst [vmem:[%s6103 + $0x80] sm:$0xff] %v5883
        %v6151 = vld [vmem:[%s6103 + $0x88] sm:$0x11]
        %v6152 = vsel %vm6115, %v5884, %v6151
        %6153 = vst [vmem:[%s6103 + $0x88] sm:$0x11] %v6152
        %v6154 = vld [vmem:[%s6103 + $0x90] sm:$0xff]
        %v6155 = vsel %vm6107, %v5891, %v6154
        %6156 = vst [vmem:[%s6103 + $0x90] sm:$0xff] %v6155
        %6157 = vst [vmem:[%s6103 + $0x98] sm:$0xff] %v5900
        %v6158 = vld [vmem:[%s6103 + $0xa0] sm:$0x11]
        %v6159 = vsel %vm6115, %v5901, %v6158
        %6160 = vst [vmem:[%s6103 + $0xa0] sm:$0x11] %v6159
        %v6161 = vld [vmem:[%s6103 + $0xa8] sm:$0xff]
        %v6162 = vsel %vm6107, %v5908, %v6161
        %6163 = vst [vmem:[%s6103 + $0xa8] sm:$0xff] %v6162
        %6164 = vst [vmem:[%s6103 + $0xb0] sm:$0xff] %v5917
        %v6165 = vld [vmem:[%s6103 + $0xb8] sm:$0x11]
        %v6166 = vsel %vm6115, %v5918, %v6165
        %6167 = vst [vmem:[%s6103 + $0xb8] sm:$0x11] %v6166
        %v6168 = vld [vmem:[%s6103 + $0xc0] sm:$0xff]
        %v6169 = vsel %vm6107, %v5925, %v6168
        %6170 = vst [vmem:[%s6103 + $0xc0] sm:$0xff] %v6169
        %6171 = vst [vmem:[%s6103 + $0xc8] sm:$0xff] %v5934
        %v6172 = vld [vmem:[%s6103 + $0xd0] sm:$0x11]
        %v6173 = vsel %vm6115, %v5935, %v6172
        %6174 = vst [vmem:[%s6103 + $0xd0] sm:$0x11] %v6173
        %v6175 = vld [vmem:[%s6103 + $0xd8] sm:$0xff]
        %v6176 = vsel %vm6107, %v5942, %v6175
        %6177 = vst [vmem:[%s6103 + $0xd8] sm:$0xff] %v6176
        %6178 = vst [vmem:[%s6103 + $0xe0] sm:$0xff] %v5951
        %v6179 = vld [vmem:[%s6103 + $0xe8] sm:$0x11]
        %v6180 = vsel %vm6115, %v5952, %v6179
        %6181 = vst [vmem:[%s6103 + $0xe8] sm:$0x11] %v6180
        %v6182 = vld [vmem:[%s6103 + $0xf0] sm:$0xff]
        %v6183 = vsel %vm6107, %v5959, %v6182
        %6184 = vst [vmem:[%s6103 + $0xf0] sm:$0xff] %v6183
        %6185 = vst [vmem:[%s6103 + $0xf8] sm:$0xff] %v5968
        %v6186 = vld [vmem:[%s6103 + $0x100] sm:$0x11]
        %v6187 = vsel %vm6115, %v5969, %v6186
        %6188 = vst [vmem:[%s6103 + $0x100] sm:$0x11] %v6187
        %v6189 = vld [vmem:[%s6103 + $0x108] sm:$0xff]
        %v6190 = vsel %vm6107, %v5976, %v6189
        %6191 = vst [vmem:[%s6103 + $0x108] sm:$0xff] %v6190
        %6192 = vst [vmem:[%s6103 + $0x110] sm:$0xff] %v5985
        %v6193 = vld [vmem:[%s6103 + $0x118] sm:$0x11]
        %v6194 = vsel %vm6115, %v5986, %v6193
        %6195 = vst [vmem:[%s6103 + $0x118] sm:$0x11] %v6194
        %v6196 = vld [vmem:[%s6103 + $0x120] sm:$0xff]
        %v6197 = vsel %vm6107, %v5993, %v6196
        %6198 = vst [vmem:[%s6103 + $0x120] sm:$0xff] %v6197
        %6199 = vst [vmem:[%s6103 + $0x128] sm:$0xff] %v6002
        %v6200 = vld [vmem:[%s6103 + $0x130] sm:$0x11]
        %v6201 = vsel %vm6115, %v6003, %v6200
        %6202 = vst [vmem:[%s6103 + $0x130] sm:$0x11] %v6201
        %v6203 = vld [vmem:[%s6103 + $0x138] sm:$0xff]
        %v6204 = vsel %vm6107, %v6010, %v6203
        %6205 = vst [vmem:[%s6103 + $0x138] sm:$0xff] %v6204
        %6206 = vst [vmem:[%s6103 + $0x140] sm:$0xff] %v6019
        %v6207 = vld [vmem:[%s6103 + $0x148] sm:$0x11]
        %v6208 = vsel %vm6115, %v6020, %v6207
        %6209 = vst [vmem:[%s6103 + $0x148] sm:$0x11] %v6208
        %v6210 = vld [vmem:[%s6103 + $0x150] sm:$0xff]
        %v6211 = vsel %vm6107, %v6027, %v6210
        %6212 = vst [vmem:[%s6103 + $0x150] sm:$0xff] %v6211
        %6213 = vst [vmem:[%s6103 + $0x158] sm:$0xff] %v6036
        %v6214 = vld [vmem:[%s6103 + $0x160] sm:$0x11]
        %v6215 = vsel %vm6115, %v6037, %v6214
        %6216 = vst [vmem:[%s6103 + $0x160] sm:$0x11] %v6215
        %v6217 = vld [vmem:[%s6103 + $0x168] sm:$0xff]
        %v6218 = vsel %vm6107, %v6044, %v6217
        %6219 = vst [vmem:[%s6103 + $0x168] sm:$0xff] %v6218
        %6220 = vst [vmem:[%s6103 + $0x170] sm:$0xff] %v6053
        %v6221 = vld [vmem:[%s6103 + $0x178] sm:$0x11]
        %v6222 = vsel %vm6115, %v6054, %v6221
        %6223 = vst [vmem:[%s6103 + $0x178] sm:$0x11] %v6222
        %v6224 = vld [vmem:[#allocation3] sm:$0xff]
        %v6225 = vld [vmem:[#allocation3 + $0x8] sm:$0xff]
        %v6226 = vld [vmem:[#allocation3 + $0x18] sm:$0xff]
        %v6227 = vld [vmem:[#allocation3 + $0x20] sm:$0xff]
        %v6228 = vld [vmem:[#allocation3 + $0x30] sm:$0xff]
        %v6229 = vld [vmem:[#allocation3 + $0x38] sm:$0xff]
        %v6230 = vld [vmem:[#allocation3 + $0x48] sm:$0xff]
        %v6231 = vld [vmem:[#allocation3 + $0x50] sm:$0xff]
        %v6232 = vld [vmem:[#allocation3 + $0x60] sm:$0xff]
        %v6233 = vld [vmem:[#allocation3 + $0x68] sm:$0xff]
        %v6234 = vld [vmem:[#allocation3 + $0x78] sm:$0xff]
        %v6235 = vld [vmem:[#allocation3 + $0x80] sm:$0xff]
        %v6236 = vld [vmem:[#allocation3 + $0x90] sm:$0xff]
        %v6237 = vld [vmem:[#allocation3 + $0x98] sm:$0xff]
        %v6238 = vld [vmem:[#allocation3 + $0xa8] sm:$0xff]
        %v6239 = vld [vmem:[#allocation3 + $0xb0] sm:$0xff]
        %v6240 = vld [vmem:[#allocation3 + $0xc0] sm:$0xff]
        %v6241 = vld [vmem:[#allocation3 + $0xc8] sm:$0xff]
        %v6242 = vld [vmem:[#allocation3 + $0xd8] sm:$0xff]
        %v6243 = vld [vmem:[#allocation3 + $0xe0] sm:$0xff]
        %v6244 = vld [vmem:[#allocation3 + $0xf0] sm:$0xff]
        %v6245 = vld [vmem:[#allocation3 + $0xf8] sm:$0xff]
        %v6246 = vld [vmem:[#allocation3 + $0x108] sm:$0xff]
        %v6247 = vld [vmem:[#allocation3 + $0x110] sm:$0xff]
        %v6248 = vld [vmem:[#allocation3 + $0x120] sm:$0xff]
        %v6249 = vld [vmem:[#allocation3 + $0x128] sm:$0xff]
        %v6250 = vld [vmem:[#allocation3 + $0x138] sm:$0xff]
        %v6251 = vld [vmem:[#allocation3 + $0x140] sm:$0xff]
        %v6252 = vld [vmem:[#allocation3 + $0x150] sm:$0xff]
        %v6253 = vld [vmem:[#allocation3 + $0x158] sm:$0xff]
        %v6254 = vld [vmem:[#allocation3 + $0x168] sm:$0xff]
        %v6255 = vld [vmem:[#allocation3 + $0x170] sm:$0xff]
        %v6256 = vld [vmem:[#allocation3 + $0x10] sm:$0x11]
        %v6257 = vld [vmem:[#allocation3 + $0x28] sm:$0x11]
        %v6258 = vld [vmem:[#allocation3 + $0x40] sm:$0x11]
        %v6259 = vld [vmem:[#allocation3 + $0x58] sm:$0x11]
        %v6260 = vld [vmem:[#allocation3 + $0x70] sm:$0x11]
        %v6261 = vld [vmem:[#allocation3 + $0x88] sm:$0x11]
        %v6262 = vld [vmem:[#allocation3 + $0xa0] sm:$0x11]
        %v6263 = vld [vmem:[#allocation3 + $0xb8] sm:$0x11]
        %v6264 = vld [vmem:[#allocation3 + $0xd0] sm:$0x11]
        %v6265 = vld [vmem:[#allocation3 + $0xe8] sm:$0x11]
        %v6266 = vld [vmem:[#allocation3 + $0x100] sm:$0x11]
        %v6267 = vld [vmem:[#allocation3 + $0x118] sm:$0x11]
        %v6268 = vld [vmem:[#allocation3 + $0x130] sm:$0x11]
        %v6269 = vld [vmem:[#allocation3 + $0x148] sm:$0x11]
        %v6270 = vld [vmem:[#allocation3 + $0x160] sm:$0x11]
        %v6271 = vld [vmem:[#allocation3 + $0x178] sm:$0x11]
        %v6273 = vshrl.u32 %v6224, 16
        %v6275 = vrot.slane %v6273, 4
        %v6276 = vshll.u32 %v6224, 16
        %v6278 = vrot.slane %v6276, 5
        %v6279 = vor.u32 %v6275, %v6278
        %v6280 = vrot.slane %v6279, 4
        %v6282 = vshll.u32 %v6225, 16
        %v6284 = vrot.slane %v6282, 5
        %v6285 = vsel %vm1119, %v6280, %v6284
        %v6286 = vshrl.u32 %v6225, 16
        %v6288 = vrot.slane %v6286, 4
        %v6289 = vor.u32 %v6288, %v6284
        %v6290 = vrot.slane %v6289, 4
        %v6292 = vshll.u32 %v6256, 16
        %v6294 = vrot.slane %v6292, 5
        %v6295 = vsel %vm1119, %v6290, %v6294
        %v6297 = vshrl.u32 %v6226, 16
        %v6299 = vrot.slane %v6297, 4
        %v6300 = vshll.u32 %v6226, 16
        %v6302 = vrot.slane %v6300, 5
        %v6303 = vor.u32 %v6299, %v6302
        %v6304 = vrot.slane %v6303, 4
        %v6306 = vshll.u32 %v6227, 16
        %v6308 = vrot.slane %v6306, 5
        %v6309 = vsel %vm1119, %v6304, %v6308
        %v6310 = vshrl.u32 %v6227, 16
        %v6312 = vrot.slane %v6310, 4
        %v6313 = vor.u32 %v6312, %v6308
        %v6314 = vrot.slane %v6313, 4
        %v6316 = vshll.u32 %v6257, 16
        %v6318 = vrot.slane %v6316, 5
        %v6319 = vsel %vm1119, %v6314, %v6318
        %v6321 = vshrl.u32 %v6228, 16
        %v6323 = vrot.slane %v6321, 4
        %v6324 = vshll.u32 %v6228, 16
        %v6326 = vrot.slane %v6324, 5
        %v6327 = vor.u32 %v6323, %v6326
        %v6328 = vrot.slane %v6327, 4
        %v6330 = vshll.u32 %v6229, 16
        %v6332 = vrot.slane %v6330, 5
        %v6333 = vsel %vm1119, %v6328, %v6332
        %v6334 = vshrl.u32 %v6229, 16
        %v6336 = vrot.slane %v6334, 4
        %v6337 = vor.u32 %v6336, %v6332
        %v6338 = vrot.slane %v6337, 4
        %v6340 = vshll.u32 %v6258, 16
        %v6342 = vrot.slane %v6340, 5
        %v6343 = vsel %vm1119, %v6338, %v6342
        %v6345 = vshrl.u32 %v6230, 16
        %v6347 = vrot.slane %v6345, 4
        %v6348 = vshll.u32 %v6230, 16
        %v6350 = vrot.slane %v6348, 5
        %v6351 = vor.u32 %v6347, %v6350
        %v6352 = vrot.slane %v6351, 4
        %v6354 = vshll.u32 %v6231, 16
        %v6356 = vrot.slane %v6354, 5
        %v6357 = vsel %vm1119, %v6352, %v6356
        %v6358 = vshrl.u32 %v6231, 16
        %v6360 = vrot.slane %v6358, 4
        %v6361 = vor.u32 %v6360, %v6356
        %v6362 = vrot.slane %v6361, 4
        %v6364 = vshll.u32 %v6259, 16
        %v6366 = vrot.slane %v6364, 5
        %v6367 = vsel %vm1119, %v6362, %v6366
        %v6369 = vshrl.u32 %v6232, 16
        %v6371 = vrot.slane %v6369, 4
        %v6372 = vshll.u32 %v6232, 16
        %v6374 = vrot.slane %v6372, 5
        %v6375 = vor.u32 %v6371, %v6374
        %v6376 = vrot.slane %v6375, 4
        %v6378 = vshll.u32 %v6233, 16
        %v6380 = vrot.slane %v6378, 5
        %v6381 = vsel %vm1119, %v6376, %v6380
        %v6382 = vshrl.u32 %v6233, 16
        %v6384 = vrot.slane %v6382, 4
        %v6385 = vor.u32 %v6384, %v6380
        %v6386 = vrot.slane %v6385, 4
        %v6388 = vshll.u32 %v6260, 16
        %v6390 = vrot.slane %v6388, 5
        %v6391 = vsel %vm1119, %v6386, %v6390
        %v6393 = vshrl.u32 %v6234, 16
        %v6395 = vrot.slane %v6393, 4
        %v6396 = vshll.u32 %v6234, 16
        %v6398 = vrot.slane %v6396, 5
        %v6399 = vor.u32 %v6395, %v6398
        %v6400 = vrot.slane %v6399, 4
        %v6402 = vshll.u32 %v6235, 16
        %v6404 = vrot.slane %v6402, 5
        %v6405 = vsel %vm1119, %v6400, %v6404
        %v6406 = vshrl.u32 %v6235, 16
        %v6408 = vrot.slane %v6406, 4
        %v6409 = vor.u32 %v6408, %v6404
        %v6410 = vrot.slane %v6409, 4
        %v6412 = vshll.u32 %v6261, 16
        %v6414 = vrot.slane %v6412, 5
        %v6415 = vsel %vm1119, %v6410, %v6414
        %v6417 = vshrl.u32 %v6236, 16
        %v6419 = vrot.slane %v6417, 4
        %v6420 = vshll.u32 %v6236, 16
        %v6422 = vrot.slane %v6420, 5
        %v6423 = vor.u32 %v6419, %v6422
        %v6424 = vrot.slane %v6423, 4
        %v6426 = vshll.u32 %v6237, 16
        %v6428 = vrot.slane %v6426, 5
        %v6429 = vsel %vm1119, %v6424, %v6428
        %v6430 = vshrl.u32 %v6237, 16
        %v6432 = vrot.slane %v6430, 4
        %v6433 = vor.u32 %v6432, %v6428
        %v6434 = vrot.slane %v6433, 4
        %v6436 = vshll.u32 %v6262, 16
        %v6438 = vrot.slane %v6436, 5
        %v6439 = vsel %vm1119, %v6434, %v6438
        %v6441 = vshrl.u32 %v6238, 16
        %v6443 = vrot.slane %v6441, 4
        %v6444 = vshll.u32 %v6238, 16
        %v6446 = vrot.slane %v6444, 5
        %v6447 = vor.u32 %v6443, %v6446
        %v6448 = vrot.slane %v6447, 4
        %v6450 = vshll.u32 %v6239, 16
        %v6452 = vrot.slane %v6450, 5
        %v6453 = vsel %vm1119, %v6448, %v6452
        %v6454 = vshrl.u32 %v6239, 16
        %v6456 = vrot.slane %v6454, 4
        %v6457 = vor.u32 %v6456, %v6452
        %v6458 = vrot.slane %v6457, 4
        %v6460 = vshll.u32 %v6263, 16
        %v6462 = vrot.slane %v6460, 5
        %v6463 = vsel %vm1119, %v6458, %v6462
        %v6465 = vshrl.u32 %v6240, 16
        %v6467 = vrot.slane %v6465, 4
        %v6468 = vshll.u32 %v6240, 16
        %v6470 = vrot.slane %v6468, 5
        %v6471 = vor.u32 %v6467, %v6470
        %v6472 = vrot.slane %v6471, 4
        %v6474 = vshll.u32 %v6241, 16
        %v6476 = vrot.slane %v6474, 5
        %v6477 = vsel %vm1119, %v6472, %v6476
        %v6478 = vshrl.u32 %v6241, 16
        %v6480 = vrot.slane %v6478, 4
        %v6481 = vor.u32 %v6480, %v6476
        %v6482 = vrot.slane %v6481, 4
        %v6484 = vshll.u32 %v6264, 16
        %v6486 = vrot.slane %v6484, 5
        %v6487 = vsel %vm1119, %v6482, %v6486
        %v6489 = vshrl.u32 %v6242, 16
        %v6491 = vrot.slane %v6489, 4
        %v6492 = vshll.u32 %v6242, 16
        %v6494 = vrot.slane %v6492, 5
        %v6495 = vor.u32 %v6491, %v6494
        %v6496 = vrot.slane %v6495, 4
        %v6498 = vshll.u32 %v6243, 16
        %v6500 = vrot.slane %v6498, 5
        %v6501 = vsel %vm1119, %v6496, %v6500
        %v6502 = vshrl.u32 %v6243, 16
        %v6504 = vrot.slane %v6502, 4
        %v6505 = vor.u32 %v6504, %v6500
        %v6506 = vrot.slane %v6505, 4
        %v6508 = vshll.u32 %v6265, 16
        %v6510 = vrot.slane %v6508, 5
        %v6511 = vsel %vm1119, %v6506, %v6510
        %v6513 = vshrl.u32 %v6244, 16
        %v6515 = vrot.slane %v6513, 4
        %v6516 = vshll.u32 %v6244, 16
        %v6518 = vrot.slane %v6516, 5
        %v6519 = vor.u32 %v6515, %v6518
        %v6520 = vrot.slane %v6519, 4
        %v6522 = vshll.u32 %v6245, 16
        %v6524 = vrot.slane %v6522, 5
        %v6525 = vsel %vm1119, %v6520, %v6524
        %v6526 = vshrl.u32 %v6245, 16
        %v6528 = vrot.slane %v6526, 4
        %v6529 = vor.u32 %v6528, %v6524
        %v6530 = vrot.slane %v6529, 4
        %v6532 = vshll.u32 %v6266, 16
        %v6534 = vrot.slane %v6532, 5
        %v6535 = vsel %vm1119, %v6530, %v6534
        %v6537 = vshrl.u32 %v6246, 16
        %v6539 = vrot.slane %v6537, 4
        %v6540 = vshll.u32 %v6246, 16
        %v6542 = vrot.slane %v6540, 5
        %v6543 = vor.u32 %v6539, %v6542
        %v6544 = vrot.slane %v6543, 4
        %v6546 = vshll.u32 %v6247, 16
        %v6548 = vrot.slane %v6546, 5
        %v6549 = vsel %vm1119, %v6544, %v6548
        %v6550 = vshrl.u32 %v6247, 16
        %v6552 = vrot.slane %v6550, 4
        %v6553 = vor.u32 %v6552, %v6548
        %v6554 = vrot.slane %v6553, 4
        %v6556 = vshll.u32 %v6267, 16
        %v6558 = vrot.slane %v6556, 5
        %v6559 = vsel %vm1119, %v6554, %v6558
        %v6561 = vshrl.u32 %v6248, 16
        %v6563 = vrot.slane %v6561, 4
        %v6564 = vshll.u32 %v6248, 16
        %v6566 = vrot.slane %v6564, 5
        %v6567 = vor.u32 %v6563, %v6566
        %v6568 = vrot.slane %v6567, 4
        %v6570 = vshll.u32 %v6249, 16
        %v6572 = vrot.slane %v6570, 5
        %v6573 = vsel %vm1119, %v6568, %v6572
        %v6574 = vshrl.u32 %v6249, 16
        %v6576 = vrot.slane %v6574, 4
        %v6577 = vor.u32 %v6576, %v6572
        %v6578 = vrot.slane %v6577, 4
        %v6580 = vshll.u32 %v6268, 16
        %v6582 = vrot.slane %v6580, 5
        %v6583 = vsel %vm1119, %v6578, %v6582
        %v6585 = vshrl.u32 %v6250, 16
        %v6587 = vrot.slane %v6585, 4
        %v6588 = vshll.u32 %v6250, 16
        %v6590 = vrot.slane %v6588, 5
        %v6591 = vor.u32 %v6587, %v6590
        %v6592 = vrot.slane %v6591, 4
        %v6594 = vshll.u32 %v6251, 16
        %v6596 = vrot.slane %v6594, 5
        %v6597 = vsel %vm1119, %v6592, %v6596
        %v6598 = vshrl.u32 %v6251, 16
        %v6600 = vrot.slane %v6598, 4
        %v6601 = vor.u32 %v6600, %v6596
        %v6602 = vrot.slane %v6601, 4
        %v6604 = vshll.u32 %v6269, 16
        %v6606 = vrot.slane %v6604, 5
        %v6607 = vsel %vm1119, %v6602, %v6606
        %v6609 = vshrl.u32 %v6252, 16
        %v6611 = vrot.slane %v6609, 4
        %v6612 = vshll.u32 %v6252, 16
        %v6614 = vrot.slane %v6612, 5
        %v6615 = vor.u32 %v6611, %v6614
        %v6616 = vrot.slane %v6615, 4
        %v6618 = vshll.u32 %v6253, 16
        %v6620 = vrot.slane %v6618, 5
        %v6621 = vsel %vm1119, %v6616, %v6620
        %v6622 = vshrl.u32 %v6253, 16
        %v6624 = vrot.slane %v6622, 4
        %v6625 = vor.u32 %v6624, %v6620
        %v6626 = vrot.slane %v6625, 4
        %v6628 = vshll.u32 %v6270, 16
        %v6630 = vrot.slane %v6628, 5
        %v6631 = vsel %vm1119, %v6626, %v6630
        %v6633 = vshrl.u32 %v6254, 16
        %v6635 = vrot.slane %v6633, 4
        %v6636 = vshll.u32 %v6254, 16
        %v6638 = vrot.slane %v6636, 5
        %v6639 = vor.u32 %v6635, %v6638
        %v6640 = vrot.slane %v6639, 4
        %v6642 = vshll.u32 %v6255, 16
        %v6644 = vrot.slane %v6642, 5
        %v6645 = vsel %vm1119, %v6640, %v6644
        %v6646 = vshrl.u32 %v6255, 16
        %v6648 = vrot.slane %v6646, 4
        %v6649 = vor.u32 %v6648, %v6644
        %v6650 = vrot.slane %v6649, 4
        %v6652 = vshll.u32 %v6271, 16
        %v6654 = vrot.slane %v6652, 5
        %v6655 = vsel %vm1119, %v6650, %v6654
        %v6656 = vld [vmem:[#allocation3] sm:$0xee]
        %v6657 = vld [vmem:[#allocation3 + $0x18] sm:$0xee]
        %v6658 = vld [vmem:[#allocation3 + $0x30] sm:$0xee]
        %v6659 = vld [vmem:[#allocation3 + $0x48] sm:$0xee]
        %v6660 = vld [vmem:[#allocation3 + $0x60] sm:$0xee]
        %v6661 = vld [vmem:[#allocation3 + $0x78] sm:$0xee]
        %v6662 = vld [vmem:[#allocation3 + $0x90] sm:$0xee]
        %v6663 = vld [vmem:[#allocation3 + $0xa8] sm:$0xee]
        %v6664 = vld [vmem:[#allocation3 + $0xc0] sm:$0xee]
        %v6665 = vld [vmem:[#allocation3 + $0xd8] sm:$0xee]
        %v6666 = vld [vmem:[#allocation3 + $0xf0] sm:$0xee]
        %v6667 = vld [vmem:[#allocation3 + $0x108] sm:$0xee]
        %v6668 = vld [vmem:[#allocation3 + $0x120] sm:$0xee]
        %v6669 = vld [vmem:[#allocation3 + $0x138] sm:$0xee]
        %v6670 = vld [vmem:[#allocation3 + $0x150] sm:$0xee]
        %v6671 = vld [vmem:[#allocation3 + $0x168] sm:$0xee]
        %v6720 = vrot.slane %v6656, 5
        %v6721 = vrot.slane %v6720, 4
        %v6722 = vrot.slane %v6225, 5
        %v6723 = vsel %vm1570, %v6721, %v6722
        %v6724 = vrot.slane %v6722, 4
        %v6725 = vrot.slane %v6256, 5
        %v6726 = vsel %vm1570, %v6724, %v6725
        %v6727 = vrot.slane %v6657, 5
        %v6728 = vrot.slane %v6727, 4
        %v6729 = vrot.slane %v6227, 5
        %v6730 = vsel %vm1570, %v6728, %v6729
        %v6731 = vrot.slane %v6729, 4
        %v6732 = vrot.slane %v6257, 5
        %v6733 = vsel %vm1570, %v6731, %v6732
        %v6734 = vrot.slane %v6658, 5
        %v6735 = vrot.slane %v6734, 4
        %v6736 = vrot.slane %v6229, 5
        %v6737 = vsel %vm1570, %v6735, %v6736
        %v6738 = vrot.slane %v6736, 4
        %v6739 = vrot.slane %v6258, 5
        %v6740 = vsel %vm1570, %v6738, %v6739
        %v6741 = vrot.slane %v6659, 5
        %v6742 = vrot.slane %v6741, 4
        %v6743 = vrot.slane %v6231, 5
        %v6744 = vsel %vm1570, %v6742, %v6743
        %v6745 = vrot.slane %v6743, 4
        %v6746 = vrot.slane %v6259, 5
        %v6747 = vsel %vm1570, %v6745, %v6746
        %v6748 = vrot.slane %v6660, 5
        %v6749 = vrot.slane %v6748, 4
        %v6750 = vrot.slane %v6233, 5
        %v6751 = vsel %vm1570, %v6749, %v6750
        %v6752 = vrot.slane %v6750, 4
        %v6753 = vrot.slane %v6260, 5
        %v6754 = vsel %vm1570, %v6752, %v6753
        %v6755 = vrot.slane %v6661, 5
        %v6756 = vrot.slane %v6755, 4
        %v6757 = vrot.slane %v6235, 5
        %v6758 = vsel %vm1570, %v6756, %v6757
        %v6759 = vrot.slane %v6757, 4
        %v6760 = vrot.slane %v6261, 5
        %v6761 = vsel %vm1570, %v6759, %v6760
        %v6762 = vrot.slane %v6662, 5
        %v6763 = vrot.slane %v6762, 4
        %v6764 = vrot.slane %v6237, 5
        %v6765 = vsel %vm1570, %v6763, %v6764
        %v6766 = vrot.slane %v6764, 4
        %v6767 = vrot.slane %v6262, 5
        %v6768 = vsel %vm1570, %v6766, %v6767
        %v6769 = vrot.slane %v6663, 5
        %v6770 = vrot.slane %v6769, 4
        %v6771 = vrot.slane %v6239, 5
        %v6772 = vsel %vm1570, %v6770, %v6771
        %v6773 = vrot.slane %v6771, 4
        %v6774 = vrot.slane %v6263, 5
        %v6775 = vsel %vm1570, %v6773, %v6774
        %v6776 = vrot.slane %v6664, 5
        %v6777 = vrot.slane %v6776, 4
        %v6778 = vrot.slane %v6241, 5
        %v6779 = vsel %vm1570, %v6777, %v6778
        %v6780 = vrot.slane %v6778, 4
        %v6781 = vrot.slane %v6264, 5
        %v6782 = vsel %vm1570, %v6780, %v6781
        %v6783 = vrot.slane %v6665, 5
        %v6784 = vrot.slane %v6783, 4
        %v6785 = vrot.slane %v6243, 5
        %v6786 = vsel %vm1570, %v6784, %v6785
        %v6787 = vrot.slane %v6785, 4
        %v6788 = vrot.slane %v6265, 5
        %v6789 = vsel %vm1570, %v6787, %v6788
        %v6790 = vrot.slane %v6666, 5
        %v6791 = vrot.slane %v6790, 4
        %v6792 = vrot.slane %v6245, 5
        %v6793 = vsel %vm1570, %v6791, %v6792
        %v6794 = vrot.slane %v6792, 4
        %v6795 = vrot.slane %v6266, 5
        %v6796 = vsel %vm1570, %v6794, %v6795
        %v6797 = vrot.slane %v6667, 5
        %v6798 = vrot.slane %v6797, 4
        %v6799 = vrot.slane %v6247, 5
        %v6800 = vsel %vm1570, %v6798, %v6799
        %v6801 = vrot.slane %v6799, 4
        %v6802 = vrot.slane %v6267, 5
        %v6803 = vsel %vm1570, %v6801, %v6802
        %v6804 = vrot.slane %v6668, 5
        %v6805 = vrot.slane %v6804, 4
        %v6806 = vrot.slane %v6249, 5
        %v6807 = vsel %vm1570, %v6805, %v6806
        %v6808 = vrot.slane %v6806, 4
        %v6809 = vrot.slane %v6268, 5
        %v6810 = vsel %vm1570, %v6808, %v6809
        %v6811 = vrot.slane %v6669, 5
        %v6812 = vrot.slane %v6811, 4
        %v6813 = vrot.slane %v6251, 5
        %v6814 = vsel %vm1570, %v6812, %v6813
        %v6815 = vrot.slane %v6813, 4
        %v6816 = vrot.slane %v6269, 5
        %v6817 = vsel %vm1570, %v6815, %v6816
        %v6818 = vrot.slane %v6670, 5
        %v6819 = vrot.slane %v6818, 4
        %v6820 = vrot.slane %v6253, 5
        %v6821 = vsel %vm1570, %v6819, %v6820
        %v6822 = vrot.slane %v6820, 4
        %v6823 = vrot.slane %v6270, 5
        %v6824 = vsel %vm1570, %v6822, %v6823
        %v6825 = vrot.slane %v6671, 5
        %v6826 = vrot.slane %v6825, 4
        %v6827 = vrot.slane %v6255, 5
        %v6828 = vsel %vm1570, %v6826, %v6827
        %v6829 = vrot.slane %v6827, 4
        %v6830 = vrot.slane %v6271, 5
        %v6831 = vsel %vm1570, %v6829, %v6830
        %v6832 = vld [vmem:[%s6103] sm:$0xff]
        %v6833 = vld [vmem:[%s6103 + $0x8] sm:$0xff]
        %v6834 = vld [vmem:[%s6103 + $0x18] sm:$0xff]
        %v6835 = vld [vmem:[%s6103 + $0x20] sm:$0xff]
        %v6836 = vld [vmem:[%s6103 + $0x30] sm:$0xff]
        %v6837 = vld [vmem:[%s6103 + $0x38] sm:$0xff]
        %v6838 = vld [vmem:[%s6103 + $0x48] sm:$0xff]
        %v6839 = vld [vmem:[%s6103 + $0x50] sm:$0xff]
        %v6840 = vld [vmem:[%s6103 + $0x60] sm:$0xff]
        %v6841 = vld [vmem:[%s6103 + $0x68] sm:$0xff]
        %v6842 = vld [vmem:[%s6103 + $0x78] sm:$0xff]
        %v6843 = vld [vmem:[%s6103 + $0x80] sm:$0xff]
        %v6844 = vld [vmem:[%s6103 + $0x90] sm:$0xff]
        %v6845 = vld [vmem:[%s6103 + $0x98] sm:$0xff]
        %v6846 = vld [vmem:[%s6103 + $0xa8] sm:$0xff]
        %v6847 = vld [vmem:[%s6103 + $0xb0] sm:$0xff]
        %v6848 = vld [vmem:[%s6103 + $0xc0] sm:$0xff]
        %v6849 = vld [vmem:[%s6103 + $0xc8] sm:$0xff]
        %v6850 = vld [vmem:[%s6103 + $0xd8] sm:$0xff]
        %v6851 = vld [vmem:[%s6103 + $0xe0] sm:$0xff]
        %v6852 = vld [vmem:[%s6103 + $0xf0] sm:$0xff]
        %v6853 = vld [vmem:[%s6103 + $0xf8] sm:$0xff]
        %v6854 = vld [vmem:[%s6103 + $0x108] sm:$0xff]
        %v6855 = vld [vmem:[%s6103 + $0x110] sm:$0xff]
        %v6856 = vld [vmem:[%s6103 + $0x120] sm:$0xff]
        %v6857 = vld [vmem:[%s6103 + $0x128] sm:$0xff]
        %v6858 = vld [vmem:[%s6103 + $0x138] sm:$0xff]
        %v6859 = vld [vmem:[%s6103 + $0x140] sm:$0xff]
        %v6860 = vld [vmem:[%s6103 + $0x150] sm:$0xff]
        %v6861 = vld [vmem:[%s6103 + $0x158] sm:$0xff]
        %v6862 = vld [vmem:[%s6103 + $0x168] sm:$0xff]
        %v6863 = vld [vmem:[%s6103 + $0x170] sm:$0xff]
        %v6864 = vld [vmem:[%s6103 + $0x10] sm:$0x11]
        %v6865 = vld [vmem:[%s6103 + $0x28] sm:$0x11]
        %v6866 = vld [vmem:[%s6103 + $0x40] sm:$0x11]
        %v6867 = vld [vmem:[%s6103 + $0x58] sm:$0x11]
        %v6868 = vld [vmem:[%s6103 + $0x70] sm:$0x11]
        %v6869 = vld [vmem:[%s6103 + $0x88] sm:$0x11]
        %v6870 = vld [vmem:[%s6103 + $0xa0] sm:$0x11]
        %v6871 = vld [vmem:[%s6103 + $0xb8] sm:$0x11]
        %v6872 = vld [vmem:[%s6103 + $0xd0] sm:$0x11]
        %v6873 = vld [vmem:[%s6103 + $0xe8] sm:$0x11]
        %v6874 = vld [vmem:[%s6103 + $0x100] sm:$0x11]
        %v6875 = vld [vmem:[%s6103 + $0x118] sm:$0x11]
        %v6876 = vld [vmem:[%s6103 + $0x130] sm:$0x11]
        %v6877 = vld [vmem:[%s6103 + $0x148] sm:$0x11]
        %v6878 = vld [vmem:[%s6103 + $0x160] sm:$0x11]
        %v6879 = vld [vmem:[%s6103 + $0x178] sm:$0x11]
        %v6881 = vshrl.u32 %v6832, 16
        %v6883 = vrot.slane %v6881, 4
        %v6884 = vshll.u32 %v6832, 16
        %v6886 = vrot.slane %v6884, 5
        %v6887 = vor.u32 %v6883, %v6886
        %v6888 = vrot.slane %v6887, 4
        %v6890 = vshll.u32 %v6833, 16
        %v6892 = vrot.slane %v6890, 5
        %v6893 = vsel %vm1119, %v6888, %v6892
        %v6894 = vshrl.u32 %v6833, 16
        %v6896 = vrot.slane %v6894, 4
        %v6897 = vor.u32 %v6896, %v6892
        %v6898 = vrot.slane %v6897, 4
        %v6900 = vshll.u32 %v6864, 16
        %v6902 = vrot.slane %v6900, 5
        %v6903 = vsel %vm1119, %v6898, %v6902
        %v6905 = vshrl.u32 %v6834, 16
        %v6907 = vrot.slane %v6905, 4
        %v6908 = vshll.u32 %v6834, 16
        %v6910 = vrot.slane %v6908, 5
        %v6911 = vor.u32 %v6907, %v6910
        %v6912 = vrot.slane %v6911, 4
        %v6914 = vshll.u32 %v6835, 16
        %v6916 = vrot.slane %v6914, 5
        %v6917 = vsel %vm1119, %v6912, %v6916
        %v6918 = vshrl.u32 %v6835, 16
        %v6920 = vrot.slane %v6918, 4
        %v6921 = vor.u32 %v6920, %v6916
        %v6922 = vrot.slane %v6921, 4
        %v6924 = vshll.u32 %v6865, 16
        %v6926 = vrot.slane %v6924, 5
        %v6927 = vsel %vm1119, %v6922, %v6926
        %v6929 = vshrl.u32 %v6836, 16
        %v6931 = vrot.slane %v6929, 4
        %v6932 = vshll.u32 %v6836, 16
        %v6934 = vrot.slane %v6932, 5
        %v6935 = vor.u32 %v6931, %v6934
        %v6936 = vrot.slane %v6935, 4
        %v6938 = vshll.u32 %v6837, 16
        %v6940 = vrot.slane %v6938, 5
        %v6941 = vsel %vm1119, %v6936, %v6940
        %v6942 = vshrl.u32 %v6837, 16
        %v6944 = vrot.slane %v6942, 4
        %v6945 = vor.u32 %v6944, %v6940
        %v6946 = vrot.slane %v6945, 4
        %v6948 = vshll.u32 %v6866, 16
        %v6950 = vrot.slane %v6948, 5
        %v6951 = vsel %vm1119, %v6946, %v6950
        %v6953 = vshrl.u32 %v6838, 16
        %v6955 = vrot.slane %v6953, 4
        %v6956 = vshll.u32 %v6838, 16
        %v6958 = vrot.slane %v6956, 5
        %v6959 = vor.u32 %v6955, %v6958
        %v6960 = vrot.slane %v6959, 4
        %v6962 = vshll.u32 %v6839, 16
        %v6964 = vrot.slane %v6962, 5
        %v6965 = vsel %vm1119, %v6960, %v6964
        %v6966 = vshrl.u32 %v6839, 16
        %v6968 = vrot.slane %v6966, 4
        %v6969 = vor.u32 %v6968, %v6964
        %v6970 = vrot.slane %v6969, 4
        %v6972 = vshll.u32 %v6867, 16
        %v6974 = vrot.slane %v6972, 5
        %v6975 = vsel %vm1119, %v6970, %v6974
        %v6977 = vshrl.u32 %v6840, 16
        %v6979 = vrot.slane %v6977, 4
        %v6980 = vshll.u32 %v6840, 16
        %v6982 = vrot.slane %v6980, 5
        %v6983 = vor.u32 %v6979, %v6982
        %v6984 = vrot.slane %v6983, 4
        %v6986 = vshll.u32 %v6841, 16
        %v6988 = vrot.slane %v6986, 5
        %v6989 = vsel %vm1119, %v6984, %v6988
        %v6990 = vshrl.u32 %v6841, 16
        %v6992 = vrot.slane %v6990, 4
        %v6993 = vor.u32 %v6992, %v6988
        %v6994 = vrot.slane %v6993, 4
        %v6996 = vshll.u32 %v6868, 16
        %v6998 = vrot.slane %v6996, 5
        %v6999 = vsel %vm1119, %v6994, %v6998
        %v7001 = vshrl.u32 %v6842, 16
        %v7003 = vrot.slane %v7001, 4
        %v7004 = vshll.u32 %v6842, 16
        %v7006 = vrot.slane %v7004, 5
        %v7007 = vor.u32 %v7003, %v7006
        %v7008 = vrot.slane %v7007, 4
        %v7010 = vshll.u32 %v6843, 16
        %v7012 = vrot.slane %v7010, 5
        %v7013 = vsel %vm1119, %v7008, %v7012
        %v7014 = vshrl.u32 %v6843, 16
        %v7016 = vrot.slane %v7014, 4
        %v7017 = vor.u32 %v7016, %v7012
        %v7018 = vrot.slane %v7017, 4
        %v7020 = vshll.u32 %v6869, 16
        %v7022 = vrot.slane %v7020, 5
        %v7023 = vsel %vm1119, %v7018, %v7022
        %v7025 = vshrl.u32 %v6844, 16
        %v7027 = vrot.slane %v7025, 4
        %v7028 = vshll.u32 %v6844, 16
        %v7030 = vrot.slane %v7028, 5
        %v7031 = vor.u32 %v7027, %v7030
        %v7032 = vrot.slane %v7031, 4
        %v7034 = vshll.u32 %v6845, 16
        %v7036 = vrot.slane %v7034, 5
        %v7037 = vsel %vm1119, %v7032, %v7036
        %v7038 = vshrl.u32 %v6845, 16
        %v7040 = vrot.slane %v7038, 4
        %v7041 = vor.u32 %v7040, %v7036
        %v7042 = vrot.slane %v7041, 4
        %v7044 = vshll.u32 %v6870, 16
        %v7046 = vrot.slane %v7044, 5
        %v7047 = vsel %vm1119, %v7042, %v7046
        %v7049 = vshrl.u32 %v6846, 16
        %v7051 = vrot.slane %v7049, 4
        %v7052 = vshll.u32 %v6846, 16
        %v7054 = vrot.slane %v7052, 5
        %v7055 = vor.u32 %v7051, %v7054
        %v7056 = vrot.slane %v7055, 4
        %v7058 = vshll.u32 %v6847, 16
        %v7060 = vrot.slane %v7058, 5
        %v7061 = vsel %vm1119, %v7056, %v7060
        %v7062 = vshrl.u32 %v6847, 16
        %v7064 = vrot.slane %v7062, 4
        %v7065 = vor.u32 %v7064, %v7060
        %v7066 = vrot.slane %v7065, 4
        %v7068 = vshll.u32 %v6871, 16
        %v7070 = vrot.slane %v7068, 5
        %v7071 = vsel %vm1119, %v7066, %v7070
        %v7073 = vshrl.u32 %v6848, 16
        %v7075 = vrot.slane %v7073, 4
        %v7076 = vshll.u32 %v6848, 16
        %v7078 = vrot.slane %v7076, 5
        %v7079 = vor.u32 %v7075, %v7078
        %v7080 = vrot.slane %v7079, 4
        %v7082 = vshll.u32 %v6849, 16
        %v7084 = vrot.slane %v7082, 5
        %v7085 = vsel %vm1119, %v7080, %v7084
        %v7086 = vshrl.u32 %v6849, 16
        %v7088 = vrot.slane %v7086, 4
        %v7089 = vor.u32 %v7088, %v7084
        %v7090 = vrot.slane %v7089, 4
        %v7092 = vshll.u32 %v6872, 16
        %v7094 = vrot.slane %v7092, 5
        %v7095 = vsel %vm1119, %v7090, %v7094
        %v7097 = vshrl.u32 %v6850, 16
        %v7099 = vrot.slane %v7097, 4
        %v7100 = vshll.u32 %v6850, 16
        %v7102 = vrot.slane %v7100, 5
        %v7103 = vor.u32 %v7099, %v7102
        %v7104 = vrot.slane %v7103, 4
        %v7106 = vshll.u32 %v6851, 16
        %v7108 = vrot.slane %v7106, 5
        %v7109 = vsel %vm1119, %v7104, %v7108
        %v7110 = vshrl.u32 %v6851, 16
        %v7112 = vrot.slane %v7110, 4
        %v7113 = vor.u32 %v7112, %v7108
        %v7114 = vrot.slane %v7113, 4
        %v7116 = vshll.u32 %v6873, 16
        %v7118 = vrot.slane %v7116, 5
        %v7119 = vsel %vm1119, %v7114, %v7118
        %v7121 = vshrl.u32 %v6852, 16
        %v7123 = vrot.slane %v7121, 4
        %v7124 = vshll.u32 %v6852, 16
        %v7126 = vrot.slane %v7124, 5
        %v7127 = vor.u32 %v7123, %v7126
        %v7128 = vrot.slane %v7127, 4
        %v7130 = vshll.u32 %v6853, 16
        %v7132 = vrot.slane %v7130, 5
        %v7133 = vsel %vm1119, %v7128, %v7132
        %v7134 = vshrl.u32 %v6853, 16
        %v7136 = vrot.slane %v7134, 4
        %v7137 = vor.u32 %v7136, %v7132
        %v7138 = vrot.slane %v7137, 4
        %v7140 = vshll.u32 %v6874, 16
        %v7142 = vrot.slane %v7140, 5
        %v7143 = vsel %vm1119, %v7138, %v7142
        %v7145 = vshrl.u32 %v6854, 16
        %v7147 = vrot.slane %v7145, 4
        %v7148 = vshll.u32 %v6854, 16
        %v7150 = vrot.slane %v7148, 5
        %v7151 = vor.u32 %v7147, %v7150
        %v7152 = vrot.slane %v7151, 4
        %v7154 = vshll.u32 %v6855, 16
        %v7156 = vrot.slane %v7154, 5
        %v7157 = vsel %vm1119, %v7152, %v7156
        %v7158 = vshrl.u32 %v6855, 16
        %v7160 = vrot.slane %v7158, 4
        %v7161 = vor.u32 %v7160, %v7156
        %v7162 = vrot.slane %v7161, 4
        %v7164 = vshll.u32 %v6875, 16
        %v7166 = vrot.slane %v7164, 5
        %v7167 = vsel %vm1119, %v7162, %v7166
        %v7169 = vshrl.u32 %v6856, 16
        %v7171 = vrot.slane %v7169, 4
        %v7172 = vshll.u32 %v6856, 16
        %v7174 = vrot.slane %v7172, 5
        %v7175 = vor.u32 %v7171, %v7174
        %v7176 = vrot.slane %v7175, 4
        %v7178 = vshll.u32 %v6857, 16
        %v7180 = vrot.slane %v7178, 5
        %v7181 = vsel %vm1119, %v7176, %v7180
        %v7182 = vshrl.u32 %v6857, 16
        %v7184 = vrot.slane %v7182, 4
        %v7185 = vor.u32 %v7184, %v7180
        %v7186 = vrot.slane %v7185, 4
        %v7188 = vshll.u32 %v6876, 16
        %v7190 = vrot.slane %v7188, 5
        %v7191 = vsel %vm1119, %v7186, %v7190
        %v7193 = vshrl.u32 %v6858, 16
        %v7195 = vrot.slane %v7193, 4
        %v7196 = vshll.u32 %v6858, 16
        %v7198 = vrot.slane %v7196, 5
        %v7199 = vor.u32 %v7195, %v7198
        %v7200 = vrot.slane %v7199, 4
        %v7202 = vshll.u32 %v6859, 16
        %v7204 = vrot.slane %v7202, 5
        %v7205 = vsel %vm1119, %v7200, %v7204
        %v7206 = vshrl.u32 %v6859, 16
        %v7208 = vrot.slane %v7206, 4
        %v7209 = vor.u32 %v7208, %v7204
        %v7210 = vrot.slane %v7209, 4
        %v7212 = vshll.u32 %v6877, 16
        %v7214 = vrot.slane %v7212, 5
        %v7215 = vsel %vm1119, %v7210, %v7214
        %v7217 = vshrl.u32 %v6860, 16
        %v7219 = vrot.slane %v7217, 4
        %v7220 = vshll.u32 %v6860, 16
        %v7222 = vrot.slane %v7220, 5
        %v7223 = vor.u32 %v7219, %v7222
        %v7224 = vrot.slane %v7223, 4
        %v7226 = vshll.u32 %v6861, 16
        %v7228 = vrot.slane %v7226, 5
        %v7229 = vsel %vm1119, %v7224, %v7228
        %v7230 = vshrl.u32 %v6861, 16
        %v7232 = vrot.slane %v7230, 4
        %v7233 = vor.u32 %v7232, %v7228
        %v7234 = vrot.slane %v7233, 4
        %v7236 = vshll.u32 %v6878, 16
        %v7238 = vrot.slane %v7236, 5
        %v7239 = vsel %vm1119, %v7234, %v7238
        %v7241 = vshrl.u32 %v6862, 16
        %v7243 = vrot.slane %v7241, 4
        %v7244 = vshll.u32 %v6862, 16
        %v7246 = vrot.slane %v7244, 5
        %v7247 = vor.u32 %v7243, %v7246
        %v7248 = vrot.slane %v7247, 4
        %v7250 = vshll.u32 %v6863, 16
        %v7252 = vrot.slane %v7250, 5
        %v7253 = vsel %vm1119, %v7248, %v7252
        %v7254 = vshrl.u32 %v6863, 16
        %v7256 = vrot.slane %v7254, 4
        %v7257 = vor.u32 %v7256, %v7252
        %v7258 = vrot.slane %v7257, 4
        %v7260 = vshll.u32 %v6879, 16
        %v7262 = vrot.slane %v7260, 5
        %v7263 = vsel %vm1119, %v7258, %v7262
        %v7264 = vld [vmem:[%s6103] sm:$0xee]
        %v7265 = vld [vmem:[%s6103 + $0x18] sm:$0xee]
        %v7266 = vld [vmem:[%s6103 + $0x30] sm:$0xee]
        %v7267 = vld [vmem:[%s6103 + $0x48] sm:$0xee]
        %v7268 = vld [vmem:[%s6103 + $0x60] sm:$0xee]
        %v7269 = vld [vmem:[%s6103 + $0x78] sm:$0xee]
        %v7270 = vld [vmem:[%s6103 + $0x90] sm:$0xee]
        %v7271 = vld [vmem:[%s6103 + $0xa8] sm:$0xee]
        %v7272 = vld [vmem:[%s6103 + $0xc0] sm:$0xee]
        %v7273 = vld [vmem:[%s6103 + $0xd8] sm:$0xee]
        %v7274 = vld [vmem:[%s6103 + $0xf0] sm:$0xee]
        %v7275 = vld [vmem:[%s6103 + $0x108] sm:$0xee]
        %v7276 = vld [vmem:[%s6103 + $0x120] sm:$0xee]
        %v7277 = vld [vmem:[%s6103 + $0x138] sm:$0xee]
        %v7278 = vld [vmem:[%s6103 + $0x150] sm:$0xee]
        %v7279 = vld [vmem:[%s6103 + $0x168] sm:$0xee]
        %v7328 = vrot.slane %v7264, 5
        %v7329 = vrot.slane %v7328, 4
        %v7330 = vrot.slane %v6833, 5
        %v7331 = vsel %vm1570, %v7329, %v7330
        %v7332 = vrot.slane %v7330, 4
        %v7333 = vrot.slane %v6864, 5
        %v7334 = vsel %vm1570, %v7332, %v7333
        %v7335 = vrot.slane %v7265, 5
        %v7336 = vrot.slane %v7335, 4
        %v7337 = vrot.slane %v6835, 5
        %v7338 = vsel %vm1570, %v7336, %v7337
        %v7339 = vrot.slane %v7337, 4
        %v7340 = vrot.slane %v6865, 5
        %v7341 = vsel %vm1570, %v7339, %v7340
        %v7342 = vrot.slane %v7266, 5
        %v7343 = vrot.slane %v7342, 4
        %v7344 = vrot.slane %v6837, 5
        %v7345 = vsel %vm1570, %v7343, %v7344
        %v7346 = vrot.slane %v7344, 4
        %v7347 = vrot.slane %v6866, 5
        %v7348 = vsel %vm1570, %v7346, %v7347
        %v7349 = vrot.slane %v7267, 5
        %v7350 = vrot.slane %v7349, 4
        %v7351 = vrot.slane %v6839, 5
        %v7352 = vsel %vm1570, %v7350, %v7351
        %v7353 = vrot.slane %v7351, 4
        %v7354 = vrot.slane %v6867, 5
        %v7355 = vsel %vm1570, %v7353, %v7354
        %v7356 = vrot.slane %v7268, 5
        %v7357 = vrot.slane %v7356, 4
        %v7358 = vrot.slane %v6841, 5
        %v7359 = vsel %vm1570, %v7357, %v7358
        %v7360 = vrot.slane %v7358, 4
        %v7361 = vrot.slane %v6868, 5
        %v7362 = vsel %vm1570, %v7360, %v7361
        %v7363 = vrot.slane %v7269, 5
        %v7364 = vrot.slane %v7363, 4
        %v7365 = vrot.slane %v6843, 5
        %v7366 = vsel %vm1570, %v7364, %v7365
        %v7367 = vrot.slane %v7365, 4
        %v7368 = vrot.slane %v6869, 5
        %v7369 = vsel %vm1570, %v7367, %v7368
        %v7370 = vrot.slane %v7270, 5
        %v7371 = vrot.slane %v7370, 4
        %v7372 = vrot.slane %v6845, 5
        %v7373 = vsel %vm1570, %v7371, %v7372
        %v7374 = vrot.slane %v7372, 4
        %v7375 = vrot.slane %v6870, 5
        %v7376 = vsel %vm1570, %v7374, %v7375
        %v7377 = vrot.slane %v7271, 5
        %v7378 = vrot.slane %v7377, 4
        %v7379 = vrot.slane %v6847, 5
        %v7380 = vsel %vm1570, %v7378, %v7379
        %v7381 = vrot.slane %v7379, 4
        %v7382 = vrot.slane %v6871, 5
        %v7383 = vsel %vm1570, %v7381, %v7382
        %v7384 = vrot.slane %v7272, 5
        %v7385 = vrot.slane %v7384, 4
        %v7386 = vrot.slane %v6849, 5
        %v7387 = vsel %vm1570, %v7385, %v7386
        %v7388 = vrot.slane %v7386, 4
        %v7389 = vrot.slane %v6872, 5
        %v7390 = vsel %vm1570, %v7388, %v7389
        %v7391 = vrot.slane %v7273, 5
        %v7392 = vrot.slane %v7391, 4
        %v7393 = vrot.slane %v6851, 5
        %v7394 = vsel %vm1570, %v7392, %v7393
        %v7395 = vrot.slane %v7393, 4
        %v7396 = vrot.slane %v6873, 5
        %v7397 = vsel %vm1570, %v7395, %v7396
        %v7398 = vrot.slane %v7274, 5
        %v7399 = vrot.slane %v7398, 4
        %v7400 = vrot.slane %v6853, 5
        %v7401 = vsel %vm1570, %v7399, %v7400
        %v7402 = vrot.slane %v7400, 4
        %v7403 = vrot.slane %v6874, 5
        %v7404 = vsel %vm1570, %v7402, %v7403
        %v7405 = vrot.slane %v7275, 5
        %v7406 = vrot.slane %v7405, 4
        %v7407 = vrot.slane %v6855, 5
        %v7408 = vsel %vm1570, %v7406, %v7407
        %v7409 = vrot.slane %v7407, 4
        %v7410 = vrot.slane %v6875, 5
        %v7411 = vsel %vm1570, %v7409, %v7410
        %v7412 = vrot.slane %v7276, 5
        %v7413 = vrot.slane %v7412, 4
        %v7414 = vrot.slane %v6857, 5
        %v7415 = vsel %vm1570, %v7413, %v7414
        %v7416 = vrot.slane %v7414, 4
        %v7417 = vrot.slane %v6876, 5
        %v7418 = vsel %vm1570, %v7416, %v7417
        %v7419 = vrot.slane %v7277, 5
        %v7420 = vrot.slane %v7419, 4
        %v7421 = vrot.slane %v6859, 5
        %v7422 = vsel %vm1570, %v7420, %v7421
        %v7423 = vrot.slane %v7421, 4
        %v7424 = vrot.slane %v6877, 5
        %v7425 = vsel %vm1570, %v7423, %v7424
        %v7426 = vrot.slane %v7278, 5
        %v7427 = vrot.slane %v7426, 4
        %v7428 = vrot.slane %v6861, 5
        %v7429 = vsel %vm1570, %v7427, %v7428
        %v7430 = vrot.slane %v7428, 4
        %v7431 = vrot.slane %v6878, 5
        %v7432 = vsel %vm1570, %v7430, %v7431
        %v7433 = vrot.slane %v7279, 5
        %v7434 = vrot.slane %v7433, 4
        %v7435 = vrot.slane %v6863, 5
        %v7436 = vsel %vm1570, %v7434, %v7435
        %v7437 = vrot.slane %v7435, 4
        %v7438 = vrot.slane %v6879, 5
        %v7439 = vsel %vm1570, %v7437, %v7438
        %s7440 = scalar_lea.vmem [#allocation3], 48
        %v7441 = vld [vmem:[%s7440] sm:$0xff]
        %v7442 = vld [vmem:[%s7440 + $0x8] sm:$0xff]
        %v7443 = vld [vmem:[%s7440 + $0x18] sm:$0xff]
        %v7444 = vld [vmem:[%s7440 + $0x20] sm:$0xff]
        %v7445 = vld [vmem:[%s7440 + $0x30] sm:$0xff]
        %v7446 = vld [vmem:[%s7440 + $0x38] sm:$0xff]
        %v7447 = vld [vmem:[%s7440 + $0x48] sm:$0xff]
        %v7448 = vld [vmem:[%s7440 + $0x50] sm:$0xff]
        %v7449 = vld [vmem:[%s7440 + $0x60] sm:$0xff]
        %v7450 = vld [vmem:[%s7440 + $0x68] sm:$0xff]
        %v7451 = vld [vmem:[%s7440 + $0x78] sm:$0xff]
        %v7452 = vld [vmem:[%s7440 + $0x80] sm:$0xff]
        %v7453 = vld [vmem:[%s7440 + $0x90] sm:$0xff]
        %v7454 = vld [vmem:[%s7440 + $0x98] sm:$0xff]
        %v7455 = vld [vmem:[%s7440 + $0xa8] sm:$0xff]
        %v7456 = vld [vmem:[%s7440 + $0xb0] sm:$0xff]
        %v7457 = vld [vmem:[%s7440 + $0xc0] sm:$0xff]
        %v7458 = vld [vmem:[%s7440 + $0xc8] sm:$0xff]
        %v7459 = vld [vmem:[%s7440 + $0xd8] sm:$0xff]
        %v7460 = vld [vmem:[%s7440 + $0xe0] sm:$0xff]
        %v7461 = vld [vmem:[%s7440 + $0xf0] sm:$0xff]
        %v7462 = vld [vmem:[%s7440 + $0xf8] sm:$0xff]
        %v7463 = vld [vmem:[%s7440 + $0x108] sm:$0xff]
        %v7464 = vld [vmem:[%s7440 + $0x110] sm:$0xff]
        %v7465 = vld [vmem:[%s7440 + $0x120] sm:$0xff]
        %v7466 = vld [vmem:[%s7440 + $0x128] sm:$0xff]
        %v7467 = vld [vmem:[%s7440 + $0x138] sm:$0xff]
        %v7468 = vld [vmem:[%s7440 + $0x140] sm:$0xff]
        %v7469 = vld [vmem:[%s7440 + $0x150] sm:$0xff]
        %v7470 = vld [vmem:[%s7440 + $0x158] sm:$0xff]
        %v7471 = vld [vmem:[%s7440 + $0x168] sm:$0xff]
        %v7472 = vld [vmem:[%s7440 + $0x170] sm:$0xff]
        %v7473 = vld [vmem:[%s7440 + $0x10] sm:$0x11]
        %v7474 = vld [vmem:[%s7440 + $0x28] sm:$0x11]
        %v7475 = vld [vmem:[%s7440 + $0x40] sm:$0x11]
        %v7476 = vld [vmem:[%s7440 + $0x58] sm:$0x11]
        %v7477 = vld [vmem:[%s7440 + $0x70] sm:$0x11]
        %v7478 = vld [vmem:[%s7440 + $0x88] sm:$0x11]
        %v7479 = vld [vmem:[%s7440 + $0xa0] sm:$0x11]
        %v7480 = vld [vmem:[%s7440 + $0xb8] sm:$0x11]
        %v7481 = vld [vmem:[%s7440 + $0xd0] sm:$0x11]
        %v7482 = vld [vmem:[%s7440 + $0xe8] sm:$0x11]
        %v7483 = vld [vmem:[%s7440 + $0x100] sm:$0x11]
        %v7484 = vld [vmem:[%s7440 + $0x118] sm:$0x11]
        %v7485 = vld [vmem:[%s7440 + $0x130] sm:$0x11]
        %v7486 = vld [vmem:[%s7440 + $0x148] sm:$0x11]
        %v7487 = vld [vmem:[%s7440 + $0x160] sm:$0x11]
        %v7488 = vld [vmem:[%s7440 + $0x178] sm:$0x11]
        %v7490 = vshrl.u32 %v7441, 16
        %v7492 = vrot.slane %v7490, 4
        %v7493 = vshll.u32 %v7441, 16
        %v7495 = vrot.slane %v7493, 5
        %v7496 = vor.u32 %v7492, %v7495
        %v7497 = vrot.slane %v7496, 4
        %v7499 = vshll.u32 %v7442, 16
        %v7501 = vrot.slane %v7499, 5
        %v7502 = vsel %vm1119, %v7497, %v7501
        %v7503 = vshrl.u32 %v7442, 16
        %v7505 = vrot.slane %v7503, 4
        %v7506 = vor.u32 %v7505, %v7501
        %v7507 = vrot.slane %v7506, 4
        %v7509 = vshll.u32 %v7473, 16
        %v7511 = vrot.slane %v7509, 5
        %v7512 = vsel %vm1119, %v7507, %v7511
        %v7514 = vshrl.u32 %v7443, 16
        %v7516 = vrot.slane %v7514, 4
        %v7517 = vshll.u32 %v7443, 16
        %v7519 = vrot.slane %v7517, 5
        %v7520 = vor.u32 %v7516, %v7519
        %v7521 = vrot.slane %v7520, 4
        %v7523 = vshll.u32 %v7444, 16
        %v7525 = vrot.slane %v7523, 5
        %v7526 = vsel %vm1119, %v7521, %v7525
        %v7527 = vshrl.u32 %v7444, 16
        %v7529 = vrot.slane %v7527, 4
        %v7530 = vor.u32 %v7529, %v7525
        %v7531 = vrot.slane %v7530, 4
        %v7533 = vshll.u32 %v7474, 16
        %v7535 = vrot.slane %v7533, 5
        %v7536 = vsel %vm1119, %v7531, %v7535
        %v7538 = vshrl.u32 %v7445, 16
        %v7540 = vrot.slane %v7538, 4
        %v7541 = vshll.u32 %v7445, 16
        %v7543 = vrot.slane %v7541, 5
        %v7544 = vor.u32 %v7540, %v7543
        %v7545 = vrot.slane %v7544, 4
        %v7547 = vshll.u32 %v7446, 16
        %v7549 = vrot.slane %v7547, 5
        %v7550 = vsel %vm1119, %v7545, %v7549
        %v7551 = vshrl.u32 %v7446, 16
        %v7553 = vrot.slane %v7551, 4
        %v7554 = vor.u32 %v7553, %v7549
        %v7555 = vrot.slane %v7554, 4
        %v7557 = vshll.u32 %v7475, 16
        %v7559 = vrot.slane %v7557, 5
        %v7560 = vsel %vm1119, %v7555, %v7559
        %v7562 = vshrl.u32 %v7447, 16
        %v7564 = vrot.slane %v7562, 4
        %v7565 = vshll.u32 %v7447, 16
        %v7567 = vrot.slane %v7565, 5
        %v7568 = vor.u32 %v7564, %v7567
        %v7569 = vrot.slane %v7568, 4
        %v7571 = vshll.u32 %v7448, 16
        %v7573 = vrot.slane %v7571, 5
        %v7574 = vsel %vm1119, %v7569, %v7573
        %v7575 = vshrl.u32 %v7448, 16
        %v7577 = vrot.slane %v7575, 4
        %v7578 = vor.u32 %v7577, %v7573
        %v7579 = vrot.slane %v7578, 4
        %v7581 = vshll.u32 %v7476, 16
        %v7583 = vrot.slane %v7581, 5
        %v7584 = vsel %vm1119, %v7579, %v7583
        %v7586 = vshrl.u32 %v7449, 16
        %v7588 = vrot.slane %v7586, 4
        %v7589 = vshll.u32 %v7449, 16
        %v7591 = vrot.slane %v7589, 5
        %v7592 = vor.u32 %v7588, %v7591
        %v7593 = vrot.slane %v7592, 4
        %v7595 = vshll.u32 %v7450, 16
        %v7597 = vrot.slane %v7595, 5
        %v7598 = vsel %vm1119, %v7593, %v7597
        %v7599 = vshrl.u32 %v7450, 16
        %v7601 = vrot.slane %v7599, 4
        %v7602 = vor.u32 %v7601, %v7597
        %v7603 = vrot.slane %v7602, 4
        %v7605 = vshll.u32 %v7477, 16
        %v7607 = vrot.slane %v7605, 5
        %v7608 = vsel %vm1119, %v7603, %v7607
        %v7610 = vshrl.u32 %v7451, 16
        %v7612 = vrot.slane %v7610, 4
        %v7613 = vshll.u32 %v7451, 16
        %v7615 = vrot.slane %v7613, 5
        %v7616 = vor.u32 %v7612, %v7615
        %v7617 = vrot.slane %v7616, 4
        %v7619 = vshll.u32 %v7452, 16
        %v7621 = vrot.slane %v7619, 5
        %v7622 = vsel %vm1119, %v7617, %v7621
        %v7623 = vshrl.u32 %v7452, 16
        %v7625 = vrot.slane %v7623, 4
        %v7626 = vor.u32 %v7625, %v7621
        %v7627 = vrot.slane %v7626, 4
        %v7629 = vshll.u32 %v7478, 16
        %v7631 = vrot.slane %v7629, 5
        %v7632 = vsel %vm1119, %v7627, %v7631
        %v7634 = vshrl.u32 %v7453, 16
        %v7636 = vrot.slane %v7634, 4
        %v7637 = vshll.u32 %v7453, 16
        %v7639 = vrot.slane %v7637, 5
        %v7640 = vor.u32 %v7636, %v7639
        %v7641 = vrot.slane %v7640, 4
        %v7643 = vshll.u32 %v7454, 16
        %v7645 = vrot.slane %v7643, 5
        %v7646 = vsel %vm1119, %v7641, %v7645
        %v7647 = vshrl.u32 %v7454, 16
        %v7649 = vrot.slane %v7647, 4
        %v7650 = vor.u32 %v7649, %v7645
        %v7651 = vrot.slane %v7650, 4
        %v7653 = vshll.u32 %v7479, 16
        %v7655 = vrot.slane %v7653, 5
        %v7656 = vsel %vm1119, %v7651, %v7655
        %v7658 = vshrl.u32 %v7455, 16
        %v7660 = vrot.slane %v7658, 4
        %v7661 = vshll.u32 %v7455, 16
        %v7663 = vrot.slane %v7661, 5
        %v7664 = vor.u32 %v7660, %v7663
        %v7665 = vrot.slane %v7664, 4
        %v7667 = vshll.u32 %v7456, 16
        %v7669 = vrot.slane %v7667, 5
        %v7670 = vsel %vm1119, %v7665, %v7669
        %v7671 = vshrl.u32 %v7456, 16
        %v7673 = vrot.slane %v7671, 4
        %v7674 = vor.u32 %v7673, %v7669
        %v7675 = vrot.slane %v7674, 4
        %v7677 = vshll.u32 %v7480, 16
        %v7679 = vrot.slane %v7677, 5
        %v7680 = vsel %vm1119, %v7675, %v7679
        %v7682 = vshrl.u32 %v7457, 16
        %v7684 = vrot.slane %v7682, 4
        %v7685 = vshll.u32 %v7457, 16
        %v7687 = vrot.slane %v7685, 5
        %v7688 = vor.u32 %v7684, %v7687
        %v7689 = vrot.slane %v7688, 4
        %v7691 = vshll.u32 %v7458, 16
        %v7693 = vrot.slane %v7691, 5
        %v7694 = vsel %vm1119, %v7689, %v7693
        %v7695 = vshrl.u32 %v7458, 16
        %v7697 = vrot.slane %v7695, 4
        %v7698 = vor.u32 %v7697, %v7693
        %v7699 = vrot.slane %v7698, 4
        %v7701 = vshll.u32 %v7481, 16
        %v7703 = vrot.slane %v7701, 5
        %v7704 = vsel %vm1119, %v7699, %v7703
        %v7706 = vshrl.u32 %v7459, 16
        %v7708 = vrot.slane %v7706, 4
        %v7709 = vshll.u32 %v7459, 16
        %v7711 = vrot.slane %v7709, 5
        %v7712 = vor.u32 %v7708, %v7711
        %v7713 = vrot.slane %v7712, 4
        %v7715 = vshll.u32 %v7460, 16
        %v7717 = vrot.slane %v7715, 5
        %v7718 = vsel %vm1119, %v7713, %v7717
        %v7719 = vshrl.u32 %v7460, 16
        %v7721 = vrot.slane %v7719, 4
        %v7722 = vor.u32 %v7721, %v7717
        %v7723 = vrot.slane %v7722, 4
        %v7725 = vshll.u32 %v7482, 16
        %v7727 = vrot.slane %v7725, 5
        %v7728 = vsel %vm1119, %v7723, %v7727
        %v7730 = vshrl.u32 %v7461, 16
        %v7732 = vrot.slane %v7730, 4
        %v7733 = vshll.u32 %v7461, 16
        %v7735 = vrot.slane %v7733, 5
        %v7736 = vor.u32 %v7732, %v7735
        %v7737 = vrot.slane %v7736, 4
        %v7739 = vshll.u32 %v7462, 16
        %v7741 = vrot.slane %v7739, 5
        %v7742 = vsel %vm1119, %v7737, %v7741
        %v7743 = vshrl.u32 %v7462, 16
        %v7745 = vrot.slane %v7743, 4
        %v7746 = vor.u32 %v7745, %v7741
        %v7747 = vrot.slane %v7746, 4
        %v7749 = vshll.u32 %v7483, 16
        %v7751 = vrot.slane %v7749, 5
        %v7752 = vsel %vm1119, %v7747, %v7751
        %v7754 = vshrl.u32 %v7463, 16
        %v7756 = vrot.slane %v7754, 4
        %v7757 = vshll.u32 %v7463, 16
        %v7759 = vrot.slane %v7757, 5
        %v7760 = vor.u32 %v7756, %v7759
        %v7761 = vrot.slane %v7760, 4
        %v7763 = vshll.u32 %v7464, 16
        %v7765 = vrot.slane %v7763, 5
        %v7766 = vsel %vm1119, %v7761, %v7765
        %v7767 = vshrl.u32 %v7464, 16
        %v7769 = vrot.slane %v7767, 4
        %v7770 = vor.u32 %v7769, %v7765
        %v7771 = vrot.slane %v7770, 4
        %v7773 = vshll.u32 %v7484, 16
        %v7775 = vrot.slane %v7773, 5
        %v7776 = vsel %vm1119, %v7771, %v7775
        %v7778 = vshrl.u32 %v7465, 16
        %v7780 = vrot.slane %v7778, 4
        %v7781 = vshll.u32 %v7465, 16
        %v7783 = vrot.slane %v7781, 5
        %v7784 = vor.u32 %v7780, %v7783
        %v7785 = vrot.slane %v7784, 4
        %v7787 = vshll.u32 %v7466, 16
        %v7789 = vrot.slane %v7787, 5
        %v7790 = vsel %vm1119, %v7785, %v7789
        %v7791 = vshrl.u32 %v7466, 16
        %v7793 = vrot.slane %v7791, 4
        %v7794 = vor.u32 %v7793, %v7789
        %v7795 = vrot.slane %v7794, 4
        %v7797 = vshll.u32 %v7485, 16
        %v7799 = vrot.slane %v7797, 5
        %v7800 = vsel %vm1119, %v7795, %v7799
        %v7802 = vshrl.u32 %v7467, 16
        %v7804 = vrot.slane %v7802, 4
        %v7805 = vshll.u32 %v7467, 16
        %v7807 = vrot.slane %v7805, 5
        %v7808 = vor.u32 %v7804, %v7807
        %v7809 = vrot.slane %v7808, 4
        %v7811 = vshll.u32 %v7468, 16
        %v7813 = vrot.slane %v7811, 5
        %v7814 = vsel %vm1119, %v7809, %v7813
        %v7815 = vshrl.u32 %v7468, 16
        %v7817 = vrot.slane %v7815, 4
        %v7818 = vor.u32 %v7817, %v7813
        %v7819 = vrot.slane %v7818, 4
        %v7821 = vshll.u32 %v7486, 16
        %v7823 = vrot.slane %v7821, 5
        %v7824 = vsel %vm1119, %v7819, %v7823
        %v7826 = vshrl.u32 %v7469, 16
        %v7828 = vrot.slane %v7826, 4
        %v7829 = vshll.u32 %v7469, 16
        %v7831 = vrot.slane %v7829, 5
        %v7832 = vor.u32 %v7828, %v7831
        %v7833 = vrot.slane %v7832, 4
        %v7835 = vshll.u32 %v7470, 16
        %v7837 = vrot.slane %v7835, 5
        %v7838 = vsel %vm1119, %v7833, %v7837
        %v7839 = vshrl.u32 %v7470, 16
        %v7841 = vrot.slane %v7839, 4
        %v7842 = vor.u32 %v7841, %v7837
        %v7843 = vrot.slane %v7842, 4
        %v7845 = vshll.u32 %v7487, 16
        %v7847 = vrot.slane %v7845, 5
        %v7848 = vsel %vm1119, %v7843, %v7847
        %v7850 = vshrl.u32 %v7471, 16
        %v7852 = vrot.slane %v7850, 4
        %v7853 = vshll.u32 %v7471, 16
        %v7855 = vrot.slane %v7853, 5
        %v7856 = vor.u32 %v7852, %v7855
        %v7857 = vrot.slane %v7856, 4
        %v7859 = vshll.u32 %v7472, 16
        %v7861 = vrot.slane %v7859, 5
        %v7862 = vsel %vm1119, %v7857, %v7861
        %v7863 = vshrl.u32 %v7472, 16
        %v7865 = vrot.slane %v7863, 4
        %v7866 = vor.u32 %v7865, %v7861
        %v7867 = vrot.slane %v7866, 4
        %v7869 = vshll.u32 %v7488, 16
        %v7871 = vrot.slane %v7869, 5
        %v7872 = vsel %vm1119, %v7867, %v7871
        %v7873 = vld [vmem:[%s7440] sm:$0xee]
        %v7874 = vld [vmem:[%s7440 + $0x18] sm:$0xee]
        %v7875 = vld [vmem:[%s7440 + $0x30] sm:$0xee]
        %v7876 = vld [vmem:[%s7440 + $0x48] sm:$0xee]
        %v7877 = vld [vmem:[%s7440 + $0x60] sm:$0xee]
        %v7878 = vld [vmem:[%s7440 + $0x78] sm:$0xee]
        %v7879 = vld [vmem:[%s7440 + $0x90] sm:$0xee]
        %v7880 = vld [vmem:[%s7440 + $0xa8] sm:$0xee]
        %v7881 = vld [vmem:[%s7440 + $0xc0] sm:$0xee]
        %v7882 = vld [vmem:[%s7440 + $0xd8] sm:$0xee]
        %v7883 = vld [vmem:[%s7440 + $0xf0] sm:$0xee]
        %v7884 = vld [vmem:[%s7440 + $0x108] sm:$0xee]
        %v7885 = vld [vmem:[%s7440 + $0x120] sm:$0xee]
        %v7886 = vld [vmem:[%s7440 + $0x138] sm:$0xee]
        %v7887 = vld [vmem:[%s7440 + $0x150] sm:$0xee]
        %v7888 = vld [vmem:[%s7440 + $0x168] sm:$0xee]
        %v7937 = vrot.slane %v7873, 5
        %v7938 = vrot.slane %v7937, 4
        %v7939 = vrot.slane %v7442, 5
        %v7940 = vsel %vm1570, %v7938, %v7939
        %v7941 = vrot.slane %v7939, 4
        %v7942 = vrot.slane %v7473, 5
        %v7943 = vsel %vm1570, %v7941, %v7942
        %v7944 = vrot.slane %v7874, 5
        %v7945 = vrot.slane %v7944, 4
        %v7946 = vrot.slane %v7444, 5
        %v7947 = vsel %vm1570, %v7945, %v7946
        %v7948 = vrot.slane %v7946, 4
        %v7949 = vrot.slane %v7474, 5
        %v7950 = vsel %vm1570, %v7948, %v7949
        %v7951 = vrot.slane %v7875, 5
        %v7952 = vrot.slane %v7951, 4
        %v7953 = vrot.slane %v7446, 5
        %v7954 = vsel %vm1570, %v7952, %v7953
        %v7955 = vrot.slane %v7953, 4
        %v7956 = vrot.slane %v7475, 5
        %v7957 = vsel %vm1570, %v7955, %v7956
        %v7958 = vrot.slane %v7876, 5
        %v7959 = vrot.slane %v7958, 4
        %v7960 = vrot.slane %v7448, 5
        %v7961 = vsel %vm1570, %v7959, %v7960
        %v7962 = vrot.slane %v7960, 4
        %v7963 = vrot.slane %v7476, 5
        %v7964 = vsel %vm1570, %v7962, %v7963
        %v7965 = vrot.slane %v7877, 5
        %v7966 = vrot.slane %v7965, 4
        %v7967 = vrot.slane %v7450, 5
        %v7968 = vsel %vm1570, %v7966, %v7967
        %v7969 = vrot.slane %v7967, 4
        %v7970 = vrot.slane %v7477, 5
        %v7971 = vsel %vm1570, %v7969, %v7970
        %v7972 = vrot.slane %v7878, 5
        %v7973 = vrot.slane %v7972, 4
        %v7974 = vrot.slane %v7452, 5
        %v7975 = vsel %vm1570, %v7973, %v7974
        %v7976 = vrot.slane %v7974, 4
        %v7977 = vrot.slane %v7478, 5
        %v7978 = vsel %vm1570, %v7976, %v7977
        %v7979 = vrot.slane %v7879, 5
        %v7980 = vrot.slane %v7979, 4
        %v7981 = vrot.slane %v7454, 5
        %v7982 = vsel %vm1570, %v7980, %v7981
        %v7983 = vrot.slane %v7981, 4
        %v7984 = vrot.slane %v7479, 5
        %v7985 = vsel %vm1570, %v7983, %v7984
        %v7986 = vrot.slane %v7880, 5
        %v7987 = vrot.slane %v7986, 4
        %v7988 = vrot.slane %v7456, 5
        %v7989 = vsel %vm1570, %v7987, %v7988
        %v7990 = vrot.slane %v7988, 4
        %v7991 = vrot.slane %v7480, 5
        %v7992 = vsel %vm1570, %v7990, %v7991
        %v7993 = vrot.slane %v7881, 5
        %v7994 = vrot.slane %v7993, 4
        %v7995 = vrot.slane %v7458, 5
        %v7996 = vsel %vm1570, %v7994, %v7995
        %v7997 = vrot.slane %v7995, 4
        %v7998 = vrot.slane %v7481, 5
        %v7999 = vsel %vm1570, %v7997, %v7998
        %v8000 = vrot.slane %v7882, 5
        %v8001 = vrot.slane %v8000, 4
        %v8002 = vrot.slane %v7460, 5
        %v8003 = vsel %vm1570, %v8001, %v8002
        %v8004 = vrot.slane %v8002, 4
        %v8005 = vrot.slane %v7482, 5
        %v8006 = vsel %vm1570, %v8004, %v8005
        %v8007 = vrot.slane %v7883, 5
        %v8008 = vrot.slane %v8007, 4
        %v8009 = vrot.slane %v7462, 5
        %v8010 = vsel %vm1570, %v8008, %v8009
        %v8011 = vrot.slane %v8009, 4
        %v8012 = vrot.slane %v7483, 5
        %v8013 = vsel %vm1570, %v8011, %v8012
        %v8014 = vrot.slane %v7884, 5
        %v8015 = vrot.slane %v8014, 4
        %v8016 = vrot.slane %v7464, 5
        %v8017 = vsel %vm1570, %v8015, %v8016
        %v8018 = vrot.slane %v8016, 4
        %v8019 = vrot.slane %v7484, 5
        %v8020 = vsel %vm1570, %v8018, %v8019
        %v8021 = vrot.slane %v7885, 5
        %v8022 = vrot.slane %v8021, 4
        %v8023 = vrot.slane %v7466, 5
        %v8024 = vsel %vm1570, %v8022, %v8023
        %v8025 = vrot.slane %v8023, 4
        %v8026 = vrot.slane %v7485, 5
        %v8027 = vsel %vm1570, %v8025, %v8026
        %v8028 = vrot.slane %v7886, 5
        %v8029 = vrot.slane %v8028, 4
        %v8030 = vrot.slane %v7468, 5
        %v8031 = vsel %vm1570, %v8029, %v8030
        %v8032 = vrot.slane %v8030, 4
        %v8033 = vrot.slane %v7486, 5
        %v8034 = vsel %vm1570, %v8032, %v8033
        %v8035 = vrot.slane %v7887, 5
        %v8036 = vrot.slane %v8035, 4
        %v8037 = vrot.slane %v7470, 5
        %v8038 = vsel %vm1570, %v8036, %v8037
        %v8039 = vrot.slane %v8037, 4
        %v8040 = vrot.slane %v7487, 5
        %v8041 = vsel %vm1570, %v8039, %v8040
        %v8042 = vrot.slane %v7888, 5
        %v8043 = vrot.slane %v8042, 4
        %v8044 = vrot.slane %v7472, 5
        %v8045 = vsel %vm1570, %v8043, %v8044
        %v8046 = vrot.slane %v8044, 4
        %v8047 = vrot.slane %v7488, 5
        %v8048 = vsel %vm1570, %v8046, %v8047
        %v8065 = vunpack.c.l.b16 %v6224
        %v8066 = vunpack.c.h.b16 %v6224
        %v8067 = vunpack.c.l.b16 %v6225
        %v8068 = vunpack.c.h.b16 %v6225
        %v8069 = vunpack.c.l.b16 %v6226
        %v8070 = vunpack.c.h.b16 %v6226
        %v8071 = vunpack.c.l.b16 %v6227
        %v8072 = vunpack.c.h.b16 %v6227
        %v8073 = vunpack.c.l.b16 %v6228
        %v8074 = vunpack.c.h.b16 %v6228
        %v8075 = vunpack.c.l.b16 %v6229
        %v8076 = vunpack.c.h.b16 %v6229
        %v8077 = vunpack.c.l.b16 %v6230
        %v8078 = vunpack.c.h.b16 %v6230
        %v8079 = vunpack.c.l.b16 %v6231
        %v8080 = vunpack.c.h.b16 %v6231
        %v8081 = vunpack.c.l.b16 %v6232
        %v8082 = vunpack.c.h.b16 %v6232
        %v8083 = vunpack.c.l.b16 %v6233
        %v8084 = vunpack.c.h.b16 %v6233
        %v8085 = vunpack.c.l.b16 %v6234
        %v8086 = vunpack.c.h.b16 %v6234
        %v8087 = vunpack.c.l.b16 %v6235
        %v8088 = vunpack.c.h.b16 %v6235
        %v8089 = vunpack.c.l.b16 %v6236
        %v8090 = vunpack.c.h.b16 %v6236
        %v8091 = vunpack.c.l.b16 %v6237
        %v8092 = vunpack.c.h.b16 %v6237
        %v8093 = vunpack.c.l.b16 %v6238
        %v8094 = vunpack.c.h.b16 %v6238
        %v8095 = vunpack.c.l.b16 %v6239
        %v8096 = vunpack.c.h.b16 %v6239
        %v8097 = vunpack.c.l.b16 %v6240
        %v8098 = vunpack.c.h.b16 %v6240
        %v8099 = vunpack.c.l.b16 %v6241
        %v8100 = vunpack.c.h.b16 %v6241
        %v8101 = vunpack.c.l.b16 %v6242
        %v8102 = vunpack.c.h.b16 %v6242
        %v8103 = vunpack.c.l.b16 %v6243
        %v8104 = vunpack.c.h.b16 %v6243
        %v8105 = vunpack.c.l.b16 %v6244
        %v8106 = vunpack.c.h.b16 %v6244
        %v8107 = vunpack.c.l.b16 %v6245
        %v8108 = vunpack.c.h.b16 %v6245
        %v8109 = vunpack.c.l.b16 %v6246
        %v8110 = vunpack.c.h.b16 %v6246
        %v8111 = vunpack.c.l.b16 %v6247
        %v8112 = vunpack.c.h.b16 %v6247
        %v8113 = vunpack.c.l.b16 %v6248
        %v8114 = vunpack.c.h.b16 %v6248
        %v8115 = vunpack.c.l.b16 %v6249
        %v8116 = vunpack.c.h.b16 %v6249
        %v8117 = vunpack.c.l.b16 %v6250
        %v8118 = vunpack.c.h.b16 %v6250
        %v8119 = vunpack.c.l.b16 %v6251
        %v8120 = vunpack.c.h.b16 %v6251
        %v8121 = vunpack.c.l.b16 %v6252
        %v8122 = vunpack.c.h.b16 %v6252
        %v8123 = vunpack.c.l.b16 %v6253
        %v8124 = vunpack.c.h.b16 %v6253
        %v8125 = vunpack.c.l.b16 %v6254
        %v8126 = vunpack.c.h.b16 %v6254
        %v8127 = vunpack.c.l.b16 %v6255
        %v8128 = vunpack.c.h.b16 %v6255
        %v8129 = vpack.c.b16 %v8067, %v8065
        %v8130 = vpack.c.b16 %v8068, %v8066
        %v8131 = vpack.c.b16 %v8071, %v8069
        %v8132 = vpack.c.b16 %v8072, %v8070
        %v8133 = vpack.c.b16 %v8075, %v8073
        %v8134 = vpack.c.b16 %v8076, %v8074
        %v8135 = vpack.c.b16 %v8079, %v8077
        %v8136 = vpack.c.b16 %v8080, %v8078
        %v8137 = vpack.c.b16 %v8083, %v8081
        %v8138 = vpack.c.b16 %v8084, %v8082
        %v8139 = vpack.c.b16 %v8087, %v8085
        %v8140 = vpack.c.b16 %v8088, %v8086
        %v8141 = vpack.c.b16 %v8091, %v8089
        %v8142 = vpack.c.b16 %v8092, %v8090
        %v8143 = vpack.c.b16 %v8095, %v8093
        %v8144 = vpack.c.b16 %v8096, %v8094
        %v8145 = vpack.c.b16 %v8099, %v8097
        %v8146 = vpack.c.b16 %v8100, %v8098
        %v8147 = vpack.c.b16 %v8103, %v8101
        %v8148 = vpack.c.b16 %v8104, %v8102
        %v8149 = vpack.c.b16 %v8107, %v8105
        %v8150 = vpack.c.b16 %v8108, %v8106
        %v8151 = vpack.c.b16 %v8111, %v8109
        %v8152 = vpack.c.b16 %v8112, %v8110
        %v8153 = vpack.c.b16 %v8115, %v8113
        %v8154 = vpack.c.b16 %v8116, %v8114
        %v8155 = vpack.c.b16 %v8119, %v8117
        %v8156 = vpack.c.b16 %v8120, %v8118
        %v8157 = vpack.c.b16 %v8123, %v8121
        %v8158 = vpack.c.b16 %v8124, %v8122
        %v8159 = vpack.c.b16 %v8127, %v8125
        %v8160 = vpack.c.b16 %v8128, %v8126
        %v8193 = vunpack.c.l.b16 %v6285
        %v8194 = vunpack.c.h.b16 %v6285
        %v8195 = vunpack.c.l.b16 %v6295
        %v8196 = vunpack.c.h.b16 %v6295
        %v8197 = vunpack.c.l.b16 %v6309
        %v8198 = vunpack.c.h.b16 %v6309
        %v8199 = vunpack.c.l.b16 %v6319
        %v8200 = vunpack.c.h.b16 %v6319
        %v8201 = vunpack.c.l.b16 %v6333
        %v8202 = vunpack.c.h.b16 %v6333
        %v8203 = vunpack.c.l.b16 %v6343
        %v8204 = vunpack.c.h.b16 %v6343
        %v8205 = vunpack.c.l.b16 %v6357
        %v8206 = vunpack.c.h.b16 %v6357
        %v8207 = vunpack.c.l.b16 %v6367
        %v8208 = vunpack.c.h.b16 %v6367
        %v8209 = vunpack.c.l.b16 %v6381
        %v8210 = vunpack.c.h.b16 %v6381
        %v8211 = vunpack.c.l.b16 %v6391
        %v8212 = vunpack.c.h.b16 %v6391
        %v8213 = vunpack.c.l.b16 %v6405
        %v8214 = vunpack.c.h.b16 %v6405
        %v8215 = vunpack.c.l.b16 %v6415
        %v8216 = vunpack.c.h.b16 %v6415
        %v8217 = vunpack.c.l.b16 %v6429
        %v8218 = vunpack.c.h.b16 %v6429
        %v8219 = vunpack.c.l.b16 %v6439
        %v8220 = vunpack.c.h.b16 %v6439
        %v8221 = vunpack.c.l.b16 %v6453
        %v8222 = vunpack.c.h.b16 %v6453
        %v8223 = vunpack.c.l.b16 %v6463
        %v8224 = vunpack.c.h.b16 %v6463
        %v8225 = vunpack.c.l.b16 %v6477
        %v8226 = vunpack.c.h.b16 %v6477
        %v8227 = vunpack.c.l.b16 %v6487
        %v8228 = vunpack.c.h.b16 %v6487
        %v8229 = vunpack.c.l.b16 %v6501
        %v8230 = vunpack.c.h.b16 %v6501
        %v8231 = vunpack.c.l.b16 %v6511
        %v8232 = vunpack.c.h.b16 %v6511
        %v8233 = vunpack.c.l.b16 %v6525
        %v8234 = vunpack.c.h.b16 %v6525
        %v8235 = vunpack.c.l.b16 %v6535
        %v8236 = vunpack.c.h.b16 %v6535
        %v8237 = vunpack.c.l.b16 %v6549
        %v8238 = vunpack.c.h.b16 %v6549
        %v8239 = vunpack.c.l.b16 %v6559
        %v8240 = vunpack.c.h.b16 %v6559
        %v8241 = vunpack.c.l.b16 %v6573
        %v8242 = vunpack.c.h.b16 %v6573
        %v8243 = vunpack.c.l.b16 %v6583
        %v8244 = vunpack.c.h.b16 %v6583
        %v8245 = vunpack.c.l.b16 %v6597
        %v8246 = vunpack.c.h.b16 %v6597
        %v8247 = vunpack.c.l.b16 %v6607
        %v8248 = vunpack.c.h.b16 %v6607
        %v8249 = vunpack.c.l.b16 %v6621
        %v8250 = vunpack.c.h.b16 %v6621
        %v8251 = vunpack.c.l.b16 %v6631
        %v8252 = vunpack.c.h.b16 %v6631
        %v8253 = vunpack.c.l.b16 %v6645
        %v8254 = vunpack.c.h.b16 %v6645
        %v8255 = vunpack.c.l.b16 %v6655
        %v8256 = vunpack.c.h.b16 %v6655
        %v8257 = vpack.c.b16 %v8195, %v8193
        %v8258 = vpack.c.b16 %v8196, %v8194
        %v8259 = vpack.c.b16 %v8199, %v8197
        %v8260 = vpack.c.b16 %v8200, %v8198
        %v8261 = vpack.c.b16 %v8203, %v8201
        %v8262 = vpack.c.b16 %v8204, %v8202
        %v8263 = vpack.c.b16 %v8207, %v8205
        %v8264 = vpack.c.b16 %v8208, %v8206
        %v8265 = vpack.c.b16 %v8211, %v8209
        %v8266 = vpack.c.b16 %v8212, %v8210
        %v8267 = vpack.c.b16 %v8215, %v8213
        %v8268 = vpack.c.b16 %v8216, %v8214
        %v8269 = vpack.c.b16 %v8219, %v8217
        %v8270 = vpack.c.b16 %v8220, %v8218
        %v8271 = vpack.c.b16 %v8223, %v8221
        %v8272 = vpack.c.b16 %v8224, %v8222
        %v8273 = vpack.c.b16 %v8227, %v8225
        %v8274 = vpack.c.b16 %v8228, %v8226
        %v8275 = vpack.c.b16 %v8231, %v8229
        %v8276 = vpack.c.b16 %v8232, %v8230
        %v8277 = vpack.c.b16 %v8235, %v8233
        %v8278 = vpack.c.b16 %v8236, %v8234
        %v8279 = vpack.c.b16 %v8239, %v8237
        %v8280 = vpack.c.b16 %v8240, %v8238
        %v8281 = vpack.c.b16 %v8243, %v8241
        %v8282 = vpack.c.b16 %v8244, %v8242
        %v8283 = vpack.c.b16 %v8247, %v8245
        %v8284 = vpack.c.b16 %v8248, %v8246
        %v8285 = vpack.c.b16 %v8251, %v8249
        %v8286 = vpack.c.b16 %v8252, %v8250
        %v8287 = vpack.c.b16 %v8255, %v8253
        %v8288 = vpack.c.b16 %v8256, %v8254
        %v8321 = vunpack.c.l.b16 %v6723
        %v8322 = vunpack.c.h.b16 %v6723
        %v8323 = vunpack.c.l.b16 %v6726
        %v8324 = vunpack.c.h.b16 %v6726
        %v8325 = vunpack.c.l.b16 %v6730
        %v8326 = vunpack.c.h.b16 %v6730
        %v8327 = vunpack.c.l.b16 %v6733
        %v8328 = vunpack.c.h.b16 %v6733
        %v8329 = vunpack.c.l.b16 %v6737
        %v8330 = vunpack.c.h.b16 %v6737
        %v8331 = vunpack.c.l.b16 %v6740
        %v8332 = vunpack.c.h.b16 %v6740
        %v8333 = vunpack.c.l.b16 %v6744
        %v8334 = vunpack.c.h.b16 %v6744
        %v8335 = vunpack.c.l.b16 %v6747
        %v8336 = vunpack.c.h.b16 %v6747
        %v8337 = vunpack.c.l.b16 %v6751
        %v8338 = vunpack.c.h.b16 %v6751
        %v8339 = vunpack.c.l.b16 %v6754
        %v8340 = vunpack.c.h.b16 %v6754
        %v8341 = vunpack.c.l.b16 %v6758
        %v8342 = vunpack.c.h.b16 %v6758
        %v8343 = vunpack.c.l.b16 %v6761
        %v8344 = vunpack.c.h.b16 %v6761
        %v8345 = vunpack.c.l.b16 %v6765
        %v8346 = vunpack.c.h.b16 %v6765
        %v8347 = vunpack.c.l.b16 %v6768
        %v8348 = vunpack.c.h.b16 %v6768
        %v8349 = vunpack.c.l.b16 %v6772
        %v8350 = vunpack.c.h.b16 %v6772
        %v8351 = vunpack.c.l.b16 %v6775
        %v8352 = vunpack.c.h.b16 %v6775
        %v8353 = vunpack.c.l.b16 %v6779
        %v8354 = vunpack.c.h.b16 %v6779
        %v8355 = vunpack.c.l.b16 %v6782
        %v8356 = vunpack.c.h.b16 %v6782
        %v8357 = vunpack.c.l.b16 %v6786
        %v8358 = vunpack.c.h.b16 %v6786
        %v8359 = vunpack.c.l.b16 %v6789
        %v8360 = vunpack.c.h.b16 %v6789
        %v8361 = vunpack.c.l.b16 %v6793
        %v8362 = vunpack.c.h.b16 %v6793
        %v8363 = vunpack.c.l.b16 %v6796
        %v8364 = vunpack.c.h.b16 %v6796
        %v8365 = vunpack.c.l.b16 %v6800
        %v8366 = vunpack.c.h.b16 %v6800
        %v8367 = vunpack.c.l.b16 %v6803
        %v8368 = vunpack.c.h.b16 %v6803
        %v8369 = vunpack.c.l.b16 %v6807
        %v8370 = vunpack.c.h.b16 %v6807
        %v8371 = vunpack.c.l.b16 %v6810
        %v8372 = vunpack.c.h.b16 %v6810
        %v8373 = vunpack.c.l.b16 %v6814
        %v8374 = vunpack.c.h.b16 %v6814
        %v8375 = vunpack.c.l.b16 %v6817
        %v8376 = vunpack.c.h.b16 %v6817
        %v8377 = vunpack.c.l.b16 %v6821
        %v8378 = vunpack.c.h.b16 %v6821
        %v8379 = vunpack.c.l.b16 %v6824
        %v8380 = vunpack.c.h.b16 %v6824
        %v8381 = vunpack.c.l.b16 %v6828
        %v8382 = vunpack.c.h.b16 %v6828
        %v8383 = vunpack.c.l.b16 %v6831
        %v8384 = vunpack.c.h.b16 %v6831
        %v8385 = vpack.c.b16 %v8323, %v8321
        %v8386 = vpack.c.b16 %v8324, %v8322
        %v8387 = vpack.c.b16 %v8327, %v8325
        %v8388 = vpack.c.b16 %v8328, %v8326
        %v8389 = vpack.c.b16 %v8331, %v8329
        %v8390 = vpack.c.b16 %v8332, %v8330
        %v8391 = vpack.c.b16 %v8335, %v8333
        %v8392 = vpack.c.b16 %v8336, %v8334
        %v8393 = vpack.c.b16 %v8339, %v8337
        %v8394 = vpack.c.b16 %v8340, %v8338
        %v8395 = vpack.c.b16 %v8343, %v8341
        %v8396 = vpack.c.b16 %v8344, %v8342
        %v8397 = vpack.c.b16 %v8347, %v8345
        %v8398 = vpack.c.b16 %v8348, %v8346
        %v8399 = vpack.c.b16 %v8351, %v8349
        %v8400 = vpack.c.b16 %v8352, %v8350
        %v8401 = vpack.c.b16 %v8355, %v8353
        %v8402 = vpack.c.b16 %v8356, %v8354
        %v8403 = vpack.c.b16 %v8359, %v8357
        %v8404 = vpack.c.b16 %v8360, %v8358
        %v8405 = vpack.c.b16 %v8363, %v8361
        %v8406 = vpack.c.b16 %v8364, %v8362
        %v8407 = vpack.c.b16 %v8367, %v8365
        %v8408 = vpack.c.b16 %v8368, %v8366
        %v8409 = vpack.c.b16 %v8371, %v8369
        %v8410 = vpack.c.b16 %v8372, %v8370
        %v8411 = vpack.c.b16 %v8375, %v8373
        %v8412 = vpack.c.b16 %v8376, %v8374
        %v8413 = vpack.c.b16 %v8379, %v8377
        %v8414 = vpack.c.b16 %v8380, %v8378
        %v8415 = vpack.c.b16 %v8383, %v8381
        %v8416 = vpack.c.b16 %v8384, %v8382
        %v8465 = vunpack.c.l.b16 %v6832
        %v8466 = vunpack.c.h.b16 %v6832
        %v8467 = vunpack.c.l.b16 %v6833
        %v8468 = vunpack.c.h.b16 %v6833
        %v8469 = vunpack.c.l.b16 %v6834
        %v8470 = vunpack.c.h.b16 %v6834
        %v8471 = vunpack.c.l.b16 %v6835
        %v8472 = vunpack.c.h.b16 %v6835
        %v8473 = vunpack.c.l.b16 %v6836
        %v8474 = vunpack.c.h.b16 %v6836
        %v8475 = vunpack.c.l.b16 %v6837
        %v8476 = vunpack.c.h.b16 %v6837
        %v8477 = vunpack.c.l.b16 %v6838
        %v8478 = vunpack.c.h.b16 %v6838
        %v8479 = vunpack.c.l.b16 %v6839
        %v8480 = vunpack.c.h.b16 %v6839
        %v8481 = vunpack.c.l.b16 %v6840
        %v8482 = vunpack.c.h.b16 %v6840
        %v8483 = vunpack.c.l.b16 %v6841
        %v8484 = vunpack.c.h.b16 %v6841
        %v8485 = vunpack.c.l.b16 %v6842
        %v8486 = vunpack.c.h.b16 %v6842
        %v8487 = vunpack.c.l.b16 %v6843
        %v8488 = vunpack.c.h.b16 %v6843
        %v8489 = vunpack.c.l.b16 %v6844
        %v8490 = vunpack.c.h.b16 %v6844
        %v8491 = vunpack.c.l.b16 %v6845
        %v8492 = vunpack.c.h.b16 %v6845
        %v8493 = vunpack.c.l.b16 %v6846
        %v8494 = vunpack.c.h.b16 %v6846
        %v8495 = vunpack.c.l.b16 %v6847
        %v8496 = vunpack.c.h.b16 %v6847
        %v8497 = vunpack.c.l.b16 %v6848
        %v8498 = vunpack.c.h.b16 %v6848
        %v8499 = vunpack.c.l.b16 %v6849
        %v8500 = vunpack.c.h.b16 %v6849
        %v8501 = vunpack.c.l.b16 %v6850
        %v8502 = vunpack.c.h.b16 %v6850
        %v8503 = vunpack.c.l.b16 %v6851
        %v8504 = vunpack.c.h.b16 %v6851
        %v8505 = vunpack.c.l.b16 %v6852
        %v8506 = vunpack.c.h.b16 %v6852
        %v8507 = vunpack.c.l.b16 %v6853
        %v8508 = vunpack.c.h.b16 %v6853
        %v8509 = vunpack.c.l.b16 %v6854
        %v8510 = vunpack.c.h.b16 %v6854
        %v8511 = vunpack.c.l.b16 %v6855
        %v8512 = vunpack.c.h.b16 %v6855
        %v8513 = vunpack.c.l.b16 %v6856
        %v8514 = vunpack.c.h.b16 %v6856
        %v8515 = vunpack.c.l.b16 %v6857
        %v8516 = vunpack.c.h.b16 %v6857
        %v8517 = vunpack.c.l.b16 %v6858
        %v8518 = vunpack.c.h.b16 %v6858
        %v8519 = vunpack.c.l.b16 %v6859
        %v8520 = vunpack.c.h.b16 %v6859
        %v8521 = vunpack.c.l.b16 %v6860
        %v8522 = vunpack.c.h.b16 %v6860
        %v8523 = vunpack.c.l.b16 %v6861
        %v8524 = vunpack.c.h.b16 %v6861
        %v8525 = vunpack.c.l.b16 %v6862
        %v8526 = vunpack.c.h.b16 %v6862
        %v8527 = vunpack.c.l.b16 %v6863
        %v8528 = vunpack.c.h.b16 %v6863
        %v8529 = vpack.c.b16 %v8467, %v8465
        %v8530 = vpack.c.b16 %v8468, %v8466
        %v8531 = vpack.c.b16 %v8471, %v8469
        %v8532 = vpack.c.b16 %v8472, %v8470
        %v8533 = vpack.c.b16 %v8475, %v8473
        %v8534 = vpack.c.b16 %v8476, %v8474
        %v8535 = vpack.c.b16 %v8479, %v8477
        %v8536 = vpack.c.b16 %v8480, %v8478
        %v8537 = vpack.c.b16 %v8483, %v8481
        %v8538 = vpack.c.b16 %v8484, %v8482
        %v8539 = vpack.c.b16 %v8487, %v8485
        %v8540 = vpack.c.b16 %v8488, %v8486
        %v8541 = vpack.c.b16 %v8491, %v8489
        %v8542 = vpack.c.b16 %v8492, %v8490
        %v8543 = vpack.c.b16 %v8495, %v8493
        %v8544 = vpack.c.b16 %v8496, %v8494
        %v8545 = vpack.c.b16 %v8499, %v8497
        %v8546 = vpack.c.b16 %v8500, %v8498
        %v8547 = vpack.c.b16 %v8503, %v8501
        %v8548 = vpack.c.b16 %v8504, %v8502
        %v8549 = vpack.c.b16 %v8507, %v8505
        %v8550 = vpack.c.b16 %v8508, %v8506
        %v8551 = vpack.c.b16 %v8511, %v8509
        %v8552 = vpack.c.b16 %v8512, %v8510
        %v8553 = vpack.c.b16 %v8515, %v8513
        %v8554 = vpack.c.b16 %v8516, %v8514
        %v8555 = vpack.c.b16 %v8519, %v8517
        %v8556 = vpack.c.b16 %v8520, %v8518
        %v8557 = vpack.c.b16 %v8523, %v8521
        %v8558 = vpack.c.b16 %v8524, %v8522
        %v8559 = vpack.c.b16 %v8527, %v8525
        %v8560 = vpack.c.b16 %v8528, %v8526
        %v8593 = vunpack.c.l.b16 %v6893
        %v8594 = vunpack.c.h.b16 %v6893
        %v8595 = vunpack.c.l.b16 %v6903
        %v8596 = vunpack.c.h.b16 %v6903
        %v8597 = vunpack.c.l.b16 %v6917
        %v8598 = vunpack.c.h.b16 %v6917
        %v8599 = vunpack.c.l.b16 %v6927
        %v8600 = vunpack.c.h.b16 %v6927
        %v8601 = vunpack.c.l.b16 %v6941
        %v8602 = vunpack.c.h.b16 %v6941
        %v8603 = vunpack.c.l.b16 %v6951
        %v8604 = vunpack.c.h.b16 %v6951
        %v8605 = vunpack.c.l.b16 %v6965
        %v8606 = vunpack.c.h.b16 %v6965
        %v8607 = vunpack.c.l.b16 %v6975
        %v8608 = vunpack.c.h.b16 %v6975
        %v8609 = vunpack.c.l.b16 %v6989
        %v8610 = vunpack.c.h.b16 %v6989
        %v8611 = vunpack.c.l.b16 %v6999
        %v8612 = vunpack.c.h.b16 %v6999
        %v8613 = vunpack.c.l.b16 %v7013
        %v8614 = vunpack.c.h.b16 %v7013
        %v8615 = vunpack.c.l.b16 %v7023
        %v8616 = vunpack.c.h.b16 %v7023
        %v8617 = vunpack.c.l.b16 %v7037
        %v8618 = vunpack.c.h.b16 %v7037
        %v8619 = vunpack.c.l.b16 %v7047
        %v8620 = vunpack.c.h.b16 %v7047
        %v8621 = vunpack.c.l.b16 %v7061
        %v8622 = vunpack.c.h.b16 %v7061
        %v8623 = vunpack.c.l.b16 %v7071
        %v8624 = vunpack.c.h.b16 %v7071
        %v8625 = vunpack.c.l.b16 %v7085
        %v8626 = vunpack.c.h.b16 %v7085
        %v8627 = vunpack.c.l.b16 %v7095
        %v8628 = vunpack.c.h.b16 %v7095
        %v8629 = vunpack.c.l.b16 %v7109
        %v8630 = vunpack.c.h.b16 %v7109
        %v8631 = vunpack.c.l.b16 %v7119
        %v8632 = vunpack.c.h.b16 %v7119
        %v8633 = vunpack.c.l.b16 %v7133
        %v8634 = vunpack.c.h.b16 %v7133
        %v8635 = vunpack.c.l.b16 %v7143
        %v8636 = vunpack.c.h.b16 %v7143
        %v8637 = vunpack.c.l.b16 %v7157
        %v8638 = vunpack.c.h.b16 %v7157
        %v8639 = vunpack.c.l.b16 %v7167
        %v8640 = vunpack.c.h.b16 %v7167
        %v8641 = vunpack.c.l.b16 %v7181
        %v8642 = vunpack.c.h.b16 %v7181
        %v8643 = vunpack.c.l.b16 %v7191
        %v8644 = vunpack.c.h.b16 %v7191
        %v8645 = vunpack.c.l.b16 %v7205
        %v8646 = vunpack.c.h.b16 %v7205
        %v8647 = vunpack.c.l.b16 %v7215
        %v8648 = vunpack.c.h.b16 %v7215
        %v8649 = vunpack.c.l.b16 %v7229
        %v8650 = vunpack.c.h.b16 %v7229
        %v8651 = vunpack.c.l.b16 %v7239
        %v8652 = vunpack.c.h.b16 %v7239
        %v8653 = vunpack.c.l.b16 %v7253
        %v8654 = vunpack.c.h.b16 %v7253
        %v8655 = vunpack.c.l.b16 %v7263
        %v8656 = vunpack.c.h.b16 %v7263
        %v8657 = vpack.c.b16 %v8595, %v8593
        %v8658 = vpack.c.b16 %v8596, %v8594
        %v8659 = vpack.c.b16 %v8599, %v8597
        %v8660 = vpack.c.b16 %v8600, %v8598
        %v8661 = vpack.c.b16 %v8603, %v8601
        %v8662 = vpack.c.b16 %v8604, %v8602
        %v8663 = vpack.c.b16 %v8607, %v8605
        %v8664 = vpack.c.b16 %v8608, %v8606
        %v8665 = vpack.c.b16 %v8611, %v8609
        %v8666 = vpack.c.b16 %v8612, %v8610
        %v8667 = vpack.c.b16 %v8615, %v8613
        %v8668 = vpack.c.b16 %v8616, %v8614
        %v8669 = vpack.c.b16 %v8619, %v8617
        %v8670 = vpack.c.b16 %v8620, %v8618
        %v8671 = vpack.c.b16 %v8623, %v8621
        %v8672 = vpack.c.b16 %v8624, %v8622
        %v8673 = vpack.c.b16 %v8627, %v8625
        %v8674 = vpack.c.b16 %v8628, %v8626
        %v8675 = vpack.c.b16 %v8631, %v8629
        %v8676 = vpack.c.b16 %v8632, %v8630
        %v8677 = vpack.c.b16 %v8635, %v8633
        %v8678 = vpack.c.b16 %v8636, %v8634
        %v8679 = vpack.c.b16 %v8639, %v8637
        %v8680 = vpack.c.b16 %v8640, %v8638
        %v8681 = vpack.c.b16 %v8643, %v8641
        %v8682 = vpack.c.b16 %v8644, %v8642
        %v8683 = vpack.c.b16 %v8647, %v8645
        %v8684 = vpack.c.b16 %v8648, %v8646
        %v8685 = vpack.c.b16 %v8651, %v8649
        %v8686 = vpack.c.b16 %v8652, %v8650
        %v8687 = vpack.c.b16 %v8655, %v8653
        %v8688 = vpack.c.b16 %v8656, %v8654
        %v8721 = vunpack.c.l.b16 %v7331
        %v8722 = vunpack.c.h.b16 %v7331
        %v8723 = vunpack.c.l.b16 %v7334
        %v8724 = vunpack.c.h.b16 %v7334
        %v8725 = vunpack.c.l.b16 %v7338
        %v8726 = vunpack.c.h.b16 %v7338
        %v8727 = vunpack.c.l.b16 %v7341
        %v8728 = vunpack.c.h.b16 %v7341
        %v8729 = vunpack.c.l.b16 %v7345
        %v8730 = vunpack.c.h.b16 %v7345
        %v8731 = vunpack.c.l.b16 %v7348
        %v8732 = vunpack.c.h.b16 %v7348
        %v8733 = vunpack.c.l.b16 %v7352
        %v8734 = vunpack.c.h.b16 %v7352
        %v8735 = vunpack.c.l.b16 %v7355
        %v8736 = vunpack.c.h.b16 %v7355
        %v8737 = vunpack.c.l.b16 %v7359
        %v8738 = vunpack.c.h.b16 %v7359
        %v8739 = vunpack.c.l.b16 %v7362
        %v8740 = vunpack.c.h.b16 %v7362
        %v8741 = vunpack.c.l.b16 %v7366
        %v8742 = vunpack.c.h.b16 %v7366
        %v8743 = vunpack.c.l.b16 %v7369
        %v8744 = vunpack.c.h.b16 %v7369
        %v8745 = vunpack.c.l.b16 %v7373
        %v8746 = vunpack.c.h.b16 %v7373
        %v8747 = vunpack.c.l.b16 %v7376
        %v8748 = vunpack.c.h.b16 %v7376
        %v8749 = vunpack.c.l.b16 %v7380
        %v8750 = vunpack.c.h.b16 %v7380
        %v8751 = vunpack.c.l.b16 %v7383
        %v8752 = vunpack.c.h.b16 %v7383
        %v8753 = vunpack.c.l.b16 %v7387
        %v8754 = vunpack.c.h.b16 %v7387
        %v8755 = vunpack.c.l.b16 %v7390
        %v8756 = vunpack.c.h.b16 %v7390
        %v8757 = vunpack.c.l.b16 %v7394
        %v8758 = vunpack.c.h.b16 %v7394
        %v8759 = vunpack.c.l.b16 %v7397
        %v8760 = vunpack.c.h.b16 %v7397
        %v8761 = vunpack.c.l.b16 %v7401
        %v8762 = vunpack.c.h.b16 %v7401
        %v8763 = vunpack.c.l.b16 %v7404
        %v8764 = vunpack.c.h.b16 %v7404
        %v8765 = vunpack.c.l.b16 %v7408
        %v8766 = vunpack.c.h.b16 %v7408
        %v8767 = vunpack.c.l.b16 %v7411
        %v8768 = vunpack.c.h.b16 %v7411
        %v8769 = vunpack.c.l.b16 %v7415
        %v8770 = vunpack.c.h.b16 %v7415
        %v8771 = vunpack.c.l.b16 %v7418
        %v8772 = vunpack.c.h.b16 %v7418
        %v8773 = vunpack.c.l.b16 %v7422
        %v8774 = vunpack.c.h.b16 %v7422
        %v8775 = vunpack.c.l.b16 %v7425
        %v8776 = vunpack.c.h.b16 %v7425
        %v8777 = vunpack.c.l.b16 %v7429
        %v8778 = vunpack.c.h.b16 %v7429
        %v8779 = vunpack.c.l.b16 %v7432
        %v8780 = vunpack.c.h.b16 %v7432
        %v8781 = vunpack.c.l.b16 %v7436
        %v8782 = vunpack.c.h.b16 %v7436
        %v8783 = vunpack.c.l.b16 %v7439
        %v8784 = vunpack.c.h.b16 %v7439
        %v8785 = vpack.c.b16 %v8723, %v8721
        %v8786 = vpack.c.b16 %v8724, %v8722
        %v8787 = vpack.c.b16 %v8727, %v8725
        %v8788 = vpack.c.b16 %v8728, %v8726
        %v8789 = vpack.c.b16 %v8731, %v8729
        %v8790 = vpack.c.b16 %v8732, %v8730
        %v8791 = vpack.c.b16 %v8735, %v8733
        %v8792 = vpack.c.b16 %v8736, %v8734
        %v8793 = vpack.c.b16 %v8739, %v8737
        %v8794 = vpack.c.b16 %v8740, %v8738
        %v8795 = vpack.c.b16 %v8743, %v8741
        %v8796 = vpack.c.b16 %v8744, %v8742
        %v8797 = vpack.c.b16 %v8747, %v8745
        %v8798 = vpack.c.b16 %v8748, %v8746
        %v8799 = vpack.c.b16 %v8751, %v8749
        %v8800 = vpack.c.b16 %v8752, %v8750
        %v8801 = vpack.c.b16 %v8755, %v8753
        %v8802 = vpack.c.b16 %v8756, %v8754
        %v8803 = vpack.c.b16 %v8759, %v8757
        %v8804 = vpack.c.b16 %v8760, %v8758
        %v8805 = vpack.c.b16 %v8763, %v8761
        %v8806 = vpack.c.b16 %v8764, %v8762
        %v8807 = vpack.c.b16 %v8767, %v8765
        %v8808 = vpack.c.b16 %v8768, %v8766
        %v8809 = vpack.c.b16 %v8771, %v8769
        %v8810 = vpack.c.b16 %v8772, %v8770
        %v8811 = vpack.c.b16 %v8775, %v8773
        %v8812 = vpack.c.b16 %v8776, %v8774
        %v8813 = vpack.c.b16 %v8779, %v8777
        %v8814 = vpack.c.b16 %v8780, %v8778
        %v8815 = vpack.c.b16 %v8783, %v8781
        %v8816 = vpack.c.b16 %v8784, %v8782
        %v8865 = vunpack.c.l.b16 %v7441
        %v8866 = vunpack.c.h.b16 %v7441
        %v8867 = vunpack.c.l.b16 %v7442
        %v8868 = vunpack.c.h.b16 %v7442
        %v8869 = vunpack.c.l.b16 %v7443
        %v8870 = vunpack.c.h.b16 %v7443
        %v8871 = vunpack.c.l.b16 %v7444
        %v8872 = vunpack.c.h.b16 %v7444
        %v8873 = vunpack.c.l.b16 %v7445
        %v8874 = vunpack.c.h.b16 %v7445
        %v8875 = vunpack.c.l.b16 %v7446
        %v8876 = vunpack.c.h.b16 %v7446
        %v8877 = vunpack.c.l.b16 %v7447
        %v8878 = vunpack.c.h.b16 %v7447
        %v8879 = vunpack.c.l.b16 %v7448
        %v8880 = vunpack.c.h.b16 %v7448
        %v8881 = vunpack.c.l.b16 %v7449
        %v8882 = vunpack.c.h.b16 %v7449
        %v8883 = vunpack.c.l.b16 %v7450
        %v8884 = vunpack.c.h.b16 %v7450
        %v8885 = vunpack.c.l.b16 %v7451
        %v8886 = vunpack.c.h.b16 %v7451
        %v8887 = vunpack.c.l.b16 %v7452
        %v8888 = vunpack.c.h.b16 %v7452
        %v8889 = vunpack.c.l.b16 %v7453
        %v8890 = vunpack.c.h.b16 %v7453
        %v8891 = vunpack.c.l.b16 %v7454
        %v8892 = vunpack.c.h.b16 %v7454
        %v8893 = vunpack.c.l.b16 %v7455
        %v8894 = vunpack.c.h.b16 %v7455
        %v8895 = vunpack.c.l.b16 %v7456
        %v8896 = vunpack.c.h.b16 %v7456
        %v8897 = vunpack.c.l.b16 %v7457
        %v8898 = vunpack.c.h.b16 %v7457
        %v8899 = vunpack.c.l.b16 %v7458
        %v8900 = vunpack.c.h.b16 %v7458
        %v8901 = vunpack.c.l.b16 %v7459
        %v8902 = vunpack.c.h.b16 %v7459
        %v8903 = vunpack.c.l.b16 %v7460
        %v8904 = vunpack.c.h.b16 %v7460
        %v8905 = vunpack.c.l.b16 %v7461
        %v8906 = vunpack.c.h.b16 %v7461
        %v8907 = vunpack.c.l.b16 %v7462
        %v8908 = vunpack.c.h.b16 %v7462
        %v8909 = vunpack.c.l.b16 %v7463
        %v8910 = vunpack.c.h.b16 %v7463
        %v8911 = vunpack.c.l.b16 %v7464
        %v8912 = vunpack.c.h.b16 %v7464
        %v8913 = vunpack.c.l.b16 %v7465
        %v8914 = vunpack.c.h.b16 %v7465
        %v8915 = vunpack.c.l.b16 %v7466
        %v8916 = vunpack.c.h.b16 %v7466
        %v8917 = vunpack.c.l.b16 %v7467
        %v8918 = vunpack.c.h.b16 %v7467
        %v8919 = vunpack.c.l.b16 %v7468
        %v8920 = vunpack.c.h.b16 %v7468
        %v8921 = vunpack.c.l.b16 %v7469
        %v8922 = vunpack.c.h.b16 %v7469
        %v8923 = vunpack.c.l.b16 %v7470
        %v8924 = vunpack.c.h.b16 %v7470
        %v8925 = vunpack.c.l.b16 %v7471
        %v8926 = vunpack.c.h.b16 %v7471
        %v8927 = vunpack.c.l.b16 %v7472
        %v8928 = vunpack.c.h.b16 %v7472
        %v8929 = vpack.c.b16 %v8867, %v8865
        %v8930 = vpack.c.b16 %v8868, %v8866
        %v8931 = vpack.c.b16 %v8871, %v8869
        %v8932 = vpack.c.b16 %v8872, %v8870
        %v8933 = vpack.c.b16 %v8875, %v8873
        %v8934 = vpack.c.b16 %v8876, %v8874
        %v8935 = vpack.c.b16 %v8879, %v8877
        %v8936 = vpack.c.b16 %v8880, %v8878
        %v8937 = vpack.c.b16 %v8883, %v8881
        %v8938 = vpack.c.b16 %v8884, %v8882
        %v8939 = vpack.c.b16 %v8887, %v8885
        %v8940 = vpack.c.b16 %v8888, %v8886
        %v8941 = vpack.c.b16 %v8891, %v8889
        %v8942 = vpack.c.b16 %v8892, %v8890
        %v8943 = vpack.c.b16 %v8895, %v8893
        %v8944 = vpack.c.b16 %v8896, %v8894
        %v8945 = vpack.c.b16 %v8899, %v8897
        %v8946 = vpack.c.b16 %v8900, %v8898
        %v8947 = vpack.c.b16 %v8903, %v8901
        %v8948 = vpack.c.b16 %v8904, %v8902
        %v8949 = vpack.c.b16 %v8907, %v8905
        %v8950 = vpack.c.b16 %v8908, %v8906
        %v8951 = vpack.c.b16 %v8911, %v8909
        %v8952 = vpack.c.b16 %v8912, %v8910
        %v8953 = vpack.c.b16 %v8915, %v8913
        %v8954 = vpack.c.b16 %v8916, %v8914
        %v8955 = vpack.c.b16 %v8919, %v8917
        %v8956 = vpack.c.b16 %v8920, %v8918
        %v8957 = vpack.c.b16 %v8923, %v8921
        %v8958 = vpack.c.b16 %v8924, %v8922
        %v8959 = vpack.c.b16 %v8927, %v8925
        %v8960 = vpack.c.b16 %v8928, %v8926
        %v8993 = vunpack.c.l.b16 %v7502
        %v8994 = vunpack.c.h.b16 %v7502
        %v8995 = vunpack.c.l.b16 %v7512
        %v8996 = vunpack.c.h.b16 %v7512
        %v8997 = vunpack.c.l.b16 %v7526
        %v8998 = vunpack.c.h.b16 %v7526
        %v8999 = vunpack.c.l.b16 %v7536
        %v9000 = vunpack.c.h.b16 %v7536
        %v9001 = vunpack.c.l.b16 %v7550
        %v9002 = vunpack.c.h.b16 %v7550
        %v9003 = vunpack.c.l.b16 %v7560
        %v9004 = vunpack.c.h.b16 %v7560
        %v9005 = vunpack.c.l.b16 %v7574
        %v9006 = vunpack.c.h.b16 %v7574
        %v9007 = vunpack.c.l.b16 %v7584
        %v9008 = vunpack.c.h.b16 %v7584
        %v9009 = vunpack.c.l.b16 %v7598
        %v9010 = vunpack.c.h.b16 %v7598
        %v9011 = vunpack.c.l.b16 %v7608
        %v9012 = vunpack.c.h.b16 %v7608
        %v9013 = vunpack.c.l.b16 %v7622
        %v9014 = vunpack.c.h.b16 %v7622
        %v9015 = vunpack.c.l.b16 %v7632
        %v9016 = vunpack.c.h.b16 %v7632
        %v9017 = vunpack.c.l.b16 %v7646
        %v9018 = vunpack.c.h.b16 %v7646
        %v9019 = vunpack.c.l.b16 %v7656
        %v9020 = vunpack.c.h.b16 %v7656
        %v9021 = vunpack.c.l.b16 %v7670
        %v9022 = vunpack.c.h.b16 %v7670
        %v9023 = vunpack.c.l.b16 %v7680
        %v9024 = vunpack.c.h.b16 %v7680
        %v9025 = vunpack.c.l.b16 %v7694
        %v9026 = vunpack.c.h.b16 %v7694
        %v9027 = vunpack.c.l.b16 %v7704
        %v9028 = vunpack.c.h.b16 %v7704
        %v9029 = vunpack.c.l.b16 %v7718
        %v9030 = vunpack.c.h.b16 %v7718
        %v9031 = vunpack.c.l.b16 %v7728
        %v9032 = vunpack.c.h.b16 %v7728
        %v9033 = vunpack.c.l.b16 %v7742
        %v9034 = vunpack.c.h.b16 %v7742
        %v9035 = vunpack.c.l.b16 %v7752
        %v9036 = vunpack.c.h.b16 %v7752
        %v9037 = vunpack.c.l.b16 %v7766
        %v9038 = vunpack.c.h.b16 %v7766
        %v9039 = vunpack.c.l.b16 %v7776
        %v9040 = vunpack.c.h.b16 %v7776
        %v9041 = vunpack.c.l.b16 %v7790
        %v9042 = vunpack.c.h.b16 %v7790
        %v9043 = vunpack.c.l.b16 %v7800
        %v9044 = vunpack.c.h.b16 %v7800
        %v9045 = vunpack.c.l.b16 %v7814
        %v9046 = vunpack.c.h.b16 %v7814
        %v9047 = vunpack.c.l.b16 %v7824
        %v9048 = vunpack.c.h.b16 %v7824
        %v9049 = vunpack.c.l.b16 %v7838
        %v9050 = vunpack.c.h.b16 %v7838
        %v9051 = vunpack.c.l.b16 %v7848
        %v9052 = vunpack.c.h.b16 %v7848
        %v9053 = vunpack.c.l.b16 %v7862
        %v9054 = vunpack.c.h.b16 %v7862
        %v9055 = vunpack.c.l.b16 %v7872
        %v9056 = vunpack.c.h.b16 %v7872
        %v9057 = vpack.c.b16 %v8995, %v8993
        %v9058 = vpack.c.b16 %v8996, %v8994
        %v9059 = vpack.c.b16 %v8999, %v8997
        %v9060 = vpack.c.b16 %v9000, %v8998
        %v9061 = vpack.c.b16 %v9003, %v9001
        %v9062 = vpack.c.b16 %v9004, %v9002
        %v9063 = vpack.c.b16 %v9007, %v9005
        %v9064 = vpack.c.b16 %v9008, %v9006
        %v9065 = vpack.c.b16 %v9011, %v9009
        %v9066 = vpack.c.b16 %v9012, %v9010
        %v9067 = vpack.c.b16 %v9015, %v9013
        %v9068 = vpack.c.b16 %v9016, %v9014
        %v9069 = vpack.c.b16 %v9019, %v9017
        %v9070 = vpack.c.b16 %v9020, %v9018
        %v9071 = vpack.c.b16 %v9023, %v9021
        %v9072 = vpack.c.b16 %v9024, %v9022
        %v9073 = vpack.c.b16 %v9027, %v9025
        %v9074 = vpack.c.b16 %v9028, %v9026
        %v9075 = vpack.c.b16 %v9031, %v9029
        %v9076 = vpack.c.b16 %v9032, %v9030
        %v9077 = vpack.c.b16 %v9035, %v9033
        %v9078 = vpack.c.b16 %v9036, %v9034
        %v9079 = vpack.c.b16 %v9039, %v9037
        %v9080 = vpack.c.b16 %v9040, %v9038
        %v9081 = vpack.c.b16 %v9043, %v9041
        %v9082 = vpack.c.b16 %v9044, %v9042
        %v9083 = vpack.c.b16 %v9047, %v9045
        %v9084 = vpack.c.b16 %v9048, %v9046
        %v9085 = vpack.c.b16 %v9051, %v9049
        %v9086 = vpack.c.b16 %v9052, %v9050
        %v9087 = vpack.c.b16 %v9055, %v9053
        %v9088 = vpack.c.b16 %v9056, %v9054
        %v9121 = vunpack.c.l.b16 %v7940
        %v9122 = vunpack.c.h.b16 %v7940
        %v9123 = vunpack.c.l.b16 %v7943
        %v9124 = vunpack.c.h.b16 %v7943
        %v9125 = vunpack.c.l.b16 %v7947
        %v9126 = vunpack.c.h.b16 %v7947
        %v9127 = vunpack.c.l.b16 %v7950
        %v9128 = vunpack.c.h.b16 %v7950
        %v9129 = vunpack.c.l.b16 %v7954
        %v9130 = vunpack.c.h.b16 %v7954
        %v9131 = vunpack.c.l.b16 %v7957
        %v9132 = vunpack.c.h.b16 %v7957
        %v9133 = vunpack.c.l.b16 %v7961
        %v9134 = vunpack.c.h.b16 %v7961
        %v9135 = vunpack.c.l.b16 %v7964
        %v9136 = vunpack.c.h.b16 %v7964
        %v9137 = vunpack.c.l.b16 %v7968
        %v9138 = vunpack.c.h.b16 %v7968
        %v9139 = vunpack.c.l.b16 %v7971
        %v9140 = vunpack.c.h.b16 %v7971
        %v9141 = vunpack.c.l.b16 %v7975
        %v9142 = vunpack.c.h.b16 %v7975
        %v9143 = vunpack.c.l.b16 %v7978
        %v9144 = vunpack.c.h.b16 %v7978
        %v9145 = vunpack.c.l.b16 %v7982
        %v9146 = vunpack.c.h.b16 %v7982
        %v9147 = vunpack.c.l.b16 %v7985
        %v9148 = vunpack.c.h.b16 %v7985
        %v9149 = vunpack.c.l.b16 %v7989
        %v9150 = vunpack.c.h.b16 %v7989
        %v9151 = vunpack.c.l.b16 %v7992
        %v9152 = vunpack.c.h.b16 %v7992
        %v9153 = vunpack.c.l.b16 %v7996
        %v9154 = vunpack.c.h.b16 %v7996
        %v9155 = vunpack.c.l.b16 %v7999
        %v9156 = vunpack.c.h.b16 %v7999
        %v9157 = vunpack.c.l.b16 %v8003
        %v9158 = vunpack.c.h.b16 %v8003
        %v9159 = vunpack.c.l.b16 %v8006
        %v9160 = vunpack.c.h.b16 %v8006
        %v9161 = vunpack.c.l.b16 %v8010
        %v9162 = vunpack.c.h.b16 %v8010
        %v9163 = vunpack.c.l.b16 %v8013
        %v9164 = vunpack.c.h.b16 %v8013
        %v9165 = vunpack.c.l.b16 %v8017
        %v9166 = vunpack.c.h.b16 %v8017
        %v9167 = vunpack.c.l.b16 %v8020
        %v9168 = vunpack.c.h.b16 %v8020
        %v9169 = vunpack.c.l.b16 %v8024
        %v9170 = vunpack.c.h.b16 %v8024
        %v9171 = vunpack.c.l.b16 %v8027
        %v9172 = vunpack.c.h.b16 %v8027
        %v9173 = vunpack.c.l.b16 %v8031
        %v9174 = vunpack.c.h.b16 %v8031
        %v9175 = vunpack.c.l.b16 %v8034
        %v9176 = vunpack.c.h.b16 %v8034
        %v9177 = vunpack.c.l.b16 %v8038
        %v9178 = vunpack.c.h.b16 %v8038
        %v9179 = vunpack.c.l.b16 %v8041
        %v9180 = vunpack.c.h.b16 %v8041
        %v9181 = vunpack.c.l.b16 %v8045
        %v9182 = vunpack.c.h.b16 %v8045
        %v9183 = vunpack.c.l.b16 %v8048
        %v9184 = vunpack.c.h.b16 %v8048
        %v9185 = vpack.c.b16 %v9123, %v9121
        %v9186 = vpack.c.b16 %v9124, %v9122
        %v9187 = vpack.c.b16 %v9127, %v9125
        %v9188 = vpack.c.b16 %v9128, %v9126
        %v9189 = vpack.c.b16 %v9131, %v9129
        %v9190 = vpack.c.b16 %v9132, %v9130
        %v9191 = vpack.c.b16 %v9135, %v9133
        %v9192 = vpack.c.b16 %v9136, %v9134
        %v9193 = vpack.c.b16 %v9139, %v9137
        %v9194 = vpack.c.b16 %v9140, %v9138
        %v9195 = vpack.c.b16 %v9143, %v9141
        %v9196 = vpack.c.b16 %v9144, %v9142
        %v9197 = vpack.c.b16 %v9147, %v9145
        %v9198 = vpack.c.b16 %v9148, %v9146
        %v9199 = vpack.c.b16 %v9151, %v9149
        %v9200 = vpack.c.b16 %v9152, %v9150
        %v9201 = vpack.c.b16 %v9155, %v9153
        %v9202 = vpack.c.b16 %v9156, %v9154
        %v9203 = vpack.c.b16 %v9159, %v9157
        %v9204 = vpack.c.b16 %v9160, %v9158
        %v9205 = vpack.c.b16 %v9163, %v9161
        %v9206 = vpack.c.b16 %v9164, %v9162
        %v9207 = vpack.c.b16 %v9167, %v9165
        %v9208 = vpack.c.b16 %v9168, %v9166
        %v9209 = vpack.c.b16 %v9171, %v9169
        %v9210 = vpack.c.b16 %v9172, %v9170
        %v9211 = vpack.c.b16 %v9175, %v9173
        %v9212 = vpack.c.b16 %v9176, %v9174
        %v9213 = vpack.c.b16 %v9179, %v9177
        %v9214 = vpack.c.b16 %v9180, %v9178
        %v9215 = vpack.c.b16 %v9183, %v9181
        %v9216 = vpack.c.b16 %v9184, %v9182
        %v9249 = vld [vmem:[#allocation11] sm:$0xff]
        %v9250 = vld [vmem:[#allocation11 + $0x8] sm:$0xff]
        %v9251 = vld [vmem:[#allocation11 + $0x10] sm:$0xff]
        %v9252 = vld [vmem:[#allocation11 + $0x18] sm:$0xff]
        %v9253 = vld [vmem:[#allocation11 + $0x20] sm:$0xff]
        %v9254 = vld [vmem:[#allocation11 + $0x28] sm:$0xff]
        %v9255 = vld [vmem:[#allocation11 + $0x30] sm:$0xff]
        %v9256 = vld [vmem:[#allocation11 + $0x38] sm:$0xff]
        %v9257 = vld [vmem:[#allocation11 + $0x40] sm:$0xff]
        %v9258 = vld [vmem:[#allocation11 + $0x48] sm:$0xff]
        %v9259 = vld [vmem:[#allocation11 + $0x50] sm:$0xff]
        %v9260 = vld [vmem:[#allocation11 + $0x58] sm:$0xff]
        %v9261 = vld [vmem:[#allocation11 + $0x60] sm:$0xff]
        %v9262 = vld [vmem:[#allocation11 + $0x68] sm:$0xff]
        %v9263 = vld [vmem:[#allocation11 + $0x70] sm:$0xff]
        %v9264 = vld [vmem:[#allocation11 + $0x78] sm:$0xff]
        %v9265 = vld [vmem:[#allocation11 + $0x80] sm:$0xff]
        %v9266 = vld [vmem:[#allocation11 + $0x88] sm:$0xff]
        %v9267 = vld [vmem:[#allocation11 + $0x90] sm:$0xff]
        %v9268 = vld [vmem:[#allocation11 + $0x98] sm:$0xff]
        %v9269 = vld [vmem:[#allocation11 + $0xa0] sm:$0xff]
        %v9270 = vld [vmem:[#allocation11 + $0xa8] sm:$0xff]
        %v9271 = vld [vmem:[#allocation11 + $0xb0] sm:$0xff]
        %v9272 = vld [vmem:[#allocation11 + $0xb8] sm:$0xff]
        %v9273 = vld [vmem:[#allocation11 + $0xc0] sm:$0xff]
        %v9274 = vld [vmem:[#allocation11 + $0xc8] sm:$0xff]
        %v9275 = vld [vmem:[#allocation11 + $0xd0] sm:$0xff]
        %v9276 = vld [vmem:[#allocation11 + $0xd8] sm:$0xff]
        %v9277 = vld [vmem:[#allocation11 + $0xe0] sm:$0xff]
        %v9278 = vld [vmem:[#allocation11 + $0xe8] sm:$0xff]
        %v9279 = vld [vmem:[#allocation11 + $0xf0] sm:$0xff]
        %v9280 = vld [vmem:[#allocation11 + $0xf8] sm:$0xff]
        %v9281 = vld [vmem:[#allocation11 + $0x100] sm:$0xff]
        %v9282 = vld [vmem:[#allocation11 + $0x108] sm:$0xff]
        %v9283 = vld [vmem:[#allocation11 + $0x110] sm:$0xff]
        %v9284 = vld [vmem:[#allocation11 + $0x118] sm:$0xff]
        %v9285 = vld [vmem:[#allocation11 + $0x120] sm:$0xff]
        %v9286 = vld [vmem:[#allocation11 + $0x128] sm:$0xff]
        %v9287 = vld [vmem:[#allocation11 + $0x130] sm:$0xff]
        %v9288 = vld [vmem:[#allocation11 + $0x138] sm:$0xff]
        %v9289 = vld [vmem:[#allocation11 + $0x140] sm:$0xff]
        %v9290 = vld [vmem:[#allocation11 + $0x148] sm:$0xff]
        %v9291 = vld [vmem:[#allocation11 + $0x150] sm:$0xff]
        %v9292 = vld [vmem:[#allocation11 + $0x158] sm:$0xff]
        %v9293 = vld [vmem:[#allocation11 + $0x160] sm:$0xff]
        %v9294 = vld [vmem:[#allocation11 + $0x168] sm:$0xff]
        %v9295 = vld [vmem:[#allocation11 + $0x170] sm:$0xff]
        %v9296 = vld [vmem:[#allocation11 + $0x178] sm:$0xff]
        %v9297 = vld [vmem:[#allocation11 + $0x180] sm:$0xff]
        %v9298 = vld [vmem:[#allocation11 + $0x188] sm:$0xff]
        %v9299 = vld [vmem:[#allocation11 + $0x190] sm:$0xff]
        %v9300 = vld [vmem:[#allocation11 + $0x198] sm:$0xff]
        %v9301 = vld [vmem:[#allocation11 + $0x1a0] sm:$0xff]
        %v9302 = vld [vmem:[#allocation11 + $0x1a8] sm:$0xff]
        %v9303 = vld [vmem:[#allocation11 + $0x1b0] sm:$0xff]
        %v9304 = vld [vmem:[#allocation11 + $0x1b8] sm:$0xff]
        %v9305 = vld [vmem:[#allocation11 + $0x1c0] sm:$0xff]
        %v9306 = vld [vmem:[#allocation11 + $0x1c8] sm:$0xff]
        %v9307 = vld [vmem:[#allocation11 + $0x1d0] sm:$0xff]
        %v9308 = vld [vmem:[#allocation11 + $0x1d8] sm:$0xff]
        %v9309 = vld [vmem:[#allocation11 + $0x1e0] sm:$0xff]
        %v9310 = vld [vmem:[#allocation11 + $0x1e8] sm:$0xff]
        %v9311 = vld [vmem:[#allocation11 + $0x1f0] sm:$0xff]
        %v9312 = vld [vmem:[#allocation11 + $0x1f8] sm:$0xff]
        %v9313 = vld [vmem:[#allocation11 + $0x200] sm:$0xff]
        %v9314 = vld [vmem:[#allocation11 + $0x208] sm:$0xff]
        %v9315 = vld [vmem:[#allocation11 + $0x210] sm:$0xff]
        %v9316 = vld [vmem:[#allocation11 + $0x218] sm:$0xff]
        %v9317 = vld [vmem:[#allocation11 + $0x220] sm:$0xff]
        %v9318 = vld [vmem:[#allocation11 + $0x228] sm:$0xff]
        %v9319 = vld [vmem:[#allocation11 + $0x230] sm:$0xff]
        %v9320 = vld [vmem:[#allocation11 + $0x238] sm:$0xff]
        %v9321 = vld [vmem:[#allocation11 + $0x240] sm:$0xff]
        %v9322 = vld [vmem:[#allocation11 + $0x248] sm:$0xff]
        %v9323 = vld [vmem:[#allocation11 + $0x250] sm:$0xff]
        %v9324 = vld [vmem:[#allocation11 + $0x258] sm:$0xff]
        %v9325 = vld [vmem:[#allocation11 + $0x260] sm:$0xff]
        %v9326 = vld [vmem:[#allocation11 + $0x268] sm:$0xff]
        %v9327 = vld [vmem:[#allocation11 + $0x270] sm:$0xff]
        %v9328 = vld [vmem:[#allocation11 + $0x278] sm:$0xff]
        %v9329 = vld [vmem:[#allocation11 + $0x280] sm:$0xff]
        %v9330 = vld [vmem:[#allocation11 + $0x288] sm:$0xff]
        %v9331 = vld [vmem:[#allocation11 + $0x290] sm:$0xff]
        %v9332 = vld [vmem:[#allocation11 + $0x298] sm:$0xff]
        %v9333 = vld [vmem:[#allocation11 + $0x2a0] sm:$0xff]
        %v9334 = vld [vmem:[#allocation11 + $0x2a8] sm:$0xff]
        %v9335 = vld [vmem:[#allocation11 + $0x2b0] sm:$0xff]
        %v9336 = vld [vmem:[#allocation11 + $0x2b8] sm:$0xff]
        %v9337 = vld [vmem:[#allocation11 + $0x2c0] sm:$0xff]
        %v9338 = vld [vmem:[#allocation11 + $0x2c8] sm:$0xff]
        %v9339 = vld [vmem:[#allocation11 + $0x2d0] sm:$0xff]
        %v9340 = vld [vmem:[#allocation11 + $0x2d8] sm:$0xff]
        %v9341 = vld [vmem:[#allocation11 + $0x2e0] sm:$0xff]
        %v9342 = vld [vmem:[#allocation11 + $0x2e8] sm:$0xff]
        %v9343 = vld [vmem:[#allocation11 + $0x2f0] sm:$0xff]
        %v9344 = vld [vmem:[#allocation11 + $0x2f8] sm:$0xff]
        %v9345 = vld [vmem:[#allocation11 + $0x300] sm:$0xff]
        %v9346 = vld [vmem:[#allocation11 + $0x308] sm:$0xff]
        %v9347 = vld [vmem:[#allocation11 + $0x310] sm:$0xff]
        %v9348 = vld [vmem:[#allocation11 + $0x318] sm:$0xff]
        %v9349 = vld [vmem:[#allocation11 + $0x320] sm:$0xff]
        %v9350 = vld [vmem:[#allocation11 + $0x328] sm:$0xff]
        %v9351 = vld [vmem:[#allocation11 + $0x330] sm:$0xff]
        %v9352 = vld [vmem:[#allocation11 + $0x338] sm:$0xff]
        %v9353 = vld [vmem:[#allocation11 + $0x340] sm:$0xff]
        %v9354 = vld [vmem:[#allocation11 + $0x348] sm:$0xff]
        %v9355 = vld [vmem:[#allocation11 + $0x350] sm:$0xff]
        %v9356 = vld [vmem:[#allocation11 + $0x358] sm:$0xff]
        %v9357 = vld [vmem:[#allocation11 + $0x360] sm:$0xff]
        %v9358 = vld [vmem:[#allocation11 + $0x368] sm:$0xff]
        %v9359 = vld [vmem:[#allocation11 + $0x370] sm:$0xff]
        %v9360 = vld [vmem:[#allocation11 + $0x378] sm:$0xff]
        %v9361 = vld [vmem:[#allocation11 + $0x380] sm:$0xff]
        %v9362 = vld [vmem:[#allocation11 + $0x388] sm:$0xff]
        %v9363 = vld [vmem:[#allocation11 + $0x390] sm:$0xff]
        %v9364 = vld [vmem:[#allocation11 + $0x398] sm:$0xff]
        %v9365 = vld [vmem:[#allocation11 + $0x3a0] sm:$0xff]
        %v9366 = vld [vmem:[#allocation11 + $0x3a8] sm:$0xff]
        %v9367 = vld [vmem:[#allocation11 + $0x3b0] sm:$0xff]
        %v9368 = vld [vmem:[#allocation11 + $0x3b8] sm:$0xff]
        %v9369 = vld [vmem:[#allocation11 + $0x3c0] sm:$0xff]
        %v9370 = vld [vmem:[#allocation11 + $0x3c8] sm:$0xff]
        %v9371 = vld [vmem:[#allocation11 + $0x3d0] sm:$0xff]
        %v9372 = vld [vmem:[#allocation11 + $0x3d8] sm:$0xff]
        %v9373 = vld [vmem:[#allocation11 + $0x3e0] sm:$0xff]
        %v9374 = vld [vmem:[#allocation11 + $0x3e8] sm:$0xff]
        %v9375 = vld [vmem:[#allocation11 + $0x3f0] sm:$0xff]
        %v9376 = vld [vmem:[#allocation11 + $0x3f8] sm:$0xff]
        %v9377 = vld [vmem:[#allocation11 + $0x400] sm:$0xff]
        %v9378 = vld [vmem:[#allocation11 + $0x408] sm:$0xff]
        %v9379 = vld [vmem:[#allocation11 + $0x410] sm:$0xff]
        %v9380 = vld [vmem:[#allocation11 + $0x418] sm:$0xff]
        %v9381 = vld [vmem:[#allocation11 + $0x420] sm:$0xff]
        %v9382 = vld [vmem:[#allocation11 + $0x428] sm:$0xff]
        %v9383 = vld [vmem:[#allocation11 + $0x430] sm:$0xff]
        %v9384 = vld [vmem:[#allocation11 + $0x438] sm:$0xff]
        %v9385 = vld [vmem:[#allocation11 + $0x440] sm:$0xff]
        %v9386 = vld [vmem:[#allocation11 + $0x448] sm:$0xff]
        %v9387 = vld [vmem:[#allocation11 + $0x450] sm:$0xff]
        %v9388 = vld [vmem:[#allocation11 + $0x458] sm:$0xff]
        %v9389 = vld [vmem:[#allocation11 + $0x460] sm:$0xff]
        %v9390 = vld [vmem:[#allocation11 + $0x468] sm:$0xff]
        %v9391 = vld [vmem:[#allocation11 + $0x470] sm:$0xff]
        %v9392 = vld [vmem:[#allocation11 + $0x478] sm:$0xff]
        %v9393 = vld [vmem:[#allocation11 + $0x480] sm:$0xff]
        %v9394 = vld [vmem:[#allocation11 + $0x488] sm:$0xff]
        %v9395 = vld [vmem:[#allocation11 + $0x490] sm:$0xff]
        %v9396 = vld [vmem:[#allocation11 + $0x498] sm:$0xff]
        %v9397 = vld [vmem:[#allocation11 + $0x4a0] sm:$0xff]
        %v9398 = vld [vmem:[#allocation11 + $0x4a8] sm:$0xff]
        %v9399 = vld [vmem:[#allocation11 + $0x4b0] sm:$0xff]
        %v9400 = vld [vmem:[#allocation11 + $0x4b8] sm:$0xff]
        %v9401 = vld [vmem:[#allocation11 + $0x4c0] sm:$0xff]
        %v9402 = vld [vmem:[#allocation11 + $0x4c8] sm:$0xff]
        %v9403 = vld [vmem:[#allocation11 + $0x4d0] sm:$0xff]
        %v9404 = vld [vmem:[#allocation11 + $0x4d8] sm:$0xff]
        %v9405 = vld [vmem:[#allocation11 + $0x4e0] sm:$0xff]
        %v9406 = vld [vmem:[#allocation11 + $0x4e8] sm:$0xff]
        %v9407 = vld [vmem:[#allocation11 + $0x4f0] sm:$0xff]
        %v9408 = vld [vmem:[#allocation11 + $0x4f8] sm:$0xff]
        %v9409 = vld [vmem:[#allocation11 + $0x500] sm:$0xff]
        %v9410 = vld [vmem:[#allocation11 + $0x508] sm:$0xff]
        %v9411 = vld [vmem:[#allocation11 + $0x510] sm:$0xff]
        %v9412 = vld [vmem:[#allocation11 + $0x518] sm:$0xff]
        %v9413 = vld [vmem:[#allocation11 + $0x520] sm:$0xff]
        %v9414 = vld [vmem:[#allocation11 + $0x528] sm:$0xff]
        %v9415 = vld [vmem:[#allocation11 + $0x530] sm:$0xff]
        %v9416 = vld [vmem:[#allocation11 + $0x538] sm:$0xff]
        %v9417 = vld [vmem:[#allocation11 + $0x540] sm:$0xff]
        %v9418 = vld [vmem:[#allocation11 + $0x548] sm:$0xff]
        %v9419 = vld [vmem:[#allocation11 + $0x550] sm:$0xff]
        %v9420 = vld [vmem:[#allocation11 + $0x558] sm:$0xff]
        %v9421 = vld [vmem:[#allocation11 + $0x560] sm:$0xff]
        %v9422 = vld [vmem:[#allocation11 + $0x568] sm:$0xff]
        %v9423 = vld [vmem:[#allocation11 + $0x570] sm:$0xff]
        %v9424 = vld [vmem:[#allocation11 + $0x578] sm:$0xff]
        %v9425 = vld [vmem:[#allocation11 + $0x580] sm:$0xff]
        %v9426 = vld [vmem:[#allocation11 + $0x588] sm:$0xff]
        %v9427 = vld [vmem:[#allocation11 + $0x590] sm:$0xff]
        %v9428 = vld [vmem:[#allocation11 + $0x598] sm:$0xff]
        %v9429 = vld [vmem:[#allocation11 + $0x5a0] sm:$0xff]
        %v9430 = vld [vmem:[#allocation11 + $0x5a8] sm:$0xff]
        %v9431 = vld [vmem:[#allocation11 + $0x5b0] sm:$0xff]
        %v9432 = vld [vmem:[#allocation11 + $0x5b8] sm:$0xff]
        %v9433 = vld [vmem:[#allocation11 + $0x5c0] sm:$0xff]
        %v9434 = vld [vmem:[#allocation11 + $0x5c8] sm:$0xff]
        %v9435 = vld [vmem:[#allocation11 + $0x5d0] sm:$0xff]
        %v9436 = vld [vmem:[#allocation11 + $0x5d8] sm:$0xff]
        %v9437 = vld [vmem:[#allocation11 + $0x5e0] sm:$0xff]
        %v9438 = vld [vmem:[#allocation11 + $0x5e8] sm:$0xff]
        %v9439 = vld [vmem:[#allocation11 + $0x5f0] sm:$0xff]
        %v9440 = vld [vmem:[#allocation11 + $0x5f8] sm:$0xff]
        %v9441 = vld [vmem:[#allocation11 + $0x600] sm:$0xff]
        %v9442 = vld [vmem:[#allocation11 + $0x608] sm:$0xff]
        %v9443 = vld [vmem:[#allocation11 + $0x610] sm:$0xff]
        %v9444 = vld [vmem:[#allocation11 + $0x618] sm:$0xff]
        %v9445 = vld [vmem:[#allocation11 + $0x620] sm:$0xff]
        %v9446 = vld [vmem:[#allocation11 + $0x628] sm:$0xff]
        %v9447 = vld [vmem:[#allocation11 + $0x630] sm:$0xff]
        %v9448 = vld [vmem:[#allocation11 + $0x638] sm:$0xff]
        %v9449 = vld [vmem:[#allocation11 + $0x640] sm:$0xff]
        %v9450 = vld [vmem:[#allocation11 + $0x648] sm:$0xff]
        %v9451 = vld [vmem:[#allocation11 + $0x650] sm:$0xff]
        %v9452 = vld [vmem:[#allocation11 + $0x658] sm:$0xff]
        %v9453 = vld [vmem:[#allocation11 + $0x660] sm:$0xff]
        %v9454 = vld [vmem:[#allocation11 + $0x668] sm:$0xff]
        %v9455 = vld [vmem:[#allocation11 + $0x670] sm:$0xff]
        %v9456 = vld [vmem:[#allocation11 + $0x678] sm:$0xff]
        %v9457 = vld [vmem:[#allocation11 + $0x680] sm:$0xff]
        %v9458 = vld [vmem:[#allocation11 + $0x688] sm:$0xff]
        %v9459 = vld [vmem:[#allocation11 + $0x690] sm:$0xff]
        %v9460 = vld [vmem:[#allocation11 + $0x698] sm:$0xff]
        %v9461 = vld [vmem:[#allocation11 + $0x6a0] sm:$0xff]
        %v9462 = vld [vmem:[#allocation11 + $0x6a8] sm:$0xff]
        %v9463 = vld [vmem:[#allocation11 + $0x6b0] sm:$0xff]
        %v9464 = vld [vmem:[#allocation11 + $0x6b8] sm:$0xff]
        %v9465 = vld [vmem:[#allocation11 + $0x6c0] sm:$0xff]
        %v9466 = vld [vmem:[#allocation11 + $0x6c8] sm:$0xff]
        %v9467 = vld [vmem:[#allocation11 + $0x6d0] sm:$0xff]
        %v9468 = vld [vmem:[#allocation11 + $0x6d8] sm:$0xff]
        %v9469 = vld [vmem:[#allocation11 + $0x6e0] sm:$0xff]
        %v9470 = vld [vmem:[#allocation11 + $0x6e8] sm:$0xff]
        %v9471 = vld [vmem:[#allocation11 + $0x6f0] sm:$0xff]
        %v9472 = vld [vmem:[#allocation11 + $0x6f8] sm:$0xff]
        %v9473 = vld [vmem:[#allocation11 + $0x700] sm:$0xff]
        %v9474 = vld [vmem:[#allocation11 + $0x708] sm:$0xff]
        %v9475 = vld [vmem:[#allocation11 + $0x710] sm:$0xff]
        %v9476 = vld [vmem:[#allocation11 + $0x718] sm:$0xff]
        %v9477 = vld [vmem:[#allocation11 + $0x720] sm:$0xff]
        %v9478 = vld [vmem:[#allocation11 + $0x728] sm:$0xff]
        %v9479 = vld [vmem:[#allocation11 + $0x730] sm:$0xff]
        %v9480 = vld [vmem:[#allocation11 + $0x738] sm:$0xff]
        %v9481 = vld [vmem:[#allocation11 + $0x740] sm:$0xff]
        %v9482 = vld [vmem:[#allocation11 + $0x748] sm:$0xff]
        %v9483 = vld [vmem:[#allocation11 + $0x750] sm:$0xff]
        %v9484 = vld [vmem:[#allocation11 + $0x758] sm:$0xff]
        %v9485 = vld [vmem:[#allocation11 + $0x760] sm:$0xff]
        %v9486 = vld [vmem:[#allocation11 + $0x768] sm:$0xff]
        %v9487 = vld [vmem:[#allocation11 + $0x770] sm:$0xff]
        %v9488 = vld [vmem:[#allocation11 + $0x778] sm:$0xff]
        %v9489 = vld [vmem:[#allocation11 + $0x780] sm:$0xff]
        %v9490 = vld [vmem:[#allocation11 + $0x788] sm:$0xff]
        %v9491 = vld [vmem:[#allocation11 + $0x790] sm:$0xff]
        %v9492 = vld [vmem:[#allocation11 + $0x798] sm:$0xff]
        %v9493 = vld [vmem:[#allocation11 + $0x7a0] sm:$0xff]
        %v9494 = vld [vmem:[#allocation11 + $0x7a8] sm:$0xff]
        %v9495 = vld [vmem:[#allocation11 + $0x7b0] sm:$0xff]
        %v9496 = vld [vmem:[#allocation11 + $0x7b8] sm:$0xff]
        %v9497 = vld [vmem:[#allocation11 + $0x7c0] sm:$0xff]
        %v9498 = vld [vmem:[#allocation11 + $0x7c8] sm:$0xff]
        %v9499 = vld [vmem:[#allocation11 + $0x7d0] sm:$0xff]
        %v9500 = vld [vmem:[#allocation11 + $0x7d8] sm:$0xff]
        %v9501 = vld [vmem:[#allocation11 + $0x7e0] sm:$0xff]
        %v9502 = vld [vmem:[#allocation11 + $0x7e8] sm:$0xff]
        %v9503 = vld [vmem:[#allocation11 + $0x7f0] sm:$0xff]
        %v9504 = vld [vmem:[#allocation11 + $0x7f8] sm:$0xff]
        %v9505 = vld [vmem:[#allocation11 + $0x800] sm:$0xff]
        %v9506 = vld [vmem:[#allocation11 + $0x808] sm:$0xff]
        %v9507 = vld [vmem:[#allocation11 + $0x810] sm:$0xff]
        %v9508 = vld [vmem:[#allocation11 + $0x818] sm:$0xff]
        %v9509 = vld [vmem:[#allocation11 + $0x820] sm:$0xff]
        %v9510 = vld [vmem:[#allocation11 + $0x828] sm:$0xff]
        %v9511 = vld [vmem:[#allocation11 + $0x830] sm:$0xff]
        %v9512 = vld [vmem:[#allocation11 + $0x838] sm:$0xff]
        %v9513 = vld [vmem:[#allocation11 + $0x840] sm:$0xff]
        %v9514 = vld [vmem:[#allocation11 + $0x848] sm:$0xff]
        %v9515 = vld [vmem:[#allocation11 + $0x850] sm:$0xff]
        %v9516 = vld [vmem:[#allocation11 + $0x858] sm:$0xff]
        %v9517 = vld [vmem:[#allocation11 + $0x860] sm:$0xff]
        %v9518 = vld [vmem:[#allocation11 + $0x868] sm:$0xff]
        %v9519 = vld [vmem:[#allocation11 + $0x870] sm:$0xff]
        %v9520 = vld [vmem:[#allocation11 + $0x878] sm:$0xff]
        %v9521 = vld [vmem:[#allocation11 + $0x880] sm:$0xff]
        %v9522 = vld [vmem:[#allocation11 + $0x888] sm:$0xff]
        %v9523 = vld [vmem:[#allocation11 + $0x890] sm:$0xff]
        %v9524 = vld [vmem:[#allocation11 + $0x898] sm:$0xff]
        %v9525 = vld [vmem:[#allocation11 + $0x8a0] sm:$0xff]
        %v9526 = vld [vmem:[#allocation11 + $0x8a8] sm:$0xff]
        %v9527 = vld [vmem:[#allocation11 + $0x8b0] sm:$0xff]
        %v9528 = vld [vmem:[#allocation11 + $0x8b8] sm:$0xff]
        %v9529 = vld [vmem:[#allocation11 + $0x8c0] sm:$0xff]
        %v9530 = vld [vmem:[#allocation11 + $0x8c8] sm:$0xff]
        %v9531 = vld [vmem:[#allocation11 + $0x8d0] sm:$0xff]
        %v9532 = vld [vmem:[#allocation11 + $0x8d8] sm:$0xff]
        %v9533 = vld [vmem:[#allocation11 + $0x8e0] sm:$0xff]
        %v9534 = vld [vmem:[#allocation11 + $0x8e8] sm:$0xff]
        %v9535 = vld [vmem:[#allocation11 + $0x8f0] sm:$0xff]
        %v9536 = vld [vmem:[#allocation11 + $0x8f8] sm:$0xff]
        %v9825 = vunpack.c.l.b16 %v9249
        %v9826 = vunpack.c.h.b16 %v9249
        %v9827 = vunpack.c.l.b16 %v9250
        %v9828 = vunpack.c.h.b16 %v9250
        %v9829 = vunpack.c.l.b16 %v9251
        %v9830 = vunpack.c.h.b16 %v9251
        %v9831 = vunpack.c.l.b16 %v9252
        %v9832 = vunpack.c.h.b16 %v9252
        %v9833 = vunpack.c.l.b16 %v9253
        %v9834 = vunpack.c.h.b16 %v9253
        %v9835 = vunpack.c.l.b16 %v9254
        %v9836 = vunpack.c.h.b16 %v9254
        %v9837 = vunpack.c.l.b16 %v9255
        %v9838 = vunpack.c.h.b16 %v9255
        %v9839 = vunpack.c.l.b16 %v9256
        %v9840 = vunpack.c.h.b16 %v9256
        %v9841 = vunpack.c.l.b16 %v9257
        %v9842 = vunpack.c.h.b16 %v9257
        %v9843 = vunpack.c.l.b16 %v9258
        %v9844 = vunpack.c.h.b16 %v9258
        %v9845 = vunpack.c.l.b16 %v9259
        %v9846 = vunpack.c.h.b16 %v9259
        %v9847 = vunpack.c.l.b16 %v9260
        %v9848 = vunpack.c.h.b16 %v9260
        %v9849 = vunpack.c.l.b16 %v9261
        %v9850 = vunpack.c.h.b16 %v9261
        %v9851 = vunpack.c.l.b16 %v9262
        %v9852 = vunpack.c.h.b16 %v9262
        %v9853 = vunpack.c.l.b16 %v9263
        %v9854 = vunpack.c.h.b16 %v9263
        %v9855 = vunpack.c.l.b16 %v9264
        %v9856 = vunpack.c.h.b16 %v9264
        %v9857 = vunpack.c.l.b16 %v9265
        %v9858 = vunpack.c.h.b16 %v9265
        %v9859 = vunpack.c.l.b16 %v9266
        %v9860 = vunpack.c.h.b16 %v9266
        %v9861 = vunpack.c.l.b16 %v9267
        %v9862 = vunpack.c.h.b16 %v9267
        %v9863 = vunpack.c.l.b16 %v9268
        %v9864 = vunpack.c.h.b16 %v9268
        %v9865 = vunpack.c.l.b16 %v9269
        %v9866 = vunpack.c.h.b16 %v9269
        %v9867 = vunpack.c.l.b16 %v9270
        %v9868 = vunpack.c.h.b16 %v9270
        %v9869 = vunpack.c.l.b16 %v9271
        %v9870 = vunpack.c.h.b16 %v9271
        %v9871 = vunpack.c.l.b16 %v9272
        %v9872 = vunpack.c.h.b16 %v9272
        %v9873 = vunpack.c.l.b16 %v9273
        %v9874 = vunpack.c.h.b16 %v9273
        %v9875 = vunpack.c.l.b16 %v9274
        %v9876 = vunpack.c.h.b16 %v9274
        %v9877 = vunpack.c.l.b16 %v9275
        %v9878 = vunpack.c.h.b16 %v9275
        %v9879 = vunpack.c.l.b16 %v9276
        %v9880 = vunpack.c.h.b16 %v9276
        %v9881 = vunpack.c.l.b16 %v9277
        %v9882 = vunpack.c.h.b16 %v9277
        %v9883 = vunpack.c.l.b16 %v9278
        %v9884 = vunpack.c.h.b16 %v9278
        %v9885 = vunpack.c.l.b16 %v9279
        %v9886 = vunpack.c.h.b16 %v9279
        %v9887 = vunpack.c.l.b16 %v9280
        %v9888 = vunpack.c.h.b16 %v9280
        %v9889 = vunpack.c.l.b16 %v9281
        %v9890 = vunpack.c.h.b16 %v9281
        %v9891 = vunpack.c.l.b16 %v9282
        %v9892 = vunpack.c.h.b16 %v9282
        %v9893 = vunpack.c.l.b16 %v9283
        %v9894 = vunpack.c.h.b16 %v9283
        %v9895 = vunpack.c.l.b16 %v9284
        %v9896 = vunpack.c.h.b16 %v9284
        %v9897 = vunpack.c.l.b16 %v9285
        %v9898 = vunpack.c.h.b16 %v9285
        %v9899 = vunpack.c.l.b16 %v9286
        %v9900 = vunpack.c.h.b16 %v9286
        %v9901 = vunpack.c.l.b16 %v9287
        %v9902 = vunpack.c.h.b16 %v9287
        %v9903 = vunpack.c.l.b16 %v9288
        %v9904 = vunpack.c.h.b16 %v9288
        %v9905 = vunpack.c.l.b16 %v9289
        %v9906 = vunpack.c.h.b16 %v9289
        %v9907 = vunpack.c.l.b16 %v9290
        %v9908 = vunpack.c.h.b16 %v9290
        %v9909 = vunpack.c.l.b16 %v9291
        %v9910 = vunpack.c.h.b16 %v9291
        %v9911 = vunpack.c.l.b16 %v9292
        %v9912 = vunpack.c.h.b16 %v9292
        %v9913 = vunpack.c.l.b16 %v9293
        %v9914 = vunpack.c.h.b16 %v9293
        %v9915 = vunpack.c.l.b16 %v9294
        %v9916 = vunpack.c.h.b16 %v9294
        %v9917 = vunpack.c.l.b16 %v9295
        %v9918 = vunpack.c.h.b16 %v9295
        %v9919 = vunpack.c.l.b16 %v9296
        %v9920 = vunpack.c.h.b16 %v9296
        %v9921 = vunpack.c.l.b16 %v9297
        %v9922 = vunpack.c.h.b16 %v9297
        %v9923 = vunpack.c.l.b16 %v9298
        %v9924 = vunpack.c.h.b16 %v9298
        %v9925 = vunpack.c.l.b16 %v9299
        %v9926 = vunpack.c.h.b16 %v9299
        %v9927 = vunpack.c.l.b16 %v9300
        %v9928 = vunpack.c.h.b16 %v9300
        %v9929 = vunpack.c.l.b16 %v9301
        %v9930 = vunpack.c.h.b16 %v9301
        %v9931 = vunpack.c.l.b16 %v9302
        %v9932 = vunpack.c.h.b16 %v9302
        %v9933 = vunpack.c.l.b16 %v9303
        %v9934 = vunpack.c.h.b16 %v9303
        %v9935 = vunpack.c.l.b16 %v9304
        %v9936 = vunpack.c.h.b16 %v9304
        %v9937 = vunpack.c.l.b16 %v9305
        %v9938 = vunpack.c.h.b16 %v9305
        %v9939 = vunpack.c.l.b16 %v9306
        %v9940 = vunpack.c.h.b16 %v9306
        %v9941 = vunpack.c.l.b16 %v9307
        %v9942 = vunpack.c.h.b16 %v9307
        %v9943 = vunpack.c.l.b16 %v9308
        %v9944 = vunpack.c.h.b16 %v9308
        %v9945 = vunpack.c.l.b16 %v9309
        %v9946 = vunpack.c.h.b16 %v9309
        %v9947 = vunpack.c.l.b16 %v9310
        %v9948 = vunpack.c.h.b16 %v9310
        %v9949 = vunpack.c.l.b16 %v9311
        %v9950 = vunpack.c.h.b16 %v9311
        %v9951 = vunpack.c.l.b16 %v9312
        %v9952 = vunpack.c.h.b16 %v9312
        %v9953 = vunpack.c.l.b16 %v9313
        %v9954 = vunpack.c.h.b16 %v9313
        %v9955 = vunpack.c.l.b16 %v9314
        %v9956 = vunpack.c.h.b16 %v9314
        %v9957 = vunpack.c.l.b16 %v9315
        %v9958 = vunpack.c.h.b16 %v9315
        %v9959 = vunpack.c.l.b16 %v9316
        %v9960 = vunpack.c.h.b16 %v9316
        %v9961 = vunpack.c.l.b16 %v9317
        %v9962 = vunpack.c.h.b16 %v9317
        %v9963 = vunpack.c.l.b16 %v9318
        %v9964 = vunpack.c.h.b16 %v9318
        %v9965 = vunpack.c.l.b16 %v9319
        %v9966 = vunpack.c.h.b16 %v9319
        %v9967 = vunpack.c.l.b16 %v9320
        %v9968 = vunpack.c.h.b16 %v9320
        %v9969 = vunpack.c.l.b16 %v9321
        %v9970 = vunpack.c.h.b16 %v9321
        %v9971 = vunpack.c.l.b16 %v9322
        %v9972 = vunpack.c.h.b16 %v9322
        %v9973 = vunpack.c.l.b16 %v9323
        %v9974 = vunpack.c.h.b16 %v9323
        %v9975 = vunpack.c.l.b16 %v9324
        %v9976 = vunpack.c.h.b16 %v9324
        %v9977 = vunpack.c.l.b16 %v9325
        %v9978 = vunpack.c.h.b16 %v9325
        %v9979 = vunpack.c.l.b16 %v9326
        %v9980 = vunpack.c.h.b16 %v9326
        %v9981 = vunpack.c.l.b16 %v9327
        %v9982 = vunpack.c.h.b16 %v9327
        %v9983 = vunpack.c.l.b16 %v9328
        %v9984 = vunpack.c.h.b16 %v9328
        %v9985 = vunpack.c.l.b16 %v9329
        %v9986 = vunpack.c.h.b16 %v9329
        %v9987 = vunpack.c.l.b16 %v9330
        %v9988 = vunpack.c.h.b16 %v9330
        %v9989 = vunpack.c.l.b16 %v9331
        %v9990 = vunpack.c.h.b16 %v9331
        %v9991 = vunpack.c.l.b16 %v9332
        %v9992 = vunpack.c.h.b16 %v9332
        %v9993 = vunpack.c.l.b16 %v9333
        %v9994 = vunpack.c.h.b16 %v9333
        %v9995 = vunpack.c.l.b16 %v9334
        %v9996 = vunpack.c.h.b16 %v9334
        %v9997 = vunpack.c.l.b16 %v9335
        %v9998 = vunpack.c.h.b16 %v9335
        %v9999 = vunpack.c.l.b16 %v9336
        %v10000 = vunpack.c.h.b16 %v9336
        %v10001 = vunpack.c.l.b16 %v9337
        %v10002 = vunpack.c.h.b16 %v9337
        %v10003 = vunpack.c.l.b16 %v9338
        %v10004 = vunpack.c.h.b16 %v9338
        %v10005 = vunpack.c.l.b16 %v9339
        %v10006 = vunpack.c.h.b16 %v9339
        %v10007 = vunpack.c.l.b16 %v9340
        %v10008 = vunpack.c.h.b16 %v9340
        %v10009 = vunpack.c.l.b16 %v9341
        %v10010 = vunpack.c.h.b16 %v9341
        %v10011 = vunpack.c.l.b16 %v9342
        %v10012 = vunpack.c.h.b16 %v9342
        %v10013 = vunpack.c.l.b16 %v9343
        %v10014 = vunpack.c.h.b16 %v9343
        %v10015 = vunpack.c.l.b16 %v9344
        %v10016 = vunpack.c.h.b16 %v9344
        %v10017 = vunpack.c.l.b16 %v9345
        %v10018 = vunpack.c.h.b16 %v9345
        %v10019 = vunpack.c.l.b16 %v9346
        %v10020 = vunpack.c.h.b16 %v9346
        %v10021 = vunpack.c.l.b16 %v9347
        %v10022 = vunpack.c.h.b16 %v9347
        %v10023 = vunpack.c.l.b16 %v9348
        %v10024 = vunpack.c.h.b16 %v9348
        %v10025 = vunpack.c.l.b16 %v9349
        %v10026 = vunpack.c.h.b16 %v9349
        %v10027 = vunpack.c.l.b16 %v9350
        %v10028 = vunpack.c.h.b16 %v9350
        %v10029 = vunpack.c.l.b16 %v9351
        %v10030 = vunpack.c.h.b16 %v9351
        %v10031 = vunpack.c.l.b16 %v9352
        %v10032 = vunpack.c.h.b16 %v9352
        %v10033 = vunpack.c.l.b16 %v9353
        %v10034 = vunpack.c.h.b16 %v9353
        %v10035 = vunpack.c.l.b16 %v9354
        %v10036 = vunpack.c.h.b16 %v9354
        %v10037 = vunpack.c.l.b16 %v9355
        %v10038 = vunpack.c.h.b16 %v9355
        %v10039 = vunpack.c.l.b16 %v9356
        %v10040 = vunpack.c.h.b16 %v9356
        %v10041 = vunpack.c.l.b16 %v9357
        %v10042 = vunpack.c.h.b16 %v9357
        %v10043 = vunpack.c.l.b16 %v9358
        %v10044 = vunpack.c.h.b16 %v9358
        %v10045 = vunpack.c.l.b16 %v9359
        %v10046 = vunpack.c.h.b16 %v9359
        %v10047 = vunpack.c.l.b16 %v9360
        %v10048 = vunpack.c.h.b16 %v9360
        %v10049 = vunpack.c.l.b16 %v9361
        %v10050 = vunpack.c.h.b16 %v9361
        %v10051 = vunpack.c.l.b16 %v9362
        %v10052 = vunpack.c.h.b16 %v9362
        %v10053 = vunpack.c.l.b16 %v9363
        %v10054 = vunpack.c.h.b16 %v9363
        %v10055 = vunpack.c.l.b16 %v9364
        %v10056 = vunpack.c.h.b16 %v9364
        %v10057 = vunpack.c.l.b16 %v9365
        %v10058 = vunpack.c.h.b16 %v9365
        %v10059 = vunpack.c.l.b16 %v9366
        %v10060 = vunpack.c.h.b16 %v9366
        %v10061 = vunpack.c.l.b16 %v9367
        %v10062 = vunpack.c.h.b16 %v9367
        %v10063 = vunpack.c.l.b16 %v9368
        %v10064 = vunpack.c.h.b16 %v9368
        %v10065 = vunpack.c.l.b16 %v9369
        %v10066 = vunpack.c.h.b16 %v9369
        %v10067 = vunpack.c.l.b16 %v9370
        %v10068 = vunpack.c.h.b16 %v9370
        %v10069 = vunpack.c.l.b16 %v9371
        %v10070 = vunpack.c.h.b16 %v9371
        %v10071 = vunpack.c.l.b16 %v9372
        %v10072 = vunpack.c.h.b16 %v9372
        %v10073 = vunpack.c.l.b16 %v9373
        %v10074 = vunpack.c.h.b16 %v9373
        %v10075 = vunpack.c.l.b16 %v9374
        %v10076 = vunpack.c.h.b16 %v9374
        %v10077 = vunpack.c.l.b16 %v9375
        %v10078 = vunpack.c.h.b16 %v9375
        %v10079 = vunpack.c.l.b16 %v9376
        %v10080 = vunpack.c.h.b16 %v9376
        %v10081 = vunpack.c.l.b16 %v9377
        %v10082 = vunpack.c.h.b16 %v9377
        %v10083 = vunpack.c.l.b16 %v9378
        %v10084 = vunpack.c.h.b16 %v9378
        %v10085 = vunpack.c.l.b16 %v9379
        %v10086 = vunpack.c.h.b16 %v9379
        %v10087 = vunpack.c.l.b16 %v9380
        %v10088 = vunpack.c.h.b16 %v9380
        %v10089 = vunpack.c.l.b16 %v9381
        %v10090 = vunpack.c.h.b16 %v9381
        %v10091 = vunpack.c.l.b16 %v9382
        %v10092 = vunpack.c.h.b16 %v9382
        %v10093 = vunpack.c.l.b16 %v9383
        %v10094 = vunpack.c.h.b16 %v9383
        %v10095 = vunpack.c.l.b16 %v9384
        %v10096 = vunpack.c.h.b16 %v9384
        %v10097 = vunpack.c.l.b16 %v9385
        %v10098 = vunpack.c.h.b16 %v9385
        %v10099 = vunpack.c.l.b16 %v9386
        %v10100 = vunpack.c.h.b16 %v9386
        %v10101 = vunpack.c.l.b16 %v9387
        %v10102 = vunpack.c.h.b16 %v9387
        %v10103 = vunpack.c.l.b16 %v9388
        %v10104 = vunpack.c.h.b16 %v9388
        %v10105 = vunpack.c.l.b16 %v9389
        %v10106 = vunpack.c.h.b16 %v9389
        %v10107 = vunpack.c.l.b16 %v9390
        %v10108 = vunpack.c.h.b16 %v9390
        %v10109 = vunpack.c.l.b16 %v9391
        %v10110 = vunpack.c.h.b16 %v9391
        %v10111 = vunpack.c.l.b16 %v9392
        %v10112 = vunpack.c.h.b16 %v9392
        %v10113 = vunpack.c.l.b16 %v9393
        %v10114 = vunpack.c.h.b16 %v9393
        %v10115 = vunpack.c.l.b16 %v9394
        %v10116 = vunpack.c.h.b16 %v9394
        %v10117 = vunpack.c.l.b16 %v9395
        %v10118 = vunpack.c.h.b16 %v9395
        %v10119 = vunpack.c.l.b16 %v9396
        %v10120 = vunpack.c.h.b16 %v9396
        %v10121 = vunpack.c.l.b16 %v9397
        %v10122 = vunpack.c.h.b16 %v9397
        %v10123 = vunpack.c.l.b16 %v9398
        %v10124 = vunpack.c.h.b16 %v9398
        %v10125 = vunpack.c.l.b16 %v9399
        %v10126 = vunpack.c.h.b16 %v9399
        %v10127 = vunpack.c.l.b16 %v9400
        %v10128 = vunpack.c.h.b16 %v9400
        %v10129 = vunpack.c.l.b16 %v9401
        %v10130 = vunpack.c.h.b16 %v9401
        %v10131 = vunpack.c.l.b16 %v9402
        %v10132 = vunpack.c.h.b16 %v9402
        %v10133 = vunpack.c.l.b16 %v9403
        %v10134 = vunpack.c.h.b16 %v9403
        %v10135 = vunpack.c.l.b16 %v9404
        %v10136 = vunpack.c.h.b16 %v9404
        %v10137 = vunpack.c.l.b16 %v9405
        %v10138 = vunpack.c.h.b16 %v9405
        %v10139 = vunpack.c.l.b16 %v9406
        %v10140 = vunpack.c.h.b16 %v9406
        %v10141 = vunpack.c.l.b16 %v9407
        %v10142 = vunpack.c.h.b16 %v9407
        %v10143 = vunpack.c.l.b16 %v9408
        %v10144 = vunpack.c.h.b16 %v9408
        %v10145 = vunpack.c.l.b16 %v9409
        %v10146 = vunpack.c.h.b16 %v9409
        %v10147 = vunpack.c.l.b16 %v9410
        %v10148 = vunpack.c.h.b16 %v9410
        %v10149 = vunpack.c.l.b16 %v9411
        %v10150 = vunpack.c.h.b16 %v9411
        %v10151 = vunpack.c.l.b16 %v9412
        %v10152 = vunpack.c.h.b16 %v9412
        %v10153 = vunpack.c.l.b16 %v9413
        %v10154 = vunpack.c.h.b16 %v9413
        %v10155 = vunpack.c.l.b16 %v9414
        %v10156 = vunpack.c.h.b16 %v9414
        %v10157 = vunpack.c.l.b16 %v9415
        %v10158 = vunpack.c.h.b16 %v9415
        %v10159 = vunpack.c.l.b16 %v9416
        %v10160 = vunpack.c.h.b16 %v9416
        %v10161 = vunpack.c.l.b16 %v9417
        %v10162 = vunpack.c.h.b16 %v9417
        %v10163 = vunpack.c.l.b16 %v9418
        %v10164 = vunpack.c.h.b16 %v9418
        %v10165 = vunpack.c.l.b16 %v9419
        %v10166 = vunpack.c.h.b16 %v9419
        %v10167 = vunpack.c.l.b16 %v9420
        %v10168 = vunpack.c.h.b16 %v9420
        %v10169 = vunpack.c.l.b16 %v9421
        %v10170 = vunpack.c.h.b16 %v9421
        %v10171 = vunpack.c.l.b16 %v9422
        %v10172 = vunpack.c.h.b16 %v9422
        %v10173 = vunpack.c.l.b16 %v9423
        %v10174 = vunpack.c.h.b16 %v9423
        %v10175 = vunpack.c.l.b16 %v9424
        %v10176 = vunpack.c.h.b16 %v9424
        %v10177 = vunpack.c.l.b16 %v9425
        %v10178 = vunpack.c.h.b16 %v9425
        %v10179 = vunpack.c.l.b16 %v9426
        %v10180 = vunpack.c.h.b16 %v9426
        %v10181 = vunpack.c.l.b16 %v9427
        %v10182 = vunpack.c.h.b16 %v9427
        %v10183 = vunpack.c.l.b16 %v9428
        %v10184 = vunpack.c.h.b16 %v9428
        %v10185 = vunpack.c.l.b16 %v9429
        %v10186 = vunpack.c.h.b16 %v9429
        %v10187 = vunpack.c.l.b16 %v9430
        %v10188 = vunpack.c.h.b16 %v9430
        %v10189 = vunpack.c.l.b16 %v9431
        %v10190 = vunpack.c.h.b16 %v9431
        %v10191 = vunpack.c.l.b16 %v9432
        %v10192 = vunpack.c.h.b16 %v9432
        %v10193 = vunpack.c.l.b16 %v9433
        %v10194 = vunpack.c.h.b16 %v9433
        %v10195 = vunpack.c.l.b16 %v9434
        %v10196 = vunpack.c.h.b16 %v9434
        %v10197 = vunpack.c.l.b16 %v9435
        %v10198 = vunpack.c.h.b16 %v9435
        %v10199 = vunpack.c.l.b16 %v9436
        %v10200 = vunpack.c.h.b16 %v9436
        %v10201 = vunpack.c.l.b16 %v9437
        %v10202 = vunpack.c.h.b16 %v9437
        %v10203 = vunpack.c.l.b16 %v9438
        %v10204 = vunpack.c.h.b16 %v9438
        %v10205 = vunpack.c.l.b16 %v9439
        %v10206 = vunpack.c.h.b16 %v9439
        %v10207 = vunpack.c.l.b16 %v9440
        %v10208 = vunpack.c.h.b16 %v9440
        %v10209 = vunpack.c.l.b16 %v9441
        %v10210 = vunpack.c.h.b16 %v9441
        %v10211 = vunpack.c.l.b16 %v9442
        %v10212 = vunpack.c.h.b16 %v9442
        %v10213 = vunpack.c.l.b16 %v9443
        %v10214 = vunpack.c.h.b16 %v9443
        %v10215 = vunpack.c.l.b16 %v9444
        %v10216 = vunpack.c.h.b16 %v9444
        %v10217 = vunpack.c.l.b16 %v9445
        %v10218 = vunpack.c.h.b16 %v9445
        %v10219 = vunpack.c.l.b16 %v9446
        %v10220 = vunpack.c.h.b16 %v9446
        %v10221 = vunpack.c.l.b16 %v9447
        %v10222 = vunpack.c.h.b16 %v9447
        %v10223 = vunpack.c.l.b16 %v9448
        %v10224 = vunpack.c.h.b16 %v9448
        %v10225 = vunpack.c.l.b16 %v9449
        %v10226 = vunpack.c.h.b16 %v9449
        %v10227 = vunpack.c.l.b16 %v9450
        %v10228 = vunpack.c.h.b16 %v9450
        %v10229 = vunpack.c.l.b16 %v9451
        %v10230 = vunpack.c.h.b16 %v9451
        %v10231 = vunpack.c.l.b16 %v9452
        %v10232 = vunpack.c.h.b16 %v9452
        %v10233 = vunpack.c.l.b16 %v9453
        %v10234 = vunpack.c.h.b16 %v9453
        %v10235 = vunpack.c.l.b16 %v9454
        %v10236 = vunpack.c.h.b16 %v9454
        %v10237 = vunpack.c.l.b16 %v9455
        %v10238 = vunpack.c.h.b16 %v9455
        %v10239 = vunpack.c.l.b16 %v9456
        %v10240 = vunpack.c.h.b16 %v9456
        %v10241 = vunpack.c.l.b16 %v9457
        %v10242 = vunpack.c.h.b16 %v9457
        %v10243 = vunpack.c.l.b16 %v9458
        %v10244 = vunpack.c.h.b16 %v9458
        %v10245 = vunpack.c.l.b16 %v9459
        %v10246 = vunpack.c.h.b16 %v9459
        %v10247 = vunpack.c.l.b16 %v9460
        %v10248 = vunpack.c.h.b16 %v9460
        %v10249 = vunpack.c.l.b16 %v9461
        %v10250 = vunpack.c.h.b16 %v9461
        %v10251 = vunpack.c.l.b16 %v9462
        %v10252 = vunpack.c.h.b16 %v9462
        %v10253 = vunpack.c.l.b16 %v9463
        %v10254 = vunpack.c.h.b16 %v9463
        %v10255 = vunpack.c.l.b16 %v9464
        %v10256 = vunpack.c.h.b16 %v9464
        %v10257 = vunpack.c.l.b16 %v9465
        %v10258 = vunpack.c.h.b16 %v9465
        %v10259 = vunpack.c.l.b16 %v9466
        %v10260 = vunpack.c.h.b16 %v9466
        %v10261 = vunpack.c.l.b16 %v9467
        %v10262 = vunpack.c.h.b16 %v9467
        %v10263 = vunpack.c.l.b16 %v9468
        %v10264 = vunpack.c.h.b16 %v9468
        %v10265 = vunpack.c.l.b16 %v9469
        %v10266 = vunpack.c.h.b16 %v9469
        %v10267 = vunpack.c.l.b16 %v9470
        %v10268 = vunpack.c.h.b16 %v9470
        %v10269 = vunpack.c.l.b16 %v9471
        %v10270 = vunpack.c.h.b16 %v9471
        %v10271 = vunpack.c.l.b16 %v9472
        %v10272 = vunpack.c.h.b16 %v9472
        %v10273 = vunpack.c.l.b16 %v9473
        %v10274 = vunpack.c.h.b16 %v9473
        %v10275 = vunpack.c.l.b16 %v9474
        %v10276 = vunpack.c.h.b16 %v9474
        %v10277 = vunpack.c.l.b16 %v9475
        %v10278 = vunpack.c.h.b16 %v9475
        %v10279 = vunpack.c.l.b16 %v9476
        %v10280 = vunpack.c.h.b16 %v9476
        %v10281 = vunpack.c.l.b16 %v9477
        %v10282 = vunpack.c.h.b16 %v9477
        %v10283 = vunpack.c.l.b16 %v9478
        %v10284 = vunpack.c.h.b16 %v9478
        %v10285 = vunpack.c.l.b16 %v9479
        %v10286 = vunpack.c.h.b16 %v9479
        %v10287 = vunpack.c.l.b16 %v9480
        %v10288 = vunpack.c.h.b16 %v9480
        %v10289 = vunpack.c.l.b16 %v9481
        %v10290 = vunpack.c.h.b16 %v9481
        %v10291 = vunpack.c.l.b16 %v9482
        %v10292 = vunpack.c.h.b16 %v9482
        %v10293 = vunpack.c.l.b16 %v9483
        %v10294 = vunpack.c.h.b16 %v9483
        %v10295 = vunpack.c.l.b16 %v9484
        %v10296 = vunpack.c.h.b16 %v9484
        %v10297 = vunpack.c.l.b16 %v9485
        %v10298 = vunpack.c.h.b16 %v9485
        %v10299 = vunpack.c.l.b16 %v9486
        %v10300 = vunpack.c.h.b16 %v9486
        %v10301 = vunpack.c.l.b16 %v9487
        %v10302 = vunpack.c.h.b16 %v9487
        %v10303 = vunpack.c.l.b16 %v9488
        %v10304 = vunpack.c.h.b16 %v9488
        %v10305 = vunpack.c.l.b16 %v9489
        %v10306 = vunpack.c.h.b16 %v9489
        %v10307 = vunpack.c.l.b16 %v9490
        %v10308 = vunpack.c.h.b16 %v9490
        %v10309 = vunpack.c.l.b16 %v9491
        %v10310 = vunpack.c.h.b16 %v9491
        %v10311 = vunpack.c.l.b16 %v9492
        %v10312 = vunpack.c.h.b16 %v9492
        %v10313 = vunpack.c.l.b16 %v9493
        %v10314 = vunpack.c.h.b16 %v9493
        %v10315 = vunpack.c.l.b16 %v9494
        %v10316 = vunpack.c.h.b16 %v9494
        %v10317 = vunpack.c.l.b16 %v9495
        %v10318 = vunpack.c.h.b16 %v9495
        %v10319 = vunpack.c.l.b16 %v9496
        %v10320 = vunpack.c.h.b16 %v9496
        %v10321 = vunpack.c.l.b16 %v9497
        %v10322 = vunpack.c.h.b16 %v9497
        %v10323 = vunpack.c.l.b16 %v9498
        %v10324 = vunpack.c.h.b16 %v9498
        %v10325 = vunpack.c.l.b16 %v9499
        %v10326 = vunpack.c.h.b16 %v9499
        %v10327 = vunpack.c.l.b16 %v9500
        %v10328 = vunpack.c.h.b16 %v9500
        %v10329 = vunpack.c.l.b16 %v9501
        %v10330 = vunpack.c.h.b16 %v9501
        %v10331 = vunpack.c.l.b16 %v9502
        %v10332 = vunpack.c.h.b16 %v9502
        %v10333 = vunpack.c.l.b16 %v9503
        %v10334 = vunpack.c.h.b16 %v9503
        %v10335 = vunpack.c.l.b16 %v9504
        %v10336 = vunpack.c.h.b16 %v9504
        %v10337 = vunpack.c.l.b16 %v9505
        %v10338 = vunpack.c.h.b16 %v9505
        %v10339 = vunpack.c.l.b16 %v9506
        %v10340 = vunpack.c.h.b16 %v9506
        %v10341 = vunpack.c.l.b16 %v9507
        %v10342 = vunpack.c.h.b16 %v9507
        %v10343 = vunpack.c.l.b16 %v9508
        %v10344 = vunpack.c.h.b16 %v9508
        %v10345 = vunpack.c.l.b16 %v9509
        %v10346 = vunpack.c.h.b16 %v9509
        %v10347 = vunpack.c.l.b16 %v9510
        %v10348 = vunpack.c.h.b16 %v9510
        %v10349 = vunpack.c.l.b16 %v9511
        %v10350 = vunpack.c.h.b16 %v9511
        %v10351 = vunpack.c.l.b16 %v9512
        %v10352 = vunpack.c.h.b16 %v9512
        %v10353 = vunpack.c.l.b16 %v9513
        %v10354 = vunpack.c.h.b16 %v9513
        %v10355 = vunpack.c.l.b16 %v9514
        %v10356 = vunpack.c.h.b16 %v9514
        %v10357 = vunpack.c.l.b16 %v9515
        %v10358 = vunpack.c.h.b16 %v9515
        %v10359 = vunpack.c.l.b16 %v9516
        %v10360 = vunpack.c.h.b16 %v9516
        %v10361 = vunpack.c.l.b16 %v9517
        %v10362 = vunpack.c.h.b16 %v9517
        %v10363 = vunpack.c.l.b16 %v9518
        %v10364 = vunpack.c.h.b16 %v9518
        %v10365 = vunpack.c.l.b16 %v9519
        %v10366 = vunpack.c.h.b16 %v9519
        %v10367 = vunpack.c.l.b16 %v9520
        %v10368 = vunpack.c.h.b16 %v9520
        %v10369 = vunpack.c.l.b16 %v9521
        %v10370 = vunpack.c.h.b16 %v9521
        %v10371 = vunpack.c.l.b16 %v9522
        %v10372 = vunpack.c.h.b16 %v9522
        %v10373 = vunpack.c.l.b16 %v9523
        %v10374 = vunpack.c.h.b16 %v9523
        %v10375 = vunpack.c.l.b16 %v9524
        %v10376 = vunpack.c.h.b16 %v9524
        %v10377 = vunpack.c.l.b16 %v9525
        %v10378 = vunpack.c.h.b16 %v9525
        %v10379 = vunpack.c.l.b16 %v9526
        %v10380 = vunpack.c.h.b16 %v9526
        %v10381 = vunpack.c.l.b16 %v9527
        %v10382 = vunpack.c.h.b16 %v9527
        %v10383 = vunpack.c.l.b16 %v9528
        %v10384 = vunpack.c.h.b16 %v9528
        %v10385 = vunpack.c.l.b16 %v9529
        %v10386 = vunpack.c.h.b16 %v9529
        %v10387 = vunpack.c.l.b16 %v9530
        %v10388 = vunpack.c.h.b16 %v9530
        %v10389 = vunpack.c.l.b16 %v9531
        %v10390 = vunpack.c.h.b16 %v9531
        %v10391 = vunpack.c.l.b16 %v9532
        %v10392 = vunpack.c.h.b16 %v9532
        %v10393 = vunpack.c.l.b16 %v9533
        %v10394 = vunpack.c.h.b16 %v9533
        %v10395 = vunpack.c.l.b16 %v9534
        %v10396 = vunpack.c.h.b16 %v9534
        %v10397 = vunpack.c.l.b16 %v9535
        %v10398 = vunpack.c.h.b16 %v9535
        %v10399 = vunpack.c.l.b16 %v9536
        %v10400 = vunpack.c.h.b16 %v9536
        %v10401 = vpack.c.b16 %v9827, %v9825
        %v10402 = vpack.c.b16 %v9828, %v9826
        %v10403 = vpack.c.b16 %v9831, %v9829
        %v10404 = vpack.c.b16 %v9832, %v9830
        %v10405 = vpack.c.b16 %v9835, %v9833
        %v10406 = vpack.c.b16 %v9836, %v9834
        %v10407 = vpack.c.b16 %v9839, %v9837
        %v10408 = vpack.c.b16 %v9840, %v9838
        %v10409 = vpack.c.b16 %v9843, %v9841
        %v10410 = vpack.c.b16 %v9844, %v9842
        %v10411 = vpack.c.b16 %v9847, %v9845
        %v10412 = vpack.c.b16 %v9848, %v9846
        %v10413 = vpack.c.b16 %v9851, %v9849
        %v10414 = vpack.c.b16 %v9852, %v9850
        %v10415 = vpack.c.b16 %v9855, %v9853
        %v10416 = vpack.c.b16 %v9856, %v9854
        %v10417 = vpack.c.b16 %v9859, %v9857
        %v10418 = vpack.c.b16 %v9860, %v9858
        %v10419 = vpack.c.b16 %v9863, %v9861
        %v10420 = vpack.c.b16 %v9864, %v9862
        %v10421 = vpack.c.b16 %v9867, %v9865
        %v10422 = vpack.c.b16 %v9868, %v9866
        %v10423 = vpack.c.b16 %v9871, %v9869
        %v10424 = vpack.c.b16 %v9872, %v9870
        %v10425 = vpack.c.b16 %v9875, %v9873
        %v10426 = vpack.c.b16 %v9876, %v9874
        %v10427 = vpack.c.b16 %v9879, %v9877
        %v10428 = vpack.c.b16 %v9880, %v9878
        %v10429 = vpack.c.b16 %v9883, %v9881
        %v10430 = vpack.c.b16 %v9884, %v9882
        %v10431 = vpack.c.b16 %v9887, %v9885
        %v10432 = vpack.c.b16 %v9888, %v9886
        %v10433 = vpack.c.b16 %v9891, %v9889
        %v10434 = vpack.c.b16 %v9892, %v9890
        %v10435 = vpack.c.b16 %v9895, %v9893
        %v10436 = vpack.c.b16 %v9896, %v9894
        %v10437 = vpack.c.b16 %v9899, %v9897
        %v10438 = vpack.c.b16 %v9900, %v9898
        %v10439 = vpack.c.b16 %v9903, %v9901
        %v10440 = vpack.c.b16 %v9904, %v9902
        %v10441 = vpack.c.b16 %v9907, %v9905
        %v10442 = vpack.c.b16 %v9908, %v9906
        %v10443 = vpack.c.b16 %v9911, %v9909
        %v10444 = vpack.c.b16 %v9912, %v9910
        %v10445 = vpack.c.b16 %v9915, %v9913
        %v10446 = vpack.c.b16 %v9916, %v9914
        %v10447 = vpack.c.b16 %v9919, %v9917
        %v10448 = vpack.c.b16 %v9920, %v9918
        %v10449 = vpack.c.b16 %v9923, %v9921
        %v10450 = vpack.c.b16 %v9924, %v9922
        %v10451 = vpack.c.b16 %v9927, %v9925
        %v10452 = vpack.c.b16 %v9928, %v9926
        %v10453 = vpack.c.b16 %v9931, %v9929
        %v10454 = vpack.c.b16 %v9932, %v9930
        %v10455 = vpack.c.b16 %v9935, %v9933
        %v10456 = vpack.c.b16 %v9936, %v9934
        %v10457 = vpack.c.b16 %v9939, %v9937
        %v10458 = vpack.c.b16 %v9940, %v9938
        %v10459 = vpack.c.b16 %v9943, %v9941
        %v10460 = vpack.c.b16 %v9944, %v9942
        %v10461 = vpack.c.b16 %v9947, %v9945
        %v10462 = vpack.c.b16 %v9948, %v9946
        %v10463 = vpack.c.b16 %v9951, %v9949
        %v10464 = vpack.c.b16 %v9952, %v9950
        %v10465 = vpack.c.b16 %v9955, %v9953
        %v10466 = vpack.c.b16 %v9956, %v9954
        %v10467 = vpack.c.b16 %v9959, %v9957
        %v10468 = vpack.c.b16 %v9960, %v9958
        %v10469 = vpack.c.b16 %v9963, %v9961
        %v10470 = vpack.c.b16 %v9964, %v9962
        %v10471 = vpack.c.b16 %v9967, %v9965
        %v10472 = vpack.c.b16 %v9968, %v9966
        %v10473 = vpack.c.b16 %v9971, %v9969
        %v10474 = vpack.c.b16 %v9972, %v9970
        %v10475 = vpack.c.b16 %v9975, %v9973
        %v10476 = vpack.c.b16 %v9976, %v9974
        %v10477 = vpack.c.b16 %v9979, %v9977
        %v10478 = vpack.c.b16 %v9980, %v9978
        %v10479 = vpack.c.b16 %v9983, %v9981
        %v10480 = vpack.c.b16 %v9984, %v9982
        %v10481 = vpack.c.b16 %v9987, %v9985
        %v10482 = vpack.c.b16 %v9988, %v9986
        %v10483 = vpack.c.b16 %v9991, %v9989
        %v10484 = vpack.c.b16 %v9992, %v9990
        %v10485 = vpack.c.b16 %v9995, %v9993
        %v10486 = vpack.c.b16 %v9996, %v9994
        %v10487 = vpack.c.b16 %v9999, %v9997
        %v10488 = vpack.c.b16 %v10000, %v9998
        %v10489 = vpack.c.b16 %v10003, %v10001
        %v10490 = vpack.c.b16 %v10004, %v10002
        %v10491 = vpack.c.b16 %v10007, %v10005
        %v10492 = vpack.c.b16 %v10008, %v10006
        %v10493 = vpack.c.b16 %v10011, %v10009
        %v10494 = vpack.c.b16 %v10012, %v10010
        %v10495 = vpack.c.b16 %v10015, %v10013
        %v10496 = vpack.c.b16 %v10016, %v10014
        %v10497 = vpack.c.b16 %v10019, %v10017
        %v10498 = vpack.c.b16 %v10020, %v10018
        %v10499 = vpack.c.b16 %v10023, %v10021
        %v10500 = vpack.c.b16 %v10024, %v10022
        %v10501 = vpack.c.b16 %v10027, %v10025
        %v10502 = vpack.c.b16 %v10028, %v10026
        %v10503 = vpack.c.b16 %v10031, %v10029
        %v10504 = vpack.c.b16 %v10032, %v10030
        %v10505 = vpack.c.b16 %v10035, %v10033
        %v10506 = vpack.c.b16 %v10036, %v10034
        %v10507 = vpack.c.b16 %v10039, %v10037
        %v10508 = vpack.c.b16 %v10040, %v10038
        %v10509 = vpack.c.b16 %v10043, %v10041
        %v10510 = vpack.c.b16 %v10044, %v10042
        %v10511 = vpack.c.b16 %v10047, %v10045
        %v10512 = vpack.c.b16 %v10048, %v10046
        %v10513 = vpack.c.b16 %v10051, %v10049
        %v10514 = vpack.c.b16 %v10052, %v10050
        %v10515 = vpack.c.b16 %v10055, %v10053
        %v10516 = vpack.c.b16 %v10056, %v10054
        %v10517 = vpack.c.b16 %v10059, %v10057
        %v10518 = vpack.c.b16 %v10060, %v10058
        %v10519 = vpack.c.b16 %v10063, %v10061
        %v10520 = vpack.c.b16 %v10064, %v10062
        %v10521 = vpack.c.b16 %v10067, %v10065
        %v10522 = vpack.c.b16 %v10068, %v10066
        %v10523 = vpack.c.b16 %v10071, %v10069
        %v10524 = vpack.c.b16 %v10072, %v10070
        %v10525 = vpack.c.b16 %v10075, %v10073
        %v10526 = vpack.c.b16 %v10076, %v10074
        %v10527 = vpack.c.b16 %v10079, %v10077
        %v10528 = vpack.c.b16 %v10080, %v10078
        %v10529 = vpack.c.b16 %v10083, %v10081
        %v10530 = vpack.c.b16 %v10084, %v10082
        %v10531 = vpack.c.b16 %v10087, %v10085
        %v10532 = vpack.c.b16 %v10088, %v10086
        %v10533 = vpack.c.b16 %v10091, %v10089
        %v10534 = vpack.c.b16 %v10092, %v10090
        %v10535 = vpack.c.b16 %v10095, %v10093
        %v10536 = vpack.c.b16 %v10096, %v10094
        %v10537 = vpack.c.b16 %v10099, %v10097
        %v10538 = vpack.c.b16 %v10100, %v10098
        %v10539 = vpack.c.b16 %v10103, %v10101
        %v10540 = vpack.c.b16 %v10104, %v10102
        %v10541 = vpack.c.b16 %v10107, %v10105
        %v10542 = vpack.c.b16 %v10108, %v10106
        %v10543 = vpack.c.b16 %v10111, %v10109
        %v10544 = vpack.c.b16 %v10112, %v10110
        %v10545 = vpack.c.b16 %v10115, %v10113
        %v10546 = vpack.c.b16 %v10116, %v10114
        %v10547 = vpack.c.b16 %v10119, %v10117
        %v10548 = vpack.c.b16 %v10120, %v10118
        %v10549 = vpack.c.b16 %v10123, %v10121
        %v10550 = vpack.c.b16 %v10124, %v10122
        %v10551 = vpack.c.b16 %v10127, %v10125
        %v10552 = vpack.c.b16 %v10128, %v10126
        %v10553 = vpack.c.b16 %v10131, %v10129
        %v10554 = vpack.c.b16 %v10132, %v10130
        %v10555 = vpack.c.b16 %v10135, %v10133
        %v10556 = vpack.c.b16 %v10136, %v10134
        %v10557 = vpack.c.b16 %v10139, %v10137
        %v10558 = vpack.c.b16 %v10140, %v10138
        %v10559 = vpack.c.b16 %v10143, %v10141
        %v10560 = vpack.c.b16 %v10144, %v10142
        %v10561 = vpack.c.b16 %v10147, %v10145
        %v10562 = vpack.c.b16 %v10148, %v10146
        %v10563 = vpack.c.b16 %v10151, %v10149
        %v10564 = vpack.c.b16 %v10152, %v10150
        %v10565 = vpack.c.b16 %v10155, %v10153
        %v10566 = vpack.c.b16 %v10156, %v10154
        %v10567 = vpack.c.b16 %v10159, %v10157
        %v10568 = vpack.c.b16 %v10160, %v10158
        %v10569 = vpack.c.b16 %v10163, %v10161
        %v10570 = vpack.c.b16 %v10164, %v10162
        %v10571 = vpack.c.b16 %v10167, %v10165
        %v10572 = vpack.c.b16 %v10168, %v10166
        %v10573 = vpack.c.b16 %v10171, %v10169
        %v10574 = vpack.c.b16 %v10172, %v10170
        %v10575 = vpack.c.b16 %v10175, %v10173
        %v10576 = vpack.c.b16 %v10176, %v10174
        %v10577 = vpack.c.b16 %v10179, %v10177
        %v10578 = vpack.c.b16 %v10180, %v10178
        %v10579 = vpack.c.b16 %v10183, %v10181
        %v10580 = vpack.c.b16 %v10184, %v10182
        %v10581 = vpack.c.b16 %v10187, %v10185
        %v10582 = vpack.c.b16 %v10188, %v10186
        %v10583 = vpack.c.b16 %v10191, %v10189
        %v10584 = vpack.c.b16 %v10192, %v10190
        %v10585 = vpack.c.b16 %v10195, %v10193
        %v10586 = vpack.c.b16 %v10196, %v10194
        %v10587 = vpack.c.b16 %v10199, %v10197
        %v10588 = vpack.c.b16 %v10200, %v10198
        %v10589 = vpack.c.b16 %v10203, %v10201
        %v10590 = vpack.c.b16 %v10204, %v10202
        %v10591 = vpack.c.b16 %v10207, %v10205
        %v10592 = vpack.c.b16 %v10208, %v10206
        %v10593 = vpack.c.b16 %v10211, %v10209
        %v10594 = vpack.c.b16 %v10212, %v10210
        %v10595 = vpack.c.b16 %v10215, %v10213
        %v10596 = vpack.c.b16 %v10216, %v10214
        %v10597 = vpack.c.b16 %v10219, %v10217
        %v10598 = vpack.c.b16 %v10220, %v10218
        %v10599 = vpack.c.b16 %v10223, %v10221
        %v10600 = vpack.c.b16 %v10224, %v10222
        %v10601 = vpack.c.b16 %v10227, %v10225
        %v10602 = vpack.c.b16 %v10228, %v10226
        %v10603 = vpack.c.b16 %v10231, %v10229
        %v10604 = vpack.c.b16 %v10232, %v10230
        %v10605 = vpack.c.b16 %v10235, %v10233
        %v10606 = vpack.c.b16 %v10236, %v10234
        %v10607 = vpack.c.b16 %v10239, %v10237
        %v10608 = vpack.c.b16 %v10240, %v10238
        %v10609 = vpack.c.b16 %v10243, %v10241
        %v10610 = vpack.c.b16 %v10244, %v10242
        %v10611 = vpack.c.b16 %v10247, %v10245
        %v10612 = vpack.c.b16 %v10248, %v10246
        %v10613 = vpack.c.b16 %v10251, %v10249
        %v10614 = vpack.c.b16 %v10252, %v10250
        %v10615 = vpack.c.b16 %v10255, %v10253
        %v10616 = vpack.c.b16 %v10256, %v10254
        %v10617 = vpack.c.b16 %v10259, %v10257
        %v10618 = vpack.c.b16 %v10260, %v10258
        %v10619 = vpack.c.b16 %v10263, %v10261
        %v10620 = vpack.c.b16 %v10264, %v10262
        %v10621 = vpack.c.b16 %v10267, %v10265
        %v10622 = vpack.c.b16 %v10268, %v10266
        %v10623 = vpack.c.b16 %v10271, %v10269
        %v10624 = vpack.c.b16 %v10272, %v10270
        %v10625 = vpack.c.b16 %v10275, %v10273
        %v10626 = vpack.c.b16 %v10276, %v10274
        %v10627 = vpack.c.b16 %v10279, %v10277
        %v10628 = vpack.c.b16 %v10280, %v10278
        %v10629 = vpack.c.b16 %v10283, %v10281
        %v10630 = vpack.c.b16 %v10284, %v10282
        %v10631 = vpack.c.b16 %v10287, %v10285
        %v10632 = vpack.c.b16 %v10288, %v10286
        %v10633 = vpack.c.b16 %v10291, %v10289
        %v10634 = vpack.c.b16 %v10292, %v10290
        %v10635 = vpack.c.b16 %v10295, %v10293
        %v10636 = vpack.c.b16 %v10296, %v10294
        %v10637 = vpack.c.b16 %v10299, %v10297
        %v10638 = vpack.c.b16 %v10300, %v10298
        %v10639 = vpack.c.b16 %v10303, %v10301
        %v10640 = vpack.c.b16 %v10304, %v10302
        %v10641 = vpack.c.b16 %v10307, %v10305
        %v10642 = vpack.c.b16 %v10308, %v10306
        %v10643 = vpack.c.b16 %v10311, %v10309
        %v10644 = vpack.c.b16 %v10312, %v10310
        %v10645 = vpack.c.b16 %v10315, %v10313
        %v10646 = vpack.c.b16 %v10316, %v10314
        %v10647 = vpack.c.b16 %v10319, %v10317
        %v10648 = vpack.c.b16 %v10320, %v10318
        %v10649 = vpack.c.b16 %v10323, %v10321
        %v10650 = vpack.c.b16 %v10324, %v10322
        %v10651 = vpack.c.b16 %v10327, %v10325
        %v10652 = vpack.c.b16 %v10328, %v10326
        %v10653 = vpack.c.b16 %v10331, %v10329
        %v10654 = vpack.c.b16 %v10332, %v10330
        %v10655 = vpack.c.b16 %v10335, %v10333
        %v10656 = vpack.c.b16 %v10336, %v10334
        %v10657 = vpack.c.b16 %v10339, %v10337
        %v10658 = vpack.c.b16 %v10340, %v10338
        %v10659 = vpack.c.b16 %v10343, %v10341
        %v10660 = vpack.c.b16 %v10344, %v10342
        %v10661 = vpack.c.b16 %v10347, %v10345
        %v10662 = vpack.c.b16 %v10348, %v10346
        %v10663 = vpack.c.b16 %v10351, %v10349
        %v10664 = vpack.c.b16 %v10352, %v10350
        %v10665 = vpack.c.b16 %v10355, %v10353
        %v10666 = vpack.c.b16 %v10356, %v10354
        %v10667 = vpack.c.b16 %v10359, %v10357
        %v10668 = vpack.c.b16 %v10360, %v10358
        %v10669 = vpack.c.b16 %v10363, %v10361
        %v10670 = vpack.c.b16 %v10364, %v10362
        %v10671 = vpack.c.b16 %v10367, %v10365
        %v10672 = vpack.c.b16 %v10368, %v10366
        %v10673 = vpack.c.b16 %v10371, %v10369
        %v10674 = vpack.c.b16 %v10372, %v10370
        %v10675 = vpack.c.b16 %v10375, %v10373
        %v10676 = vpack.c.b16 %v10376, %v10374
        %v10677 = vpack.c.b16 %v10379, %v10377
        %v10678 = vpack.c.b16 %v10380, %v10378
        %v10679 = vpack.c.b16 %v10383, %v10381
        %v10680 = vpack.c.b16 %v10384, %v10382
        %v10681 = vpack.c.b16 %v10387, %v10385
        %v10682 = vpack.c.b16 %v10388, %v10386
        %v10683 = vpack.c.b16 %v10391, %v10389
        %v10684 = vpack.c.b16 %v10392, %v10390
        %v10685 = vpack.c.b16 %v10395, %v10393
        %v10686 = vpack.c.b16 %v10396, %v10394
        %v10687 = vpack.c.b16 %v10399, %v10397
        %v10688 = vpack.c.b16 %v10400, %v10398
        %10977 = vmatprep.subr.bf16.mxu0 %v10402
        %10978 = vmatpush1.bf16.msra.mxu0 %v10401
        %10979 = vmatprep.subr.bf16.mxu0 %v10404
        %10980 = vmatpush1.bf16.msra.mxu0 %v10403
        %10981 = vmatprep.subr.bf16.mxu0 %v10406
        %10982 = vmatpush1.bf16.msra.mxu0 %v10405
        %10983 = vmatprep.subr.bf16.mxu0 %v10408
        %10984 = vmatpush1.bf16.msra.mxu0 %v10407
        %10985 = vmatprep.subr.bf16.mxu0 %v10410
        %10986 = vmatpush1.bf16.msra.mxu0 %v10409
        %10987 = vmatprep.subr.bf16.mxu0 %v10412
        %10988 = vmatpush1.bf16.msra.mxu0 %v10411
        %10989 = vmatprep.subr.bf16.mxu0 %v10414
        %10990 = vmatpush1.bf16.msra.mxu0 %v10413
        %10991 = vmatprep.subr.bf16.mxu0 %v10416
        %10992 = vmatpush1.bf16.msra.mxu0 %v10415
        %10993 = vmatprep.subr.bf16.mxu0 %v10418
        %10994 = vmatpush1.bf16.msra.mxu0 %v10417
        %10995 = vmatprep.subr.bf16.mxu0 %v10420
        %10996 = vmatpush1.bf16.msra.mxu0 %v10419
        %10997 = vmatprep.subr.bf16.mxu0 %v10422
        %10998 = vmatpush1.bf16.msra.mxu0 %v10421
        %10999 = vmatprep.subr.bf16.mxu0 %v10424
        %11000 = vmatpush1.bf16.msra.mxu0 %v10423
        %11001 = vmatprep.subr.bf16.mxu0 %v10426
        %11002 = vmatpush1.bf16.msra.mxu0 %v10425
        %11003 = vmatprep.subr.bf16.mxu0 %v10428
        %11004 = vmatpush1.bf16.msra.mxu0 %v10427
        %11005 = vmatprep.subr.bf16.mxu0 %v10430
        %11006 = vmatpush1.bf16.msra.mxu0 %v10429
        %11007 = vmatprep.subr.bf16.mxu0 %v10432
        %11008 = vmatpush1.bf16.msra.mxu0 %v10431
        %11009 = vmatprep.mubr.bf16.mxu0 %v8130
        %11010 = vmatmul.mubr.bf16.gmra.mrb[0].mxu0 %v8129
        %v11011 = vpop.f32.mrb[0].mxu0
        %v11012 = vadd.f32 0.0, %v11011
        %v11013 = vpop.f32.mrb[0].mxu0
        %v11014 = vadd.f32 0.0, %v11013
        %v11015 = vpop.f32.mrb[0].mxu0
        %v11016 = vadd.f32 0.0, %v11015
        %v11017 = vpop.f32.mrb[0].mxu0
        %v11018 = vadd.f32 0.0, %v11017
        %11019 = vmatprep.mubr.bf16.mxu0 %v8132
        %11020 = vmatmul.mubr.bf16.gmra.mrb[0].mxu0 %v8131
        %v11021 = vpop.f32.mrb[0].mxu0
        %v11022 = vadd.f32 0.0, %v11021
        %v11023 = vpop.f32.mrb[0].mxu0
        %v11024 = vadd.f32 0.0, %v11023
        %v11025 = vpop.f32.mrb[0].mxu0
        %v11026 = vadd.f32 0.0, %v11025
        %v11027 = vpop.f32.mrb[0].mxu0
        %v11028 = vadd.f32 0.0, %v11027
        %11029 = vmatprep.mubr.bf16.mxu0 %v8134
        %11030 = vmatmul.mubr.bf16.gmra.mrb[0].mxu0 %v8133
        %v11031 = vpop.f32.mrb[0].mxu0
        %v11032 = vadd.f32 0.0, %v11031
        %v11033 = vpop.f32.mrb[0].mxu0
        %v11034 = vadd.f32 0.0, %v11033
        %v11035 = vpop.f32.mrb[0].mxu0
        %v11036 = vadd.f32 0.0, %v11035
        %v11037 = vpop.f32.mrb[0].mxu0
        %v11038 = vadd.f32 0.0, %v11037
        %11039 = vmatprep.mubr.bf16.mxu0 %v8136
        %11040 = vmatmul.mubr.bf16.gmra.mrb[0].mxu0 %v8135
        %v11041 = vpop.f32.mrb[0].mxu0
        %v11042 = vadd.f32 0.0, %v11041
        %v11043 = vpop.f32.mrb[0].mxu0
        %v11044 = vadd.f32 0.0, %v11043
        %v11045 = vpop.f32.mrb[0].mxu0
        %v11046 = vadd.f32 0.0, %v11045
        %v11047 = vpop.f32.mrb[0].mxu0
        %v11048 = vadd.f32 0.0, %v11047
        %11049 = vmatprep.mubr.bf16.mxu0 %v8138
        %11050 = vmatmul.mubr.bf16.gmra.mrb[0].mxu0 %v8137
        %v11051 = vpop.f32.mrb[0].mxu0
        %v11052 = vadd.f32 0.0, %v11051
        %v11053 = vpop.f32.mrb[0].mxu0
        %v11054 = vadd.f32 0.0, %v11053
        %v11055 = vpop.f32.mrb[0].mxu0
        %v11056 = vadd.f32 0.0, %v11055
        %v11057 = vpop.f32.mrb[0].mxu0
        %v11058 = vadd.f32 0.0, %v11057
        %11059 = vmatprep.mubr.bf16.mxu0 %v8140
        %11060 = vmatmul.mubr.bf16.gmra.mrb[0].mxu0 %v8139
        %v11061 = vpop.f32.mrb[0].mxu0
        %v11062 = vadd.f32 0.0, %v11061
        %v11063 = vpop.f32.mrb[0].mxu0
        %v11064 = vadd.f32 0.0, %v11063
        %v11065 = vpop.f32.mrb[0].mxu0
        %v11066 = vadd.f32 0.0, %v11065
        %v11067 = vpop.f32.mrb[0].mxu0
        %v11068 = vadd.f32 0.0, %v11067
        %11069 = vmatprep.mubr.bf16.mxu0 %v8142
        %11070 = vmatmul.mubr.bf16.gmra.mrb[0].mxu0 %v8141
        %v11071 = vpop.f32.mrb[0].mxu0
        %v11072 = vadd.f32 0.0, %v11071
        %v11073 = vpop.f32.mrb[0].mxu0
        %v11074 = vadd.f32 0.0, %v11073
        %v11075 = vpop.f32.mrb[0].mxu0
        %v11076 = vadd.f32 0.0, %v11075
        %v11077 = vpop.f32.mrb[0].mxu0
        %v11078 = vadd.f32 0.0, %v11077
        %11079 = vmatprep.mubr.bf16.mxu0 %v8144
        %11080 = vmatmul.mubr.bf16.gmra.mrb[0].mxu0 %v8143
        %v11081 = vpop.f32.mrb[0].mxu0
        %v11082 = vadd.f32 0.0, %v11081
        %v11083 = vpop.f32.mrb[0].mxu0
        %v11084 = vadd.f32 0.0, %v11083
        %v11085 = vpop.f32.mrb[0].mxu0
        %v11086 = vadd.f32 0.0, %v11085
        %v11087 = vpop.f32.mrb[0].mxu0
        %v11088 = vadd.f32 0.0, %v11087
        %11089 = vmatprep.mubr.bf16.mxu0 %v8146
        %11090 = vmatmul.mubr.bf16.gmra.mrb[0].mxu0 %v8145
        %v11091 = vpop.f32.mrb[0].mxu0
        %v11092 = vadd.f32 0.0, %v11091
        %v11093 = vpop.f32.mrb[0].mxu0
        %v11094 = vadd.f32 0.0, %v11093
        %v11095 = vpop.f32.mrb[0].mxu0
        %v11096 = vadd.f32 0.0, %v11095
        %v11097 = vpop.f32.mrb[0].mxu0
        %v11098 = vadd.f32 0.0, %v11097
        %11099 = vmatprep.mubr.bf16.mxu0 %v8148
        %11100 = vmatmul.mubr.bf16.gmra.mrb[0].mxu0 %v8147
        %v11101 = vpop.f32.mrb[0].mxu0
        %v11102 = vadd.f32 0.0, %v11101
        %v11103 = vpop.f32.mrb[0].mxu0
        %v11104 = vadd.f32 0.0, %v11103
        %v11105 = vpop.f32.mrb[0].mxu0
        %v11106 = vadd.f32 0.0, %v11105
        %v11107 = vpop.f32.mrb[0].mxu0
        %v11108 = vadd.f32 0.0, %v11107
        %11109 = vmatprep.mubr.bf16.mxu0 %v8150
        %11110 = vmatmul.mubr.bf16.gmra.mrb[0].mxu0 %v8149
        %v11111 = vpop.f32.mrb[0].mxu0
        %v11112 = vadd.f32 0.0, %v11111
        %v11113 = vpop.f32.mrb[0].mxu0
        %v11114 = vadd.f32 0.0, %v11113
        %v11115 = vpop.f32.mrb[0].mxu0
        %v11116 = vadd.f32 0.0, %v11115
        %v11117 = vpop.f32.mrb[0].mxu0
        %v11118 = vadd.f32 0.0, %v11117
        %11119 = vmatprep.mubr.bf16.mxu0 %v8152
        %11120 = vmatmul.mubr.bf16.gmra.mrb[0].mxu0 %v8151
        %v11121 = vpop.f32.mrb[0].mxu0
        %v11122 = vadd.f32 0.0, %v11121
        %v11123 = vpop.f32.mrb[0].mxu0
        %v11124 = vadd.f32 0.0, %v11123
        %v11125 = vpop.f32.mrb[0].mxu0
        %v11126 = vadd.f32 0.0, %v11125
        %v11127 = vpop.f32.mrb[0].mxu0
        %v11128 = vadd.f32 0.0, %v11127
        %11129 = vmatprep.mubr.bf16.mxu0 %v8154
        %11130 = vmatmul.mubr.bf16.gmra.mrb[0].mxu0 %v8153
        %v11131 = vpop.f32.mrb[0].mxu0
        %v11132 = vadd.f32 0.0, %v11131
        %v11133 = vpop.f32.mrb[0].mxu0
        %v11134 = vadd.f32 0.0, %v11133
        %v11135 = vpop.f32.mrb[0].mxu0
        %v11136 = vadd.f32 0.0, %v11135
        %v11137 = vpop.f32.mrb[0].mxu0
        %v11138 = vadd.f32 0.0, %v11137
        %11139 = vmatprep.mubr.bf16.mxu0 %v8156
        %11140 = vmatmul.mubr.bf16.gmra.mrb[0].mxu0 %v8155
        %v11141 = vpop.f32.mrb[0].mxu0
        %v11142 = vadd.f32 0.0, %v11141
        %v11143 = vpop.f32.mrb[0].mxu0
        %v11144 = vadd.f32 0.0, %v11143
        %v11145 = vpop.f32.mrb[0].mxu0
        %v11146 = vadd.f32 0.0, %v11145
        %v11147 = vpop.f32.mrb[0].mxu0
        %v11148 = vadd.f32 0.0, %v11147
        %11149 = vmatprep.mubr.bf16.mxu0 %v8158
        %11150 = vmatmul.mubr.bf16.gmra.mrb[0].mxu0 %v8157
        %v11151 = vpop.f32.mrb[0].mxu0
        %v11152 = vadd.f32 0.0, %v11151
        %v11153 = vpop.f32.mrb[0].mxu0
        %v11154 = vadd.f32 0.0, %v11153
        %v11155 = vpop.f32.mrb[0].mxu0
        %v11156 = vadd.f32 0.0, %v11155
        %v11157 = vpop.f32.mrb[0].mxu0
        %v11158 = vadd.f32 0.0, %v11157
        %11159 = vmatprep.mubr.bf16.mxu0 %v8160
        %11160 = vmatmul.mubr.bf16.gmra.mrb[0].mxu0 %v8159
        %v11161 = vpop.f32.mrb[0].mxu0
        %v11162 = vadd.f32 0.0, %v11161
        %v11163 = vpop.f32.mrb[0].mxu0
        %v11164 = vadd.f32 0.0, %v11163
        %v11165 = vpop.f32.mrb[0].mxu0
        %v11166 = vadd.f32 0.0, %v11165
        %v11167 = vpop.f32.mrb[0].mxu0
        %v11168 = vadd.f32 0.0, %v11167
        %11169 = vdwg.mxu0
        %11170 = vmatprep.subr.bf16.mxu0 %v10434
        %11171 = vmatpush1.bf16.msra.mxu0 %v10433
        %11172 = vmatprep.subr.bf16.mxu0 %v10436
        %11173 = vmatpush1.bf16.msra.mxu0 %v10435
        %11174 = vmatprep.subr.bf16.mxu0 %v10438
        %11175 = vmatpush1.bf16.msra.mxu0 %v10437
        %11176 = vmatprep.subr.bf16.mxu0 %v10440
        %11177 = vmatpush1.bf16.msra.mxu0 %v10439
        %11178 = vmatprep.subr.bf16.mxu0 %v10442
        %11179 = vmatpush1.bf16.msra.mxu0 %v10441
        %11180 = vmatprep.subr.bf16.mxu0 %v10444
        %11181 = vmatpush1.bf16.msra.mxu0 %v10443
        %11182 = vmatprep.subr.bf16.mxu0 %v10446
        %11183 = vmatpush1.bf16.msra.mxu0 %v10445
        %11184 = vmatprep.subr.bf16.mxu0 %v10448
        %11185 = vmatpush1.bf16.msra.mxu0 %v10447
        %11186 = vmatprep.subr.bf16.mxu0 %v10450
        %11187 = vmatpush1.bf16.msra.mxu0 %v10449
        %11188 = vmatprep.subr.bf16.mxu0 %v10452
        %11189 = vmatpush1.bf16.msra.mxu0 %v10451
        %11190 = vmatprep.subr.bf16.mxu0 %v10454
        %11191 = vmatpush1.bf16.msra.mxu0 %v10453
        %11192 = vmatprep.subr.bf16.mxu0 %v10456
        %11193 = vmatpush1.bf16.msra.mxu0 %v10455
        %11194 = vmatprep.subr.bf16.mxu0 %v10458
        %11195 = vmatpush1.bf16.msra.mxu0 %v10457
        %11196 = vmatprep.subr.bf16.mxu0 %v10460
        %11197 = vmatpush1.bf16.msra.mxu0 %v10459
        %11198 = vmatprep.subr.bf16.mxu0 %v10462
        %11199 = vmatpush1.bf16.msra.mxu0 %v10461
        %11200 = vmatprep.subr.bf16.mxu0 %v10464
        %11201 = vmatpush1.bf16.msra.mxu0 %v10463
        %11202 = vmatprep.mubr.bf16.mxu0 %v8258
        %11203 = vmatmul.mubr.bf16.gmra.mrb[0].mxu0 %v8257
        %v11204 = vpop.f32.mrb[0].mxu0
        %v11205 = vadd.f32 %v11012, %v11204
        %v11206 = vpop.f32.mrb[0].mxu0
        %v11207 = vadd.f32 %v11014, %v11206
        %v11208 = vpop.f32.mrb[0].mxu0
        %v11209 = vadd.f32 %v11016, %v11208
        %v11210 = vpop.f32.mrb[0].mxu0
        %v11211 = vadd.f32 %v11018, %v11210
        %11212 = vmatprep.mubr.bf16.mxu0 %v8260
        %11213 = vmatmul.mubr.bf16.gmra.mrb[0].mxu0 %v8259
        %v11214 = vpop.f32.mrb[0].mxu0
        %v11215 = vadd.f32 %v11022, %v11214
        %v11216 = vpop.f32.mrb[0].mxu0
        %v11217 = vadd.f32 %v11024, %v11216
        %v11218 = vpop.f32.mrb[0].mxu0
        %v11219 = vadd.f32 %v11026, %v11218
        %v11220 = vpop.f32.mrb[0].mxu0
        %v11221 = vadd.f32 %v11028, %v11220
        %11222 = vmatprep.mubr.bf16.mxu0 %v8262
        %11223 = vmatmul.mubr.bf16.gmra.mrb[0].mxu0 %v8261
        %v11224 = vpop.f32.mrb[0].mxu0
        %v11225 = vadd.f32 %v11032, %v11224
        %v11226 = vpop.f32.mrb[0].mxu0
        %v11227 = vadd.f32 %v11034, %v11226
        %v11228 = vpop.f32.mrb[0].mxu0
        %v11229 = vadd.f32 %v11036, %v11228
        %v11230 = vpop.f32.mrb[0].mxu0
        %v11231 = vadd.f32 %v11038, %v11230
        %11232 = vmatprep.mubr.bf16.mxu0 %v8264
        %11233 = vmatmul.mubr.bf16.gmra.mrb[0].mxu0 %v8263
        %v11234 = vpop.f32.mrb[0].mxu0
        %v11235 = vadd.f32 %v11042, %v11234
        %v11236 = vpop.f32.mrb[0].mxu0
        %v11237 = vadd.f32 %v11044, %v11236
        %v11238 = vpop.f32.mrb[0].mxu0
        %v11239 = vadd.f32 %v11046, %v11238
        %v11240 = vpop.f32.mrb[0].mxu0
        %v11241 = vadd.f32 %v11048, %v11240
        %11242 = vmatprep.mubr.bf16.mxu0 %v8266
        %11243 = vmatmul.mubr.bf16.gmra.mrb[0].mxu0 %v8265
        %v11244 = vpop.f32.mrb[0].mxu0
        %v11245 = vadd.f32 %v11052, %v11244
        %v11246 = vpop.f32.mrb[0].mxu0
        %v11247 = vadd.f32 %v11054, %v11246
        %v11248 = vpop.f32.mrb[0].mxu0
        %v11249 = vadd.f32 %v11056, %v11248
        %v11250 = vpop.f32.mrb[0].mxu0
        %v11251 = vadd.f32 %v11058, %v11250
        %11252 = vmatprep.mubr.bf16.mxu0 %v8268
        %11253 = vmatmul.mubr.bf16.gmra.mrb[0].mxu0 %v8267
        %v11254 = vpop.f32.mrb[0].mxu0
        %v11255 = vadd.f32 %v11062, %v11254
        %v11256 = vpop.f32.mrb[0].mxu0
        %v11257 = vadd.f32 %v11064, %v11256
        %v11258 = vpop.f32.mrb[0].mxu0
        %v11259 = vadd.f32 %v11066, %v11258
        %v11260 = vpop.f32.mrb[0].mxu0
        %v11261 = vadd.f32 %v11068, %v11260
        %11262 = vmatprep.mubr.bf16.mxu0 %v8270
        %11263 = vmatmul.mubr.bf16.gmra.mrb[0].mxu0 %v8269
        %v11264 = vpop.f32.mrb[0].mxu0
        %v11265 = vadd.f32 %v11072, %v11264
        %v11266 = vpop.f32.mrb[0].mxu0
        %v11267 = vadd.f32 %v11074, %v11266
        %v11268 = vpop.f32.mrb[0].mxu0
        %v11269 = vadd.f32 %v11076, %v11268
        %v11270 = vpop.f32.mrb[0].mxu0
        %v11271 = vadd.f32 %v11078, %v11270
        %11272 = vmatprep.mubr.bf16.mxu0 %v8272
        %11273 = vmatmul.mubr.bf16.gmra.mrb[0].mxu0 %v8271
        %v11274 = vpop.f32.mrb[0].mxu0
        %v11275 = vadd.f32 %v11082, %v11274
        %v11276 = vpop.f32.mrb[0].mxu0
        %v11277 = vadd.f32 %v11084, %v11276
        %v11278 = vpop.f32.mrb[0].mxu0
        %v11279 = vadd.f32 %v11086, %v11278
        %v11280 = vpop.f32.mrb[0].mxu0
        %v11281 = vadd.f32 %v11088, %v11280
        %11282 = vmatprep.mubr.bf16.mxu0 %v8274
        %11283 = vmatmul.mubr.bf16.gmra.mrb[0].mxu0 %v8273
        %v11284 = vpop.f32.mrb[0].mxu0
        %v11285 = vadd.f32 %v11092, %v11284
        %v11286 = vpop.f32.mrb[0].mxu0
        %v11287 = vadd.f32 %v11094, %v11286
        %v11288 = vpop.f32.mrb[0].mxu0
        %v11289 = vadd.f32 %v11096, %v11288
        %v11290 = vpop.f32.mrb[0].mxu0
        %v11291 = vadd.f32 %v11098, %v11290
        %11292 = vmatprep.mubr.bf16.mxu0 %v8276
        %11293 = vmatmul.mubr.bf16.gmra.mrb[0].mxu0 %v8275
        %v11294 = vpop.f32.mrb[0].mxu0
        %v11295 = vadd.f32 %v11102, %v11294
        %v11296 = vpop.f32.mrb[0].mxu0
        %v11297 = vadd.f32 %v11104, %v11296
        %v11298 = vpop.f32.mrb[0].mxu0
        %v11299 = vadd.f32 %v11106, %v11298
        %v11300 = vpop.f32.mrb[0].mxu0
        %v11301 = vadd.f32 %v11108, %v11300
        %11302 = vmatprep.mubr.bf16.mxu0 %v8278
        %11303 = vmatmul.mubr.bf16.gmra.mrb[0].mxu0 %v8277
        %v11304 = vpop.f32.mrb[0].mxu0
        %v11305 = vadd.f32 %v11112, %v11304
        %v11306 = vpop.f32.mrb[0].mxu0
        %v11307 = vadd.f32 %v11114, %v11306
        %v11308 = vpop.f32.mrb[0].mxu0
        %v11309 = vadd.f32 %v11116, %v11308
        %v11310 = vpop.f32.mrb[0].mxu0
        %v11311 = vadd.f32 %v11118, %v11310
        %11312 = vmatprep.mubr.bf16.mxu0 %v8280
        %11313 = vmatmul.mubr.bf16.gmra.mrb[0].mxu0 %v8279
        %v11314 = vpop.f32.mrb[0].mxu0
        %v11315 = vadd.f32 %v11122, %v11314
        %v11316 = vpop.f32.mrb[0].mxu0
        %v11317 = vadd.f32 %v11124, %v11316
        %v11318 = vpop.f32.mrb[0].mxu0
        %v11319 = vadd.f32 %v11126, %v11318
        %v11320 = vpop.f32.mrb[0].mxu0
        %v11321 = vadd.f32 %v11128, %v11320
        %11322 = vmatprep.mubr.bf16.mxu0 %v8282
        %11323 = vmatmul.mubr.bf16.gmra.mrb[0].mxu0 %v8281
        %v11324 = vpop.f32.mrb[0].mxu0
        %v11325 = vadd.f32 %v11132, %v11324
        %v11326 = vpop.f32.mrb[0].mxu0
        %v11327 = vadd.f32 %v11134, %v11326
        %v11328 = vpop.f32.mrb[0].mxu0
        %v11329 = vadd.f32 %v11136, %v11328
        %v11330 = vpop.f32.mrb[0].mxu0
        %v11331 = vadd.f32 %v11138, %v11330
        %11332 = vmatprep.mubr.bf16.mxu0 %v8284
        %11333 = vmatmul.mubr.bf16.gmra.mrb[0].mxu0 %v8283
        %v11334 = vpop.f32.mrb[0].mxu0
        %v11335 = vadd.f32 %v11142, %v11334
        %v11336 = vpop.f32.mrb[0].mxu0
        %v11337 = vadd.f32 %v11144, %v11336
        %v11338 = vpop.f32.mrb[0].mxu0
        %v11339 = vadd.f32 %v11146, %v11338
        %v11340 = vpop.f32.mrb[0].mxu0
        %v11341 = vadd.f32 %v11148, %v11340
        %11342 = vmatprep.mubr.bf16.mxu0 %v8286
        %11343 = vmatmul.mubr.bf16.gmra.mrb[0].mxu0 %v8285
        %v11344 = vpop.f32.mrb[0].mxu0
        %v11345 = vadd.f32 %v11152, %v11344
        %v11346 = vpop.f32.mrb[0].mxu0
        %v11347 = vadd.f32 %v11154, %v11346
        %v11348 = vpop.f32.mrb[0].mxu0
        %v11349 = vadd.f32 %v11156, %v11348
        %v11350 = vpop.f32.mrb[0].mxu0
        %v11351 = vadd.f32 %v11158, %v11350
        %11352 = vmatprep.mubr.bf16.mxu0 %v8288
        %11353 = vmatmul.mubr.bf16.gmra.mrb[0].mxu0 %v8287
        %v11354 = vpop.f32.mrb[0].mxu0
        %v11355 = vadd.f32 %v11162, %v11354
        %v11356 = vpop.f32.mrb[0].mxu0
        %v11357 = vadd.f32 %v11164, %v11356
        %v11358 = vpop.f32.mrb[0].mxu0
        %v11359 = vadd.f32 %v11166, %v11358
        %v11360 = vpop.f32.mrb[0].mxu0
        %v11361 = vadd.f32 %v11168, %v11360
        %11362 = vdwg.mxu0
        %11363 = vmatprep.subr.bf16.mxu0 %v10466
        %11364 = vmatpush1.bf16.msra.mxu0 %v10465
        %11365 = vmatprep.subr.bf16.mxu0 %v10468
        %11366 = vmatpush1.bf16.msra.mxu0 %v10467
        %11367 = vmatprep.subr.bf16.mxu0 %v10470
        %11368 = vmatpush1.bf16.msra.mxu0 %v10469
        %11369 = vmatprep.subr.bf16.mxu0 %v10472
        %11370 = vmatpush1.bf16.msra.mxu0 %v10471
        %11371 = vmatprep.subr.bf16.mxu0 %v10474
        %11372 = vmatpush1.bf16.msra.mxu0 %v10473
        %11373 = vmatprep.subr.bf16.mxu0 %v10476
        %11374 = vmatpush1.bf16.msra.mxu0 %v10475
        %11375 = vmatprep.subr.bf16.mxu0 %v10478
        %11376 = vmatpush1.bf16.msra.mxu0 %v10477
        %11377 = vmatprep.subr.bf16.mxu0 %v10480
        %11378 = vmatpush1.bf16.msra.mxu0 %v10479
        %11379 = vmatprep.subr.bf16.mxu0 %v10482
        %11380 = vmatpush1.bf16.msra.mxu0 %v10481
        %11381 = vmatprep.subr.bf16.mxu0 %v10484
        %11382 = vmatpush1.bf16.msra.mxu0 %v10483
        %11383 = vmatprep.subr.bf16.mxu0 %v10486
        %11384 = vmatpush1.bf16.msra.mxu0 %v10485
        %11385 = vmatprep.subr.bf16.mxu0 %v10488
        %11386 = vmatpush1.bf16.msra.mxu0 %v10487
        %11387 = vmatprep.subr.bf16.mxu0 %v10490
        %11388 = vmatpush1.bf16.msra.mxu0 %v10489
        %11389 = vmatprep.subr.bf16.mxu0 %v10492
        %11390 = vmatpush1.bf16.msra.mxu0 %v10491
        %11391 = vmatprep.subr.bf16.mxu0 %v10494
        %11392 = vmatpush1.bf16.msra.mxu0 %v10493
        %11393 = vmatprep.subr.bf16.mxu0 %v10496
        %11394 = vmatpush1.bf16.msra.mxu0 %v10495
        %11395 = vmatprep.mubr.bf16.mxu0 %v8386
        %11396 = vmatmul.mubr.bf16.gmra.mrb[0].mxu0 %v8385
        %v11397 = vpop.f32.mrb[0].mxu0
        %v11398 = vadd.f32 %v11205, %v11397
        %v11399 = vpop.f32.mrb[0].mxu0
        %v11400 = vadd.f32 %v11207, %v11399
        %v11401 = vpop.f32.mrb[0].mxu0
        %v11402 = vadd.f32 %v11209, %v11401
        %v11403 = vpop.f32.mrb[0].mxu0
        %v11404 = vadd.f32 %v11211, %v11403
        %11405 = vmatprep.mubr.bf16.mxu0 %v8388
        %11406 = vmatmul.mubr.bf16.gmra.mrb[0].mxu0 %v8387
        %v11407 = vpop.f32.mrb[0].mxu0
        %v11408 = vadd.f32 %v11215, %v11407
        %v11409 = vpop.f32.mrb[0].mxu0
        %v11410 = vadd.f32 %v11217, %v11409
        %v11411 = vpop.f32.mrb[0].mxu0
        %v11412 = vadd.f32 %v11219, %v11411
        %v11413 = vpop.f32.mrb[0].mxu0
        %v11414 = vadd.f32 %v11221, %v11413
        %11415 = vmatprep.mubr.bf16.mxu0 %v8390
        %11416 = vmatmul.mubr.bf16.gmra.mrb[0].mxu0 %v8389
        %v11417 = vpop.f32.mrb[0].mxu0
        %v11418 = vadd.f32 %v11225, %v11417
        %v11419 = vpop.f32.mrb[0].mxu0
        %v11420 = vadd.f32 %v11227, %v11419
        %v11421 = vpop.f32.mrb[0].mxu0
        %v11422 = vadd.f32 %v11229, %v11421
        %v11423 = vpop.f32.mrb[0].mxu0
        %v11424 = vadd.f32 %v11231, %v11423
        %11425 = vmatprep.mubr.bf16.mxu0 %v8392
        %11426 = vmatmul.mubr.bf16.gmra.mrb[0].mxu0 %v8391
        %v11427 = vpop.f32.mrb[0].mxu0
        %v11428 = vadd.f32 %v11235, %v11427
        %v11429 = vpop.f32.mrb[0].mxu0
        %v11430 = vadd.f32 %v11237, %v11429
        %v11431 = vpop.f32.mrb[0].mxu0
        %v11432 = vadd.f32 %v11239, %v11431
        %v11433 = vpop.f32.mrb[0].mxu0
        %v11434 = vadd.f32 %v11241, %v11433
        %11435 = vmatprep.mubr.bf16.mxu0 %v8394
        %11436 = vmatmul.mubr.bf16.gmra.mrb[0].mxu0 %v8393
        %v11437 = vpop.f32.mrb[0].mxu0
        %v11438 = vadd.f32 %v11245, %v11437
        %v11439 = vpop.f32.mrb[0].mxu0
        %v11440 = vadd.f32 %v11247, %v11439
        %v11441 = vpop.f32.mrb[0].mxu0
        %v11442 = vadd.f32 %v11249, %v11441
        %v11443 = vpop.f32.mrb[0].mxu0
        %v11444 = vadd.f32 %v11251, %v11443
        %11445 = vmatprep.mubr.bf16.mxu0 %v8396
        %11446 = vmatmul.mubr.bf16.gmra.mrb[0].mxu0 %v8395
        %v11447 = vpop.f32.mrb[0].mxu0
        %v11448 = vadd.f32 %v11255, %v11447
        %v11449 = vpop.f32.mrb[0].mxu0
        %v11450 = vadd.f32 %v11257, %v11449
        %v11451 = vpop.f32.mrb[0].mxu0
        %v11452 = vadd.f32 %v11259, %v11451
        %v11453 = vpop.f32.mrb[0].mxu0
        %v11454 = vadd.f32 %v11261, %v11453
        %11455 = vmatprep.mubr.bf16.mxu0 %v8398
        %11456 = vmatmul.mubr.bf16.gmra.mrb[0].mxu0 %v8397
        %v11457 = vpop.f32.mrb[0].mxu0
        %v11458 = vadd.f32 %v11265, %v11457
        %v11459 = vpop.f32.mrb[0].mxu0
        %v11460 = vadd.f32 %v11267, %v11459
        %v11461 = vpop.f32.mrb[0].mxu0
        %v11462 = vadd.f32 %v11269, %v11461
        %v11463 = vpop.f32.mrb[0].mxu0
        %v11464 = vadd.f32 %v11271, %v11463
        %11465 = vmatprep.mubr.bf16.mxu0 %v8400
        %11466 = vmatmul.mubr.bf16.gmra.mrb[0].mxu0 %v8399
        %v11467 = vpop.f32.mrb[0].mxu0
        %v11468 = vadd.f32 %v11275, %v11467
        %v11469 = vpop.f32.mrb[0].mxu0
        %v11470 = vadd.f32 %v11277, %v11469
        %v11471 = vpop.f32.mrb[0].mxu0
        %v11472 = vadd.f32 %v11279, %v11471
        %v11473 = vpop.f32.mrb[0].mxu0
        %v11474 = vadd.f32 %v11281, %v11473
        %11475 = vmatprep.mubr.bf16.mxu0 %v8402
        %11476 = vmatmul.mubr.bf16.gmra.mrb[0].mxu0 %v8401
        %v11477 = vpop.f32.mrb[0].mxu0
        %v11478 = vadd.f32 %v11285, %v11477
        %v11479 = vpop.f32.mrb[0].mxu0
        %v11480 = vadd.f32 %v11287, %v11479
        %v11481 = vpop.f32.mrb[0].mxu0
        %v11482 = vadd.f32 %v11289, %v11481
        %v11483 = vpop.f32.mrb[0].mxu0
        %v11484 = vadd.f32 %v11291, %v11483
        %11485 = vmatprep.mubr.bf16.mxu0 %v8404
        %11486 = vmatmul.mubr.bf16.gmra.mrb[0].mxu0 %v8403
        %v11487 = vpop.f32.mrb[0].mxu0
        %v11488 = vadd.f32 %v11295, %v11487
        %v11489 = vpop.f32.mrb[0].mxu0
        %v11490 = vadd.f32 %v11297, %v11489
        %v11491 = vpop.f32.mrb[0].mxu0
        %v11492 = vadd.f32 %v11299, %v11491
        %v11493 = vpop.f32.mrb[0].mxu0
        %v11494 = vadd.f32 %v11301, %v11493
        %11495 = vmatprep.mubr.bf16.mxu0 %v8406
        %11496 = vmatmul.mubr.bf16.gmra.mrb[0].mxu0 %v8405
        %v11497 = vpop.f32.mrb[0].mxu0
        %v11498 = vadd.f32 %v11305, %v11497
        %v11499 = vpop.f32.mrb[0].mxu0
        %v11500 = vadd.f32 %v11307, %v11499
        %v11501 = vpop.f32.mrb[0].mxu0
        %v11502 = vadd.f32 %v11309, %v11501
        %v11503 = vpop.f32.mrb[0].mxu0
        %v11504 = vadd.f32 %v11311, %v11503
        %11505 = vmatprep.mubr.bf16.mxu0 %v8408
        %11506 = vmatmul.mubr.bf16.gmra.mrb[0].mxu0 %v8407
        %v11507 = vpop.f32.mrb[0].mxu0
        %v11508 = vadd.f32 %v11315, %v11507
        %v11509 = vpop.f32.mrb[0].mxu0
        %v11510 = vadd.f32 %v11317, %v11509
        %v11511 = vpop.f32.mrb[0].mxu0
        %v11512 = vadd.f32 %v11319, %v11511
        %v11513 = vpop.f32.mrb[0].mxu0
        %v11514 = vadd.f32 %v11321, %v11513
        %11515 = vmatprep.mubr.bf16.mxu0 %v8410
        %11516 = vmatmul.mubr.bf16.gmra.mrb[0].mxu0 %v8409
        %v11517 = vpop.f32.mrb[0].mxu0
        %v11518 = vadd.f32 %v11325, %v11517
        %v11519 = vpop.f32.mrb[0].mxu0
        %v11520 = vadd.f32 %v11327, %v11519
        %v11521 = vpop.f32.mrb[0].mxu0
        %v11522 = vadd.f32 %v11329, %v11521
        %v11523 = vpop.f32.mrb[0].mxu0
        %v11524 = vadd.f32 %v11331, %v11523
        %11525 = vmatprep.mubr.bf16.mxu0 %v8412
        %11526 = vmatmul.mubr.bf16.gmra.mrb[0].mxu0 %v8411
        %v11527 = vpop.f32.mrb[0].mxu0
        %v11528 = vadd.f32 %v11335, %v11527
        %v11529 = vpop.f32.mrb[0].mxu0
        %v11530 = vadd.f32 %v11337, %v11529
        %v11531 = vpop.f32.mrb[0].mxu0
        %v11532 = vadd.f32 %v11339, %v11531
        %v11533 = vpop.f32.mrb[0].mxu0
        %v11534 = vadd.f32 %v11341, %v11533
        %11535 = vmatprep.mubr.bf16.mxu0 %v8414
        %11536 = vmatmul.mubr.bf16.gmra.mrb[0].mxu0 %v8413
        %v11537 = vpop.f32.mrb[0].mxu0
        %v11538 = vadd.f32 %v11345, %v11537
        %v11539 = vpop.f32.mrb[0].mxu0
        %v11540 = vadd.f32 %v11347, %v11539
        %v11541 = vpop.f32.mrb[0].mxu0
        %v11542 = vadd.f32 %v11349, %v11541
        %v11543 = vpop.f32.mrb[0].mxu0
        %v11544 = vadd.f32 %v11351, %v11543
        %11545 = vmatprep.mubr.bf16.mxu0 %v8416
        %11546 = vmatmul.mubr.bf16.gmra.mrb[0].mxu0 %v8415
        %v11547 = vpop.f32.mrb[0].mxu0
        %v11548 = vadd.f32 %v11355, %v11547
        %v11549 = vpop.f32.mrb[0].mxu0
        %v11550 = vadd.f32 %v11357, %v11549
        %v11551 = vpop.f32.mrb[0].mxu0
        %v11552 = vadd.f32 %v11359, %v11551
        %v11553 = vpop.f32.mrb[0].mxu0
        %v11554 = vadd.f32 %v11361, %v11553
        %11555 = vdwg.mxu0
        %11556 = vmatprep.subr.bf16.mxu0 %v10498
        %11557 = vmatpush1.bf16.msra.mxu0 %v10497
        %11558 = vmatprep.subr.bf16.mxu0 %v10500
        %11559 = vmatpush1.bf16.msra.mxu0 %v10499
        %11560 = vmatprep.subr.bf16.mxu0 %v10502
        %11561 = vmatpush1.bf16.msra.mxu0 %v10501
        %11562 = vmatprep.subr.bf16.mxu0 %v10504
        %11563 = vmatpush1.bf16.msra.mxu0 %v10503
        %11564 = vmatprep.subr.bf16.mxu0 %v10506
        %11565 = vmatpush1.bf16.msra.mxu0 %v10505
        %11566 = vmatprep.subr.bf16.mxu0 %v10508
        %11567 = vmatpush1.bf16.msra.mxu0 %v10507
        %11568 = vmatprep.subr.bf16.mxu0 %v10510
        %11569 = vmatpush1.bf16.msra.mxu0 %v10509
        %11570 = vmatprep.subr.bf16.mxu0 %v10512
        %11571 = vmatpush1.bf16.msra.mxu0 %v10511
        %11572 = vmatprep.subr.bf16.mxu0 %v10514
        %11573 = vmatpush1.bf16.msra.mxu0 %v10513
        %11574 = vmatprep.subr.bf16.mxu0 %v10516
        %11575 = vmatpush1.bf16.msra.mxu0 %v10515
        %11576 = vmatprep.subr.bf16.mxu0 %v10518
        %11577 = vmatpush1.bf16.msra.mxu0 %v10517
        %11578 = vmatprep.subr.bf16.mxu0 %v10520
        %11579 = vmatpush1.bf16.msra.mxu0 %v10519
        %11580 = vmatprep.subr.bf16.mxu0 %v10522
        %11581 = vmatpush1.bf16.msra.mxu0 %v10521
        %11582 = vmatprep.subr.bf16.mxu0 %v10524
        %11583 = vmatpush1.bf16.msra.mxu0 %v10523
        %11584 = vmatprep.subr.bf16.mxu0 %v10526
        %11585 = vmatpush1.bf16.msra.mxu0 %v10525
        %11586 = vmatprep.subr.bf16.mxu0 %v10528
        %11587 = vmatpush1.bf16.msra.mxu0 %v10527
        %11588 = vmatprep.mubr.bf16.mxu0 %v8530
        %11589 = vmatmul.mubr.bf16.gmra.mrb[0].mxu0 %v8529
        %v11590 = vpop.f32.mrb[0].mxu0
        %v11591 = vadd.f32 %v11398, %v11590
        %v11592 = vpop.f32.mrb[0].mxu0
        %v11593 = vadd.f32 %v11400, %v11592
        %v11594 = vpop.f32.mrb[0].mxu0
        %v11595 = vadd.f32 %v11402, %v11594
        %v11596 = vpop.f32.mrb[0].mxu0
        %v11597 = vadd.f32 %v11404, %v11596
        %11598 = vmatprep.mubr.bf16.mxu0 %v8532
        %11599 = vmatmul.mubr.bf16.gmra.mrb[0].mxu0 %v8531
        %v11600 = vpop.f32.mrb[0].mxu0
        %v11601 = vadd.f32 %v11408, %v11600
        %v11602 = vpop.f32.mrb[0].mxu0
        %v11603 = vadd.f32 %v11410, %v11602
        %v11604 = vpop.f32.mrb[0].mxu0
        %v11605 = vadd.f32 %v11412, %v11604
        %v11606 = vpop.f32.mrb[0].mxu0
        %v11607 = vadd.f32 %v11414, %v11606
        %11608 = vmatprep.mubr.bf16.mxu0 %v8534
        %11609 = vmatmul.mubr.bf16.gmra.mrb[0].mxu0 %v8533
        %v11610 = vpop.f32.mrb[0].mxu0
        %v11611 = vadd.f32 %v11418, %v11610
        %v11612 = vpop.f32.mrb[0].mxu0
        %v11613 = vadd.f32 %v11420, %v11612
        %v11614 = vpop.f32.mrb[0].mxu0
        %v11615 = vadd.f32 %v11422, %v11614
        %v11616 = vpop.f32.mrb[0].mxu0
        %v11617 = vadd.f32 %v11424, %v11616
        %11618 = vmatprep.mubr.bf16.mxu0 %v8536
        %11619 = vmatmul.mubr.bf16.gmra.mrb[0].mxu0 %v8535
        %v11620 = vpop.f32.mrb[0].mxu0
        %v11621 = vadd.f32 %v11428, %v11620
        %v11622 = vpop.f32.mrb[0].mxu0
        %v11623 = vadd.f32 %v11430, %v11622
        %v11624 = vpop.f32.mrb[0].mxu0
        %v11625 = vadd.f32 %v11432, %v11624
        %v11626 = vpop.f32.mrb[0].mxu0
        %v11627 = vadd.f32 %v11434, %v11626
        %11628 = vmatprep.mubr.bf16.mxu0 %v8538
        %11629 = vmatmul.mubr.bf16.gmra.mrb[0].mxu0 %v8537
        %v11630 = vpop.f32.mrb[0].mxu0
        %v11631 = vadd.f32 %v11438, %v11630
        %v11632 = vpop.f32.mrb[0].mxu0
        %v11633 = vadd.f32 %v11440, %v11632
        %v11634 = vpop.f32.mrb[0].mxu0
        %v11635 = vadd.f32 %v11442, %v11634
        %v11636 = vpop.f32.mrb[0].mxu0
        %v11637 = vadd.f32 %v11444, %v11636
        %11638 = vmatprep.mubr.bf16.mxu0 %v8540
        %11639 = vmatmul.mubr.bf16.gmra.mrb[0].mxu0 %v8539
        %v11640 = vpop.f32.mrb[0].mxu0
        %v11641 = vadd.f32 %v11448, %v11640
        %v11642 = vpop.f32.mrb[0].mxu0
        %v11643 = vadd.f32 %v11450, %v11642
        %v11644 = vpop.f32.mrb[0].mxu0
        %v11645 = vadd.f32 %v11452, %v11644
        %v11646 = vpop.f32.mrb[0].mxu0
        %v11647 = vadd.f32 %v11454, %v11646
        %11648 = vmatprep.mubr.bf16.mxu0 %v8542
        %11649 = vmatmul.mubr.bf16.gmra.mrb[0].mxu0 %v8541
        %v11650 = vpop.f32.mrb[0].mxu0
        %v11651 = vadd.f32 %v11458, %v11650
        %v11652 = vpop.f32.mrb[0].mxu0
        %v11653 = vadd.f32 %v11460, %v11652
        %v11654 = vpop.f32.mrb[0].mxu0
        %v11655 = vadd.f32 %v11462, %v11654
        %v11656 = vpop.f32.mrb[0].mxu0
        %v11657 = vadd.f32 %v11464, %v11656
        %11658 = vmatprep.mubr.bf16.mxu0 %v8544
        %11659 = vmatmul.mubr.bf16.gmra.mrb[0].mxu0 %v8543
        %v11660 = vpop.f32.mrb[0].mxu0
        %v11661 = vadd.f32 %v11468, %v11660
        %v11662 = vpop.f32.mrb[0].mxu0
        %v11663 = vadd.f32 %v11470, %v11662
        %v11664 = vpop.f32.mrb[0].mxu0
        %v11665 = vadd.f32 %v11472, %v11664
        %v11666 = vpop.f32.mrb[0].mxu0
        %v11667 = vadd.f32 %v11474, %v11666
        %11668 = vmatprep.mubr.bf16.mxu0 %v8546
        %11669 = vmatmul.mubr.bf16.gmra.mrb[0].mxu0 %v8545
        %v11670 = vpop.f32.mrb[0].mxu0
        %v11671 = vadd.f32 %v11478, %v11670
        %v11672 = vpop.f32.mrb[0].mxu0
        %v11673 = vadd.f32 %v11480, %v11672
        %v11674 = vpop.f32.mrb[0].mxu0
        %v11675 = vadd.f32 %v11482, %v11674
        %v11676 = vpop.f32.mrb[0].mxu0
        %v11677 = vadd.f32 %v11484, %v11676
        %11678 = vmatprep.mubr.bf16.mxu0 %v8548
        %11679 = vmatmul.mubr.bf16.gmra.mrb[0].mxu0 %v8547
        %v11680 = vpop.f32.mrb[0].mxu0
        %v11681 = vadd.f32 %v11488, %v11680
        %v11682 = vpop.f32.mrb[0].mxu0
        %v11683 = vadd.f32 %v11490, %v11682
        %v11684 = vpop.f32.mrb[0].mxu0
        %v11685 = vadd.f32 %v11492, %v11684
        %v11686 = vpop.f32.mrb[0].mxu0
        %v11687 = vadd.f32 %v11494, %v11686
        %11688 = vmatprep.mubr.bf16.mxu0 %v8550
        %11689 = vmatmul.mubr.bf16.gmra.mrb[0].mxu0 %v8549
        %v11690 = vpop.f32.mrb[0].mxu0
        %v11691 = vadd.f32 %v11498, %v11690
        %v11692 = vpop.f32.mrb[0].mxu0
        %v11693 = vadd.f32 %v11500, %v11692
        %v11694 = vpop.f32.mrb[0].mxu0
        %v11695 = vadd.f32 %v11502, %v11694
        %v11696 = vpop.f32.mrb[0].mxu0
        %v11697 = vadd.f32 %v11504, %v11696
        %11698 = vmatprep.mubr.bf16.mxu0 %v8552
        %11699 = vmatmul.mubr.bf16.gmra.mrb[0].mxu0 %v8551
        %v11700 = vpop.f32.mrb[0].mxu0
        %v11701 = vadd.f32 %v11508, %v11700
        %v11702 = vpop.f32.mrb[0].mxu0
        %v11703 = vadd.f32 %v11510, %v11702
        %v11704 = vpop.f32.mrb[0].mxu0
        %v11705 = vadd.f32 %v11512, %v11704
        %v11706 = vpop.f32.mrb[0].mxu0
        %v11707 = vadd.f32 %v11514, %v11706
        %11708 = vmatprep.mubr.bf16.mxu0 %v8554
        %11709 = vmatmul.mubr.bf16.gmra.mrb[0].mxu0 %v8553
        %v11710 = vpop.f32.mrb[0].mxu0
        %v11711 = vadd.f32 %v11518, %v11710
        %v11712 = vpop.f32.mrb[0].mxu0
        %v11713 = vadd.f32 %v11520, %v11712
        %v11714 = vpop.f32.mrb[0].mxu0
        %v11715 = vadd.f32 %v11522, %v11714
        %v11716 = vpop.f32.mrb[0].mxu0
        %v11717 = vadd.f32 %v11524, %v11716
        %11718 = vmatprep.mubr.bf16.mxu0 %v8556
        %11719 = vmatmul.mubr.bf16.gmra.mrb[0].mxu0 %v8555
        %v11720 = vpop.f32.mrb[0].mxu0
        %v11721 = vadd.f32 %v11528, %v11720
        %v11722 = vpop.f32.mrb[0].mxu0
        %v11723 = vadd.f32 %v11530, %v11722
        %v11724 = vpop.f32.mrb[0].mxu0
        %v11725 = vadd.f32 %v11532, %v11724
        %v11726 = vpop.f32.mrb[0].mxu0
        %v11727 = vadd.f32 %v11534, %v11726
        %11728 = vmatprep.mubr.bf16.mxu0 %v8558
        %11729 = vmatmul.mubr.bf16.gmra.mrb[0].mxu0 %v8557
        %v11730 = vpop.f32.mrb[0].mxu0
        %v11731 = vadd.f32 %v11538, %v11730
        %v11732 = vpop.f32.mrb[0].mxu0
        %v11733 = vadd.f32 %v11540, %v11732
        %v11734 = vpop.f32.mrb[0].mxu0
        %v11735 = vadd.f32 %v11542, %v11734
        %v11736 = vpop.f32.mrb[0].mxu0
        %v11737 = vadd.f32 %v11544, %v11736
        %11738 = vmatprep.mubr.bf16.mxu0 %v8560
        %11739 = vmatmul.mubr.bf16.gmra.mrb[0].mxu0 %v8559
        %v11740 = vpop.f32.mrb[0].mxu0
        %v11741 = vadd.f32 %v11548, %v11740
        %v11742 = vpop.f32.mrb[0].mxu0
        %v11743 = vadd.f32 %v11550, %v11742
        %v11744 = vpop.f32.mrb[0].mxu0
        %v11745 = vadd.f32 %v11552, %v11744
        %v11746 = vpop.f32.mrb[0].mxu0
        %v11747 = vadd.f32 %v11554, %v11746
        %11748 = vdwg.mxu0
        %11749 = vmatprep.subr.bf16.mxu0 %v10530
        %11750 = vmatpush1.bf16.msra.mxu0 %v10529
        %11751 = vmatprep.subr.bf16.mxu0 %v10532
        %11752 = vmatpush1.bf16.msra.mxu0 %v10531
        %11753 = vmatprep.subr.bf16.mxu0 %v10534
        %11754 = vmatpush1.bf16.msra.mxu0 %v10533
        %11755 = vmatprep.subr.bf16.mxu0 %v10536
        %11756 = vmatpush1.bf16.msra.mxu0 %v10535
        %11757 = vmatprep.subr.bf16.mxu0 %v10538
        %11758 = vmatpush1.bf16.msra.mxu0 %v10537
        %11759 = vmatprep.subr.bf16.mxu0 %v10540
        %11760 = vmatpush1.bf16.msra.mxu0 %v10539
        %11761 = vmatprep.subr.bf16.mxu0 %v10542
        %11762 = vmatpush1.bf16.msra.mxu0 %v10541
        %11763 = vmatprep.subr.bf16.mxu0 %v10544
        %11764 = vmatpush1.bf16.msra.mxu0 %v10543
        %11765 = vmatprep.subr.bf16.mxu0 %v10546
        %11766 = vmatpush1.bf16.msra.mxu0 %v10545
        %11767 = vmatprep.subr.bf16.mxu0 %v10548
        %11768 = vmatpush1.bf16.msra.mxu0 %v10547
        %11769 = vmatprep.subr.bf16.mxu0 %v10550
        %11770 = vmatpush1.bf16.msra.mxu0 %v10549
        %11771 = vmatprep.subr.bf16.mxu0 %v10552
        %11772 = vmatpush1.bf16.msra.mxu0 %v10551
        %11773 = vmatprep.subr.bf16.mxu0 %v10554
        %11774 = vmatpush1.bf16.msra.mxu0 %v10553
        %11775 = vmatprep.subr.bf16.mxu0 %v10556
        %11776 = vmatpush1.bf16.msra.mxu0 %v10555
        %11777 = vmatprep.subr.bf16.mxu0 %v10558
        %11778 = vmatpush1.bf16.msra.mxu0 %v10557
        %11779 = vmatprep.subr.bf16.mxu0 %v10560
        %11780 = vmatpush1.bf16.msra.mxu0 %v10559
        %11781 = vmatprep.mubr.bf16.mxu0 %v8658
        %11782 = vmatmul.mubr.bf16.gmra.mrb[0].mxu0 %v8657
        %v11783 = vpop.f32.mrb[0].mxu0
        %v11784 = vadd.f32 %v11591, %v11783
        %v11785 = vpop.f32.mrb[0].mxu0
        %v11786 = vadd.f32 %v11593, %v11785
        %v11787 = vpop.f32.mrb[0].mxu0
        %v11788 = vadd.f32 %v11595, %v11787
        %v11789 = vpop.f32.mrb[0].mxu0
        %v11790 = vadd.f32 %v11597, %v11789
        %11791 = vmatprep.mubr.bf16.mxu0 %v8660
        %11792 = vmatmul.mubr.bf16.gmra.mrb[0].mxu0 %v8659
        %v11793 = vpop.f32.mrb[0].mxu0
        %v11794 = vadd.f32 %v11601, %v11793
        %v11795 = vpop.f32.mrb[0].mxu0
        %v11796 = vadd.f32 %v11603, %v11795
        %v11797 = vpop.f32.mrb[0].mxu0
        %v11798 = vadd.f32 %v11605, %v11797
        %v11799 = vpop.f32.mrb[0].mxu0
        %v11800 = vadd.f32 %v11607, %v11799
        %11801 = vmatprep.mubr.bf16.mxu0 %v8662
        %11802 = vmatmul.mubr.bf16.gmra.mrb[0].mxu0 %v8661
        %v11803 = vpop.f32.mrb[0].mxu0
        %v11804 = vadd.f32 %v11611, %v11803
        %v11805 = vpop.f32.mrb[0].mxu0
        %v11806 = vadd.f32 %v11613, %v11805
        %v11807 = vpop.f32.mrb[0].mxu0
        %v11808 = vadd.f32 %v11615, %v11807
        %v11809 = vpop.f32.mrb[0].mxu0
        %v11810 = vadd.f32 %v11617, %v11809
        %11811 = vmatprep.mubr.bf16.mxu0 %v8664
        %11812 = vmatmul.mubr.bf16.gmra.mrb[0].mxu0 %v8663
        %v11813 = vpop.f32.mrb[0].mxu0
        %v11814 = vadd.f32 %v11621, %v11813
        %v11815 = vpop.f32.mrb[0].mxu0
        %v11816 = vadd.f32 %v11623, %v11815
        %v11817 = vpop.f32.mrb[0].mxu0
        %v11818 = vadd.f32 %v11625, %v11817
        %v11819 = vpop.f32.mrb[0].mxu0
        %v11820 = vadd.f32 %v11627, %v11819
        %11821 = vmatprep.mubr.bf16.mxu0 %v8666
        %11822 = vmatmul.mubr.bf16.gmra.mrb[0].mxu0 %v8665
        %v11823 = vpop.f32.mrb[0].mxu0
        %v11824 = vadd.f32 %v11631, %v11823
        %v11825 = vpop.f32.mrb[0].mxu0
        %v11826 = vadd.f32 %v11633, %v11825
        %v11827 = vpop.f32.mrb[0].mxu0
        %v11828 = vadd.f32 %v11635, %v11827
        %v11829 = vpop.f32.mrb[0].mxu0
        %v11830 = vadd.f32 %v11637, %v11829
        %11831 = vmatprep.mubr.bf16.mxu0 %v8668
        %11832 = vmatmul.mubr.bf16.gmra.mrb[0].mxu0 %v8667
        %v11833 = vpop.f32.mrb[0].mxu0
        %v11834 = vadd.f32 %v11641, %v11833
        %v11835 = vpop.f32.mrb[0].mxu0
        %v11836 = vadd.f32 %v11643, %v11835
        %v11837 = vpop.f32.mrb[0].mxu0
        %v11838 = vadd.f32 %v11645, %v11837
        %v11839 = vpop.f32.mrb[0].mxu0
        %v11840 = vadd.f32 %v11647, %v11839
        %11841 = vmatprep.mubr.bf16.mxu0 %v8670
        %11842 = vmatmul.mubr.bf16.gmra.mrb[0].mxu0 %v8669
        %v11843 = vpop.f32.mrb[0].mxu0
        %v11844 = vadd.f32 %v11651, %v11843
        %v11845 = vpop.f32.mrb[0].mxu0
        %v11846 = vadd.f32 %v11653, %v11845
        %v11847 = vpop.f32.mrb[0].mxu0
        %v11848 = vadd.f32 %v11655, %v11847
        %v11849 = vpop.f32.mrb[0].mxu0
        %v11850 = vadd.f32 %v11657, %v11849
        %11851 = vmatprep.mubr.bf16.mxu0 %v8672
        %11852 = vmatmul.mubr.bf16.gmra.mrb[0].mxu0 %v8671
        %v11853 = vpop.f32.mrb[0].mxu0
        %v11854 = vadd.f32 %v11661, %v11853
        %v11855 = vpop.f32.mrb[0].mxu0
        %v11856 = vadd.f32 %v11663, %v11855
        %v11857 = vpop.f32.mrb[0].mxu0
        %v11858 = vadd.f32 %v11665, %v11857
        %v11859 = vpop.f32.mrb[0].mxu0
        %v11860 = vadd.f32 %v11667, %v11859
        %11861 = vmatprep.mubr.bf16.mxu0 %v8674
        %11862 = vmatmul.mubr.bf16.gmra.mrb[0].mxu0 %v8673
        %v11863 = vpop.f32.mrb[0].mxu0
        %v11864 = vadd.f32 %v11671, %v11863
        %v11865 = vpop.f32.mrb[0].mxu0
        %v11866 = vadd.f32 %v11673, %v11865
        %v11867 = vpop.f32.mrb[0].mxu0
        %v11868 = vadd.f32 %v11675, %v11867
        %v11869 = vpop.f32.mrb[0].mxu0
        %v11870 = vadd.f32 %v11677, %v11869
        %11871 = vmatprep.mubr.bf16.mxu0 %v8676
        %11872 = vmatmul.mubr.bf16.gmra.mrb[0].mxu0 %v8675
        %v11873 = vpop.f32.mrb[0].mxu0
        %v11874 = vadd.f32 %v11681, %v11873
        %v11875 = vpop.f32.mrb[0].mxu0
        %v11876 = vadd.f32 %v11683, %v11875
        %v11877 = vpop.f32.mrb[0].mxu0
        %v11878 = vadd.f32 %v11685, %v11877
        %v11879 = vpop.f32.mrb[0].mxu0
        %v11880 = vadd.f32 %v11687, %v11879
        %11881 = vmatprep.mubr.bf16.mxu0 %v8678
        %11882 = vmatmul.mubr.bf16.gmra.mrb[0].mxu0 %v8677
        %v11883 = vpop.f32.mrb[0].mxu0
        %v11884 = vadd.f32 %v11691, %v11883
        %v11885 = vpop.f32.mrb[0].mxu0
        %v11886 = vadd.f32 %v11693, %v11885
        %v11887 = vpop.f32.mrb[0].mxu0
        %v11888 = vadd.f32 %v11695, %v11887
        %v11889 = vpop.f32.mrb[0].mxu0
        %v11890 = vadd.f32 %v11697, %v11889
        %11891 = vmatprep.mubr.bf16.mxu0 %v8680
        %11892 = vmatmul.mubr.bf16.gmra.mrb[0].mxu0 %v8679
        %v11893 = vpop.f32.mrb[0].mxu0
        %v11894 = vadd.f32 %v11701, %v11893
        %v11895 = vpop.f32.mrb[0].mxu0
        %v11896 = vadd.f32 %v11703, %v11895
        %v11897 = vpop.f32.mrb[0].mxu0
        %v11898 = vadd.f32 %v11705, %v11897
        %v11899 = vpop.f32.mrb[0].mxu0
        %v11900 = vadd.f32 %v11707, %v11899
        %11901 = vmatprep.mubr.bf16.mxu0 %v8682
        %11902 = vmatmul.mubr.bf16.gmra.mrb[0].mxu0 %v8681
        %v11903 = vpop.f32.mrb[0].mxu0
        %v11904 = vadd.f32 %v11711, %v11903
        %v11905 = vpop.f32.mrb[0].mxu0
        %v11906 = vadd.f32 %v11713, %v11905
        %v11907 = vpop.f32.mrb[0].mxu0
        %v11908 = vadd.f32 %v11715, %v11907
        %v11909 = vpop.f32.mrb[0].mxu0
        %v11910 = vadd.f32 %v11717, %v11909
        %11911 = vmatprep.mubr.bf16.mxu0 %v8684
        %11912 = vmatmul.mubr.bf16.gmra.mrb[0].mxu0 %v8683
        %v11913 = vpop.f32.mrb[0].mxu0
        %v11914 = vadd.f32 %v11721, %v11913
        %v11915 = vpop.f32.mrb[0].mxu0
        %v11916 = vadd.f32 %v11723, %v11915
        %v11917 = vpop.f32.mrb[0].mxu0
        %v11918 = vadd.f32 %v11725, %v11917
        %v11919 = vpop.f32.mrb[0].mxu0
        %v11920 = vadd.f32 %v11727, %v11919
        %11921 = vmatprep.mubr.bf16.mxu0 %v8686
        %11922 = vmatmul.mubr.bf16.gmra.mrb[0].mxu0 %v8685
        %v11923 = vpop.f32.mrb[0].mxu0
        %v11924 = vadd.f32 %v11731, %v11923
        %v11925 = vpop.f32.mrb[0].mxu0
        %v11926 = vadd.f32 %v11733, %v11925
        %v11927 = vpop.f32.mrb[0].mxu0
        %v11928 = vadd.f32 %v11735, %v11927
        %v11929 = vpop.f32.mrb[0].mxu0
        %v11930 = vadd.f32 %v11737, %v11929
        %11931 = vmatprep.mubr.bf16.mxu0 %v8688
        %11932 = vmatmul.mubr.bf16.gmra.mrb[0].mxu0 %v8687
        %v11933 = vpop.f32.mrb[0].mxu0
        %v11934 = vadd.f32 %v11741, %v11933
        %v11935 = vpop.f32.mrb[0].mxu0
        %v11936 = vadd.f32 %v11743, %v11935
        %v11937 = vpop.f32.mrb[0].mxu0
        %v11938 = vadd.f32 %v11745, %v11937
        %v11939 = vpop.f32.mrb[0].mxu0
        %v11940 = vadd.f32 %v11747, %v11939
        %11941 = vdwg.mxu0
        %11942 = vmatprep.subr.bf16.mxu0 %v10562
        %11943 = vmatpush1.bf16.msra.mxu0 %v10561
        %11944 = vmatprep.subr.bf16.mxu0 %v10564
        %11945 = vmatpush1.bf16.msra.mxu0 %v10563
        %11946 = vmatprep.subr.bf16.mxu0 %v10566
        %11947 = vmatpush1.bf16.msra.mxu0 %v10565
        %11948 = vmatprep.subr.bf16.mxu0 %v10568
        %11949 = vmatpush1.bf16.msra.mxu0 %v10567
        %11950 = vmatprep.subr.bf16.mxu0 %v10570
        %11951 = vmatpush1.bf16.msra.mxu0 %v10569
        %11952 = vmatprep.subr.bf16.mxu0 %v10572
        %11953 = vmatpush1.bf16.msra.mxu0 %v10571
        %11954 = vmatprep.subr.bf16.mxu0 %v10574
        %11955 = vmatpush1.bf16.msra.mxu0 %v10573
        %11956 = vmatprep.subr.bf16.mxu0 %v10576
        %11957 = vmatpush1.bf16.msra.mxu0 %v10575
        %11958 = vmatprep.subr.bf16.mxu0 %v10578
        %11959 = vmatpush1.bf16.msra.mxu0 %v10577
        %11960 = vmatprep.subr.bf16.mxu0 %v10580
        %11961 = vmatpush1.bf16.msra.mxu0 %v10579
        %11962 = vmatprep.subr.bf16.mxu0 %v10582
        %11963 = vmatpush1.bf16.msra.mxu0 %v10581
        %11964 = vmatprep.subr.bf16.mxu0 %v10584
        %11965 = vmatpush1.bf16.msra.mxu0 %v10583
        %11966 = vmatprep.subr.bf16.mxu0 %v10586
        %11967 = vmatpush1.bf16.msra.mxu0 %v10585
        %11968 = vmatprep.subr.bf16.mxu0 %v10588
        %11969 = vmatpush1.bf16.msra.mxu0 %v10587
        %11970 = vmatprep.subr.bf16.mxu0 %v10590
        %11971 = vmatpush1.bf16.msra.mxu0 %v10589
        %11972 = vmatprep.subr.bf16.mxu0 %v10592
        %11973 = vmatpush1.bf16.msra.mxu0 %v10591
        %11974 = vmatprep.mubr.bf16.mxu0 %v8786
        %11975 = vmatmul.mubr.bf16.gmra.mrb[0].mxu0 %v8785
        %v11976 = vpop.f32.mrb[0].mxu0
        %v11977 = vadd.f32 %v11784, %v11976
        %v11978 = vpop.f32.mrb[0].mxu0
        %v11979 = vadd.f32 %v11786, %v11978
        %v11980 = vpop.f32.mrb[0].mxu0
        %v11981 = vadd.f32 %v11788, %v11980
        %v11982 = vpop.f32.mrb[0].mxu0
        %v11983 = vadd.f32 %v11790, %v11982
        %11984 = vmatprep.mubr.bf16.mxu0 %v8788
        %11985 = vmatmul.mubr.bf16.gmra.mrb[0].mxu0 %v8787
        %v11986 = vpop.f32.mrb[0].mxu0
        %v11987 = vadd.f32 %v11794, %v11986
        %v11988 = vpop.f32.mrb[0].mxu0
        %v11989 = vadd.f32 %v11796, %v11988
        %v11990 = vpop.f32.mrb[0].mxu0
        %v11991 = vadd.f32 %v11798, %v11990
        %v11992 = vpop.f32.mrb[0].mxu0
        %v11993 = vadd.f32 %v11800, %v11992
        %11994 = vmatprep.mubr.bf16.mxu0 %v8790
        %11995 = vmatmul.mubr.bf16.gmra.mrb[0].mxu0 %v8789
        %v11996 = vpop.f32.mrb[0].mxu0
        %v11997 = vadd.f32 %v11804, %v11996
        %v11998 = vpop.f32.mrb[0].mxu0
        %v11999 = vadd.f32 %v11806, %v11998
        %v12000 = vpop.f32.mrb[0].mxu0
        %v12001 = vadd.f32 %v11808, %v12000
        %v12002 = vpop.f32.mrb[0].mxu0
        %v12003 = vadd.f32 %v11810, %v12002
        %12004 = vmatprep.mubr.bf16.mxu0 %v8792
        %12005 = vmatmul.mubr.bf16.gmra.mrb[0].mxu0 %v8791
        %v12006 = vpop.f32.mrb[0].mxu0
        %v12007 = vadd.f32 %v11814, %v12006
        %v12008 = vpop.f32.mrb[0].mxu0
        %v12009 = vadd.f32 %v11816, %v12008
        %v12010 = vpop.f32.mrb[0].mxu0
        %v12011 = vadd.f32 %v11818, %v12010
        %v12012 = vpop.f32.mrb[0].mxu0
        %v12013 = vadd.f32 %v11820, %v12012
        %12014 = vmatprep.mubr.bf16.mxu0 %v8794
        %12015 = vmatmul.mubr.bf16.gmra.mrb[0].mxu0 %v8793
        %v12016 = vpop.f32.mrb[0].mxu0
        %v12017 = vadd.f32 %v11824, %v12016
        %v12018 = vpop.f32.mrb[0].mxu0
        %v12019 = vadd.f32 %v11826, %v12018
        %v12020 = vpop.f32.mrb[0].mxu0
        %v12021 = vadd.f32 %v11828, %v12020
        %v12022 = vpop.f32.mrb[0].mxu0
        %v12023 = vadd.f32 %v11830, %v12022
        %12024 = vmatprep.mubr.bf16.mxu0 %v8796
        %12025 = vmatmul.mubr.bf16.gmra.mrb[0].mxu0 %v8795
        %v12026 = vpop.f32.mrb[0].mxu0
        %v12027 = vadd.f32 %v11834, %v12026
        %v12028 = vpop.f32.mrb[0].mxu0
        %v12029 = vadd.f32 %v11836, %v12028
        %v12030 = vpop.f32.mrb[0].mxu0
        %v12031 = vadd.f32 %v11838, %v12030
        %v12032 = vpop.f32.mrb[0].mxu0
        %v12033 = vadd.f32 %v11840, %v12032
        %12034 = vmatprep.mubr.bf16.mxu0 %v8798
        %12035 = vmatmul.mubr.bf16.gmra.mrb[0].mxu0 %v8797
        %v12036 = vpop.f32.mrb[0].mxu0
        %v12037 = vadd.f32 %v11844, %v12036
        %v12038 = vpop.f32.mrb[0].mxu0
        %v12039 = vadd.f32 %v11846, %v12038
        %v12040 = vpop.f32.mrb[0].mxu0
        %v12041 = vadd.f32 %v11848, %v12040
        %v12042 = vpop.f32.mrb[0].mxu0
        %v12043 = vadd.f32 %v11850, %v12042
        %12044 = vmatprep.mubr.bf16.mxu0 %v8800
        %12045 = vmatmul.mubr.bf16.gmra.mrb[0].mxu0 %v8799
        %v12046 = vpop.f32.mrb[0].mxu0
        %v12047 = vadd.f32 %v11854, %v12046
        %v12048 = vpop.f32.mrb[0].mxu0
        %v12049 = vadd.f32 %v11856, %v12048
        %v12050 = vpop.f32.mrb[0].mxu0
        %v12051 = vadd.f32 %v11858, %v12050
        %v12052 = vpop.f32.mrb[0].mxu0
        %v12053 = vadd.f32 %v11860, %v12052
        %12054 = vmatprep.mubr.bf16.mxu0 %v8802
        %12055 = vmatmul.mubr.bf16.gmra.mrb[0].mxu0 %v8801
        %v12056 = vpop.f32.mrb[0].mxu0
        %v12057 = vadd.f32 %v11864, %v12056
        %v12058 = vpop.f32.mrb[0].mxu0
        %v12059 = vadd.f32 %v11866, %v12058
        %v12060 = vpop.f32.mrb[0].mxu0
        %v12061 = vadd.f32 %v11868, %v12060
        %v12062 = vpop.f32.mrb[0].mxu0
        %v12063 = vadd.f32 %v11870, %v12062
        %12064 = vmatprep.mubr.bf16.mxu0 %v8804
        %12065 = vmatmul.mubr.bf16.gmra.mrb[0].mxu0 %v8803
        %v12066 = vpop.f32.mrb[0].mxu0
        %v12067 = vadd.f32 %v11874, %v12066
        %v12068 = vpop.f32.mrb[0].mxu0
        %v12069 = vadd.f32 %v11876, %v12068
        %v12070 = vpop.f32.mrb[0].mxu0
        %v12071 = vadd.f32 %v11878, %v12070
        %v12072 = vpop.f32.mrb[0].mxu0
        %v12073 = vadd.f32 %v11880, %v12072
        %12074 = vmatprep.mubr.bf16.mxu0 %v8806
        %12075 = vmatmul.mubr.bf16.gmra.mrb[0].mxu0 %v8805
        %v12076 = vpop.f32.mrb[0].mxu0
        %v12077 = vadd.f32 %v11884, %v12076
        %v12078 = vpop.f32.mrb[0].mxu0
        %v12079 = vadd.f32 %v11886, %v12078
        %v12080 = vpop.f32.mrb[0].mxu0
        %v12081 = vadd.f32 %v11888, %v12080
        %v12082 = vpop.f32.mrb[0].mxu0
        %v12083 = vadd.f32 %v11890, %v12082
        %12084 = vmatprep.mubr.bf16.mxu0 %v8808
        %12085 = vmatmul.mubr.bf16.gmra.mrb[0].mxu0 %v8807
        %v12086 = vpop.f32.mrb[0].mxu0
        %v12087 = vadd.f32 %v11894, %v12086
        %v12088 = vpop.f32.mrb[0].mxu0
        %v12089 = vadd.f32 %v11896, %v12088
        %v12090 = vpop.f32.mrb[0].mxu0
        %v12091 = vadd.f32 %v11898, %v12090
        %v12092 = vpop.f32.mrb[0].mxu0
        %v12093 = vadd.f32 %v11900, %v12092
        %12094 = vmatprep.mubr.bf16.mxu0 %v8810
        %12095 = vmatmul.mubr.bf16.gmra.mrb[0].mxu0 %v8809
        %v12096 = vpop.f32.mrb[0].mxu0
        %v12097 = vadd.f32 %v11904, %v12096
        %v12098 = vpop.f32.mrb[0].mxu0
        %v12099 = vadd.f32 %v11906, %v12098
        %v12100 = vpop.f32.mrb[0].mxu0
        %v12101 = vadd.f32 %v11908, %v12100
        %v12102 = vpop.f32.mrb[0].mxu0
        %v12103 = vadd.f32 %v11910, %v12102
        %12104 = vmatprep.mubr.bf16.mxu0 %v8812
        %12105 = vmatmul.mubr.bf16.gmra.mrb[0].mxu0 %v8811
        %v12106 = vpop.f32.mrb[0].mxu0
        %v12107 = vadd.f32 %v11914, %v12106
        %v12108 = vpop.f32.mrb[0].mxu0
        %v12109 = vadd.f32 %v11916, %v12108
        %v12110 = vpop.f32.mrb[0].mxu0
        %v12111 = vadd.f32 %v11918, %v12110
        %v12112 = vpop.f32.mrb[0].mxu0
        %v12113 = vadd.f32 %v11920, %v12112
        %12114 = vmatprep.mubr.bf16.mxu0 %v8814
        %12115 = vmatmul.mubr.bf16.gmra.mrb[0].mxu0 %v8813
        %v12116 = vpop.f32.mrb[0].mxu0
        %v12117 = vadd.f32 %v11924, %v12116
        %v12118 = vpop.f32.mrb[0].mxu0
        %v12119 = vadd.f32 %v11926, %v12118
        %v12120 = vpop.f32.mrb[0].mxu0
        %v12121 = vadd.f32 %v11928, %v12120
        %v12122 = vpop.f32.mrb[0].mxu0
        %v12123 = vadd.f32 %v11930, %v12122
        %12124 = vmatprep.mubr.bf16.mxu0 %v8816
        %12125 = vmatmul.mubr.bf16.gmra.mrb[0].mxu0 %v8815
        %v12126 = vpop.f32.mrb[0].mxu0
        %v12127 = vadd.f32 %v11934, %v12126
        %v12128 = vpop.f32.mrb[0].mxu0
        %v12129 = vadd.f32 %v11936, %v12128
        %v12130 = vpop.f32.mrb[0].mxu0
        %v12131 = vadd.f32 %v11938, %v12130
        %v12132 = vpop.f32.mrb[0].mxu0
        %v12133 = vadd.f32 %v11940, %v12132
        %12134 = vdwg.mxu0
        %12135 = vmatprep.subr.bf16.mxu0 %v10594
        %12136 = vmatpush1.bf16.msra.mxu0 %v10593
        %12137 = vmatprep.subr.bf16.mxu0 %v10596
        %12138 = vmatpush1.bf16.msra.mxu0 %v10595
        %12139 = vmatprep.subr.bf16.mxu0 %v10598
        %12140 = vmatpush1.bf16.msra.mxu0 %v10597
        %12141 = vmatprep.subr.bf16.mxu0 %v10600
        %12142 = vmatpush1.bf16.msra.mxu0 %v10599
        %12143 = vmatprep.subr.bf16.mxu0 %v10602
        %12144 = vmatpush1.bf16.msra.mxu0 %v10601
        %12145 = vmatprep.subr.bf16.mxu0 %v10604
        %12146 = vmatpush1.bf16.msra.mxu0 %v10603
        %12147 = vmatprep.subr.bf16.mxu0 %v10606
        %12148 = vmatpush1.bf16.msra.mxu0 %v10605
        %12149 = vmatprep.subr.bf16.mxu0 %v10608
        %12150 = vmatpush1.bf16.msra.mxu0 %v10607
        %12151 = vmatprep.subr.bf16.mxu0 %v10610
        %12152 = vmatpush1.bf16.msra.mxu0 %v10609
        %12153 = vmatprep.subr.bf16.mxu0 %v10612
        %12154 = vmatpush1.bf16.msra.mxu0 %v10611
        %12155 = vmatprep.subr.bf16.mxu0 %v10614
        %12156 = vmatpush1.bf16.msra.mxu0 %v10613
        %12157 = vmatprep.subr.bf16.mxu0 %v10616
        %12158 = vmatpush1.bf16.msra.mxu0 %v10615
        %12159 = vmatprep.subr.bf16.mxu0 %v10618
        %12160 = vmatpush1.bf16.msra.mxu0 %v10617
        %12161 = vmatprep.subr.bf16.mxu0 %v10620
        %12162 = vmatpush1.bf16.msra.mxu0 %v10619
        %12163 = vmatprep.subr.bf16.mxu0 %v10622
        %12164 = vmatpush1.bf16.msra.mxu0 %v10621
        %12165 = vmatprep.subr.bf16.mxu0 %v10624
        %12166 = vmatpush1.bf16.msra.mxu0 %v10623
        %12167 = vmatprep.mubr.bf16.mxu0 %v8930
        %12168 = vmatmul.mubr.bf16.gmra.mrb[0].mxu0 %v8929
        %v12169 = vpop.f32.mrb[0].mxu0
        %v12170 = vadd.f32 %v11977, %v12169
        %v12171 = vpop.f32.mrb[0].mxu0
        %v12172 = vadd.f32 %v11979, %v12171
        %v12173 = vpop.f32.mrb[0].mxu0
        %v12174 = vadd.f32 %v11981, %v12173
        %v12175 = vpop.f32.mrb[0].mxu0
        %v12176 = vadd.f32 %v11983, %v12175
        %12177 = vmatprep.mubr.bf16.mxu0 %v8932
        %12178 = vmatmul.mubr.bf16.gmra.mrb[0].mxu0 %v8931
        %v12179 = vpop.f32.mrb[0].mxu0
        %v12180 = vadd.f32 %v11987, %v12179
        %v12181 = vpop.f32.mrb[0].mxu0
        %v12182 = vadd.f32 %v11989, %v12181
        %v12183 = vpop.f32.mrb[0].mxu0
        %v12184 = vadd.f32 %v11991, %v12183
        %v12185 = vpop.f32.mrb[0].mxu0
        %v12186 = vadd.f32 %v11993, %v12185
        %12187 = vmatprep.mubr.bf16.mxu0 %v8934
        %12188 = vmatmul.mubr.bf16.gmra.mrb[0].mxu0 %v8933
        %v12189 = vpop.f32.mrb[0].mxu0
        %v12190 = vadd.f32 %v11997, %v12189
        %v12191 = vpop.f32.mrb[0].mxu0
        %v12192 = vadd.f32 %v11999, %v12191
        %v12193 = vpop.f32.mrb[0].mxu0
        %v12194 = vadd.f32 %v12001, %v12193
        %v12195 = vpop.f32.mrb[0].mxu0
        %v12196 = vadd.f32 %v12003, %v12195
        %12197 = vmatprep.mubr.bf16.mxu0 %v8936
        %12198 = vmatmul.mubr.bf16.gmra.mrb[0].mxu0 %v8935
        %v12199 = vpop.f32.mrb[0].mxu0
        %v12200 = vadd.f32 %v12007, %v12199
        %v12201 = vpop.f32.mrb[0].mxu0
        %v12202 = vadd.f32 %v12009, %v12201
        %v12203 = vpop.f32.mrb[0].mxu0
        %v12204 = vadd.f32 %v12011, %v12203
        %v12205 = vpop.f32.mrb[0].mxu0
        %v12206 = vadd.f32 %v12013, %v12205
        %12207 = vmatprep.mubr.bf16.mxu0 %v8938
        %12208 = vmatmul.mubr.bf16.gmra.mrb[0].mxu0 %v8937
        %v12209 = vpop.f32.mrb[0].mxu0
        %v12210 = vadd.f32 %v12017, %v12209
        %v12211 = vpop.f32.mrb[0].mxu0
        %v12212 = vadd.f32 %v12019, %v12211
        %v12213 = vpop.f32.mrb[0].mxu0
        %v12214 = vadd.f32 %v12021, %v12213
        %v12215 = vpop.f32.mrb[0].mxu0
        %v12216 = vadd.f32 %v12023, %v12215
        %12217 = vmatprep.mubr.bf16.mxu0 %v8940
        %12218 = vmatmul.mubr.bf16.gmra.mrb[0].mxu0 %v8939
        %v12219 = vpop.f32.mrb[0].mxu0
        %v12220 = vadd.f32 %v12027, %v12219
        %v12221 = vpop.f32.mrb[0].mxu0
        %v12222 = vadd.f32 %v12029, %v12221
        %v12223 = vpop.f32.mrb[0].mxu0
        %v12224 = vadd.f32 %v12031, %v12223
        %v12225 = vpop.f32.mrb[0].mxu0
        %v12226 = vadd.f32 %v12033, %v12225
        %12227 = vmatprep.mubr.bf16.mxu0 %v8942
        %12228 = vmatmul.mubr.bf16.gmra.mrb[0].mxu0 %v8941
        %v12229 = vpop.f32.mrb[0].mxu0
        %v12230 = vadd.f32 %v12037, %v12229
        %v12231 = vpop.f32.mrb[0].mxu0
        %v12232 = vadd.f32 %v12039, %v12231
        %v12233 = vpop.f32.mrb[0].mxu0
        %v12234 = vadd.f32 %v12041, %v12233
        %v12235 = vpop.f32.mrb[0].mxu0
        %v12236 = vadd.f32 %v12043, %v12235
        %12237 = vmatprep.mubr.bf16.mxu0 %v8944
        %12238 = vmatmul.mubr.bf16.gmra.mrb[0].mxu0 %v8943
        %v12239 = vpop.f32.mrb[0].mxu0
        %v12240 = vadd.f32 %v12047, %v12239
        %v12241 = vpop.f32.mrb[0].mxu0
        %v12242 = vadd.f32 %v12049, %v12241
        %v12243 = vpop.f32.mrb[0].mxu0
        %v12244 = vadd.f32 %v12051, %v12243
        %v12245 = vpop.f32.mrb[0].mxu0
        %v12246 = vadd.f32 %v12053, %v12245
        %12247 = vmatprep.mubr.bf16.mxu0 %v8946
        %12248 = vmatmul.mubr.bf16.gmra.mrb[0].mxu0 %v8945
        %v12249 = vpop.f32.mrb[0].mxu0
        %v12250 = vadd.f32 %v12057, %v12249
        %v12251 = vpop.f32.mrb[0].mxu0
        %v12252 = vadd.f32 %v12059, %v12251
        %v12253 = vpop.f32.mrb[0].mxu0
        %v12254 = vadd.f32 %v12061, %v12253
        %v12255 = vpop.f32.mrb[0].mxu0
        %v12256 = vadd.f32 %v12063, %v12255
        %12257 = vmatprep.mubr.bf16.mxu0 %v8948
        %12258 = vmatmul.mubr.bf16.gmra.mrb[0].mxu0 %v8947
        %v12259 = vpop.f32.mrb[0].mxu0
        %v12260 = vadd.f32 %v12067, %v12259
        %v12261 = vpop.f32.mrb[0].mxu0
        %v12262 = vadd.f32 %v12069, %v12261
        %v12263 = vpop.f32.mrb[0].mxu0
        %v12264 = vadd.f32 %v12071, %v12263
        %v12265 = vpop.f32.mrb[0].mxu0
        %v12266 = vadd.f32 %v12073, %v12265
        %12267 = vmatprep.mubr.bf16.mxu0 %v8950
        %12268 = vmatmul.mubr.bf16.gmra.mrb[0].mxu0 %v8949
        %v12269 = vpop.f32.mrb[0].mxu0
        %v12270 = vadd.f32 %v12077, %v12269
        %v12271 = vpop.f32.mrb[0].mxu0
        %v12272 = vadd.f32 %v12079, %v12271
        %v12273 = vpop.f32.mrb[0].mxu0
        %v12274 = vadd.f32 %v12081, %v12273
        %v12275 = vpop.f32.mrb[0].mxu0
        %v12276 = vadd.f32 %v12083, %v12275
        %12277 = vmatprep.mubr.bf16.mxu0 %v8952
        %12278 = vmatmul.mubr.bf16.gmra.mrb[0].mxu0 %v8951
        %v12279 = vpop.f32.mrb[0].mxu0
        %v12280 = vadd.f32 %v12087, %v12279
        %v12281 = vpop.f32.mrb[0].mxu0
        %v12282 = vadd.f32 %v12089, %v12281
        %v12283 = vpop.f32.mrb[0].mxu0
        %v12284 = vadd.f32 %v12091, %v12283
        %v12285 = vpop.f32.mrb[0].mxu0
        %v12286 = vadd.f32 %v12093, %v12285
        %12287 = vmatprep.mubr.bf16.mxu0 %v8954
        %12288 = vmatmul.mubr.bf16.gmra.mrb[0].mxu0 %v8953
        %v12289 = vpop.f32.mrb[0].mxu0
        %v12290 = vadd.f32 %v12097, %v12289
        %v12291 = vpop.f32.mrb[0].mxu0
        %v12292 = vadd.f32 %v12099, %v12291
        %v12293 = vpop.f32.mrb[0].mxu0
        %v12294 = vadd.f32 %v12101, %v12293
        %v12295 = vpop.f32.mrb[0].mxu0
        %v12296 = vadd.f32 %v12103, %v12295
        %12297 = vmatprep.mubr.bf16.mxu0 %v8956
        %12298 = vmatmul.mubr.bf16.gmra.mrb[0].mxu0 %v8955
        %v12299 = vpop.f32.mrb[0].mxu0
        %v12300 = vadd.f32 %v12107, %v12299
        %v12301 = vpop.f32.mrb[0].mxu0
        %v12302 = vadd.f32 %v12109, %v12301
        %v12303 = vpop.f32.mrb[0].mxu0
        %v12304 = vadd.f32 %v12111, %v12303
        %v12305 = vpop.f32.mrb[0].mxu0
        %v12306 = vadd.f32 %v12113, %v12305
        %12307 = vmatprep.mubr.bf16.mxu0 %v8958
        %12308 = vmatmul.mubr.bf16.gmra.mrb[0].mxu0 %v8957
        %v12309 = vpop.f32.mrb[0].mxu0
        %v12310 = vadd.f32 %v12117, %v12309
        %v12311 = vpop.f32.mrb[0].mxu0
        %v12312 = vadd.f32 %v12119, %v12311
        %v12313 = vpop.f32.mrb[0].mxu0
        %v12314 = vadd.f32 %v12121, %v12313
        %v12315 = vpop.f32.mrb[0].mxu0
        %v12316 = vadd.f32 %v12123, %v12315
        %12317 = vmatprep.mubr.bf16.mxu0 %v8960
        %12318 = vmatmul.mubr.bf16.gmra.mrb[0].mxu0 %v8959
        %v12319 = vpop.f32.mrb[0].mxu0
        %v12320 = vadd.f32 %v12127, %v12319
        %v12321 = vpop.f32.mrb[0].mxu0
        %v12322 = vadd.f32 %v12129, %v12321
        %v12323 = vpop.f32.mrb[0].mxu0
        %v12324 = vadd.f32 %v12131, %v12323
        %v12325 = vpop.f32.mrb[0].mxu0
        %v12326 = vadd.f32 %v12133, %v12325
        %12327 = vdwg.mxu0
        %12328 = vmatprep.subr.bf16.mxu0 %v10626
        %12329 = vmatpush1.bf16.msra.mxu0 %v10625
        %12330 = vmatprep.subr.bf16.mxu0 %v10628
        %12331 = vmatpush1.bf16.msra.mxu0 %v10627
        %12332 = vmatprep.subr.bf16.mxu0 %v10630
        %12333 = vmatpush1.bf16.msra.mxu0 %v10629
        %12334 = vmatprep.subr.bf16.mxu0 %v10632
        %12335 = vmatpush1.bf16.msra.mxu0 %v10631
        %12336 = vmatprep.subr.bf16.mxu0 %v10634
        %12337 = vmatpush1.bf16.msra.mxu0 %v10633
        %12338 = vmatprep.subr.bf16.mxu0 %v10636
        %12339 = vmatpush1.bf16.msra.mxu0 %v10635
        %12340 = vmatprep.subr.bf16.mxu0 %v10638
        %12341 = vmatpush1.bf16.msra.mxu0 %v10637
        %12342 = vmatprep.subr.bf16.mxu0 %v10640
        %12343 = vmatpush1.bf16.msra.mxu0 %v10639
        %12344 = vmatprep.subr.bf16.mxu0 %v10642
        %12345 = vmatpush1.bf16.msra.mxu0 %v10641
        %12346 = vmatprep.subr.bf16.mxu0 %v10644
        %12347 = vmatpush1.bf16.msra.mxu0 %v10643
        %12348 = vmatprep.subr.bf16.mxu0 %v10646
        %12349 = vmatpush1.bf16.msra.mxu0 %v10645
        %12350 = vmatprep.subr.bf16.mxu0 %v10648
        %12351 = vmatpush1.bf16.msra.mxu0 %v10647
        %12352 = vmatprep.subr.bf16.mxu0 %v10650
        %12353 = vmatpush1.bf16.msra.mxu0 %v10649
        %12354 = vmatprep.subr.bf16.mxu0 %v10652
        %12355 = vmatpush1.bf16.msra.mxu0 %v10651
        %12356 = vmatprep.subr.bf16.mxu0 %v10654
        %12357 = vmatpush1.bf16.msra.mxu0 %v10653
        %12358 = vmatprep.subr.bf16.mxu0 %v10656
        %12359 = vmatpush1.bf16.msra.mxu0 %v10655
        %12360 = vmatprep.mubr.bf16.mxu0 %v9058
        %12361 = vmatmul.mubr.bf16.gmra.mrb[0].mxu0 %v9057
        %v12362 = vpop.f32.mrb[0].mxu0
        %v12363 = vadd.f32 %v12170, %v12362
        %v12364 = vpop.f32.mrb[0].mxu0
        %v12365 = vadd.f32 %v12172, %v12364
        %v12366 = vpop.f32.mrb[0].mxu0
        %v12367 = vadd.f32 %v12174, %v12366
        %v12368 = vpop.f32.mrb[0].mxu0
        %v12369 = vadd.f32 %v12176, %v12368
        %12370 = vmatprep.mubr.bf16.mxu0 %v9060
        %12371 = vmatmul.mubr.bf16.gmra.mrb[0].mxu0 %v9059
        %v12372 = vpop.f32.mrb[0].mxu0
        %v12373 = vadd.f32 %v12180, %v12372
        %v12374 = vpop.f32.mrb[0].mxu0
        %v12375 = vadd.f32 %v12182, %v12374
        %v12376 = vpop.f32.mrb[0].mxu0
        %v12377 = vadd.f32 %v12184, %v12376
        %v12378 = vpop.f32.mrb[0].mxu0
        %v12379 = vadd.f32 %v12186, %v12378
        %12380 = vmatprep.mubr.bf16.mxu0 %v9062
        %12381 = vmatmul.mubr.bf16.gmra.mrb[0].mxu0 %v9061
        %v12382 = vpop.f32.mrb[0].mxu0
        %v12383 = vadd.f32 %v12190, %v12382
        %v12384 = vpop.f32.mrb[0].mxu0
        %v12385 = vadd.f32 %v12192, %v12384
        %v12386 = vpop.f32.mrb[0].mxu0
        %v12387 = vadd.f32 %v12194, %v12386
        %v12388 = vpop.f32.mrb[0].mxu0
        %v12389 = vadd.f32 %v12196, %v12388
        %12390 = vmatprep.mubr.bf16.mxu0 %v9064
        %12391 = vmatmul.mubr.bf16.gmra.mrb[0].mxu0 %v9063
        %v12392 = vpop.f32.mrb[0].mxu0
        %v12393 = vadd.f32 %v12200, %v12392
        %v12394 = vpop.f32.mrb[0].mxu0
        %v12395 = vadd.f32 %v12202, %v12394
        %v12396 = vpop.f32.mrb[0].mxu0
        %v12397 = vadd.f32 %v12204, %v12396
        %v12398 = vpop.f32.mrb[0].mxu0
        %v12399 = vadd.f32 %v12206, %v12398
        %12400 = vmatprep.mubr.bf16.mxu0 %v9066
        %12401 = vmatmul.mubr.bf16.gmra.mrb[0].mxu0 %v9065
        %v12402 = vpop.f32.mrb[0].mxu0
        %v12403 = vadd.f32 %v12210, %v12402
        %v12404 = vpop.f32.mrb[0].mxu0
        %v12405 = vadd.f32 %v12212, %v12404
        %v12406 = vpop.f32.mrb[0].mxu0
        %v12407 = vadd.f32 %v12214, %v12406
        %v12408 = vpop.f32.mrb[0].mxu0
        %v12409 = vadd.f32 %v12216, %v12408
        %12410 = vmatprep.mubr.bf16.mxu0 %v9068
        %12411 = vmatmul.mubr.bf16.gmra.mrb[0].mxu0 %v9067
        %v12412 = vpop.f32.mrb[0].mxu0
        %v12413 = vadd.f32 %v12220, %v12412
        %v12414 = vpop.f32.mrb[0].mxu0
        %v12415 = vadd.f32 %v12222, %v12414
        %v12416 = vpop.f32.mrb[0].mxu0
        %v12417 = vadd.f32 %v12224, %v12416
        %v12418 = vpop.f32.mrb[0].mxu0
        %v12419 = vadd.f32 %v12226, %v12418
        %12420 = vmatprep.mubr.bf16.mxu0 %v9070
        %12421 = vmatmul.mubr.bf16.gmra.mrb[0].mxu0 %v9069
        %v12422 = vpop.f32.mrb[0].mxu0
        %v12423 = vadd.f32 %v12230, %v12422
        %v12424 = vpop.f32.mrb[0].mxu0
        %v12425 = vadd.f32 %v12232, %v12424
        %v12426 = vpop.f32.mrb[0].mxu0
        %v12427 = vadd.f32 %v12234, %v12426
        %v12428 = vpop.f32.mrb[0].mxu0
        %v12429 = vadd.f32 %v12236, %v12428
        %12430 = vmatprep.mubr.bf16.mxu0 %v9072
        %12431 = vmatmul.mubr.bf16.gmra.mrb[0].mxu0 %v9071
        %v12432 = vpop.f32.mrb[0].mxu0
        %v12433 = vadd.f32 %v12240, %v12432
        %v12434 = vpop.f32.mrb[0].mxu0
        %v12435 = vadd.f32 %v12242, %v12434
        %v12436 = vpop.f32.mrb[0].mxu0
        %v12437 = vadd.f32 %v12244, %v12436
        %v12438 = vpop.f32.mrb[0].mxu0
        %v12439 = vadd.f32 %v12246, %v12438
        %12440 = vmatprep.mubr.bf16.mxu0 %v9074
        %12441 = vmatmul.mubr.bf16.gmra.mrb[0].mxu0 %v9073
        %v12442 = vpop.f32.mrb[0].mxu0
        %v12443 = vadd.f32 %v12250, %v12442
        %v12444 = vpop.f32.mrb[0].mxu0
        %v12445 = vadd.f32 %v12252, %v12444
        %v12446 = vpop.f32.mrb[0].mxu0
        %v12447 = vadd.f32 %v12254, %v12446
        %v12448 = vpop.f32.mrb[0].mxu0
        %v12449 = vadd.f32 %v12256, %v12448
        %12450 = vmatprep.mubr.bf16.mxu0 %v9076
        %12451 = vmatmul.mubr.bf16.gmra.mrb[0].mxu0 %v9075
        %v12452 = vpop.f32.mrb[0].mxu0
        %v12453 = vadd.f32 %v12260, %v12452
        %v12454 = vpop.f32.mrb[0].mxu0
        %v12455 = vadd.f32 %v12262, %v12454
        %v12456 = vpop.f32.mrb[0].mxu0
        %v12457 = vadd.f32 %v12264, %v12456
        %v12458 = vpop.f32.mrb[0].mxu0
        %v12459 = vadd.f32 %v12266, %v12458
        %12460 = vmatprep.mubr.bf16.mxu0 %v9078
        %12461 = vmatmul.mubr.bf16.gmra.mrb[0].mxu0 %v9077
        %v12462 = vpop.f32.mrb[0].mxu0
        %v12463 = vadd.f32 %v12270, %v12462
        %v12464 = vpop.f32.mrb[0].mxu0
        %v12465 = vadd.f32 %v12272, %v12464
        %v12466 = vpop.f32.mrb[0].mxu0
        %v12467 = vadd.f32 %v12274, %v12466
        %v12468 = vpop.f32.mrb[0].mxu0
        %v12469 = vadd.f32 %v12276, %v12468
        %12470 = vmatprep.mubr.bf16.mxu0 %v9080
        %12471 = vmatmul.mubr.bf16.gmra.mrb[0].mxu0 %v9079
        %v12472 = vpop.f32.mrb[0].mxu0
        %v12473 = vadd.f32 %v12280, %v12472
        %v12474 = vpop.f32.mrb[0].mxu0
        %v12475 = vadd.f32 %v12282, %v12474
        %v12476 = vpop.f32.mrb[0].mxu0
        %v12477 = vadd.f32 %v12284, %v12476
        %v12478 = vpop.f32.mrb[0].mxu0
        %v12479 = vadd.f32 %v12286, %v12478
        %12480 = vmatprep.mubr.bf16.mxu0 %v9082
        %12481 = vmatmul.mubr.bf16.gmra.mrb[0].mxu0 %v9081
        %v12482 = vpop.f32.mrb[0].mxu0
        %v12483 = vadd.f32 %v12290, %v12482
        %v12484 = vpop.f32.mrb[0].mxu0
        %v12485 = vadd.f32 %v12292, %v12484
        %v12486 = vpop.f32.mrb[0].mxu0
        %v12487 = vadd.f32 %v12294, %v12486
        %v12488 = vpop.f32.mrb[0].mxu0
        %v12489 = vadd.f32 %v12296, %v12488
        %12490 = vmatprep.mubr.bf16.mxu0 %v9084
        %12491 = vmatmul.mubr.bf16.gmra.mrb[0].mxu0 %v9083
        %v12492 = vpop.f32.mrb[0].mxu0
        %v12493 = vadd.f32 %v12300, %v12492
        %v12494 = vpop.f32.mrb[0].mxu0
        %v12495 = vadd.f32 %v12302, %v12494
        %v12496 = vpop.f32.mrb[0].mxu0
        %v12497 = vadd.f32 %v12304, %v12496
        %v12498 = vpop.f32.mrb[0].mxu0
        %v12499 = vadd.f32 %v12306, %v12498
        %12500 = vmatprep.mubr.bf16.mxu0 %v9086
        %12501 = vmatmul.mubr.bf16.gmra.mrb[0].mxu0 %v9085
        %v12502 = vpop.f32.mrb[0].mxu0
        %v12503 = vadd.f32 %v12310, %v12502
        %v12504 = vpop.f32.mrb[0].mxu0
        %v12505 = vadd.f32 %v12312, %v12504
        %v12506 = vpop.f32.mrb[0].mxu0
        %v12507 = vadd.f32 %v12314, %v12506
        %v12508 = vpop.f32.mrb[0].mxu0
        %v12509 = vadd.f32 %v12316, %v12508
        %12510 = vmatprep.mubr.bf16.mxu0 %v9088
        %12511 = vmatmul.mubr.bf16.gmra.mrb[0].mxu0 %v9087
        %v12512 = vpop.f32.mrb[0].mxu0
        %v12513 = vadd.f32 %v12320, %v12512
        %v12514 = vpop.f32.mrb[0].mxu0
        %v12515 = vadd.f32 %v12322, %v12514
        %v12516 = vpop.f32.mrb[0].mxu0
        %v12517 = vadd.f32 %v12324, %v12516
        %v12518 = vpop.f32.mrb[0].mxu0
        %v12519 = vadd.f32 %v12326, %v12518
        %12520 = vdwg.mxu0
        %12521 = vmatprep.subr.bf16.mxu0 %v10658
        %12522 = vmatpush1.bf16.msra.mxu0 %v10657
        %12523 = vmatprep.subr.bf16.mxu0 %v10660
        %12524 = vmatpush1.bf16.msra.mxu0 %v10659
        %12525 = vmatprep.subr.bf16.mxu0 %v10662
        %12526 = vmatpush1.bf16.msra.mxu0 %v10661
        %12527 = vmatprep.subr.bf16.mxu0 %v10664
        %12528 = vmatpush1.bf16.msra.mxu0 %v10663
        %12529 = vmatprep.subr.bf16.mxu0 %v10666
        %12530 = vmatpush1.bf16.msra.mxu0 %v10665
        %12531 = vmatprep.subr.bf16.mxu0 %v10668
        %12532 = vmatpush1.bf16.msra.mxu0 %v10667
        %12533 = vmatprep.subr.bf16.mxu0 %v10670
        %12534 = vmatpush1.bf16.msra.mxu0 %v10669
        %12535 = vmatprep.subr.bf16.mxu0 %v10672
        %12536 = vmatpush1.bf16.msra.mxu0 %v10671
        %12537 = vmatprep.subr.bf16.mxu0 %v10674
        %12538 = vmatpush1.bf16.msra.mxu0 %v10673
        %12539 = vmatprep.subr.bf16.mxu0 %v10676
        %12540 = vmatpush1.bf16.msra.mxu0 %v10675
        %12541 = vmatprep.subr.bf16.mxu0 %v10678
        %12542 = vmatpush1.bf16.msra.mxu0 %v10677
        %12543 = vmatprep.subr.bf16.mxu0 %v10680
        %12544 = vmatpush1.bf16.msra.mxu0 %v10679
        %12545 = vmatprep.subr.bf16.mxu0 %v10682
        %12546 = vmatpush1.bf16.msra.mxu0 %v10681
        %12547 = vmatprep.subr.bf16.mxu0 %v10684
        %12548 = vmatpush1.bf16.msra.mxu0 %v10683
        %12549 = vmatprep.subr.bf16.mxu0 %v10686
        %12550 = vmatpush1.bf16.msra.mxu0 %v10685
        %12551 = vmatprep.subr.bf16.mxu0 %v10688
        %12552 = vmatpush1.bf16.msra.mxu0 %v10687
        %12553 = vmatprep.mubr.bf16.mxu0 %v9186
        %12554 = vmatmul.mubr.bf16.gmra.mrb[0].mxu0 %v9185
        %v12555 = vpop.f32.mrb[0].mxu0
        %v12556 = vadd.f32 %v12363, %v12555
        %v12557 = vpop.f32.mrb[0].mxu0
        %v12558 = vadd.f32 %v12365, %v12557
        %v12559 = vpop.f32.mrb[0].mxu0
        %v12560 = vadd.f32 %v12367, %v12559
        %v12561 = vpop.f32.mrb[0].mxu0
        %v12562 = vadd.f32 %v12369, %v12561
        %12563 = vmatprep.mubr.bf16.mxu0 %v9188
        %12564 = vmatmul.mubr.bf16.gmra.mrb[0].mxu0 %v9187
        %v12565 = vpop.f32.mrb[0].mxu0
        %v12566 = vadd.f32 %v12373, %v12565
        %v12567 = vpop.f32.mrb[0].mxu0
        %v12568 = vadd.f32 %v12375, %v12567
        %v12569 = vpop.f32.mrb[0].mxu0
        %v12570 = vadd.f32 %v12377, %v12569
        %v12571 = vpop.f32.mrb[0].mxu0
        %v12572 = vadd.f32 %v12379, %v12571
        %12573 = vmatprep.mubr.bf16.mxu0 %v9190
        %12574 = vmatmul.mubr.bf16.gmra.mrb[0].mxu0 %v9189
        %v12575 = vpop.f32.mrb[0].mxu0
        %v12576 = vadd.f32 %v12383, %v12575
        %v12577 = vpop.f32.mrb[0].mxu0
        %v12578 = vadd.f32 %v12385, %v12577
        %v12579 = vpop.f32.mrb[0].mxu0
        %v12580 = vadd.f32 %v12387, %v12579
        %v12581 = vpop.f32.mrb[0].mxu0
        %v12582 = vadd.f32 %v12389, %v12581
        %12583 = vmatprep.mubr.bf16.mxu0 %v9192
        %12584 = vmatmul.mubr.bf16.gmra.mrb[0].mxu0 %v9191
        %v12585 = vpop.f32.mrb[0].mxu0
        %v12586 = vadd.f32 %v12393, %v12585
        %v12587 = vpop.f32.mrb[0].mxu0
        %v12588 = vadd.f32 %v12395, %v12587
        %v12589 = vpop.f32.mrb[0].mxu0
        %v12590 = vadd.f32 %v12397, %v12589
        %v12591 = vpop.f32.mrb[0].mxu0
        %v12592 = vadd.f32 %v12399, %v12591
        %12593 = vmatprep.mubr.bf16.mxu0 %v9194
        %12594 = vmatmul.mubr.bf16.gmra.mrb[0].mxu0 %v9193
        %v12595 = vpop.f32.mrb[0].mxu0
        %v12596 = vadd.f32 %v12403, %v12595
        %v12597 = vpop.f32.mrb[0].mxu0
        %v12598 = vadd.f32 %v12405, %v12597
        %v12599 = vpop.f32.mrb[0].mxu0
        %v12600 = vadd.f32 %v12407, %v12599
        %v12601 = vpop.f32.mrb[0].mxu0
        %v12602 = vadd.f32 %v12409, %v12601
        %12603 = vmatprep.mubr.bf16.mxu0 %v9196
        %12604 = vmatmul.mubr.bf16.gmra.mrb[0].mxu0 %v9195
        %v12605 = vpop.f32.mrb[0].mxu0
        %v12606 = vadd.f32 %v12413, %v12605
        %v12607 = vpop.f32.mrb[0].mxu0
        %v12608 = vadd.f32 %v12415, %v12607
        %v12609 = vpop.f32.mrb[0].mxu0
        %v12610 = vadd.f32 %v12417, %v12609
        %v12611 = vpop.f32.mrb[0].mxu0
        %v12612 = vadd.f32 %v12419, %v12611
        %12613 = vmatprep.mubr.bf16.mxu0 %v9198
        %12614 = vmatmul.mubr.bf16.gmra.mrb[0].mxu0 %v9197
        %v12615 = vpop.f32.mrb[0].mxu0
        %v12616 = vadd.f32 %v12423, %v12615
        %v12617 = vpop.f32.mrb[0].mxu0
        %v12618 = vadd.f32 %v12425, %v12617
        %v12619 = vpop.f32.mrb[0].mxu0
        %v12620 = vadd.f32 %v12427, %v12619
        %v12621 = vpop.f32.mrb[0].mxu0
        %v12622 = vadd.f32 %v12429, %v12621
        %12623 = vmatprep.mubr.bf16.mxu0 %v9200
        %12624 = vmatmul.mubr.bf16.gmra.mrb[0].mxu0 %v9199
        %v12625 = vpop.f32.mrb[0].mxu0
        %v12626 = vadd.f32 %v12433, %v12625
        %v12627 = vpop.f32.mrb[0].mxu0
        %v12628 = vadd.f32 %v12435, %v12627
        %v12629 = vpop.f32.mrb[0].mxu0
        %v12630 = vadd.f32 %v12437, %v12629
        %v12631 = vpop.f32.mrb[0].mxu0
        %v12632 = vadd.f32 %v12439, %v12631
        %12633 = vmatprep.mubr.bf16.mxu0 %v9202
        %12634 = vmatmul.mubr.bf16.gmra.mrb[0].mxu0 %v9201
        %v12635 = vpop.f32.mrb[0].mxu0
        %v12636 = vadd.f32 %v12443, %v12635
        %v12637 = vpop.f32.mrb[0].mxu0
        %v12638 = vadd.f32 %v12445, %v12637
        %v12639 = vpop.f32.mrb[0].mxu0
        %v12640 = vadd.f32 %v12447, %v12639
        %v12641 = vpop.f32.mrb[0].mxu0
        %v12642 = vadd.f32 %v12449, %v12641
        %12643 = vmatprep.mubr.bf16.mxu0 %v9204
        %12644 = vmatmul.mubr.bf16.gmra.mrb[0].mxu0 %v9203
        %v12645 = vpop.f32.mrb[0].mxu0
        %v12646 = vadd.f32 %v12453, %v12645
        %v12647 = vpop.f32.mrb[0].mxu0
        %v12648 = vadd.f32 %v12455, %v12647
        %v12649 = vpop.f32.mrb[0].mxu0
        %v12650 = vadd.f32 %v12457, %v12649
        %v12651 = vpop.f32.mrb[0].mxu0
        %v12652 = vadd.f32 %v12459, %v12651
        %12653 = vmatprep.mubr.bf16.mxu0 %v9206
        %12654 = vmatmul.mubr.bf16.gmra.mrb[0].mxu0 %v9205
        %v12655 = vpop.f32.mrb[0].mxu0
        %v12656 = vadd.f32 %v12463, %v12655
        %v12657 = vpop.f32.mrb[0].mxu0
        %v12658 = vadd.f32 %v12465, %v12657
        %v12659 = vpop.f32.mrb[0].mxu0
        %v12660 = vadd.f32 %v12467, %v12659
        %v12661 = vpop.f32.mrb[0].mxu0
        %v12662 = vadd.f32 %v12469, %v12661
        %12663 = vmatprep.mubr.bf16.mxu0 %v9208
        %12664 = vmatmul.mubr.bf16.gmra.mrb[0].mxu0 %v9207
        %v12665 = vpop.f32.mrb[0].mxu0
        %v12666 = vadd.f32 %v12473, %v12665
        %v12667 = vpop.f32.mrb[0].mxu0
        %v12668 = vadd.f32 %v12475, %v12667
        %v12669 = vpop.f32.mrb[0].mxu0
        %v12670 = vadd.f32 %v12477, %v12669
        %v12671 = vpop.f32.mrb[0].mxu0
        %v12672 = vadd.f32 %v12479, %v12671
        %12673 = vmatprep.mubr.bf16.mxu0 %v9210
        %12674 = vmatmul.mubr.bf16.gmra.mrb[0].mxu0 %v9209
        %v12675 = vpop.f32.mrb[0].mxu0
        %v12676 = vadd.f32 %v12483, %v12675
        %v12677 = vpop.f32.mrb[0].mxu0
        %v12678 = vadd.f32 %v12485, %v12677
        %v12679 = vpop.f32.mrb[0].mxu0
        %v12680 = vadd.f32 %v12487, %v12679
        %v12681 = vpop.f32.mrb[0].mxu0
        %v12682 = vadd.f32 %v12489, %v12681
        %12683 = vmatprep.mubr.bf16.mxu0 %v9212
        %12684 = vmatmul.mubr.bf16.gmra.mrb[0].mxu0 %v9211
        %v12685 = vpop.f32.mrb[0].mxu0
        %v12686 = vadd.f32 %v12493, %v12685
        %v12687 = vpop.f32.mrb[0].mxu0
        %v12688 = vadd.f32 %v12495, %v12687
        %v12689 = vpop.f32.mrb[0].mxu0
        %v12690 = vadd.f32 %v12497, %v12689
        %v12691 = vpop.f32.mrb[0].mxu0
        %v12692 = vadd.f32 %v12499, %v12691
        %12693 = vmatprep.mubr.bf16.mxu0 %v9214
        %12694 = vmatmul.mubr.bf16.gmra.mrb[0].mxu0 %v9213
        %v12695 = vpop.f32.mrb[0].mxu0
        %v12696 = vadd.f32 %v12503, %v12695
        %v12697 = vpop.f32.mrb[0].mxu0
        %v12698 = vadd.f32 %v12505, %v12697
        %v12699 = vpop.f32.mrb[0].mxu0
        %v12700 = vadd.f32 %v12507, %v12699
        %v12701 = vpop.f32.mrb[0].mxu0
        %v12702 = vadd.f32 %v12509, %v12701
        %12703 = vmatprep.mubr.bf16.mxu0 %v9216
        %12704 = vmatmul.mubr.bf16.gmra.mrb[0].mxu0 %v9215
        %v12705 = vpop.f32.mrb[0].mxu0
        %v12706 = vadd.f32 %v12513, %v12705
        %v12707 = vpop.f32.mrb[0].mxu0
        %v12708 = vadd.f32 %v12515, %v12707
        %v12709 = vpop.f32.mrb[0].mxu0
        %v12710 = vadd.f32 %v12517, %v12709
        %v12711 = vpop.f32.mrb[0].mxu0
        %v12712 = vadd.f32 %v12519, %v12711
        %12713 = vdwg.mxu0
        %v12714 = vld [vmem:[#allocation12] sm:$0x3]
        %v12716 = vlaneseq
        %v12717 = vshrl.u32 %v12716, 7
        %v12718 = vsub.s32 0, %v12717
        %v12719 = vrot.slane %v12714, %v12718
        %v12720 = vlaneseq
        %v12721 = vshrl.u32 %v12720, 7
        %v12722 = vsub.s32 1, %v12721
        %v12723 = vrot.slane %v12714, %v12722
        %v12726 = vmul.f32 %v12556, %v12719
        %v12727 = vmul.f32 %v12558, %v12723
        %v12728 = vmul.f32 %v12560, %v12719
        %v12729 = vmul.f32 %v12562, %v12723
        %v12730 = vmul.f32 %v12566, %v12719
        %v12731 = vmul.f32 %v12568, %v12723
        %v12732 = vmul.f32 %v12570, %v12719
        %v12733 = vmul.f32 %v12572, %v12723
        %v12734 = vmul.f32 %v12576, %v12719
        %v12735 = vmul.f32 %v12578, %v12723
        %v12736 = vmul.f32 %v12580, %v12719
        %v12737 = vmul.f32 %v12582, %v12723
        %v12738 = vmul.f32 %v12586, %v12719
        %v12739 = vmul.f32 %v12588, %v12723
        %v12740 = vmul.f32 %v12590, %v12719
        %v12741 = vmul.f32 %v12592, %v12723
        %v12742 = vmul.f32 %v12596, %v12719
        %v12743 = vmul.f32 %v12598, %v12723
        %v12744 = vmul.f32 %v12600, %v12719
        %v12745 = vmul.f32 %v12602, %v12723
        %v12746 = vmul.f32 %v12606, %v12719
        %v12747 = vmul.f32 %v12608, %v12723
        %v12748 = vmul.f32 %v12610, %v12719
        %v12749 = vmul.f32 %v12612, %v12723
        %v12750 = vmul.f32 %v12616, %v12719
        %v12751 = vmul.f32 %v12618, %v12723
        %v12752 = vmul.f32 %v12620, %v12719
        %v12753 = vmul.f32 %v12622, %v12723
        %v12754 = vmul.f32 %v12626, %v12719
        %v12755 = vmul.f32 %v12628, %v12723
        %v12756 = vmul.f32 %v12630, %v12719
        %v12757 = vmul.f32 %v12632, %v12723
        %v12758 = vmul.f32 %v12636, %v12719
        %v12759 = vmul.f32 %v12638, %v12723
        %v12760 = vmul.f32 %v12640, %v12719
        %v12761 = vmul.f32 %v12642, %v12723
        %v12762 = vmul.f32 %v12646, %v12719
        %v12763 = vmul.f32 %v12648, %v12723
        %v12764 = vmul.f32 %v12650, %v12719
        %v12765 = vmul.f32 %v12652, %v12723
        %v12766 = vmul.f32 %v12656, %v12719
        %v12767 = vmul.f32 %v12658, %v12723
        %v12768 = vmul.f32 %v12660, %v12719
        %v12769 = vmul.f32 %v12662, %v12723
        %v12770 = vmul.f32 %v12666, %v12719
        %v12771 = vmul.f32 %v12668, %v12723
        %v12772 = vmul.f32 %v12670, %v12719
        %v12773 = vmul.f32 %v12672, %v12723
        %v12774 = vmul.f32 %v12676, %v12719
        %v12775 = vmul.f32 %v12678, %v12723
        %v12776 = vmul.f32 %v12680, %v12719
        %v12777 = vmul.f32 %v12682, %v12723
        %v12778 = vmul.f32 %v12686, %v12719
        %v12779 = vmul.f32 %v12688, %v12723
        %v12780 = vmul.f32 %v12690, %v12719
        %v12781 = vmul.f32 %v12692, %v12723
        %v12782 = vmul.f32 %v12696, %v12719
        %v12783 = vmul.f32 %v12698, %v12723
        %v12784 = vmul.f32 %v12700, %v12719
        %v12785 = vmul.f32 %v12702, %v12723
        %v12786 = vmul.f32 %v12706, %v12719
        %v12787 = vmul.f32 %v12708, %v12723
        %v12788 = vmul.f32 %v12710, %v12719
        %v12789 = vmul.f32 %v12712, %v12723
        %v12790 = vld [vmem:[#allocation14] sm:$0x3]
        %v12792 = vlaneseq
        %v12793 = vshrl.u32 %v12792, 7
        %v12794 = vsub.s32 0, %v12793
        %v12795 = vrot.slane %v12790, %v12794
        %v12796 = vlaneseq
        %v12797 = vshrl.u32 %v12796, 7
        %v12798 = vsub.s32 1, %v12797
        %v12799 = vrot.slane %v12790, %v12798
        %v12802 = vadd.f32 %v12726, %v12795
        %v12803 = vadd.f32 %v12727, %v12799
        %v12804 = vadd.f32 %v12728, %v12795
        %v12805 = vadd.f32 %v12729, %v12799
        %v12806 = vadd.f32 %v12730, %v12795
        %v12807 = vadd.f32 %v12731, %v12799
        %v12808 = vadd.f32 %v12732, %v12795
        %v12809 = vadd.f32 %v12733, %v12799
        %v12810 = vadd.f32 %v12734, %v12795
        %v12811 = vadd.f32 %v12735, %v12799
        %v12812 = vadd.f32 %v12736, %v12795
        %v12813 = vadd.f32 %v12737, %v12799
        %v12814 = vadd.f32 %v12738, %v12795
        %v12815 = vadd.f32 %v12739, %v12799
        %v12816 = vadd.f32 %v12740, %v12795
        %v12817 = vadd.f32 %v12741, %v12799
        %v12818 = vadd.f32 %v12742, %v12795
        %v12819 = vadd.f32 %v12743, %v12799
        %v12820 = vadd.f32 %v12744, %v12795
        %v12821 = vadd.f32 %v12745, %v12799
        %v12822 = vadd.f32 %v12746, %v12795
        %v12823 = vadd.f32 %v12747, %v12799
        %v12824 = vadd.f32 %v12748, %v12795
        %v12825 = vadd.f32 %v12749, %v12799
        %v12826 = vadd.f32 %v12750, %v12795
        %v12827 = vadd.f32 %v12751, %v12799
        %v12828 = vadd.f32 %v12752, %v12795
        %v12829 = vadd.f32 %v12753, %v12799
        %v12830 = vadd.f32 %v12754, %v12795
        %v12831 = vadd.f32 %v12755, %v12799
        %v12832 = vadd.f32 %v12756, %v12795
        %v12833 = vadd.f32 %v12757, %v12799
        %v12834 = vadd.f32 %v12758, %v12795
        %v12835 = vadd.f32 %v12759, %v12799
        %v12836 = vadd.f32 %v12760, %v12795
        %v12837 = vadd.f32 %v12761, %v12799
        %v12838 = vadd.f32 %v12762, %v12795
        %v12839 = vadd.f32 %v12763, %v12799
        %v12840 = vadd.f32 %v12764, %v12795
        %v12841 = vadd.f32 %v12765, %v12799
        %v12842 = vadd.f32 %v12766, %v12795
        %v12843 = vadd.f32 %v12767, %v12799
        %v12844 = vadd.f32 %v12768, %v12795
        %v12845 = vadd.f32 %v12769, %v12799
        %v12846 = vadd.f32 %v12770, %v12795
        %v12847 = vadd.f32 %v12771, %v12799
        %v12848 = vadd.f32 %v12772, %v12795
        %v12849 = vadd.f32 %v12773, %v12799
        %v12850 = vadd.f32 %v12774, %v12795
        %v12851 = vadd.f32 %v12775, %v12799
        %v12852 = vadd.f32 %v12776, %v12795
        %v12853 = vadd.f32 %v12777, %v12799
        %v12854 = vadd.f32 %v12778, %v12795
        %v12855 = vadd.f32 %v12779, %v12799
        %v12856 = vadd.f32 %v12780, %v12795
        %v12857 = vadd.f32 %v12781, %v12799
        %v12858 = vadd.f32 %v12782, %v12795
        %v12859 = vadd.f32 %v12783, %v12799
        %v12860 = vadd.f32 %v12784, %v12795
        %v12861 = vadd.f32 %v12785, %v12799
        %v12862 = vadd.f32 %v12786, %v12795
        %v12863 = vadd.f32 %v12787, %v12799
        %v12864 = vadd.f32 %v12788, %v12795
        %v12865 = vadd.f32 %v12789, %v12799
        %v12866 = vmax.f32 %v12802, 0.0
        %v12867 = vmax.f32 %v12803, 0.0
        %v12868 = vmax.f32 %v12804, 0.0
        %v12869 = vmax.f32 %v12805, 0.0
        %v12870 = vmax.f32 %v12806, 0.0
        %v12871 = vmax.f32 %v12807, 0.0
        %v12872 = vmax.f32 %v12808, 0.0
        %v12873 = vmax.f32 %v12809, 0.0
        %v12874 = vmax.f32 %v12810, 0.0
        %v12875 = vmax.f32 %v12811, 0.0
        %v12876 = vmax.f32 %v12812, 0.0
        %v12877 = vmax.f32 %v12813, 0.0
        %v12878 = vmax.f32 %v12814, 0.0
        %v12879 = vmax.f32 %v12815, 0.0
        %v12880 = vmax.f32 %v12816, 0.0
        %v12881 = vmax.f32 %v12817, 0.0
        %v12882 = vmax.f32 %v12818, 0.0
        %v12883 = vmax.f32 %v12819, 0.0
        %v12884 = vmax.f32 %v12820, 0.0
        %v12885 = vmax.f32 %v12821, 0.0
        %v12886 = vmax.f32 %v12822, 0.0
        %v12887 = vmax.f32 %v12823, 0.0
        %v12888 = vmax.f32 %v12824, 0.0
        %v12889 = vmax.f32 %v12825, 0.0
        %v12890 = vmax.f32 %v12826, 0.0
        %v12891 = vmax.f32 %v12827, 0.0
        %v12892 = vmax.f32 %v12828, 0.0
        %v12893 = vmax.f32 %v12829, 0.0
        %v12894 = vmax.f32 %v12830, 0.0
        %v12895 = vmax.f32 %v12831, 0.0
        %v12896 = vmax.f32 %v12832, 0.0
        %v12897 = vmax.f32 %v12833, 0.0
        %v12898 = vmax.f32 %v12834, 0.0
        %v12899 = vmax.f32 %v12835, 0.0
        %v12900 = vmax.f32 %v12836, 0.0
        %v12901 = vmax.f32 %v12837, 0.0
        %v12902 = vmax.f32 %v12838, 0.0
        %v12903 = vmax.f32 %v12839, 0.0
        %v12904 = vmax.f32 %v12840, 0.0
        %v12905 = vmax.f32 %v12841, 0.0
        %v12906 = vmax.f32 %v12842, 0.0
        %v12907 = vmax.f32 %v12843, 0.0
        %v12908 = vmax.f32 %v12844, 0.0
        %v12909 = vmax.f32 %v12845, 0.0
        %v12910 = vmax.f32 %v12846, 0.0
        %v12911 = vmax.f32 %v12847, 0.0
        %v12912 = vmax.f32 %v12848, 0.0
        %v12913 = vmax.f32 %v12849, 0.0
        %v12914 = vmax.f32 %v12850, 0.0
        %v12915 = vmax.f32 %v12851, 0.0
        %v12916 = vmax.f32 %v12852, 0.0
        %v12917 = vmax.f32 %v12853, 0.0
        %v12918 = vmax.f32 %v12854, 0.0
        %v12919 = vmax.f32 %v12855, 0.0
        %v12920 = vmax.f32 %v12856, 0.0
        %v12921 = vmax.f32 %v12857, 0.0
        %v12922 = vmax.f32 %v12858, 0.0
        %v12923 = vmax.f32 %v12859, 0.0
        %v12924 = vmax.f32 %v12860, 0.0
        %v12925 = vmax.f32 %v12861, 0.0
        %v12926 = vmax.f32 %v12862, 0.0
        %v12927 = vmax.f32 %v12863, 0.0
        %v12928 = vmax.f32 %v12864, 0.0
        %v12929 = vmax.f32 %v12865, 0.0
        %v12930 = vld [vmem:[%s7] sm:$0xff]
        %v12931 = vld [vmem:[%s7 + $0x8] sm:$0xff]
        %v12932 = vld [vmem:[%s7 + $0x10] sm:$0xff]
        %v12933 = vld [vmem:[%s7 + $0x18] sm:$0xff]
        %v12934 = vld [vmem:[%s7 + $0x20] sm:$0xff]
        %v12935 = vld [vmem:[%s7 + $0x28] sm:$0xff]
        %v12936 = vld [vmem:[%s7 + $0x30] sm:$0xff]
        %v12937 = vld [vmem:[%s7 + $0x38] sm:$0xff]
        %v12938 = vld [vmem:[%s7 + $0x40] sm:$0xff]
        %v12939 = vld [vmem:[%s7 + $0x48] sm:$0xff]
        %v12940 = vld [vmem:[%s7 + $0x50] sm:$0xff]
        %v12941 = vld [vmem:[%s7 + $0x58] sm:$0xff]
        %v12942 = vld [vmem:[%s7 + $0x60] sm:$0xff]
        %v12943 = vld [vmem:[%s7 + $0x68] sm:$0xff]
        %v12944 = vld [vmem:[%s7 + $0x70] sm:$0xff]
        %v12945 = vld [vmem:[%s7 + $0x78] sm:$0xff]
        %v12946 = vld [vmem:[%s7 + $0x80] sm:$0xff]
        %v12947 = vld [vmem:[%s7 + $0x88] sm:$0xff]
        %v12948 = vld [vmem:[%s7 + $0x90] sm:$0xff]
        %v12949 = vld [vmem:[%s7 + $0x98] sm:$0xff]
        %v12950 = vld [vmem:[%s7 + $0xa0] sm:$0xff]
        %v12951 = vld [vmem:[%s7 + $0xa8] sm:$0xff]
        %v12952 = vld [vmem:[%s7 + $0xb0] sm:$0xff]
        %v12953 = vld [vmem:[%s7 + $0xb8] sm:$0xff]
        %v12954 = vld [vmem:[%s7 + $0xc0] sm:$0xff]
        %v12955 = vld [vmem:[%s7 + $0xc8] sm:$0xff]
        %v12956 = vld [vmem:[%s7 + $0xd0] sm:$0xff]
        %v12957 = vld [vmem:[%s7 + $0xd8] sm:$0xff]
        %v12958 = vld [vmem:[%s7 + $0xe0] sm:$0xff]
        %v12959 = vld [vmem:[%s7 + $0xe8] sm:$0xff]
        %v12960 = vld [vmem:[%s7 + $0xf0] sm:$0xff]
        %v12961 = vld [vmem:[%s7 + $0xf8] sm:$0xff]
        %v12962 = vld [vmem:[#allocation15] sm:$0x1]
        %v12964 = vlaneseq
        %v12965 = vshrl.u32 %v12964, 7
        %v12966 = vsub.s32 0, %v12965
        %v12967 = vrot.slane %v12962, %v12966
        %12969 = vmatprep.subr.mxu0 0.0
        %12970 = vmatpush1.msra.mxu0 %v12930
        %12971 = vmatprep.subr.mxu0 0.0
        %12972 = vmatpush1.msra.mxu0 %v12931
        %12973 = vmatprep.subr.mxu0 0.0
        %12974 = vmatpush1.msra.mxu0 %v12932
        %12975 = vmatprep.subr.mxu0 0.0
        %12976 = vmatpush1.msra.mxu0 %v12933
        %12977 = vmatprep.subr.mxu0 0.0
        %12978 = vmatpush1.msra.mxu0 %v12934
        %12979 = vmatprep.subr.mxu0 0.0
        %12980 = vmatpush1.msra.mxu0 %v12935
        %12981 = vmatprep.subr.mxu0 0.0
        %12982 = vmatpush1.msra.mxu0 %v12936
        %12983 = vmatprep.subr.mxu0 0.0
        %12984 = vmatpush1.msra.mxu0 %v12937
        %12985 = vmatprep.subr.mxu0 0.0
        %12986 = vmatpush1.msra.mxu0 %v12938
        %12987 = vmatprep.subr.mxu0 0.0
        %12988 = vmatpush1.msra.mxu0 %v12939
        %12989 = vmatprep.subr.mxu0 0.0
        %12990 = vmatpush1.msra.mxu0 %v12940
        %12991 = vmatprep.subr.mxu0 0.0
        %12992 = vmatpush1.msra.mxu0 %v12941
        %12993 = vmatprep.subr.mxu0 0.0
        %12994 = vmatpush1.msra.mxu0 %v12942
        %12995 = vmatprep.subr.mxu0 0.0
        %12996 = vmatpush1.msra.mxu0 %v12943
        %12997 = vmatprep.subr.mxu0 0.0
        %12998 = vmatpush1.msra.mxu0 %v12944
        %12999 = vmatprep.subr.mxu0 0.0
        %13000 = vmatpush1.msra.mxu0 %v12945
        %13001 = vmatprep.subr.mxu0 0.0
        %13002 = vmatpush1.msra.mxu0 %v12946
        %13003 = vmatprep.subr.mxu0 0.0
        %13004 = vmatpush1.msra.mxu0 %v12947
        %13005 = vmatprep.subr.mxu0 0.0
        %13006 = vmatpush1.msra.mxu0 %v12948
        %13007 = vmatprep.subr.mxu0 0.0
        %13008 = vmatpush1.msra.mxu0 %v12949
        %13009 = vmatprep.subr.mxu0 0.0
        %13010 = vmatpush1.msra.mxu0 %v12950
        %13011 = vmatprep.subr.mxu0 0.0
        %13012 = vmatpush1.msra.mxu0 %v12951
        %13013 = vmatprep.subr.mxu0 0.0
        %13014 = vmatpush1.msra.mxu0 %v12952
        %13015 = vmatprep.subr.mxu0 0.0
        %13016 = vmatpush1.msra.mxu0 %v12953
        %13017 = vmatprep.subr.mxu0 0.0
        %13018 = vmatpush1.msra.mxu0 %v12954
        %13019 = vmatprep.subr.mxu0 0.0
        %13020 = vmatpush1.msra.mxu0 %v12955
        %13021 = vmatprep.subr.mxu0 0.0
        %13022 = vmatpush1.msra.mxu0 %v12956
        %13023 = vmatprep.subr.mxu0 0.0
        %13024 = vmatpush1.msra.mxu0 %v12957
        %13025 = vmatprep.subr.mxu0 0.0
        %13026 = vmatpush1.msra.mxu0 %v12958
        %13027 = vmatprep.subr.mxu0 0.0
        %13028 = vmatpush1.msra.mxu0 %v12959
        %13029 = vmatprep.subr.mxu0 0.0
        %13030 = vmatpush1.msra.mxu0 %v12960
        %13031 = vmatprep.subr.mxu0 0.0
        %13032 = vmatpush1.msra.mxu0 %v12961
        %13033 = vmatprep.mubr.f32.mxu0 %v12867
        %13034 = vmatmul.mubr.f32.gmra.mrb[0].mxu0 %v12866
        %v13035 = vpop.f32.mrb[0].mxu0
        %v13036 = vadd.f32 %v12967, %v13035
        %v13037 = vpop.f32.mrb[0].mxu0
        %13038 = vmatprep.mubr.f32.mxu0 %v12869
        %13039 = vmatmul.mubr.f32.gmra.mrb[0].mxu0 %v12868
        %v13040 = vpop.f32.mrb[0].mxu0
        %v13041 = vadd.f32 %v12967, %v13040
        %v13042 = vpop.f32.mrb[0].mxu0
        %13043 = vmatprep.mubr.f32.mxu0 %v12871
        %13044 = vmatmul.mubr.f32.gmra.mrb[0].mxu0 %v12870
        %v13045 = vpop.f32.mrb[0].mxu0
        %v13046 = vadd.f32 %v12967, %v13045
        %v13047 = vpop.f32.mrb[0].mxu0
        %13048 = vmatprep.mubr.f32.mxu0 %v12873
        %13049 = vmatmul.mubr.f32.gmra.mrb[0].mxu0 %v12872
        %v13050 = vpop.f32.mrb[0].mxu0
        %v13051 = vadd.f32 %v12967, %v13050
        %v13052 = vpop.f32.mrb[0].mxu0
        %13053 = vmatprep.mubr.f32.mxu0 %v12875
        %13054 = vmatmul.mubr.f32.gmra.mrb[0].mxu0 %v12874
        %v13055 = vpop.f32.mrb[0].mxu0
        %v13056 = vadd.f32 %v12967, %v13055
        %v13057 = vpop.f32.mrb[0].mxu0
        %13058 = vmatprep.mubr.f32.mxu0 %v12877
        %13059 = vmatmul.mubr.f32.gmra.mrb[0].mxu0 %v12876
        %v13060 = vpop.f32.mrb[0].mxu0
        %v13061 = vadd.f32 %v12967, %v13060
        %v13062 = vpop.f32.mrb[0].mxu0
        %13063 = vmatprep.mubr.f32.mxu0 %v12879
        %13064 = vmatmul.mubr.f32.gmra.mrb[0].mxu0 %v12878
        %v13065 = vpop.f32.mrb[0].mxu0
        %v13066 = vadd.f32 %v12967, %v13065
        %v13067 = vpop.f32.mrb[0].mxu0
        %13068 = vmatprep.mubr.f32.mxu0 %v12881
        %13069 = vmatmul.mubr.f32.gmra.mrb[0].mxu0 %v12880
        %v13070 = vpop.f32.mrb[0].mxu0
        %v13071 = vadd.f32 %v12967, %v13070
        %v13072 = vpop.f32.mrb[0].mxu0
        %13073 = vmatprep.mubr.f32.mxu0 %v12883
        %13074 = vmatmul.mubr.f32.gmra.mrb[0].mxu0 %v12882
        %v13075 = vpop.f32.mrb[0].mxu0
        %v13076 = vadd.f32 %v12967, %v13075
        %v13077 = vpop.f32.mrb[0].mxu0
        %13078 = vmatprep.mubr.f32.mxu0 %v12885
        %13079 = vmatmul.mubr.f32.gmra.mrb[0].mxu0 %v12884
        %v13080 = vpop.f32.mrb[0].mxu0
        %v13081 = vadd.f32 %v12967, %v13080
        %v13082 = vpop.f32.mrb[0].mxu0
        %13083 = vmatprep.mubr.f32.mxu0 %v12887
        %13084 = vmatmul.mubr.f32.gmra.mrb[0].mxu0 %v12886
        %v13085 = vpop.f32.mrb[0].mxu0
        %v13086 = vadd.f32 %v12967, %v13085
        %v13087 = vpop.f32.mrb[0].mxu0
        %13088 = vmatprep.mubr.f32.mxu0 %v12889
        %13089 = vmatmul.mubr.f32.gmra.mrb[0].mxu0 %v12888
        %v13090 = vpop.f32.mrb[0].mxu0
        %v13091 = vadd.f32 %v12967, %v13090
        %v13092 = vpop.f32.mrb[0].mxu0
        %13093 = vmatprep.mubr.f32.mxu0 %v12891
        %13094 = vmatmul.mubr.f32.gmra.mrb[0].mxu0 %v12890
        %v13095 = vpop.f32.mrb[0].mxu0
        %v13096 = vadd.f32 %v12967, %v13095
        %v13097 = vpop.f32.mrb[0].mxu0
        %13098 = vmatprep.mubr.f32.mxu0 %v12893
        %13099 = vmatmul.mubr.f32.gmra.mrb[0].mxu0 %v12892
        %v13100 = vpop.f32.mrb[0].mxu0
        %v13101 = vadd.f32 %v12967, %v13100
        %v13102 = vpop.f32.mrb[0].mxu0
        %13103 = vmatprep.mubr.f32.mxu0 %v12895
        %13104 = vmatmul.mubr.f32.gmra.mrb[0].mxu0 %v12894
        %v13105 = vpop.f32.mrb[0].mxu0
        %v13106 = vadd.f32 %v12967, %v13105
        %v13107 = vpop.f32.mrb[0].mxu0
        %13108 = vmatprep.mubr.f32.mxu0 %v12897
        %13109 = vmatmul.mubr.f32.gmra.mrb[0].mxu0 %v12896
        %v13110 = vpop.f32.mrb[0].mxu0
        %v13111 = vadd.f32 %v12967, %v13110
        %v13112 = vpop.f32.mrb[0].mxu0
        %13113 = vmatprep.mubr.f32.mxu0 %v12899
        %13114 = vmatmul.mubr.f32.gmra.mrb[0].mxu0 %v12898
        %v13115 = vpop.f32.mrb[0].mxu0
        %v13116 = vadd.f32 %v12967, %v13115
        %v13117 = vpop.f32.mrb[0].mxu0
        %13118 = vmatprep.mubr.f32.mxu0 %v12901
        %13119 = vmatmul.mubr.f32.gmra.mrb[0].mxu0 %v12900
        %v13120 = vpop.f32.mrb[0].mxu0
        %v13121 = vadd.f32 %v12967, %v13120
        %v13122 = vpop.f32.mrb[0].mxu0
        %13123 = vmatprep.mubr.f32.mxu0 %v12903
        %13124 = vmatmul.mubr.f32.gmra.mrb[0].mxu0 %v12902
        %v13125 = vpop.f32.mrb[0].mxu0
        %v13126 = vadd.f32 %v12967, %v13125
        %v13127 = vpop.f32.mrb[0].mxu0
        %13128 = vmatprep.mubr.f32.mxu0 %v12905
        %13129 = vmatmul.mubr.f32.gmra.mrb[0].mxu0 %v12904
        %v13130 = vpop.f32.mrb[0].mxu0
        %v13131 = vadd.f32 %v12967, %v13130
        %v13132 = vpop.f32.mrb[0].mxu0
        %13133 = vmatprep.mubr.f32.mxu0 %v12907
        %13134 = vmatmul.mubr.f32.gmra.mrb[0].mxu0 %v12906
        %v13135 = vpop.f32.mrb[0].mxu0
        %v13136 = vadd.f32 %v12967, %v13135
        %v13137 = vpop.f32.mrb[0].mxu0
        %13138 = vmatprep.mubr.f32.mxu0 %v12909
        %13139 = vmatmul.mubr.f32.gmra.mrb[0].mxu0 %v12908
        %v13140 = vpop.f32.mrb[0].mxu0
        %v13141 = vadd.f32 %v12967, %v13140
        %v13142 = vpop.f32.mrb[0].mxu0
        %13143 = vmatprep.mubr.f32.mxu0 %v12911
        %13144 = vmatmul.mubr.f32.gmra.mrb[0].mxu0 %v12910
        %v13145 = vpop.f32.mrb[0].mxu0
        %v13146 = vadd.f32 %v12967, %v13145
        %v13147 = vpop.f32.mrb[0].mxu0
        %13148 = vmatprep.mubr.f32.mxu0 %v12913
        %13149 = vmatmul.mubr.f32.gmra.mrb[0].mxu0 %v12912
        %v13150 = vpop.f32.mrb[0].mxu0
        %v13151 = vadd.f32 %v12967, %v13150
        %v13152 = vpop.f32.mrb[0].mxu0
        %13153 = vmatprep.mubr.f32.mxu0 %v12915
        %13154 = vmatmul.mubr.f32.gmra.mrb[0].mxu0 %v12914
        %v13155 = vpop.f32.mrb[0].mxu0
        %v13156 = vadd.f32 %v12967, %v13155
        %v13157 = vpop.f32.mrb[0].mxu0
        %13158 = vmatprep.mubr.f32.mxu0 %v12917
        %13159 = vmatmul.mubr.f32.gmra.mrb[0].mxu0 %v12916
        %v13160 = vpop.f32.mrb[0].mxu0
        %v13161 = vadd.f32 %v12967, %v13160
        %v13162 = vpop.f32.mrb[0].mxu0
        %13163 = vmatprep.mubr.f32.mxu0 %v12919
        %13164 = vmatmul.mubr.f32.gmra.mrb[0].mxu0 %v12918
        %v13165 = vpop.f32.mrb[0].mxu0
        %v13166 = vadd.f32 %v12967, %v13165
        %v13167 = vpop.f32.mrb[0].mxu0
        %13168 = vmatprep.mubr.f32.mxu0 %v12921
        %13169 = vmatmul.mubr.f32.gmra.mrb[0].mxu0 %v12920
        %v13170 = vpop.f32.mrb[0].mxu0
        %v13171 = vadd.f32 %v12967, %v13170
        %v13172 = vpop.f32.mrb[0].mxu0
        %13173 = vmatprep.mubr.f32.mxu0 %v12923
        %13174 = vmatmul.mubr.f32.gmra.mrb[0].mxu0 %v12922
        %v13175 = vpop.f32.mrb[0].mxu0
        %v13176 = vadd.f32 %v12967, %v13175
        %v13177 = vpop.f32.mrb[0].mxu0
        %13178 = vmatprep.mubr.f32.mxu0 %v12925
        %13179 = vmatmul.mubr.f32.gmra.mrb[0].mxu0 %v12924
        %v13180 = vpop.f32.mrb[0].mxu0
        %v13181 = vadd.f32 %v12967, %v13180
        %v13182 = vpop.f32.mrb[0].mxu0
        %13183 = vmatprep.mubr.f32.mxu0 %v12927
        %13184 = vmatmul.mubr.f32.gmra.mrb[0].mxu0 %v12926
        %v13185 = vpop.f32.mrb[0].mxu0
        %v13186 = vadd.f32 %v12967, %v13185
        %v13187 = vpop.f32.mrb[0].mxu0
        %13188 = vmatprep.mubr.f32.mxu0 %v12929
        %13189 = vmatmul.mubr.f32.gmra.mrb[0].mxu0 %v12928
        %v13190 = vpop.f32.mrb[0].mxu0
        %v13191 = vadd.f32 %v12967, %v13190
        %v13192 = vpop.f32.mrb[0].mxu0
        %13193 = vdwg.mxu0
        %vm13194 = vcmask 261120
        %13195 = vst.msk [vmem:[%s444] sm:$0xff] %vm13194, %v13036
        %13196 = vst.msk [vmem:[%s444 + $0x8] sm:$0xff] %vm13194, %v13041
        %13197 = vst.msk [vmem:[%s444 + $0x10] sm:$0xff] %vm13194, %v13046
        %13198 = vst.msk [vmem:[%s444 + $0x18] sm:$0xff] %vm13194, %v13051
        %13199 = vst.msk [vmem:[%s444 + $0x20] sm:$0xff] %vm13194, %v13056
        %13200 = vst.msk [vmem:[%s444 + $0x28] sm:$0xff] %vm13194, %v13061
        %13201 = vst.msk [vmem:[%s444 + $0x30] sm:$0xff] %vm13194, %v13066
        %13202 = vst.msk [vmem:[%s444 + $0x38] sm:$0xff] %vm13194, %v13071
        %13203 = vst.msk [vmem:[%s444 + $0x40] sm:$0xff] %vm13194, %v13076
        %13204 = vst.msk [vmem:[%s444 + $0x48] sm:$0xff] %vm13194, %v13081
        %13205 = vst.msk [vmem:[%s444 + $0x50] sm:$0xff] %vm13194, %v13086
        %13206 = vst.msk [vmem:[%s444 + $0x58] sm:$0xff] %vm13194, %v13091
        %13207 = vst.msk [vmem:[%s444 + $0x60] sm:$0xff] %vm13194, %v13096
        %13208 = vst.msk [vmem:[%s444 + $0x68] sm:$0xff] %vm13194, %v13101
        %13209 = vst.msk [vmem:[%s444 + $0x70] sm:$0xff] %vm13194, %v13106
        %13210 = vst.msk [vmem:[%s444 + $0x78] sm:$0xff] %vm13194, %v13111
        %13211 = vst.msk [vmem:[%s444 + $0x80] sm:$0xff] %vm13194, %v13116
        %13212 = vst.msk [vmem:[%s444 + $0x88] sm:$0xff] %vm13194, %v13121
        %13213 = vst.msk [vmem:[%s444 + $0x90] sm:$0xff] %vm13194, %v13126
        %13214 = vst.msk [vmem:[%s444 + $0x98] sm:$0xff] %vm13194, %v13131
        %13215 = vst.msk [vmem:[%s444 + $0xa0] sm:$0xff] %vm13194, %v13136
        %13216 = vst.msk [vmem:[%s444 + $0xa8] sm:$0xff] %vm13194, %v13141
        %13217 = vst.msk [vmem:[%s444 + $0xb0] sm:$0xff] %vm13194, %v13146
        %13218 = vst.msk [vmem:[%s444 + $0xb8] sm:$0xff] %vm13194, %v13151
        %13219 = vst.msk [vmem:[%s444 + $0xc0] sm:$0xff] %vm13194, %v13156
        %13220 = vst.msk [vmem:[%s444 + $0xc8] sm:$0xff] %vm13194, %v13161
        %13221 = vst.msk [vmem:[%s444 + $0xd0] sm:$0xff] %vm13194, %v13166
        %13222 = vst.msk [vmem:[%s444 + $0xd8] sm:$0xff] %vm13194, %v13171
        %13223 = vst.msk [vmem:[%s444 + $0xe0] sm:$0xff] %vm13194, %v13176
        %13224 = vst.msk [vmem:[%s444 + $0xe8] sm:$0xff] %vm13194, %v13181
        %13225 = vst.msk [vmem:[%s444 + $0xf0] sm:$0xff] %vm13194, %v13186
        %13226 = vst.msk [vmem:[%s444 + $0xf8] sm:$0xff] %vm13194, %v13191
        %p13227 = scmp.lt.s32.totalorder %s27, 1
        %s13228 = scalar_select %p13227, %s27, 1
        %s13229 = smul.addr %s13228, 32
        %s13230 = smul.addr %s13229, 8
        %s13231 = scalar_lea.vmem %s9, %s13230
        // Predicated region
        $region89: #{pixel_shuffle_decoder.1} parent=55 // pred_check
          %p13232 = pneg %p239
        $region90: #{pixel_shuffle_decoder.1} parent=55 // pred_check_branch
          %13234 = sbr.rel (%p13232) target = $region92
        $region91: #{pixel_shuffle_decoder.1} parent=55 // pred_region
          _
        $region92: #{pixel_shuffle_decoder.1} parent=55 // pred_fallthru
          _
      $region56: #{pixel_shuffle_decoder.1} parent=5 // pred_fallthru
        _
      %p13235 = scmp.le.s32.totalorder 2, %s22
      // Predicated region
      $region93: #{pixel_shuffle_decoder.1} parent=5 // pred_check
        %p13236 = pneg %p13235
      $region94: #{pixel_shuffle_decoder.1} parent=5 // pred_check_branch
        %13238 = sbr.rel (%p13236) target = $region96
      $region95: #{pixel_shuffle_decoder.1} parent=5 // pred_region
        %s13239 = ssub.s32 %s22, 2
        // Predicated region
        $region97: #{pixel_shuffle_decoder.1} parent=95 // pred_check
          %p13240 = pneg %p245
        $region98: #{pixel_shuffle_decoder.1} parent=95 // pred_check_branch
          %13242 = sbr.rel (%p13240) target = $region100
        $region99: #{pixel_shuffle_decoder.1} parent=95 // pred_region
          %p13243 = scmp.lt.s32.totalorder %s28, 1
          %s13244 = scalar_select %p13243, %s28, 1
          %s13245 = smul.addr %s13244, 32
          %s13246 = smul.addr %s13245, 8
          %s13247 = scalar_lea.vmem %s9, %s13246
        $region100: #{pixel_shuffle_decoder.1} parent=95 // pred_fallthru
          _
      $region96: #{pixel_shuffle_decoder.1} parent=5 // pred_fallthru
        _
    $region6: #{pixel_shuffle_decoder.1} parent=1 // loop_footer
      %s26 = sadd.s32 1, %s22
    $region7: #{pixel_shuffle_decoder.1} parent=1 // loop_footer_branch
      %21 = sbr.rel target = $region3
    $region8: #{pixel_shuffle_decoder.1} parent=1 // loop_exit
      _
    %13248 = vsyncpa [#allocation5], 1
    %s13249 = scalar_lea.sflag [#allocation5], 1
    %13250 = vsyncpa %s13249, 1
    %13251 = vsyncpa [#allocation7], 1
    %13252 = vsyncpa [#allocation10], 1
    %13253 = vsyncpa [#allocation13], 1
    %13254 = vsyncpa [#allocation16], 1

</llo_original>
